<compile_context>
chip_gen: v7x
topology: tpu7x:2x2x1
jax: 0.10.0
libtpu: 0.0.40
codegen_flags: <defaults>
</compile_context>

<pallas_src>
import functools

import jax
import jax.numpy as jnp
import numpy as np
from jax.experimental import pallas as pl
from jax.experimental.pallas import tpu as pltpu


# ----------------------------------------------------------------------------
# Fused per-batch-element kernel:
#   conv1+relu+pool -> conv2+relu+pool -> t_conv1+relu -> t_conv2+sigmoid
# ----------------------------------------------------------------------------
def _cae_fused_kernel(x_ref, w1_ref, b1_ref, w2_ref, b2_ref,
                      wt1_ref, bt1_ref, wt2_ref, bt2_ref,
                      o_ref, pad1_ref, pad2_ref, *, H, W):
    f32, bf16 = jnp.float32, jnp.bfloat16
    C0, C1, C2 = 3, 16, 4            # input / conv1 / conv2 channel counts
    H1, W1 = H // 2, W // 2          # after pool1
    H2, W2 = H // 4, W // 4          # after pool2
    M2 = H2 * W2

    def zero_border(pad_ref, h, w, c):
        # zero only the 1-px border; the interior is fully overwritten every step.
        pad_ref[0:1, :, :] = jnp.zeros((1, w + 2, c), bf16)
        pad_ref[h + 1:h + 2, :, :] = jnp.zeros((1, w + 2, c), bf16)
        pad_ref[:, 0:1, :] = jnp.zeros((h + 2, 1, c), bf16)
        pad_ref[:, w + 1:w + 2, :] = jnp.zeros((h + 2, 1, c), bf16)

    def conv3x3_relu(pad_ref, w_ref, b_row, h, w, cin, cout):
        # 9 per-tap MXU dots accumulated in f32 (no im2col lane-concat on the XLU/VPU).
        acc = jnp.zeros((h * w, cout), dtype=f32)
        for dy in range(3):
            for dx in range(3):
                tap = pad_ref[dy:dy + h, dx:dx + w, :].reshape(h * w, cin)
                acc = acc + jnp.dot(tap, w_ref[3 * dy + dx],
                                    preferred_element_type=f32)
        return jnp.maximum(acc + b_row, 0.0)

    def maxpool2x2(y, h, w, c):
        # rows of y ordered (row, col): pool along cols, then along rows.
        y = y.reshape(h * (w // 2), 2, c)
        y = jnp.maximum(y[:, 0, :], y[:, 1, :])                    # (h*w/2, c)
        y = y.reshape(h // 2, 2, w // 2, c)
        return jnp.maximum(y[:, 0, :, :], y[:, 1, :, :])           # (h/2, w/2, c)

    # -------- encoder: conv1 + relu + pool ------------------------------------
    zero_border(pad1_ref, H, W, C0)
    pad1_ref[1:H + 1, 1:W + 1, :] = x_ref[0].astype(bf16)
    h1 = conv3x3_relu(pad1_ref, w1_ref, b1_ref[...], H, W, C0, C1)     # (H*W, 16)
    p1 = maxpool2x2(h1, H, W, C1)                                      # (H1, W1, 16)

    # -------- encoder: conv2 + relu + pool ------------------------------------
    zero_border(pad2_ref, H1, W1, C1)
    pad2_ref[1:H1 + 1, 1:W1 + 1, :] = p1.astype(bf16)
    h2 = conv3x3_relu(pad2_ref, w2_ref, b2_ref[...], H1, W1, C1, C2)   # (H1*W1, 4)
    p2 = maxpool2x2(h2, H1, W1, C2).reshape(M2, C2).astype(bf16)       # (M2, 4)

    # -------- decoder: t_conv1 (k=2, s=2) + relu -------------------------------
    # stride == kernel -> no spatial overlap: fold the 2x2 taps into lanes (M2, 4*16).
    h3 = jnp.dot(p2, wt1_ref[...], preferred_element_type=f32)         # (M2, 64)
    h3 = jnp.maximum(h3 + bt1_ref[...], 0.0).astype(bf16)

    # -------- decoder: t_conv2 (k=2, s=2) + sigmoid ----------------------------
    # block-diagonal weight zero-padded to 128 output lanes -> the only HBM store is
    # one unmasked, lane-dense (M2, 128) slab.
    z = jnp.dot(h3, wt2_ref[...], preferred_element_type=f32) + bt2_ref[...]
    o_ref[...] = (1.0 / (1.0 + jnp.exp(-z))).reshape(1, M2, 128)       # exact sigmoid


# ----------------------------------------------------------------------------
# Wrapper: NCHW in / NCHW out, weight flattening, batch-gridded pallas_call
# ----------------------------------------------------------------------------
def conv_autoencoder_forward(x_nchw, p):
    x = jnp.transpose(x_nchw.astype(jnp.float32), (0, 2, 3, 1))        # NCHW -> NHWC
    N, H, W, Cin = x.shape
    if Cin != 3 or H % 4 != 0 or W % 4 != 0:
        raise ValueError("expects 3 input channels and H, W divisible by 4")
    H2, W2 = H // 4, W // 4
    M2 = H2 * W2

    # ---- one-time (tiny) weight/bias re-layouts; MXU operands in bf16 -------
    # conv weights (Cout, Cin, 3, 3) -> (kh, kw, Cin, Cout) -> (9, Cin, Cout)
    w1 = jnp.transpose(p["conv1_w"], (2, 3, 1, 0)).reshape(9, 3, 16).astype(jnp.bfloat16)
    w2 = jnp.transpose(p["conv2_w"], (2, 3, 1, 0)).reshape(9, 16, 4).astype(jnp.bfloat16)
    b1 = p["conv1_b"].reshape(1, 16)
    b2 = p["conv2_b"].reshape(1, 4)
    # t_conv1 weight (Cin, Cout, 2, 2) -> (Cin, dy, dx, Cout) -> (4, 64)
    wt1 = jnp.transpose(p["tconv1_w"], (0, 2, 3, 1)).reshape(4, 64).astype(jnp.bfloat16)
    bt1 = jnp.tile(p["tconv1_b"], 4).reshape(1, 64)
    # t_conv2 -> (16, 12), block-diag over the 4 t_conv1 taps -> (64, 48),
    # zero-padded to 128 output lanes for an unmasked lane-dense store.
    wt2 = jnp.transpose(p["tconv2_w"], (0, 2, 3, 1)).reshape(16, 12)
    wt2 = jnp.kron(jnp.eye(4, dtype=jnp.float32), wt2)                 # (64, 48)
    wt2 = jnp.pad(wt2, ((0, 0), (0, 128 - 48))).astype(jnp.bfloat16)   # (64, 128)
    bt2 = jnp.pad(jnp.tile(p["tconv2_b"], 16), (0, 128 - 48)).reshape(1, 128)

    kern = functools.partial(_cae_fused_kernel, H=H, W=W)
    full = lambda a: pl.BlockSpec(a.shape, lambda b: (0,) * a.ndim)    # resident weights

    o = pl.pallas_call(
        kern,
        out_shape=jax.ShapeDtypeStruct((N, M2, 128), jnp.float32),
        grid=(N,),
        in_specs=[pl.BlockSpec((1, H, W, 3), lambda b: (b, 0, 0, 0)),
                  full(w1), full(b1), full(w2), full(b2),
                  full(wt1), full(bt1), full(wt2), full(bt2)],
        out_specs=pl.BlockSpec((1, M2, 128), lambda b: (b, 0, 0)),
        scratch_shapes=[
            pltpu.VMEM((H + 2, W + 2, 3), jnp.bfloat16),        # padded conv1 input
            pltpu.VMEM((H // 2 + 2, W // 2 + 2, 16), jnp.bfloat16),  # padded conv2 input
        ],
        compiler_params=pltpu.CompilerParams(
            dimension_semantics=("parallel",),
            vmem_limit_bytes=32 * 1024 * 1024),
    )(x, w1, b1, w2, b2, wt1, bt1, wt2, bt2)

    # wrapper-side (free XLA layout) decode of the lane-dense slab:
    # rows = (i', j'); lanes = (dy1, dx1, dy2, dx2, c); y = 4i'+2dy1+dy2, x = 4j'+2dx1+dx2
    o = o[:, :, :48].reshape(N, H2, W2, 2, 2, 2, 2, 3)
    return jnp.transpose(o, (0, 7, 1, 3, 5, 2, 4, 6)).reshape(N, 3, H, W)


# ----------------------------------------------------------------------------
# Parameters (deterministic, PyTorch-shaped)
# ----------------------------------------------------------------------------
def init_params(key):
    ks = jax.random.split(key, 8)

    def u(k, shape, fan_in):
        bound = float(fan_in) ** -0.5
        return jax.random.uniform(k, shape, jnp.float32, -bound, bound)

    return {
        # nn.Conv2d(3, 16, 3): weight (Cout, Cin, 3, 3)
        "conv1_w": u(ks[0], (16, 3, 3, 3), 3 * 9),
        "conv1_b": u(ks[1], (16,), 3 * 9),
        # nn.Conv2d(16, 4, 3)
        "conv2_w": u(ks[2], (4, 16, 3, 3), 16 * 9),
        "conv2_b": u(ks[3], (4,), 16 * 9),
        # nn.ConvTranspose2d(4, 16, 2, stride=2): weight (Cin, Cout, 2, 2)
        "tconv1_w": u(ks[4], (4, 16, 2, 2), 4 * 4),
        "tconv1_b": u(ks[5], (16,), 4 * 4),
        # nn.ConvTranspose2d(16, 3, 2, stride=2)
        "tconv2_w": u(ks[6], (16, 3, 2, 2), 16 * 4),
        "tconv2_b": u(ks[7], (3,), 16 * 4),
    }


# ----------------------------------------------------------------------------
# Pure-JAX reference (mirrors the PyTorch forward) for a sanity check
# ----------------------------------------------------------------------------
def forward_reference(x_nchw, p):
    x = x_nchw.astype(jnp.float32)

    def conv(x, w, b):
        y = jax.lax.conv_general_dilated(
            x, w, (1, 1), [(1, 1), (1, 1)],
            dimension_numbers=("NCHW", "OIHW", "NCHW"))
        return jax.nn.relu(y + b[None, :, None, None])

    def pool(x):
        return jax.lax.reduce_window(x, -jnp.inf, jax.lax.max,
                                     (1, 1, 2, 2), (1, 1, 2, 2), "VALID")

    def tconv(x, w, b):
        N, _, Hi, Wi = x.shape
        Co = w.shape[1]
        t = jnp.einsum("ncij,coab->noiajb", x, w)
        return t.reshape(N, Co, 2 * Hi, 2 * Wi) + b[None, :, None, None]

    h = pool(conv(x, p["conv1_w"], p["conv1_b"]))
    h = pool(conv(h, p["conv2_w"], p["conv2_b"]))
    h = jax.nn.relu(tconv(h, p["tconv1_w"], p["tconv1_b"]))
    return jax.nn.sigmoid(tconv(h, p["tconv2_w"], p["tconv2_b"]))


if __name__ == "__main__":
    key = jax.random.PRNGKey(0)
    kx, kp = jax.random.split(key)
    x = jax.random.normal(kx, (2, 3, 16, 16), dtype=jnp.float32)
    params = init_params(kp)

    fwd = jax.jit(conv_autoencoder_forward)
    y = jax.block_until_ready(fwd(x, params))
    assert y.shape == (2, 3, 16, 16), y.shape

    ref = forward_reference(x, params)
    np.testing.assert_allclose(np.asarray(y), np.asarray(ref), atol=2e-2, rtol=2e-2)

    print("KERNEL_OK")
</pallas_src>

<mosaic_0001>
module attributes {stable_mosaic.version = 11 : i64} {
  func.func @_cae_fused_kernel(%arg0: i32, %arg1: memref<1x16x16x3xf32, #tpu.memory_space<vmem>>, %arg2: memref<9x3x16xbf16, #tpu.memory_space<vmem>>, %arg3: memref<1x16xf32, #tpu.memory_space<vmem>>, %arg4: memref<9x16x4xbf16, #tpu.memory_space<vmem>>, %arg5: memref<1x4xf32, #tpu.memory_space<vmem>>, %arg6: memref<4x64xbf16, #tpu.memory_space<vmem>>, %arg7: memref<1x64xf32, #tpu.memory_space<vmem>>, %arg8: memref<64x128xbf16, #tpu.memory_space<vmem>>, %arg9: memref<1x128xf32, #tpu.memory_space<vmem>>, %arg10: memref<1x16x128xf32, #tpu.memory_space<vmem>>, %arg11: memref<18x18x3xbf16, #tpu.memory_space<vmem>>, %arg12: memref<10x10x16xbf16, #tpu.memory_space<vmem>>) attributes {dimension_semantics = [#tpu.dimension_semantics<parallel>], iteration_bounds = array<i64: 2>, scalar_prefetch = 0 : i64, scratch_operands = 2 : i64, tpu.core_type = #tpu.core_type<tc>, window_params = [{transform_indices = @transform_0, window_bounds = array<i64: 1, 16, 16, 3>}, {pipeline_mode = #tpu.pipeline_mode<synchronous>, transform_indices = @transform_1, window_bounds = array<i64: 9, 3, 16>}, {pipeline_mode = #tpu.pipeline_mode<synchronous>, transform_indices = @transform_2, window_bounds = array<i64: 1, 16>}, {pipeline_mode = #tpu.pipeline_mode<synchronous>, transform_indices = @transform_3, window_bounds = array<i64: 9, 16, 4>}, {pipeline_mode = #tpu.pipeline_mode<synchronous>, transform_indices = @transform_4, window_bounds = array<i64: 1, 4>}, {pipeline_mode = #tpu.pipeline_mode<synchronous>, transform_indices = @transform_5, window_bounds = array<i64: 4, 64>}, {pipeline_mode = #tpu.pipeline_mode<synchronous>, transform_indices = @transform_6, window_bounds = array<i64: 1, 64>}, {pipeline_mode = #tpu.pipeline_mode<synchronous>, transform_indices = @transform_7, window_bounds = array<i64: 64, 128>}, {pipeline_mode = #tpu.pipeline_mode<synchronous>, transform_indices = @transform_8, window_bounds = array<i64: 1, 128>}, {transform_indices = @transform_9, window_bounds = array<i64: 1, 16, 128>}]} {
    %cst = arith.constant 0.000000e+00 : bf16
    %0 = vector.broadcast %cst : bf16 to vector<1x18x3xbf16>
    %c0 = arith.constant 0 : index
    %c0_0 = arith.constant 0 : index
    %c0_1 = arith.constant 0 : index
    %1 = vector.load %arg11[%c0, %c0_0, %c0_1] : memref<18x18x3xbf16, #tpu.memory_space<vmem>>, vector<1x18x3xbf16>
    tpu.vector_store %arg11[%c0, %c0_0, %c0_1], %0 {strides = array<i32>} : memref<18x18x3xbf16, #tpu.memory_space<vmem>>, vector<1x18x3xbf16>,
    %cst_2 = arith.constant 0.000000e+00 : bf16
    %2 = vector.broadcast %cst_2 : bf16 to vector<1x18x3xbf16>
    %c17 = arith.constant 17 : index
    %c0_3 = arith.constant 0 : index
    %c0_4 = arith.constant 0 : index
    %3 = vector.load %arg11[%c17, %c0_3, %c0_4] : memref<18x18x3xbf16, #tpu.memory_space<vmem>>, vector<1x18x3xbf16>
    tpu.vector_store %arg11[%c17, %c0_3, %c0_4], %2 {strides = array<i32>} : memref<18x18x3xbf16, #tpu.memory_space<vmem>>, vector<1x18x3xbf16>,
    %cst_5 = arith.constant 0.000000e+00 : bf16
    %4 = vector.broadcast %cst_5 : bf16 to vector<18x1x3xbf16>
    %c0_6 = arith.constant 0 : index
    %c0_7 = arith.constant 0 : index
    %c0_8 = arith.constant 0 : index
    %5 = vector.load %arg11[%c0_6, %c0_7, %c0_8] : memref<18x18x3xbf16, #tpu.memory_space<vmem>>, vector<18x1x3xbf16>
    tpu.vector_store %arg11[%c0_6, %c0_7, %c0_8], %4 {strides = array<i32>} : memref<18x18x3xbf16, #tpu.memory_space<vmem>>, vector<18x1x3xbf16>,
    %cst_9 = arith.constant 0.000000e+00 : bf16
    %6 = vector.broadcast %cst_9 : bf16 to vector<18x1x3xbf16>
    %c0_10 = arith.constant 0 : index
    %c17_11 = arith.constant 17 : index
    %c0_12 = arith.constant 0 : index
    %7 = vector.load %arg11[%c0_10, %c17_11, %c0_12] : memref<18x18x3xbf16, #tpu.memory_space<vmem>>, vector<18x1x3xbf16>
    tpu.vector_store %arg11[%c0_10, %c17_11, %c0_12], %6 {strides = array<i32>} : memref<18x18x3xbf16, #tpu.memory_space<vmem>>, vector<18x1x3xbf16>,
    %c0_13 = arith.constant 0 : index
    %c0_14 = arith.constant 0 : index
    %c0_15 = arith.constant 0 : index
    %c0_16 = arith.constant 0 : index
    %8 = vector.load %arg1[%c0_13, %c0_14, %c0_15, %c0_16] : memref<1x16x16x3xf32, #tpu.memory_space<vmem>>, vector<1x16x16x3xf32>
    %9 = vector.shape_cast %8 : vector<1x16x16x3xf32> to vector<16x16x3xf32>
    %10 = arith.truncf %9 : vector<16x16x3xf32> to vector<16x16x3xbf16>
    %c1 = arith.constant 1 : index
    %c1_17 = arith.constant 1 : index
    %c0_18 = arith.constant 0 : index
    %11 = vector.load %arg11[%c1, %c1_17, %c0_18] : memref<18x18x3xbf16, #tpu.memory_space<vmem>>, vector<16x16x3xbf16>
    tpu.vector_store %arg11[%c1, %c1_17, %c0_18], %10 {strides = array<i32>} : memref<18x18x3xbf16, #tpu.memory_space<vmem>>, vector<16x16x3xbf16>,
    %c0_19 = arith.constant 0 : index
    %c0_20 = arith.constant 0 : index
    %12 = vector.load %arg3[%c0_19, %c0_20] : memref<1x16xf32, #tpu.memory_space<vmem>>, vector<1x16xf32>
    %cst_21 = arith.constant 0.000000e+00 : f32
    %13 = vector.broadcast %cst_21 : f32 to vector<256x16xf32>
    %c0_22 = arith.constant 0 : index
    %c0_23 = arith.constant 0 : index
    %c0_24 = arith.constant 0 : index
    %14 = vector.load %arg11[%c0_22, %c0_23, %c0_24] : memref<18x18x3xbf16, #tpu.memory_space<vmem>>, vector<16x16x3xbf16>
    %15 = vector.shape_cast %14 : vector<16x16x3xbf16> to vector<256x3xbf16>
    %c0_25 = arith.constant 0 : index
    %c0_26 = arith.constant 0 : index
    %c0_27 = arith.constant 0 : index
    %16 = vector.load %arg2[%c0_25, %c0_26, %c0_27] : memref<9x3x16xbf16, #tpu.memory_space<vmem>>, vector<1x3x16xbf16>
    %17 = vector.shape_cast %16 : vector<1x3x16xbf16> to vector<3x16xbf16>
    %cst_28 = arith.constant dense<0.000000e+00> : vector<256x16xf32>
    %18 = tpu.matmul %15, %17, %cst_28 {dimension_numbers = #tpu.dot_dimension_numbers<[1], [0], [0], [1], [0, 0, 1, 1], [], []>} : vector<256x3xbf16>, vector<3x16xbf16>, vector<256x16xf32> -> vector<256x16xf32>
    %19 = arith.addf %13, %18 : vector<256x16xf32>
    %c0_29 = arith.constant 0 : index
    %c1_30 = arith.constant 1 : index
    %c0_31 = arith.constant 0 : index
    %20 = vector.load %arg11[%c0_29, %c1_30, %c0_31] : memref<18x18x3xbf16, #tpu.memory_space<vmem>>, vector<16x16x3xbf16>
    %21 = vector.shape_cast %20 : vector<16x16x3xbf16> to vector<256x3xbf16>
    %c1_32 = arith.constant 1 : index
    %c0_33 = arith.constant 0 : index
    %c0_34 = arith.constant 0 : index
    %22 = vector.load %arg2[%c1_32, %c0_33, %c0_34] : memref<9x3x16xbf16, #tpu.memory_space<vmem>>, vector<1x3x16xbf16>
    %23 = vector.shape_cast %22 : vector<1x3x16xbf16> to vector<3x16xbf16>
    %cst_35 = arith.constant dense<0.000000e+00> : vector<256x16xf32>
    %24 = tpu.matmul %21, %23, %cst_35 {dimension_numbers = #tpu.dot_dimension_numbers<[1], [0], [0], [1], [0, 0, 1, 1], [], []>} : vector<256x3xbf16>, vector<3x16xbf16>, vector<256x16xf32> -> vector<256x16xf32>
    %25 = arith.addf %19, %24 : vector<256x16xf32>
    %c0_36 = arith.constant 0 : index
    %c2 = arith.constant 2 : index
    %c0_37 = arith.constant 0 : index
    %26 = vector.load %arg11[%c0_36, %c2, %c0_37] : memref<18x18x3xbf16, #tpu.memory_space<vmem>>, vector<16x16x3xbf16>
    %27 = vector.shape_cast %26 : vector<16x16x3xbf16> to vector<256x3xbf16>
    %c2_38 = arith.constant 2 : index
    %c0_39 = arith.constant 0 : index
    %c0_40 = arith.constant 0 : index
    %28 = vector.load %arg2[%c2_38, %c0_39, %c0_40] : memref<9x3x16xbf16, #tpu.memory_space<vmem>>, vector<1x3x16xbf16>
    %29 = vector.shape_cast %28 : vector<1x3x16xbf16> to vector<3x16xbf16>
    %cst_41 = arith.constant dense<0.000000e+00> : vector<256x16xf32>
    %30 = tpu.matmul %27, %29, %cst_41 {dimension_numbers = #tpu.dot_dimension_numbers<[1], [0], [0], [1], [0, 0, 1, 1], [], []>} : vector<256x3xbf16>, vector<3x16xbf16>, vector<256x16xf32> -> vector<256x16xf32>
    %31 = arith.addf %25, %30 : vector<256x16xf32>
    %c1_42 = arith.constant 1 : index
    %c0_43 = arith.constant 0 : index
    %c0_44 = arith.constant 0 : index
    %32 = vector.load %arg11[%c1_42, %c0_43, %c0_44] : memref<18x18x3xbf16, #tpu.memory_space<vmem>>, vector<16x16x3xbf16>
    %33 = vector.shape_cast %32 : vector<16x16x3xbf16> to vector<256x3xbf16>
    %c3 = arith.constant 3 : index
    %c0_45 = arith.constant 0 : index
    %c0_46 = arith.constant 0 : index
    %34 = vector.load %arg2[%c3, %c0_45, %c0_46] : memref<9x3x16xbf16, #tpu.memory_space<vmem>>, vector<1x3x16xbf16>
    %35 = vector.shape_cast %34 : vector<1x3x16xbf16> to vector<3x16xbf16>
    %cst_47 = arith.constant dense<0.000000e+00> : vector<256x16xf32>
    %36 = tpu.matmul %33, %35, %cst_47 {dimension_numbers = #tpu.dot_dimension_numbers<[1], [0], [0], [1], [0, 0, 1, 1], [], []>} : vector<256x3xbf16>, vector<3x16xbf16>, vector<256x16xf32> -> vector<256x16xf32>
    %37 = arith.addf %31, %36 : vector<256x16xf32>
    %c1_48 = arith.constant 1 : index
    %c1_49 = arith.constant 1 : index
    %c0_50 = arith.constant 0 : index
    %38 = vector.load %arg11[%c1_48, %c1_49, %c0_50] : memref<18x18x3xbf16, #tpu.memory_space<vmem>>, vector<16x16x3xbf16>
    %39 = vector.shape_cast %38 : vector<16x16x3xbf16> to vector<256x3xbf16>
    %c4 = arith.constant 4 : index
    %c0_51 = arith.constant 0 : index
    %c0_52 = arith.constant 0 : index
    %40 = vector.load %arg2[%c4, %c0_51, %c0_52] : memref<9x3x16xbf16, #tpu.memory_space<vmem>>, vector<1x3x16xbf16>
    %41 = vector.shape_cast %40 : vector<1x3x16xbf16> to vector<3x16xbf16>
    %cst_53 = arith.constant dense<0.000000e+00> : vector<256x16xf32>
    %42 = tpu.matmul %39, %41, %cst_53 {dimension_numbers = #tpu.dot_dimension_numbers<[1], [0], [0], [1], [0, 0, 1, 1], [], []>} : vector<256x3xbf16>, vector<3x16xbf16>, vector<256x16xf32> -> vector<256x16xf32>
    %43 = arith.addf %37, %42 : vector<256x16xf32>
    %c1_54 = arith.constant 1 : index
    %c2_55 = arith.constant 2 : index
    %c0_56 = arith.constant 0 : index
    %44 = vector.load %arg11[%c1_54, %c2_55, %c0_56] : memref<18x18x3xbf16, #tpu.memory_space<vmem>>, vector<16x16x3xbf16>
    %45 = vector.shape_cast %44 : vector<16x16x3xbf16> to vector<256x3xbf16>
    %c5 = arith.constant 5 : index
    %c0_57 = arith.constant 0 : index
    %c0_58 = arith.constant 0 : index
    %46 = vector.load %arg2[%c5, %c0_57, %c0_58] : memref<9x3x16xbf16, #tpu.memory_space<vmem>>, vector<1x3x16xbf16>
    %47 = vector.shape_cast %46 : vector<1x3x16xbf16> to vector<3x16xbf16>
    %cst_59 = arith.constant dense<0.000000e+00> : vector<256x16xf32>
    %48 = tpu.matmul %45, %47, %cst_59 {dimension_numbers = #tpu.dot_dimension_numbers<[1], [0], [0], [1], [0, 0, 1, 1], [], []>} : vector<256x3xbf16>, vector<3x16xbf16>, vector<256x16xf32> -> vector<256x16xf32>
    %49 = arith.addf %43, %48 : vector<256x16xf32>
    %c2_60 = arith.constant 2 : index
    %c0_61 = arith.constant 0 : index
    %c0_62 = arith.constant 0 : index
    %50 = vector.load %arg11[%c2_60, %c0_61, %c0_62] : memref<18x18x3xbf16, #tpu.memory_space<vmem>>, vector<16x16x3xbf16>
    %51 = vector.shape_cast %50 : vector<16x16x3xbf16> to vector<256x3xbf16>
    %c6 = arith.constant 6 : index
    %c0_63 = arith.constant 0 : index
    %c0_64 = arith.constant 0 : index
    %52 = vector.load %arg2[%c6, %c0_63, %c0_64] : memref<9x3x16xbf16, #tpu.memory_space<vmem>>, vector<1x3x16xbf16>
    %53 = vector.shape_cast %52 : vector<1x3x16xbf16> to vector<3x16xbf16>
    %cst_65 = arith.constant dense<0.000000e+00> : vector<256x16xf32>
    %54 = tpu.matmul %51, %53, %cst_65 {dimension_numbers = #tpu.dot_dimension_numbers<[1], [0], [0], [1], [0, 0, 1, 1], [], []>} : vector<256x3xbf16>, vector<3x16xbf16>, vector<256x16xf32> -> vector<256x16xf32>
    %55 = arith.addf %49, %54 : vector<256x16xf32>
    %c2_66 = arith.constant 2 : index
    %c1_67 = arith.constant 1 : index
    %c0_68 = arith.constant 0 : index
    %56 = vector.load %arg11[%c2_66, %c1_67, %c0_68] : memref<18x18x3xbf16, #tpu.memory_space<vmem>>, vector<16x16x3xbf16>
    %57 = vector.shape_cast %56 : vector<16x16x3xbf16> to vector<256x3xbf16>
    %c7 = arith.constant 7 : index
    %c0_69 = arith.constant 0 : index
    %c0_70 = arith.constant 0 : index
    %58 = vector.load %arg2[%c7, %c0_69, %c0_70] : memref<9x3x16xbf16, #tpu.memory_space<vmem>>, vector<1x3x16xbf16>
    %59 = vector.shape_cast %58 : vector<1x3x16xbf16> to vector<3x16xbf16>
    %cst_71 = arith.constant dense<0.000000e+00> : vector<256x16xf32>
    %60 = tpu.matmul %57, %59, %cst_71 {dimension_numbers = #tpu.dot_dimension_numbers<[1], [0], [0], [1], [0, 0, 1, 1], [], []>} : vector<256x3xbf16>, vector<3x16xbf16>, vector<256x16xf32> -> vector<256x16xf32>
    %61 = arith.addf %55, %60 : vector<256x16xf32>
    %c2_72 = arith.constant 2 : index
    %c2_73 = arith.constant 2 : index
    %c0_74 = arith.constant 0 : index
    %62 = vector.load %arg11[%c2_72, %c2_73, %c0_74] : memref<18x18x3xbf16, #tpu.memory_space<vmem>>, vector<16x16x3xbf16>
    %63 = vector.shape_cast %62 : vector<16x16x3xbf16> to vector<256x3xbf16>
    %c8 = arith.constant 8 : index
    %c0_75 = arith.constant 0 : index
    %c0_76 = arith.constant 0 : index
    %64 = vector.load %arg2[%c8, %c0_75, %c0_76] : memref<9x3x16xbf16, #tpu.memory_space<vmem>>, vector<1x3x16xbf16>
    %65 = vector.shape_cast %64 : vector<1x3x16xbf16> to vector<3x16xbf16>
    %cst_77 = arith.constant dense<0.000000e+00> : vector<256x16xf32>
    %66 = tpu.matmul %63, %65, %cst_77 {dimension_numbers = #tpu.dot_dimension_numbers<[1], [0], [0], [1], [0, 0, 1, 1], [], []>} : vector<256x3xbf16>, vector<3x16xbf16>, vector<256x16xf32> -> vector<256x16xf32>
    %67 = arith.addf %61, %66 : vector<256x16xf32>
    %68 = vector.broadcast %12 : vector<1x16xf32> to vector<256x16xf32>
    %69 = arith.addf %67, %68 : vector<256x16xf32>
    %cst_78 = arith.constant 0.000000e+00 : f32
    %70 = vector.broadcast %cst_78 : f32 to vector<256x16xf32>
    %71 = arith.maximumf %69, %70 : vector<256x16xf32>
    %72 = vector.shape_cast %71 : vector<256x16xf32> to vector<128x2x16xf32>
    %73 = vector.extract_strided_slice %72 {offsets = [0, 0, 0], sizes = [128, 1, 16], strides = [1, 1, 1]} : vector<128x2x16xf32> to vector<128x1x16xf32>
    %74 = vector.shape_cast %73 : vector<128x1x16xf32> to vector<128x16xf32>
    %75 = vector.extract_strided_slice %72 {offsets = [0, 1, 0], sizes = [128, 1, 16], strides = [1, 1, 1]} : vector<128x2x16xf32> to vector<128x1x16xf32>
    %76 = vector.shape_cast %75 : vector<128x1x16xf32> to vector<128x16xf32>
    %77 = arith.maximumf %74, %76 : vector<128x16xf32>
    %78 = vector.shape_cast %77 : vector<128x16xf32> to vector<8x2x8x16xf32>
    %79 = vector.extract_strided_slice %78 {offsets = [0, 0, 0, 0], sizes = [8, 1, 8, 16], strides = [1, 1, 1, 1]} : vector<8x2x8x16xf32> to vector<8x1x8x16xf32>
    %80 = vector.shape_cast %79 : vector<8x1x8x16xf32> to vector<8x8x16xf32>
    %81 = vector.extract_strided_slice %78 {offsets = [0, 1, 0, 0], sizes = [8, 1, 8, 16], strides = [1, 1, 1, 1]} : vector<8x2x8x16xf32> to vector<8x1x8x16xf32>
    %82 = vector.shape_cast %81 : vector<8x1x8x16xf32> to vector<8x8x16xf32>
    %83 = arith.maximumf %80, %82 : vector<8x8x16xf32>
    %cst_79 = arith.constant 0.000000e+00 : bf16
    %84 = vector.broadcast %cst_79 : bf16 to vector<1x10x16xbf16>
    %c0_80 = arith.constant 0 : index
    %c0_81 = arith.constant 0 : index
    %c0_82 = arith.constant 0 : index
    %85 = vector.load %arg12[%c0_80, %c0_81, %c0_82] : memref<10x10x16xbf16, #tpu.memory_space<vmem>>, vector<1x10x16xbf16>
    tpu.vector_store %arg12[%c0_80, %c0_81, %c0_82], %84 {strides = array<i32>} : memref<10x10x16xbf16, #tpu.memory_space<vmem>>, vector<1x10x16xbf16>,
    %cst_83 = arith.constant 0.000000e+00 : bf16
    %86 = vector.broadcast %cst_83 : bf16 to vector<1x10x16xbf16>
    %c9 = arith.constant 9 : index
    %c0_84 = arith.constant 0 : index
    %c0_85 = arith.constant 0 : index
    %87 = vector.load %arg12[%c9, %c0_84, %c0_85] : memref<10x10x16xbf16, #tpu.memory_space<vmem>>, vector<1x10x16xbf16>
    tpu.vector_store %arg12[%c9, %c0_84, %c0_85], %86 {strides = array<i32>} : memref<10x10x16xbf16, #tpu.memory_space<vmem>>, vector<1x10x16xbf16>,
    %cst_86 = arith.constant 0.000000e+00 : bf16
    %88 = vector.broadcast %cst_86 : bf16 to vector<10x1x16xbf16>
    %c0_87 = arith.constant 0 : index
    %c0_88 = arith.constant 0 : index
    %c0_89 = arith.constant 0 : index
    %89 = vector.load %arg12[%c0_87, %c0_88, %c0_89] : memref<10x10x16xbf16, #tpu.memory_space<vmem>>, vector<10x1x16xbf16>
    tpu.vector_store %arg12[%c0_87, %c0_88, %c0_89], %88 {strides = array<i32>} : memref<10x10x16xbf16, #tpu.memory_space<vmem>>, vector<10x1x16xbf16>,
    %cst_90 = arith.constant 0.000000e+00 : bf16
    %90 = vector.broadcast %cst_90 : bf16 to vector<10x1x16xbf16>
    %c0_91 = arith.constant 0 : index
    %c9_92 = arith.constant 9 : index
    %c0_93 = arith.constant 0 : index
    %91 = vector.load %arg12[%c0_91, %c9_92, %c0_93] : memref<10x10x16xbf16, #tpu.memory_space<vmem>>, vector<10x1x16xbf16>
    tpu.vector_store %arg12[%c0_91, %c9_92, %c0_93], %90 {strides = array<i32>} : memref<10x10x16xbf16, #tpu.memory_space<vmem>>, vector<10x1x16xbf16>,
    %92 = arith.truncf %83 : vector<8x8x16xf32> to vector<8x8x16xbf16>
    %c1_94 = arith.constant 1 : index
    %c1_95 = arith.constant 1 : index
    %c0_96 = arith.constant 0 : index
    %93 = vector.load %arg12[%c1_94, %c1_95, %c0_96] : memref<10x10x16xbf16, #tpu.memory_space<vmem>>, vector<8x8x16xbf16>
    tpu.vector_store %arg12[%c1_94, %c1_95, %c0_96], %92 {strides = array<i32>} : memref<10x10x16xbf16, #tpu.memory_space<vmem>>, vector<8x8x16xbf16>,
    %c0_97 = arith.constant 0 : index
    %c0_98 = arith.constant 0 : index
    %94 = vector.load %arg5[%c0_97, %c0_98] : memref<1x4xf32, #tpu.memory_space<vmem>>, vector<1x4xf32>
    %cst_99 = arith.constant 0.000000e+00 : f32
    %95 = vector.broadcast %cst_99 : f32 to vector<64x4xf32>
    %c0_100 = arith.constant 0 : index
    %c0_101 = arith.constant 0 : index
    %c0_102 = arith.constant 0 : index
    %96 = vector.load %arg12[%c0_100, %c0_101, %c0_102] : memref<10x10x16xbf16, #tpu.memory_space<vmem>>, vector<8x8x16xbf16>
    %97 = vector.shape_cast %96 : vector<8x8x16xbf16> to vector<64x16xbf16>
    %c0_103 = arith.constant 0 : index
    %c0_104 = arith.constant 0 : index
    %c0_105 = arith.constant 0 : index
    %98 = vector.load %arg4[%c0_103, %c0_104, %c0_105] : memref<9x16x4xbf16, #tpu.memory_space<vmem>>, vector<1x16x4xbf16>
    %99 = vector.shape_cast %98 : vector<1x16x4xbf16> to vector<16x4xbf16>
    %cst_106 = arith.constant dense<0.000000e+00> : vector<64x4xf32>
    %100 = tpu.matmul %97, %99, %cst_106 {dimension_numbers = #tpu.dot_dimension_numbers<[1], [0], [0], [1], [0, 0, 1, 1], [], []>} : vector<64x16xbf16>, vector<16x4xbf16>, vector<64x4xf32> -> vector<64x4xf32>
    %101 = arith.addf %95, %100 : vector<64x4xf32>
    %c0_107 = arith.constant 0 : index
    %c1_108 = arith.constant 1 : index
    %c0_109 = arith.constant 0 : index
    %102 = vector.load %arg12[%c0_107, %c1_108, %c0_109] : memref<10x10x16xbf16, #tpu.memory_space<vmem>>, vector<8x8x16xbf16>
    %103 = vector.shape_cast %102 : vector<8x8x16xbf16> to vector<64x16xbf16>
    %c1_110 = arith.constant 1 : index
    %c0_111 = arith.constant 0 : index
    %c0_112 = arith.constant 0 : index
    %104 = vector.load %arg4[%c1_110, %c0_111, %c0_112] : memref<9x16x4xbf16, #tpu.memory_space<vmem>>, vector<1x16x4xbf16>
    %105 = vector.shape_cast %104 : vector<1x16x4xbf16> to vector<16x4xbf16>
    %cst_113 = arith.constant dense<0.000000e+00> : vector<64x4xf32>
    %106 = tpu.matmul %103, %105, %cst_113 {dimension_numbers = #tpu.dot_dimension_numbers<[1], [0], [0], [1], [0, 0, 1, 1], [], []>} : vector<64x16xbf16>, vector<16x4xbf16>, vector<64x4xf32> -> vector<64x4xf32>
    %107 = arith.addf %101, %106 : vector<64x4xf32>
    %c0_114 = arith.constant 0 : index
    %c2_115 = arith.constant 2 : index
    %c0_116 = arith.constant 0 : index
    %108 = vector.load %arg12[%c0_114, %c2_115, %c0_116] : memref<10x10x16xbf16, #tpu.memory_space<vmem>>, vector<8x8x16xbf16>
    %109 = vector.shape_cast %108 : vector<8x8x16xbf16> to vector<64x16xbf16>
    %c2_117 = arith.constant 2 : index
    %c0_118 = arith.constant 0 : index
    %c0_119 = arith.constant 0 : index
    %110 = vector.load %arg4[%c2_117, %c0_118, %c0_119] : memref<9x16x4xbf16, #tpu.memory_space<vmem>>, vector<1x16x4xbf16>
    %111 = vector.shape_cast %110 : vector<1x16x4xbf16> to vector<16x4xbf16>
    %cst_120 = arith.constant dense<0.000000e+00> : vector<64x4xf32>
    %112 = tpu.matmul %109, %111, %cst_120 {dimension_numbers = #tpu.dot_dimension_numbers<[1], [0], [0], [1], [0, 0, 1, 1], [], []>} : vector<64x16xbf16>, vector<16x4xbf16>, vector<64x4xf32> -> vector<64x4xf32>
    %113 = arith.addf %107, %112 : vector<64x4xf32>
    %c1_121 = arith.constant 1 : index
    %c0_122 = arith.constant 0 : index
    %c0_123 = arith.constant 0 : index
    %114 = vector.load %arg12[%c1_121, %c0_122, %c0_123] : memref<10x10x16xbf16, #tpu.memory_space<vmem>>, vector<8x8x16xbf16>
    %115 = vector.shape_cast %114 : vector<8x8x16xbf16> to vector<64x16xbf16>
    %c3_124 = arith.constant 3 : index
    %c0_125 = arith.constant 0 : index
    %c0_126 = arith.constant 0 : index
    %116 = vector.load %arg4[%c3_124, %c0_125, %c0_126] : memref<9x16x4xbf16, #tpu.memory_space<vmem>>, vector<1x16x4xbf16>
    %117 = vector.shape_cast %116 : vector<1x16x4xbf16> to vector<16x4xbf16>
    %cst_127 = arith.constant dense<0.000000e+00> : vector<64x4xf32>
    %118 = tpu.matmul %115, %117, %cst_127 {dimension_numbers = #tpu.dot_dimension_numbers<[1], [0], [0], [1], [0, 0, 1, 1], [], []>} : vector<64x16xbf16>, vector<16x4xbf16>, vector<64x4xf32> -> vector<64x4xf32>
    %119 = arith.addf %113, %118 : vector<64x4xf32>
    %c1_128 = arith.constant 1 : index
    %c1_129 = arith.constant 1 : index
    %c0_130 = arith.constant 0 : index
    %120 = vector.load %arg12[%c1_128, %c1_129, %c0_130] : memref<10x10x16xbf16, #tpu.memory_space<vmem>>, vector<8x8x16xbf16>
    %121 = vector.shape_cast %120 : vector<8x8x16xbf16> to vector<64x16xbf16>
    %c4_131 = arith.constant 4 : index
    %c0_132 = arith.constant 0 : index
    %c0_133 = arith.constant 0 : index
    %122 = vector.load %arg4[%c4_131, %c0_132, %c0_133] : memref<9x16x4xbf16, #tpu.memory_space<vmem>>, vector<1x16x4xbf16>
    %123 = vector.shape_cast %122 : vector<1x16x4xbf16> to vector<16x4xbf16>
    %cst_134 = arith.constant dense<0.000000e+00> : vector<64x4xf32>
    %124 = tpu.matmul %121, %123, %cst_134 {dimension_numbers = #tpu.dot_dimension_numbers<[1], [0], [0], [1], [0, 0, 1, 1], [], []>} : vector<64x16xbf16>, vector<16x4xbf16>, vector<64x4xf32> -> vector<64x4xf32>
    %125 = arith.addf %119, %124 : vector<64x4xf32>
    %c1_135 = arith.constant 1 : index
    %c2_136 = arith.constant 2 : index
    %c0_137 = arith.constant 0 : index
    %126 = vector.load %arg12[%c1_135, %c2_136, %c0_137] : memref<10x10x16xbf16, #tpu.memory_space<vmem>>, vector<8x8x16xbf16>
    %127 = vector.shape_cast %126 : vector<8x8x16xbf16> to vector<64x16xbf16>
    %c5_138 = arith.constant 5 : index
    %c0_139 = arith.constant 0 : index
    %c0_140 = arith.constant 0 : index
    %128 = vector.load %arg4[%c5_138, %c0_139, %c0_140] : memref<9x16x4xbf16, #tpu.memory_space<vmem>>, vector<1x16x4xbf16>
    %129 = vector.shape_cast %128 : vector<1x16x4xbf16> to vector<16x4xbf16>
    %cst_141 = arith.constant dense<0.000000e+00> : vector<64x4xf32>
    %130 = tpu.matmul %127, %129, %cst_141 {dimension_numbers = #tpu.dot_dimension_numbers<[1], [0], [0], [1], [0, 0, 1, 1], [], []>} : vector<64x16xbf16>, vector<16x4xbf16>, vector<64x4xf32> -> vector<64x4xf32>
    %131 = arith.addf %125, %130 : vector<64x4xf32>
    %c2_142 = arith.constant 2 : index
    %c0_143 = arith.constant 0 : index
    %c0_144 = arith.constant 0 : index
    %132 = vector.load %arg12[%c2_142, %c0_143, %c0_144] : memref<10x10x16xbf16, #tpu.memory_space<vmem>>, vector<8x8x16xbf16>
    %133 = vector.shape_cast %132 : vector<8x8x16xbf16> to vector<64x16xbf16>
    %c6_145 = arith.constant 6 : index
    %c0_146 = arith.constant 0 : index
    %c0_147 = arith.constant 0 : index
    %134 = vector.load %arg4[%c6_145, %c0_146, %c0_147] : memref<9x16x4xbf16, #tpu.memory_space<vmem>>, vector<1x16x4xbf16>
    %135 = vector.shape_cast %134 : vector<1x16x4xbf16> to vector<16x4xbf16>
    %cst_148 = arith.constant dense<0.000000e+00> : vector<64x4xf32>
    %136 = tpu.matmul %133, %135, %cst_148 {dimension_numbers = #tpu.dot_dimension_numbers<[1], [0], [0], [1], [0, 0, 1, 1], [], []>} : vector<64x16xbf16>, vector<16x4xbf16>, vector<64x4xf32> -> vector<64x4xf32>
    %137 = arith.addf %131, %136 : vector<64x4xf32>
    %c2_149 = arith.constant 2 : index
    %c1_150 = arith.constant 1 : index
    %c0_151 = arith.constant 0 : index
    %138 = vector.load %arg12[%c2_149, %c1_150, %c0_151] : memref<10x10x16xbf16, #tpu.memory_space<vmem>>, vector<8x8x16xbf16>
    %139 = vector.shape_cast %138 : vector<8x8x16xbf16> to vector<64x16xbf16>
    %c7_152 = arith.constant 7 : index
    %c0_153 = arith.constant 0 : index
    %c0_154 = arith.constant 0 : index
    %140 = vector.load %arg4[%c7_152, %c0_153, %c0_154] : memref<9x16x4xbf16, #tpu.memory_space<vmem>>, vector<1x16x4xbf16>
    %141 = vector.shape_cast %140 : vector<1x16x4xbf16> to vector<16x4xbf16>
    %cst_155 = arith.constant dense<0.000000e+00> : vector<64x4xf32>
    %142 = tpu.matmul %139, %141, %cst_155 {dimension_numbers = #tpu.dot_dimension_numbers<[1], [0], [0], [1], [0, 0, 1, 1], [], []>} : vector<64x16xbf16>, vector<16x4xbf16>, vector<64x4xf32> -> vector<64x4xf32>
    %143 = arith.addf %137, %142 : vector<64x4xf32>
    %c2_156 = arith.constant 2 : index
    %c2_157 = arith.constant 2 : index
    %c0_158 = arith.constant 0 : index
    %144 = vector.load %arg12[%c2_156, %c2_157, %c0_158] : memref<10x10x16xbf16, #tpu.memory_space<vmem>>, vector<8x8x16xbf16>
    %145 = vector.shape_cast %144 : vector<8x8x16xbf16> to vector<64x16xbf16>
    %c8_159 = arith.constant 8 : index
    %c0_160 = arith.constant 0 : index
    %c0_161 = arith.constant 0 : index
    %146 = vector.load %arg4[%c8_159, %c0_160, %c0_161] : memref<9x16x4xbf16, #tpu.memory_space<vmem>>, vector<1x16x4xbf16>
    %147 = vector.shape_cast %146 : vector<1x16x4xbf16> to vector<16x4xbf16>
    %cst_162 = arith.constant dense<0.000000e+00> : vector<64x4xf32>
    %148 = tpu.matmul %145, %147, %cst_162 {dimension_numbers = #tpu.dot_dimension_numbers<[1], [0], [0], [1], [0, 0, 1, 1], [], []>} : vector<64x16xbf16>, vector<16x4xbf16>, vector<64x4xf32> -> vector<64x4xf32>
    %149 = arith.addf %143, %148 : vector<64x4xf32>
    %150 = vector.broadcast %94 : vector<1x4xf32> to vector<64x4xf32>
    %151 = arith.addf %149, %150 : vector<64x4xf32>
    %cst_163 = arith.constant 0.000000e+00 : f32
    %152 = vector.broadcast %cst_163 : f32 to vector<64x4xf32>
    %153 = arith.maximumf %151, %152 : vector<64x4xf32>
    %154 = vector.shape_cast %153 : vector<64x4xf32> to vector<32x2x4xf32>
    %155 = vector.extract_strided_slice %154 {offsets = [0, 0, 0], sizes = [32, 1, 4], strides = [1, 1, 1]} : vector<32x2x4xf32> to vector<32x1x4xf32>
    %156 = vector.shape_cast %155 : vector<32x1x4xf32> to vector<32x4xf32>
    %157 = vector.extract_strided_slice %154 {offsets = [0, 1, 0], sizes = [32, 1, 4], strides = [1, 1, 1]} : vector<32x2x4xf32> to vector<32x1x4xf32>
    %158 = vector.shape_cast %157 : vector<32x1x4xf32> to vector<32x4xf32>
    %159 = arith.maximumf %156, %158 : vector<32x4xf32>
    %160 = vector.shape_cast %159 : vector<32x4xf32> to vector<4x2x4x4xf32>
    %161 = vector.extract_strided_slice %160 {offsets = [0, 0, 0, 0], sizes = [4, 1, 4, 4], strides = [1, 1, 1, 1]} : vector<4x2x4x4xf32> to vector<4x1x4x4xf32>
    %162 = vector.shape_cast %161 : vector<4x1x4x4xf32> to vector<4x4x4xf32>
    %163 = vector.extract_strided_slice %160 {offsets = [0, 1, 0, 0], sizes = [4, 1, 4, 4], strides = [1, 1, 1, 1]} : vector<4x2x4x4xf32> to vector<4x1x4x4xf32>
    %164 = vector.shape_cast %163 : vector<4x1x4x4xf32> to vector<4x4x4xf32>
    %165 = arith.maximumf %162, %164 : vector<4x4x4xf32>
    %166 = vector.shape_cast %165 : vector<4x4x4xf32> to vector<16x4xf32>
    %167 = arith.truncf %166 : vector<16x4xf32> to vector<16x4xbf16>
    %c0_164 = arith.constant 0 : index
    %c0_165 = arith.constant 0 : index
    %168 = vector.load %arg6[%c0_164, %c0_165] : memref<4x64xbf16, #tpu.memory_space<vmem>>, vector<4x64xbf16>
    %cst_166 = arith.constant dense<0.000000e+00> : vector<16x64xf32>
    %169 = tpu.matmul %167, %168, %cst_166 {dimension_numbers = #tpu.dot_dimension_numbers<[1], [0], [0], [1], [0, 0, 1, 1], [], []>} : vector<16x4xbf16>, vector<4x64xbf16>, vector<16x64xf32> -> vector<16x64xf32>
    %c0_167 = arith.constant 0 : index
    %c0_168 = arith.constant 0 : index
    %170 = vector.load %arg7[%c0_167, %c0_168] : memref<1x64xf32, #tpu.memory_space<vmem>>, vector<1x64xf32>
    %171 = vector.broadcast %170 : vector<1x64xf32> to vector<16x64xf32>
    %172 = arith.addf %169, %171 : vector<16x64xf32>
    %cst_169 = arith.constant 0.000000e+00 : f32
    %173 = vector.broadcast %cst_169 : f32 to vector<16x64xf32>
    %174 = arith.maximumf %172, %173 : vector<16x64xf32>
    %175 = arith.truncf %174 : vector<16x64xf32> to vector<16x64xbf16>
    %c0_170 = arith.constant 0 : index
    %c0_171 = arith.constant 0 : index
    %176 = vector.load %arg8[%c0_170, %c0_171] : memref<64x128xbf16, #tpu.memory_space<vmem>>, vector<64x128xbf16>
    %cst_172 = arith.constant dense<0.000000e+00> : vector<16x128xf32>
    %177 = tpu.matmul %175, %176, %cst_172 {dimension_numbers = #tpu.dot_dimension_numbers<[1], [0], [0], [1], [0, 0, 1, 1], [], []>} : vector<16x64xbf16>, vector<64x128xbf16>, vector<16x128xf32> -> vector<16x128xf32>
    %c0_173 = arith.constant 0 : index
    %c0_174 = arith.constant 0 : index
    %178 = vector.load %arg9[%c0_173, %c0_174] : memref<1x128xf32, #tpu.memory_space<vmem>>, vector<1x128xf32>
    %179 = vector.broadcast %178 : vector<1x128xf32> to vector<16x128xf32>
    %180 = arith.addf %177, %179 : vector<16x128xf32>
    %cst_175 = arith.constant 0.000000e+00 : f32
    %181 = vector.broadcast %cst_175 : f32 to vector<16x128xf32>
    %182 = arith.subf %181, %180 : vector<16x128xf32>
    %183 = math.exp %182 : vector<16x128xf32>
    %cst_176 = arith.constant 1.000000e+00 : f32
    %184 = vector.broadcast %cst_176 : f32 to vector<16x128xf32>
    %185 = arith.addf %184, %183 : vector<16x128xf32>
    %cst_177 = arith.constant 1.000000e+00 : f32
    %186 = vector.broadcast %cst_177 : f32 to vector<16x128xf32>
    %187 = arith.divf %186, %185 : vector<16x128xf32>
    %188 = vector.shape_cast %187 : vector<16x128xf32> to vector<1x16x128xf32>
    %c0_178 = arith.constant 0 : index
    %c0_179 = arith.constant 0 : index
    %c0_180 = arith.constant 0 : index
    %189 = vector.load %arg10[%c0_178, %c0_179, %c0_180] : memref<1x16x128xf32, #tpu.memory_space<vmem>>, vector<1x16x128xf32>
    tpu.vector_store %arg10[%c0_178, %c0_179, %c0_180], %188 {strides = array<i32>} : memref<1x16x128xf32, #tpu.memory_space<vmem>>, vector<1x16x128xf32>,
    return
  }
  func.func @transform_0(%arg0: i32) -> (i32, i32, i32, i32) {
    %c0_i32 = arith.constant 0 : i32
    %c0_i32_0 = arith.constant 0 : i32
    %c0_i32_1 = arith.constant 0 : i32
    %c0_i32_2 = arith.constant 0 : i32
    return %arg0, %c0_i32, %c0_i32_0, %c0_i32_1 : i32, i32, i32, i32
  }
  func.func @transform_1(%arg0: i32) -> (i32, i32, i32) {
    %c0_i32 = arith.constant 0 : i32
    %c0_i32_0 = arith.constant 0 : i32
    %c0_i32_1 = arith.constant 0 : i32
    %c0_i32_2 = arith.constant 0 : i32
    return %c0_i32, %c0_i32_0, %c0_i32_1 : i32, i32, i32
  }
  func.func @transform_2(%arg0: i32) -> (i32, i32) {
    %c0_i32 = arith.constant 0 : i32
    %c0_i32_0 = arith.constant 0 : i32
    %c0_i32_1 = arith.constant 0 : i32
    return %c0_i32, %c0_i32_0 : i32, i32
  }
  func.func @transform_3(%arg0: i32) -> (i32, i32, i32) {
    %c0_i32 = arith.constant 0 : i32
    %c0_i32_0 = arith.constant 0 : i32
    %c0_i32_1 = arith.constant 0 : i32
    %c0_i32_2 = arith.constant 0 : i32
    return %c0_i32, %c0_i32_0, %c0_i32_1 : i32, i32, i32
  }
  func.func @transform_4(%arg0: i32) -> (i32, i32) {
    %c0_i32 = arith.constant 0 : i32
    %c0_i32_0 = arith.constant 0 : i32
    %c0_i32_1 = arith.constant 0 : i32
    return %c0_i32, %c0_i32_0 : i32, i32
  }
  func.func @transform_5(%arg0: i32) -> (i32, i32) {
    %c0_i32 = arith.constant 0 : i32
    %c0_i32_0 = arith.constant 0 : i32
    %c0_i32_1 = arith.constant 0 : i32
    return %c0_i32, %c0_i32_0 : i32, i32
  }
  func.func @transform_6(%arg0: i32) -> (i32, i32) {
    %c0_i32 = arith.constant 0 : i32
    %c0_i32_0 = arith.constant 0 : i32
    %c0_i32_1 = arith.constant 0 : i32
    return %c0_i32, %c0_i32_0 : i32, i32
  }
  func.func @transform_7(%arg0: i32) -> (i32, i32) {
    %c0_i32 = arith.constant 0 : i32
    %c0_i32_0 = arith.constant 0 : i32
    %c0_i32_1 = arith.constant 0 : i32
    return %c0_i32, %c0_i32_0 : i32, i32
  }
  func.func @transform_8(%arg0: i32) -> (i32, i32) {
    %c0_i32 = arith.constant 0 : i32
    %c0_i32_0 = arith.constant 0 : i32
    %c0_i32_1 = arith.constant 0 : i32
    return %c0_i32, %c0_i32_0 : i32, i32
  }
  func.func @transform_9(%arg0: i32) -> (i32, i32, i32) {
    %c0_i32 = arith.constant 0 : i32
    %c0_i32_0 = arith.constant 0 : i32
    %c0_i32_1 = arith.constant 0 : i32
    return %arg0, %c0_i32, %c0_i32_0 : i32, i32, i32
  }
}

</mosaic_0001>

<llo_original>
// kernel: tile.13
$region0: #{tile.13}
  #allocation0 [shape = 's32[1]{0}', space=sflag, size = 0x4, scoped, tag = 'scoped memory for tile.13']
  %s0 = inlined_call_operand.vmem [shape: f32[16], index: 0, kind: input, shape index: {}]
  %s1 = inlined_call_operand.vmem [shape: f32[4,16], index: 1, kind: output, shape index: {}]
  // Predicated region
  $region2: #{tile.13} parent=0 // pred_check
    _
  $region3: #{tile.13} parent=0 // pred_check_branch
    %3 = sbr.rel (0) target = $region5
  $region4: #{tile.13} parent=0 // pred_region
    _
  $region5: #{tile.13} parent=0 // pred_fallthru
    _
  %v4 = vld [vmem:[%s0] ss:$0 sm:$0xff]
  %5 = vst [vmem:[%s1] sm:$0xf] %v4

// kernel: tile.14
$region0: #{tile.14}
  %s0 = inlined_call_operand.vmem [shape: f32[4,16], index: 0, kind: input, shape index: {}]
  %s1 = inlined_call_operand.vmem [shape: f32[1,64], index: 1, kind: output, shape index: {}]
  $region1: #{tile.14} parent=0
    #allocation0 [shape = 'u8[4096]{0}', space=vmem, size = 0x1000, scoped, tag = 'scoped mem for output reshape']
    #allocation1 [shape = 'u8[4096]{0}', space=vmem, size = 0x1000, scoped, tag = 'scoped mem for input reshape']
    %s3 = sshllo.u32 0, 4
    %v4 = vld [vmem:[%s0] sm:%s3]
    %5 = vst [vmem:[#allocation1] sm:%s3] %v4
    %v6 = vld [vmem:[#allocation1] sm:$0x1]
    %vm7 = vcmask 130048
    %8 = vst.msk [vmem:[#allocation0] sm:$0x1] %vm7, %v6
    %s9 = scalar_lea.vmem [#allocation1], 3
    %v10 = vld [vmem:[%s9] sm:$0x1]
    %11 = vrot.lane.b32.xlu0 %v10, 48
    %v12 = vpop.permute.xlu0 %11
    %vm13 = vcmask 523648
    %14 = vst.msk [vmem:[#allocation0] sm:$0x1] %vm13, %v12
    %s15 = scalar_lea.vmem [#allocation1], 2
    %v16 = vld [vmem:[%s15] sm:$0x1]
    %17 = vrot.lane.b32.xlu0 %v16, 32
    %v18 = vpop.permute.xlu0 %17
    %vm19 = vcmask 392448
    %20 = vst.msk [vmem:[#allocation0] sm:$0x1] %vm19, %v18
    %s21 = scalar_lea.vmem [#allocation1], 1
    %v22 = vld [vmem:[%s21] sm:$0x1]
    %23 = vrot.lane.b32.xlu0 %v22, 16
    %v24 = vpop.permute.xlu0 %23
    %vm25 = vcmask 261248
    %26 = vst.msk [vmem:[#allocation0] sm:$0x1] %vm25, %v24
    %s28 = sshllo.u32 0, 1
    %v30 = vld [vmem:[#allocation0] sm:%s28]
    %s31 = sshllo.u32 0, 1
    %32 = vst [vmem:[%s1] sm:%s31] %v30

// kernel: tile.18
$region0: #{tile.18}
  #allocation0 [shape = 's32[1]{0}', space=sflag, size = 0x4, scoped, tag = 'scoped memory for tile.18']
  %s0 = inlined_call_operand.vmem [shape: f32[3], index: 0, kind: input, shape index: {}]
  %s1 = inlined_call_operand.vmem [shape: f32[16,3], index: 1, kind: output, shape index: {}]
  // Predicated region
  $region2: #{tile.18} parent=0 // pred_check
    _
  $region3: #{tile.18} parent=0 // pred_check_branch
    %3 = sbr.rel (0) target = $region5
  $region4: #{tile.18} parent=0 // pred_region
    _
  $region5: #{tile.18} parent=0 // pred_fallthru
    _
  %v4 = vld [vmem:[%s0] ss:$0 sm:$0xff]
  %5 = vst [vmem:[%s1] sm:$0xff] %v4
  %s6 = scalar_lea.vmem %s1, 8
  %7 = vst [vmem:[%s6] sm:$0xff] %v4

// kernel: tile.19
$region0: #{tile.19}
  %s0 = inlined_call_operand.vmem [shape: f32[16,3], index: 0, kind: input, shape index: {}]
  %s1 = inlined_call_operand.vmem [shape: f32[48], index: 1, kind: output, shape index: {}]
  $region1: #{tile.19} parent=0
    #allocation0 [shape = 'u8[4096]{0}', space=vmem, size = 0x1000, scoped, tag = 'scoped mem for output reshape']
    %v2 = vld [vmem:[%s0] sm:$0x1]
    %vm3 = vcmask 23552
    %4 = vst.msk [vmem:[#allocation0] sm:$0x1] %vm3, %v2
    %s5 = scalar_lea.vmem %s0, 15
    %v6 = vld [vmem:[%s5] sm:$0x1]
    %7 = vrot.lane.b32.xlu0 %v6, 45
    %v8 = vpop.permute.xlu0 %7
    %vm9 = vcmask 392552
    %10 = vst.msk [vmem:[#allocation0] sm:$0x1] %vm9, %v8
    %s11 = scalar_lea.vmem %s0, 14
    %v12 = vld [vmem:[%s11] sm:$0x1]
    %13 = vrot.lane.b32.xlu0 %v12, 42
    %v14 = vpop.permute.xlu0 %13
    %vm15 = vcmask 367952
    %16 = vst.msk [vmem:[#allocation0] sm:$0x1] %vm15, %v14
    %s17 = scalar_lea.vmem %s0, 13
    %v18 = vld [vmem:[%s17] sm:$0x1]
    %19 = vrot.lane.b32.xlu0 %v18, 39
    %v20 = vpop.permute.xlu0 %19
    %vm21 = vcmask 343352
    %22 = vst.msk [vmem:[#allocation0] sm:$0x1] %vm21, %v20
    %s23 = scalar_lea.vmem %s0, 12
    %v24 = vld [vmem:[%s23] sm:$0x1]
    %25 = vrot.lane.b32.xlu0 %v24, 36
    %v26 = vpop.permute.xlu0 %25
    %vm27 = vcmask 318752
    %28 = vst.msk [vmem:[#allocation0] sm:$0x1] %vm27, %v26
    %s29 = scalar_lea.vmem %s0, 11
    %v30 = vld [vmem:[%s29] sm:$0x1]
    %31 = vrot.lane.b32.xlu0 %v30, 33
    %v32 = vpop.permute.xlu0 %31
    %vm33 = vcmask 294152
    %34 = vst.msk [vmem:[#allocation0] sm:$0x1] %vm33, %v32
    %s35 = scalar_lea.vmem %s0, 10
    %v36 = vld [vmem:[%s35] sm:$0x1]
    %37 = vrot.lane.b32.xlu0 %v36, 30
    %v38 = vpop.permute.xlu0 %37
    %vm39 = vcmask 269552
    %40 = vst.msk [vmem:[#allocation0] sm:$0x1] %vm39, %v38
    %s41 = scalar_lea.vmem %s0, 9
    %v42 = vld [vmem:[%s41] sm:$0x1]
    %43 = vrot.lane.b32.xlu0 %v42, 27
    %v44 = vpop.permute.xlu0 %43
    %vm45 = vcmask 244952
    %46 = vst.msk [vmem:[#allocation0] sm:$0x1] %vm45, %v44
    %s47 = scalar_lea.vmem %s0, 8
    %v48 = vld [vmem:[%s47] sm:$0x1]
    %49 = vrot.lane.b32.xlu0 %v48, 24
    %v50 = vpop.permute.xlu0 %49
    %vm51 = vcmask 220352
    %52 = vst.msk [vmem:[#allocation0] sm:$0x1] %vm51, %v50
    %s53 = scalar_lea.vmem %s0, 7
    %v54 = vld [vmem:[%s53] sm:$0x1]
    %55 = vrot.lane.b32.xlu0 %v54, 21
    %v56 = vpop.permute.xlu0 %55
    %vm57 = vcmask 195752
    %58 = vst.msk [vmem:[#allocation0] sm:$0x1] %vm57, %v56
    %s59 = scalar_lea.vmem %s0, 6
    %v60 = vld [vmem:[%s59] sm:$0x1]
    %61 = vrot.lane.b32.xlu0 %v60, 18
    %v62 = vpop.permute.xlu0 %61
    %vm63 = vcmask 171152
    %64 = vst.msk [vmem:[#allocation0] sm:$0x1] %vm63, %v62
    %s65 = scalar_lea.vmem %s0, 5
    %v66 = vld [vmem:[%s65] sm:$0x1]
    %67 = vrot.lane.b32.xlu0 %v66, 15
    %v68 = vpop.permute.xlu0 %67
    %vm69 = vcmask 146552
    %70 = vst.msk [vmem:[#allocation0] sm:$0x1] %vm69, %v68
    %s71 = scalar_lea.vmem %s0, 4
    %v72 = vld [vmem:[%s71] sm:$0x1]
    %73 = vrot.lane.b32.xlu0 %v72, 12
    %v74 = vpop.permute.xlu0 %73
    %vm75 = vcmask 121952
    %76 = vst.msk [vmem:[#allocation0] sm:$0x1] %vm75, %v74
    %s77 = scalar_lea.vmem %s0, 3
    %v78 = vld [vmem:[%s77] sm:$0x1]
    %79 = vrot.lane.b32.xlu0 %v78, 9
    %v80 = vpop.permute.xlu0 %79
    %vm81 = vcmask 97352
    %82 = vst.msk [vmem:[#allocation0] sm:$0x1] %vm81, %v80
    %s83 = scalar_lea.vmem %s0, 2
    %v84 = vld [vmem:[%s83] sm:$0x1]
    %85 = vrot.lane.b32.xlu0 %v84, 6
    %v86 = vpop.permute.xlu0 %85
    %vm87 = vcmask 72752
    %88 = vst.msk [vmem:[#allocation0] sm:$0x1] %vm87, %v86
    %s89 = scalar_lea.vmem %s0, 1
    %v90 = vld [vmem:[%s89] sm:$0x1]
    %91 = vrot.lane.b32.xlu0 %v90, 3
    %v92 = vpop.permute.xlu0 %91
    %vm93 = vcmask 48152
    %94 = vst.msk [vmem:[#allocation0] sm:$0x1] %vm93, %v92
    %s96 = sshllo.u32 0, 1
    %v98 = vld [vmem:[#allocation0] sm:%s96]
    %s99 = sshllo.u32 0, 1
    %100 = vst [vmem:[%s1] sm:%s99] %v98

// kernel: mul.4
$region0: #{mul.4}
  %s0 = inlined_call_operand.vmem [shape: f32[16,2,2,3], index: 0, kind: input, shape index: {}]
  %s1 = inlined_call_operand.vmem [shape: f32[16,12], index: 1, kind: output, shape index: {}]
  $region1: #{mul.4} parent=0
    #allocation0 [shape = 'u8[16384]{0}', space=vmem, size = 0x4000, scoped, tag = 'scoped mem for input reshape']
    %s3 = sshllo.u32 0, 4
    %s4 = smul.addr 4, 3
    %s5 = scalar_lea.vmem %s0, %s4
    %v6 = vld [vmem:[%s5] sm:%s3]
    %s7 = scalar_lea.vmem [#allocation0], 24
    %8 = vst [vmem:[%s7] sm:%s3] %v6
    %s9 = smul.addr 4, 2
    %s10 = scalar_lea.vmem %s0, %s9
    %v11 = vld [vmem:[%s10] sm:%s3]
    %s12 = scalar_lea.vmem [#allocation0], 16
    %13 = vst [vmem:[%s12] sm:%s3] %v11
    %s14 = scalar_lea.vmem %s0, 4
    %v15 = vld [vmem:[%s14] sm:%s3]
    %s16 = scalar_lea.vmem [#allocation0], 8
    %17 = vst [vmem:[%s16] sm:%s3] %v15
    %v18 = vld [vmem:[%s0] sm:%s3]
    %19 = vst [vmem:[#allocation0] sm:%s3] %v18
    %v20 = vld [vmem:[#allocation0] sm:$0x7]
    %vm21 = vcmask 130048
    %22 = vst.msk [vmem:[%s1] sm:$0x7] %vm21, %v20
    %s23 = scalar_lea.vmem [#allocation0], 8
    %v24 = vld [vmem:[%s23] sm:$0x7]
    %vm25 = vcmask 130048
    %s26 = scalar_lea.vmem %s1, 3
    %27 = vst.msk [vmem:[%s26] sm:$0x7] %vm25, %v24
    %s28 = scalar_lea.vmem [#allocation0], 16
    %v29 = vld [vmem:[%s28] sm:$0x7]
    %vm30 = vcmask 130048
    %s31 = scalar_lea.vmem %s1, 6
    %32 = vst.msk [vmem:[%s31] sm:$0x7] %vm30, %v29
    %s33 = scalar_lea.vmem [#allocation0], 24
    %v34 = vld [vmem:[%s33] sm:$0x7]
    %vm35 = vcmask 130048
    %s36 = scalar_lea.vmem %s1, 9
    %37 = vst.msk [vmem:[%s36] sm:$0x7] %vm35, %v34

// kernel: conv_autoencoder_forward.1
$region0: #{conv_autoencoder_forward.1}
  #allocation0 [shape = 'u32[]', space=smem, size = 0x4, offset = 0x4, fixed_abs, tag = 'smem constant byte address 0x4 - core index']
  #allocation1 [shape = 'u32[144,128]{1,0:T(1,128)}', space=vmem, size = 0x12000, scoped, tag = 'internal scratch']
  #allocation2 [shape = 'bf16[18,18,3]{2,1,0:T(8,128)(2,1)}', space=vmem, size = 0x1b000, scoped, tag = 'scratch operand']
  #allocation3 [shape = 'bf16[10,10,16]{2,1,0:T(8,128)(2,1)}', space=vmem, size = 0xa000, scoped, tag = 'scratch operand']
  %s0 = inlined_call_operand.vmem [shape: f32[2,16,16,3], index: 0, kind: input, shape index: {}]
  %s1 = inlined_call_operand.vmem [shape: bf16[9,3,16], index: 1, kind: input, shape index: {}]
  %s2 = inlined_call_operand.vmem [shape: f32[1,16], index: 2, kind: input, shape index: {}]
  %s3 = inlined_call_operand.vmem [shape: bf16[9,16,4], index: 3, kind: input, shape index: {}]
  %s4 = inlined_call_operand.vmem [shape: f32[1,4], index: 4, kind: input, shape index: {}]
  %s5 = inlined_call_operand.vmem [shape: bf16[4,64], index: 5, kind: input, shape index: {}]
  %s6 = inlined_call_operand.vmem [shape: f32[1,64], index: 6, kind: input, shape index: {}]
  %s7 = inlined_call_operand.vmem [shape: bf16[64,128], index: 7, kind: input, shape index: {}]
  %s8 = inlined_call_operand.vmem [shape: f32[1,128], index: 8, kind: input, shape index: {}]
  %s9 = inlined_call_operand.vmem [shape: f32[2,16,128], index: 9, kind: output, shape index: {}]
  %s10 = sld [smem:[#allocation0]]
  $region69: #{conv_autoencoder_forward.1} parent=0
    _
  %s12 = ssub.s32 1, %s10
  %s13 = scalar_select 0, %s12, %s10
  loop: start=0, step=1, limit=4
  $region2: #{conv_autoencoder_forward.1} parent=0 // loop_pre_header
    _
  $region3: #{conv_autoencoder_forward.1} parent=0 // loop_header
    %s15 = sphi 0, %s19
    %p16 = scmp.ge.s32.totalorder %s15, 4
    %s25 = sphi 0, %s27
    %s28 = sphi 0, %s25
    %s29 = sphi 0, %s28
    %s45 = sphi 0, %s29
    %s49 = sphi 0, %s49
    %s51 = sphi 0, %s49
    %s52 = sphi 0, %s51
    %s66 = sphi 0, %s52
    %s70 = sphi 0, %s70
    %s72 = sphi 0, %s70
    %s73 = sphi 0, %s72
    %s87 = sphi 0, %s73
    %s91 = sphi 0, %s91
    %s93 = sphi 0, %s91
    %s94 = sphi 0, %s93
    %s108 = sphi 0, %s94
    %s112 = sphi 0, %s112
    %s114 = sphi 0, %s112
    %s115 = sphi 0, %s114
    %s129 = sphi 0, %s115
    %s133 = sphi 0, %s133
    %s135 = sphi 0, %s133
    %s136 = sphi 0, %s135
    %s150 = sphi 0, %s136
    %s154 = sphi 0, %s154
    %s156 = sphi 0, %s154
    %s157 = sphi 0, %s156
    %s171 = sphi 0, %s157
    %s175 = sphi 0, %s175
    %s177 = sphi 0, %s175
    %s178 = sphi 0, %s177
    %s192 = sphi 0, %s178
    %s196 = sphi 0, %s196
    %s198 = sphi 0, %s196
    %s199 = sphi 0, %s198
    %s213 = sphi 0, %s199
    %s219 = sphi 0, %s221
    %s222 = sphi 0, %s219
    %s223 = sphi 0, %s222
    %s239 = sphi 0, %s223
  $region4: #{conv_autoencoder_forward.1} parent=0 // loop_header_branch
    %18 = sbr.rel (%p16) target = $region8
  $region5: #{conv_autoencoder_forward.1} parent=0 // loop_body
    %s20 = ssub.s32 %s15, 1
    %s21 = ssub.s32 %s15, 2
    %s22 = sadd.s32 %s15, 1
    %s23 = ssub.s32 %s15, %s22
    %p24 = scmp.eq.s32.totalorder %s23, 0
    %s26 = sadd.s32 %s25, 1
    %s27 = scalar_select %p24, %s25, %s26
    %p30 = pneg %p24
    %p31 = scmp.eq.s32.totalorder %s15, 1
    %p32 = por %p30, %p31
    %p33 = scmp.ne.s32.totalorder %s25, %s28
    %p34 = scmp.eq.s32.totalorder %s15, 0
    %p35 = por %p33, %p34
    %p36 = scmp.ne.s32.totalorder %s25, %s28
    %p37 = scmp.eq.s32.totalorder %s20, 1
    %p38 = por %p36, %p37
    %p39 = scmp.ne.s32.totalorder %s28, %s29
    %p40 = scmp.eq.s32.totalorder %s20, 0
    %p41 = por %p39, %p40
    %p42 = scmp.ne.s32.totalorder %s28, %s29
    %p43 = scmp.eq.s32.totalorder %s21, 1
    %p44 = por %p42, %p43
    %p46 = scmp.ne.s32.totalorder %s29, %s45
    %p47 = scmp.eq.s32.totalorder %s21, 0
    %p48 = por %p46, %p47
    %s50 = sadd.s32 %s49, 1
    %p53 = scmp.eq.s32.totalorder %s15, 1
    %p54 = scmp.ne.s32.totalorder %s49, %s51
    %p55 = scmp.eq.s32.totalorder %s15, 0
    %p56 = por %p54, %p55
    %p57 = scmp.ne.s32.totalorder %s49, %s51
    %p58 = scmp.eq.s32.totalorder %s20, 1
    %p59 = por %p57, %p58
    %p60 = scmp.ne.s32.totalorder %s51, %s52
    %p61 = scmp.eq.s32.totalorder %s20, 0
    %p62 = por %p60, %p61
    %p63 = scmp.ne.s32.totalorder %s51, %s52
    %p64 = scmp.eq.s32.totalorder %s21, 1
    %p65 = por %p63, %p64
    %p67 = scmp.ne.s32.totalorder %s52, %s66
    %p68 = scmp.eq.s32.totalorder %s21, 0
    %p69 = por %p67, %p68
    %s71 = sadd.s32 %s70, 1
    %p74 = scmp.eq.s32.totalorder %s15, 1
    %p75 = scmp.ne.s32.totalorder %s70, %s72
    %p76 = scmp.eq.s32.totalorder %s15, 0
    %p77 = por %p75, %p76
    %p78 = scmp.ne.s32.totalorder %s70, %s72
    %p79 = scmp.eq.s32.totalorder %s20, 1
    %p80 = por %p78, %p79
    %p81 = scmp.ne.s32.totalorder %s72, %s73
    %p82 = scmp.eq.s32.totalorder %s20, 0
    %p83 = por %p81, %p82
    %p84 = scmp.ne.s32.totalorder %s72, %s73
    %p85 = scmp.eq.s32.totalorder %s21, 1
    %p86 = por %p84, %p85
    %p88 = scmp.ne.s32.totalorder %s73, %s87
    %p89 = scmp.eq.s32.totalorder %s21, 0
    %p90 = por %p88, %p89
    %s92 = sadd.s32 %s91, 1
    %p95 = scmp.eq.s32.totalorder %s15, 1
    %p96 = scmp.ne.s32.totalorder %s91, %s93
    %p97 = scmp.eq.s32.totalorder %s15, 0
    %p98 = por %p96, %p97
    %p99 = scmp.ne.s32.totalorder %s91, %s93
    %p100 = scmp.eq.s32.totalorder %s20, 1
    %p101 = por %p99, %p100
    %p102 = scmp.ne.s32.totalorder %s93, %s94
    %p103 = scmp.eq.s32.totalorder %s20, 0
    %p104 = por %p102, %p103
    %p105 = scmp.ne.s32.totalorder %s93, %s94
    %p106 = scmp.eq.s32.totalorder %s21, 1
    %p107 = por %p105, %p106
    %p109 = scmp.ne.s32.totalorder %s94, %s108
    %p110 = scmp.eq.s32.totalorder %s21, 0
    %p111 = por %p109, %p110
    %s113 = sadd.s32 %s112, 1
    %p116 = scmp.eq.s32.totalorder %s15, 1
    %p117 = scmp.ne.s32.totalorder %s112, %s114
    %p118 = scmp.eq.s32.totalorder %s15, 0
    %p119 = por %p117, %p118
    %p120 = scmp.ne.s32.totalorder %s112, %s114
    %p121 = scmp.eq.s32.totalorder %s20, 1
    %p122 = por %p120, %p121
    %p123 = scmp.ne.s32.totalorder %s114, %s115
    %p124 = scmp.eq.s32.totalorder %s20, 0
    %p125 = por %p123, %p124
    %p126 = scmp.ne.s32.totalorder %s114, %s115
    %p127 = scmp.eq.s32.totalorder %s21, 1
    %p128 = por %p126, %p127
    %p130 = scmp.ne.s32.totalorder %s115, %s129
    %p131 = scmp.eq.s32.totalorder %s21, 0
    %p132 = por %p130, %p131
    %s134 = sadd.s32 %s133, 1
    %p137 = scmp.eq.s32.totalorder %s15, 1
    %p138 = scmp.ne.s32.totalorder %s133, %s135
    %p139 = scmp.eq.s32.totalorder %s15, 0
    %p140 = por %p138, %p139
    %p141 = scmp.ne.s32.totalorder %s133, %s135
    %p142 = scmp.eq.s32.totalorder %s20, 1
    %p143 = por %p141, %p142
    %p144 = scmp.ne.s32.totalorder %s135, %s136
    %p145 = scmp.eq.s32.totalorder %s20, 0
    %p146 = por %p144, %p145
    %p147 = scmp.ne.s32.totalorder %s135, %s136
    %p148 = scmp.eq.s32.totalorder %s21, 1
    %p149 = por %p147, %p148
    %p151 = scmp.ne.s32.totalorder %s136, %s150
    %p152 = scmp.eq.s32.totalorder %s21, 0
    %p153 = por %p151, %p152
    %s155 = sadd.s32 %s154, 1
    %p158 = scmp.eq.s32.totalorder %s15, 1
    %p159 = scmp.ne.s32.totalorder %s154, %s156
    %p160 = scmp.eq.s32.totalorder %s15, 0
    %p161 = por %p159, %p160
    %p162 = scmp.ne.s32.totalorder %s154, %s156
    %p163 = scmp.eq.s32.totalorder %s20, 1
    %p164 = por %p162, %p163
    %p165 = scmp.ne.s32.totalorder %s156, %s157
    %p166 = scmp.eq.s32.totalorder %s20, 0
    %p167 = por %p165, %p166
    %p168 = scmp.ne.s32.totalorder %s156, %s157
    %p169 = scmp.eq.s32.totalorder %s21, 1
    %p170 = por %p168, %p169
    %p172 = scmp.ne.s32.totalorder %s157, %s171
    %p173 = scmp.eq.s32.totalorder %s21, 0
    %p174 = por %p172, %p173
    %s176 = sadd.s32 %s175, 1
    %p179 = scmp.eq.s32.totalorder %s15, 1
    %p180 = scmp.ne.s32.totalorder %s175, %s177
    %p181 = scmp.eq.s32.totalorder %s15, 0
    %p182 = por %p180, %p181
    %p183 = scmp.ne.s32.totalorder %s175, %s177
    %p184 = scmp.eq.s32.totalorder %s20, 1
    %p185 = por %p183, %p184
    %p186 = scmp.ne.s32.totalorder %s177, %s178
    %p187 = scmp.eq.s32.totalorder %s20, 0
    %p188 = por %p186, %p187
    %p189 = scmp.ne.s32.totalorder %s177, %s178
    %p190 = scmp.eq.s32.totalorder %s21, 1
    %p191 = por %p189, %p190
    %p193 = scmp.ne.s32.totalorder %s178, %s192
    %p194 = scmp.eq.s32.totalorder %s21, 0
    %p195 = por %p193, %p194
    %s197 = sadd.s32 %s196, 1
    %p200 = scmp.eq.s32.totalorder %s15, 1
    %p201 = scmp.ne.s32.totalorder %s196, %s198
    %p202 = scmp.eq.s32.totalorder %s15, 0
    %p203 = por %p201, %p202
    %p204 = scmp.ne.s32.totalorder %s196, %s198
    %p205 = scmp.eq.s32.totalorder %s20, 1
    %p206 = por %p204, %p205
    %p207 = scmp.ne.s32.totalorder %s198, %s199
    %p208 = scmp.eq.s32.totalorder %s20, 0
    %p209 = por %p207, %p208
    %p210 = scmp.ne.s32.totalorder %s198, %s199
    %p211 = scmp.eq.s32.totalorder %s21, 1
    %p212 = por %p210, %p211
    %p214 = scmp.ne.s32.totalorder %s199, %s213
    %p215 = scmp.eq.s32.totalorder %s21, 0
    %p216 = por %p214, %p215
    %s217 = ssub.s32 %s15, %s22
    %p218 = scmp.eq.s32.totalorder %s217, 0
    %s220 = sadd.s32 %s219, 1
    %s221 = scalar_select %p218, %s219, %s220
    %p224 = pneg %p218
    %p225 = scmp.eq.s32.totalorder %s15, 1
    %p226 = por %p224, %p225
    %p227 = scmp.ne.s32.totalorder %s219, %s222
    %p228 = scmp.eq.s32.totalorder %s15, 0
    %p229 = por %p227, %p228
    %p230 = scmp.ne.s32.totalorder %s219, %s222
    %p231 = scmp.eq.s32.totalorder %s20, 1
    %p232 = por %p230, %p231
    %p233 = scmp.ne.s32.totalorder %s222, %s223
    %p234 = scmp.eq.s32.totalorder %s20, 0
    %p235 = por %p233, %p234
    %p236 = scmp.ne.s32.totalorder %s222, %s223
    %p237 = scmp.eq.s32.totalorder %s21, 1
    %p238 = por %p236, %p237
    %p240 = scmp.ne.s32.totalorder %s223, %s239
    %p241 = scmp.eq.s32.totalorder %s21, 0
    %p242 = por %p240, %p241
    %p243 = scmp.le.s32.totalorder 1, %s15
    %p244 = scmp.lt.s32.totalorder %s15, 3
    %p245 = pnand %p243, %p244
    %p246 = pneg %p245
    // Predicated region
    $region9: #{conv_autoencoder_forward.1} parent=5 // pred_check
      _
    $region10: #{conv_autoencoder_forward.1} parent=5 // pred_check_branch
      %248 = sbr.rel (%p245) target = $region12
    $region11: #{conv_autoencoder_forward.1} parent=5 // pred_region
      %s249 = ssub.s32 %s15, 1
      // Predicated region
      $region13: #{conv_autoencoder_forward.1} parent=11 // pred_check
        %p250 = pneg %p62
      $region14: #{conv_autoencoder_forward.1} parent=11 // pred_check_branch
        %252 = sbr.rel (%p250) target = $region16
      $region15: #{conv_autoencoder_forward.1} parent=11 // pred_region
        _
      $region16: #{conv_autoencoder_forward.1} parent=11 // pred_fallthru
        _
      // Predicated region
      $region17: #{conv_autoencoder_forward.1} parent=11 // pred_check
        %p253 = pneg %p83
      $region18: #{conv_autoencoder_forward.1} parent=11 // pred_check_branch
        %255 = sbr.rel (%p253) target = $region20
      $region19: #{conv_autoencoder_forward.1} parent=11 // pred_region
        _
      $region20: #{conv_autoencoder_forward.1} parent=11 // pred_fallthru
        _
      // Predicated region
      $region21: #{conv_autoencoder_forward.1} parent=11 // pred_check
        %p256 = pneg %p104
      $region22: #{conv_autoencoder_forward.1} parent=11 // pred_check_branch
        %258 = sbr.rel (%p256) target = $region24
      $region23: #{conv_autoencoder_forward.1} parent=11 // pred_region
        _
      $region24: #{conv_autoencoder_forward.1} parent=11 // pred_fallthru
        _
      // Predicated region
      $region25: #{conv_autoencoder_forward.1} parent=11 // pred_check
        %p259 = pneg %p125
      $region26: #{conv_autoencoder_forward.1} parent=11 // pred_check_branch
        %261 = sbr.rel (%p259) target = $region28
      $region27: #{conv_autoencoder_forward.1} parent=11 // pred_region
        _
      $region28: #{conv_autoencoder_forward.1} parent=11 // pred_fallthru
        _
      // Predicated region
      $region29: #{conv_autoencoder_forward.1} parent=11 // pred_check
        %p262 = pneg %p146
      $region30: #{conv_autoencoder_forward.1} parent=11 // pred_check_branch
        %264 = sbr.rel (%p262) target = $region32
      $region31: #{conv_autoencoder_forward.1} parent=11 // pred_region
        _
      $region32: #{conv_autoencoder_forward.1} parent=11 // pred_fallthru
        _
      // Predicated region
      $region33: #{conv_autoencoder_forward.1} parent=11 // pred_check
        %p265 = pneg %p167
      $region34: #{conv_autoencoder_forward.1} parent=11 // pred_check_branch
        %267 = sbr.rel (%p265) target = $region36
      $region35: #{conv_autoencoder_forward.1} parent=11 // pred_region
        _
      $region36: #{conv_autoencoder_forward.1} parent=11 // pred_fallthru
        _
      // Predicated region
      $region37: #{conv_autoencoder_forward.1} parent=11 // pred_check
        %p268 = pneg %p188
      $region38: #{conv_autoencoder_forward.1} parent=11 // pred_check_branch
        %270 = sbr.rel (%p268) target = $region40
      $region39: #{conv_autoencoder_forward.1} parent=11 // pred_region
        _
      $region40: #{conv_autoencoder_forward.1} parent=11 // pred_fallthru
        _
      // Predicated region
      $region41: #{conv_autoencoder_forward.1} parent=11 // pred_check
        %p271 = pneg %p209
      $region42: #{conv_autoencoder_forward.1} parent=11 // pred_check_branch
        %273 = sbr.rel (%p271) target = $region44
      $region43: #{conv_autoencoder_forward.1} parent=11 // pred_region
        _
      $region44: #{conv_autoencoder_forward.1} parent=11 // pred_fallthru
        _
    $region12: #{conv_autoencoder_forward.1} parent=5 // pred_fallthru
      _
    %p274 = scmp.lt.s32.totalorder %s15, 2
    // Predicated region
    $region45: #{conv_autoencoder_forward.1} parent=5 // pred_check
      %p275 = pneg %p274
    $region46: #{conv_autoencoder_forward.1} parent=5 // pred_check_branch
      %277 = sbr.rel (%p275) target = $region48
    $region47: #{conv_autoencoder_forward.1} parent=5 // pred_region
      // Predicated region
      $region49: #{conv_autoencoder_forward.1} parent=47 // pred_check
        %p278 = pneg %p35
      $region50: #{conv_autoencoder_forward.1} parent=47 // pred_check_branch
        %280 = sbr.rel (%p278) target = $region52
      $region51: #{conv_autoencoder_forward.1} parent=47 // pred_region
        %p281 = scmp.lt.s32.totalorder %s15, 1
        %s282 = scalar_select %p281, %s15, 1
        %s283 = smul.addr %s282, 32
        %s284 = smul.addr %s283, 8
        %s285 = scalar_lea.vmem %s0, %s284
      $region52: #{conv_autoencoder_forward.1} parent=47 // pred_fallthru
        _
    $region48: #{conv_autoencoder_forward.1} parent=5 // pred_fallthru
      _
    %p286 = scmp.le.s32.totalorder 1, %s15
    %p287 = scmp.lt.s32.totalorder %s15, 3
    %p288 = pnand %p286, %p287
    %p289 = pneg %p288
    // Predicated region
    $region53: #{conv_autoencoder_forward.1} parent=5 // pred_check
      _
    $region54: #{conv_autoencoder_forward.1} parent=5 // pred_check_branch
      %291 = sbr.rel (%p288) target = $region56
    $region55: #{conv_autoencoder_forward.1} parent=5 // pred_region
      %s292 = ssub.s32 %s15, 1
      %p293 = scmp.lt.s32.totalorder %s20, 1
      %s294 = scalar_select %p293, %s20, 1
      %s295 = smul.addr %s294, 32
      %s296 = smul.addr %s295, 8
      %s297 = scalar_lea.vmem %s0, %s296
      %p298 = pneg %p41
      %p299 = pneg %p38
      %p300 = pneg %p62
      %p301 = pneg %p59
      %p302 = pneg %p83
      %p303 = pneg %p80
      %p304 = pneg %p104
      %p305 = pneg %p101
      %p306 = pneg %p125
      %p307 = pneg %p122
      %p308 = pneg %p146
      %p309 = pneg %p143
      %p310 = pneg %p167
      %p311 = pneg %p164
      %p312 = pneg %p188
      %p313 = pneg %p185
      %p314 = pneg %p209
      %p315 = pneg %p206
      %p316 = pneg %p235
      %p317 = pneg %p232
      %p318 = scmp.lt.s32.totalorder %s20, 1
      %s319 = scalar_select %p318, %s20, 1
      %s320 = smul.addr %s319, 2
      %s321 = smul.addr %s320, 8
      %s322 = scalar_lea.vmem %s9, %s321
      %p323 = scmp.lt.s32.totalorder %s20, 1
      %s324 = scalar_select %p323, %s20, 1
      %s325 = smul.addr %s324, 32
      %s326 = smul.addr %s325, 8
      %s327 = scalar_lea.vmem %s0, %s326
      %p328 = scmp.lt.s32.totalorder %s20, 1
      %s329 = scalar_select %p328, %s20, 1
      %s330 = smul.addr %s329, 2
      %s331 = smul.addr %s330, 8
      %s332 = scalar_lea.vmem %s9, %s331
      %vm334 = vcmask 19456
      %335 = vst.msk [vmem:[#allocation2] sm:$0xf] %vm334, 0
      %336 = vst.msk [vmem:[#allocation2 + $0x4] sm:$0xf] %vm334, 0
      %vm337 = vcmask 16384
      %338 = vst.msk [vmem:[#allocation2 + $0x8] sm:$0x1] %vm337, 0
      %s339 = scalar_lea.vmem [#allocation2], 204
      %340 = vst.msk [vmem:[%s339] sm:$0xf] %vm334, 0
      %341 = vst.msk [vmem:[%s339 + $0x4] sm:$0xf] %vm334, 0
      %342 = vst.msk [vmem:[%s339 + $0x8] sm:$0x1] %vm337, 0
      %vm343 = vcmask 16384
      %vm344 = vsmask.f32 256
      %vm345 = vmand %vm343, %vm344
      %v346 = vld [vmem:[#allocation2] sm:$0x1]
      %v347 = vsel %vm345, 0, %v346
      %348 = vst [vmem:[#allocation2] sm:$0x1] %v347
      %v349 = vld [vmem:[#allocation2 + $0xc] sm:$0x1]
      %v350 = vsel %vm345, 0, %v349
      %351 = vst [vmem:[#allocation2 + $0xc] sm:$0x1] %v350
      %v352 = vld [vmem:[#allocation2 + $0x18] sm:$0x1]
      %v353 = vsel %vm345, 0, %v352
      %354 = vst [vmem:[#allocation2 + $0x18] sm:$0x1] %v353
      %v355 = vld [vmem:[#allocation2 + $0x24] sm:$0x1]
      %v356 = vsel %vm345, 0, %v355
      %357 = vst [vmem:[#allocation2 + $0x24] sm:$0x1] %v356
      %v358 = vld [vmem:[#allocation2 + $0x30] sm:$0x1]
      %v359 = vsel %vm345, 0, %v358
      %360 = vst [vmem:[#allocation2 + $0x30] sm:$0x1] %v359
      %v361 = vld [vmem:[#allocation2 + $0x3c] sm:$0x1]
      %v362 = vsel %vm345, 0, %v361
      %363 = vst [vmem:[#allocation2 + $0x3c] sm:$0x1] %v362
      %v364 = vld [vmem:[#allocation2 + $0x48] sm:$0x1]
      %v365 = vsel %vm345, 0, %v364
      %366 = vst [vmem:[#allocation2 + $0x48] sm:$0x1] %v365
      %v367 = vld [vmem:[#allocation2 + $0x54] sm:$0x1]
      %v368 = vsel %vm345, 0, %v367
      %369 = vst [vmem:[#allocation2 + $0x54] sm:$0x1] %v368
      %v370 = vld [vmem:[#allocation2 + $0x60] sm:$0x1]
      %v371 = vsel %vm345, 0, %v370
      %372 = vst [vmem:[#allocation2 + $0x60] sm:$0x1] %v371
      %v373 = vld [vmem:[#allocation2 + $0x6c] sm:$0x1]
      %v374 = vsel %vm345, 0, %v373
      %375 = vst [vmem:[#allocation2 + $0x6c] sm:$0x1] %v374
      %v376 = vld [vmem:[#allocation2 + $0x78] sm:$0x1]
      %v377 = vsel %vm345, 0, %v376
      %378 = vst [vmem:[#allocation2 + $0x78] sm:$0x1] %v377
      %v379 = vld [vmem:[#allocation2 + $0x84] sm:$0x1]
      %v380 = vsel %vm345, 0, %v379
      %381 = vst [vmem:[#allocation2 + $0x84] sm:$0x1] %v380
      %v382 = vld [vmem:[#allocation2 + $0x90] sm:$0x1]
      %v383 = vsel %vm345, 0, %v382
      %384 = vst [vmem:[#allocation2 + $0x90] sm:$0x1] %v383
      %v385 = vld [vmem:[#allocation2 + $0x9c] sm:$0x1]
      %v386 = vsel %vm345, 0, %v385
      %387 = vst [vmem:[#allocation2 + $0x9c] sm:$0x1] %v386
      %v388 = vld [vmem:[#allocation2 + $0xa8] sm:$0x1]
      %v389 = vsel %vm345, 0, %v388
      %390 = vst [vmem:[#allocation2 + $0xa8] sm:$0x1] %v389
      %v391 = vld [vmem:[#allocation2 + $0xb4] sm:$0x1]
      %v392 = vsel %vm345, 0, %v391
      %393 = vst [vmem:[#allocation2 + $0xb4] sm:$0x1] %v392
      %v394 = vld [vmem:[#allocation2 + $0xc0] sm:$0x1]
      %v395 = vsel %vm345, 0, %v394
      %396 = vst [vmem:[#allocation2 + $0xc0] sm:$0x1] %v395
      %v397 = vld [vmem:[#allocation2 + $0xcc] sm:$0x1]
      %v398 = vsel %vm345, 0, %v397
      %399 = vst [vmem:[#allocation2 + $0xcc] sm:$0x1] %v398
      %vm400 = vsmask.f32 7938
      %vm401 = vmand %vm343, %vm400
      %v402 = vld [vmem:[#allocation2 + $0x8] sm:$0x1]
      %v403 = vsel %vm401, 0, %v402
      %404 = vst [vmem:[#allocation2 + $0x8] sm:$0x1] %v403
      %v405 = vld [vmem:[#allocation2 + $0x14] sm:$0x1]
      %v406 = vsel %vm401, 0, %v405
      %407 = vst [vmem:[#allocation2 + $0x14] sm:$0x1] %v406
      %v408 = vld [vmem:[#allocation2 + $0x20] sm:$0x1]
      %v409 = vsel %vm401, 0, %v408
      %410 = vst [vmem:[#allocation2 + $0x20] sm:$0x1] %v409
      %v411 = vld [vmem:[#allocation2 + $0x2c] sm:$0x1]
      %v412 = vsel %vm401, 0, %v411
      %413 = vst [vmem:[#allocation2 + $0x2c] sm:$0x1] %v412
      %v414 = vld [vmem:[#allocation2 + $0x38] sm:$0x1]
      %v415 = vsel %vm401, 0, %v414
      %416 = vst [vmem:[#allocation2 + $0x38] sm:$0x1] %v415
      %v417 = vld [vmem:[#allocation2 + $0x44] sm:$0x1]
      %v418 = vsel %vm401, 0, %v417
      %419 = vst [vmem:[#allocation2 + $0x44] sm:$0x1] %v418
      %v420 = vld [vmem:[#allocation2 + $0x50] sm:$0x1]
      %v421 = vsel %vm401, 0, %v420
      %422 = vst [vmem:[#allocation2 + $0x50] sm:$0x1] %v421
      %v423 = vld [vmem:[#allocation2 + $0x5c] sm:$0x1]
      %v424 = vsel %vm401, 0, %v423
      %425 = vst [vmem:[#allocation2 + $0x5c] sm:$0x1] %v424
      %v426 = vld [vmem:[#allocation2 + $0x68] sm:$0x1]
      %v427 = vsel %vm401, 0, %v426
      %428 = vst [vmem:[#allocation2 + $0x68] sm:$0x1] %v427
      %v429 = vld [vmem:[#allocation2 + $0x74] sm:$0x1]
      %v430 = vsel %vm401, 0, %v429
      %431 = vst [vmem:[#allocation2 + $0x74] sm:$0x1] %v430
      %v432 = vld [vmem:[#allocation2 + $0x80] sm:$0x1]
      %v433 = vsel %vm401, 0, %v432
      %434 = vst [vmem:[#allocation2 + $0x80] sm:$0x1] %v433
      %v435 = vld [vmem:[#allocation2 + $0x8c] sm:$0x1]
      %v436 = vsel %vm401, 0, %v435
      %437 = vst [vmem:[#allocation2 + $0x8c] sm:$0x1] %v436
      %v438 = vld [vmem:[#allocation2 + $0x98] sm:$0x1]
      %v439 = vsel %vm401, 0, %v438
      %440 = vst [vmem:[#allocation2 + $0x98] sm:$0x1] %v439
      %v441 = vld [vmem:[#allocation2 + $0xa4] sm:$0x1]
      %v442 = vsel %vm401, 0, %v441
      %443 = vst [vmem:[#allocation2 + $0xa4] sm:$0x1] %v442
      %v444 = vld [vmem:[#allocation2 + $0xb0] sm:$0x1]
      %v445 = vsel %vm401, 0, %v444
      %446 = vst [vmem:[#allocation2 + $0xb0] sm:$0x1] %v445
      %v447 = vld [vmem:[#allocation2 + $0xbc] sm:$0x1]
      %v448 = vsel %vm401, 0, %v447
      %449 = vst [vmem:[#allocation2 + $0xbc] sm:$0x1] %v448
      %v450 = vld [vmem:[#allocation2 + $0xc8] sm:$0x1]
      %v451 = vsel %vm401, 0, %v450
      %452 = vst [vmem:[#allocation2 + $0xc8] sm:$0x1] %v451
      %v453 = vld [vmem:[#allocation2 + $0xd4] sm:$0x1]
      %v454 = vsel %vm401, 0, %v453
      %455 = vst [vmem:[#allocation2 + $0xd4] sm:$0x1] %v454
      %v456 = vld [vmem:[%s327] sm:$0xff]
      %v457 = vld [vmem:[%s327 + $0x8] sm:$0xff]
      %v458 = vld [vmem:[%s327 + $0x10] sm:$0xff]
      %v459 = vld [vmem:[%s327 + $0x18] sm:$0xff]
      %v460 = vld [vmem:[%s327 + $0x20] sm:$0xff]
      %v461 = vld [vmem:[%s327 + $0x28] sm:$0xff]
      %v462 = vld [vmem:[%s327 + $0x30] sm:$0xff]
      %v463 = vld [vmem:[%s327 + $0x38] sm:$0xff]
      %v464 = vld [vmem:[%s327 + $0x40] sm:$0xff]
      %v465 = vld [vmem:[%s327 + $0x48] sm:$0xff]
      %v466 = vld [vmem:[%s327 + $0x50] sm:$0xff]
      %v467 = vld [vmem:[%s327 + $0x58] sm:$0xff]
      %v468 = vld [vmem:[%s327 + $0x60] sm:$0xff]
      %v469 = vld [vmem:[%s327 + $0x68] sm:$0xff]
      %v470 = vld [vmem:[%s327 + $0x70] sm:$0xff]
      %v471 = vld [vmem:[%s327 + $0x78] sm:$0xff]
      %v472 = vld [vmem:[%s327 + $0x80] sm:$0xff]
      %v473 = vld [vmem:[%s327 + $0x88] sm:$0xff]
      %v474 = vld [vmem:[%s327 + $0x90] sm:$0xff]
      %v475 = vld [vmem:[%s327 + $0x98] sm:$0xff]
      %v476 = vld [vmem:[%s327 + $0xa0] sm:$0xff]
      %v477 = vld [vmem:[%s327 + $0xa8] sm:$0xff]
      %v478 = vld [vmem:[%s327 + $0xb0] sm:$0xff]
      %v479 = vld [vmem:[%s327 + $0xb8] sm:$0xff]
      %v480 = vld [vmem:[%s327 + $0xc0] sm:$0xff]
      %v481 = vld [vmem:[%s327 + $0xc8] sm:$0xff]
      %v482 = vld [vmem:[%s327 + $0xd0] sm:$0xff]
      %v483 = vld [vmem:[%s327 + $0xd8] sm:$0xff]
      %v484 = vld [vmem:[%s327 + $0xe0] sm:$0xff]
      %v485 = vld [vmem:[%s327 + $0xe8] sm:$0xff]
      %v486 = vld [vmem:[%s327 + $0xf0] sm:$0xff]
      %v487 = vld [vmem:[%s327 + $0xf8] sm:$0xff]
      %v488 = vpack.c.bf16 %v457, %v456
      %v489 = vpack.c.bf16 %v459, %v458
      %v490 = vpack.c.bf16 %v461, %v460
      %v491 = vpack.c.bf16 %v463, %v462
      %v492 = vpack.c.bf16 %v465, %v464
      %v493 = vpack.c.bf16 %v467, %v466
      %v494 = vpack.c.bf16 %v469, %v468
      %v495 = vpack.c.bf16 %v471, %v470
      %v496 = vpack.c.bf16 %v473, %v472
      %v497 = vpack.c.bf16 %v475, %v474
      %v498 = vpack.c.bf16 %v477, %v476
      %v499 = vpack.c.bf16 %v479, %v478
      %v500 = vpack.c.bf16 %v481, %v480
      %v501 = vpack.c.bf16 %v483, %v482
      %v502 = vpack.c.bf16 %v485, %v484
      %v503 = vpack.c.bf16 %v487, %v486
      %v520 = vunpack.c.l.b16 %v488
      %v521 = vunpack.c.h.b16 %v488
      %v522 = vunpack.c.l.b16 %v489
      %v523 = vunpack.c.h.b16 %v489
      %v524 = vunpack.c.l.b16 %v490
      %v525 = vunpack.c.h.b16 %v490
      %v526 = vunpack.c.l.b16 %v491
      %v527 = vunpack.c.h.b16 %v491
      %v528 = vunpack.c.l.b16 %v492
      %v529 = vunpack.c.h.b16 %v492
      %v530 = vunpack.c.l.b16 %v493
      %v531 = vunpack.c.h.b16 %v493
      %v532 = vunpack.c.l.b16 %v494
      %v533 = vunpack.c.h.b16 %v494
      %v534 = vunpack.c.l.b16 %v495
      %v535 = vunpack.c.h.b16 %v495
      %v536 = vunpack.c.l.b16 %v496
      %v537 = vunpack.c.h.b16 %v496
      %v538 = vunpack.c.l.b16 %v497
      %v539 = vunpack.c.h.b16 %v497
      %v540 = vunpack.c.l.b16 %v498
      %v541 = vunpack.c.h.b16 %v498
      %v542 = vunpack.c.l.b16 %v499
      %v543 = vunpack.c.h.b16 %v499
      %v544 = vunpack.c.l.b16 %v500
      %v545 = vunpack.c.h.b16 %v500
      %v546 = vunpack.c.l.b16 %v501
      %v547 = vunpack.c.h.b16 %v501
      %v548 = vunpack.c.l.b16 %v502
      %v549 = vunpack.c.h.b16 %v502
      %v550 = vunpack.c.l.b16 %v503
      %v551 = vunpack.c.h.b16 %v503
      %v552 = vpack.c.b16 %v520, %v520
      %v553 = vpack.c.b16 %v521, %v521
      %v554 = vpack.c.b16 %v522, %v522
      %v555 = vpack.c.b16 %v523, %v523
      %v556 = vpack.c.b16 %v524, %v524
      %v557 = vpack.c.b16 %v525, %v525
      %v558 = vpack.c.b16 %v526, %v526
      %v559 = vpack.c.b16 %v527, %v527
      %v560 = vpack.c.b16 %v528, %v528
      %v561 = vpack.c.b16 %v529, %v529
      %v562 = vpack.c.b16 %v530, %v530
      %v563 = vpack.c.b16 %v531, %v531
      %v564 = vpack.c.b16 %v532, %v532
      %v565 = vpack.c.b16 %v533, %v533
      %v566 = vpack.c.b16 %v534, %v534
      %v567 = vpack.c.b16 %v535, %v535
      %v568 = vpack.c.b16 %v536, %v536
      %v569 = vpack.c.b16 %v537, %v537
      %v570 = vpack.c.b16 %v538, %v538
      %v571 = vpack.c.b16 %v539, %v539
      %v572 = vpack.c.b16 %v540, %v540
      %v573 = vpack.c.b16 %v541, %v541
      %v574 = vpack.c.b16 %v542, %v542
      %v575 = vpack.c.b16 %v543, %v543
      %v576 = vpack.c.b16 %v544, %v544
      %v577 = vpack.c.b16 %v545, %v545
      %v578 = vpack.c.b16 %v546, %v546
      %v579 = vpack.c.b16 %v547, %v547
      %v580 = vpack.c.b16 %v548, %v548
      %v581 = vpack.c.b16 %v549, %v549
      %v582 = vpack.c.b16 %v550, %v550
      %v583 = vpack.c.b16 %v551, %v551
      %vm584 = vsmask.f32 4368
      %vm585 = vmor %vm344, %vm584
      %v587 = vshrl.u32 %v552, 16
      %v589 = vrot.slane %v587, 7
      %v590 = vshll.u32 %v552, 16
      %v592 = vor.u32 %v589, %v590
      %v593 = vrot.slane %v589, 4
      %v595 = vshrl.u32 %v553, 16
      %v597 = vrot.slane %v595, 7
      %v598 = vshll.u32 %v553, 16
      %v600 = vor.u32 %v597, %v598
      %v601 = vsel %vm585, %v593, %v600
      %v602 = vrot.slane %v597, 4
      %v604 = vshrl.u32 %v554, 16
      %v606 = vrot.slane %v604, 7
      %v607 = vshll.u32 %v554, 16
      %v609 = vor.u32 %v606, %v607
      %v610 = vrot.slane %v606, 4
      %v612 = vshrl.u32 %v555, 16
      %v614 = vrot.slane %v612, 7
      %v615 = vshll.u32 %v555, 16
      %v617 = vor.u32 %v614, %v615
      %v618 = vsel %vm585, %v610, %v617
      %v619 = vrot.slane %v614, 4
      %v621 = vshrl.u32 %v556, 16
      %v623 = vrot.slane %v621, 7
      %v624 = vshll.u32 %v556, 16
      %v626 = vor.u32 %v623, %v624
      %v627 = vrot.slane %v623, 4
      %v629 = vshrl.u32 %v557, 16
      %v631 = vrot.slane %v629, 7
      %v632 = vshll.u32 %v557, 16
      %v634 = vor.u32 %v631, %v632
      %v635 = vsel %vm585, %v627, %v634
      %v636 = vrot.slane %v631, 4
      %v638 = vshrl.u32 %v558, 16
      %v640 = vrot.slane %v638, 7
      %v641 = vshll.u32 %v558, 16
      %v643 = vor.u32 %v640, %v641
      %v644 = vrot.slane %v640, 4
      %v646 = vshrl.u32 %v559, 16
      %v648 = vrot.slane %v646, 7
      %v649 = vshll.u32 %v559, 16
      %v651 = vor.u32 %v648, %v649
      %v652 = vsel %vm585, %v644, %v651
      %v653 = vrot.slane %v648, 4
      %v655 = vshrl.u32 %v560, 16
      %v657 = vrot.slane %v655, 7
      %v658 = vshll.u32 %v560, 16
      %v660 = vor.u32 %v657, %v658
      %v661 = vrot.slane %v657, 4
      %v663 = vshrl.u32 %v561, 16
      %v665 = vrot.slane %v663, 7
      %v666 = vshll.u32 %v561, 16
      %v668 = vor.u32 %v665, %v666
      %v669 = vsel %vm585, %v661, %v668
      %v670 = vrot.slane %v665, 4
      %v672 = vshrl.u32 %v562, 16
      %v674 = vrot.slane %v672, 7
      %v675 = vshll.u32 %v562, 16
      %v677 = vor.u32 %v674, %v675
      %v678 = vrot.slane %v674, 4
      %v680 = vshrl.u32 %v563, 16
      %v682 = vrot.slane %v680, 7
      %v683 = vshll.u32 %v563, 16
      %v685 = vor.u32 %v682, %v683
      %v686 = vsel %vm585, %v678, %v685
      %v687 = vrot.slane %v682, 4
      %v689 = vshrl.u32 %v564, 16
      %v691 = vrot.slane %v689, 7
      %v692 = vshll.u32 %v564, 16
      %v694 = vor.u32 %v691, %v692
      %v695 = vrot.slane %v691, 4
      %v697 = vshrl.u32 %v565, 16
      %v699 = vrot.slane %v697, 7
      %v700 = vshll.u32 %v565, 16
      %v702 = vor.u32 %v699, %v700
      %v703 = vsel %vm585, %v695, %v702
      %v704 = vrot.slane %v699, 4
      %v706 = vshrl.u32 %v566, 16
      %v708 = vrot.slane %v706, 7
      %v709 = vshll.u32 %v566, 16
      %v711 = vor.u32 %v708, %v709
      %v712 = vrot.slane %v708, 4
      %v714 = vshrl.u32 %v567, 16
      %v716 = vrot.slane %v714, 7
      %v717 = vshll.u32 %v567, 16
      %v719 = vor.u32 %v716, %v717
      %v720 = vsel %vm585, %v712, %v719
      %v721 = vrot.slane %v716, 4
      %v723 = vshrl.u32 %v568, 16
      %v725 = vrot.slane %v723, 7
      %v726 = vshll.u32 %v568, 16
      %v728 = vor.u32 %v725, %v726
      %v729 = vrot.slane %v725, 4
      %v731 = vshrl.u32 %v569, 16
      %v733 = vrot.slane %v731, 7
      %v734 = vshll.u32 %v569, 16
      %v736 = vor.u32 %v733, %v734
      %v737 = vsel %vm585, %v729, %v736
      %v738 = vrot.slane %v733, 4
      %v740 = vshrl.u32 %v570, 16
      %v742 = vrot.slane %v740, 7
      %v743 = vshll.u32 %v570, 16
      %v745 = vor.u32 %v742, %v743
      %v746 = vrot.slane %v742, 4
      %v748 = vshrl.u32 %v571, 16
      %v750 = vrot.slane %v748, 7
      %v751 = vshll.u32 %v571, 16
      %v753 = vor.u32 %v750, %v751
      %v754 = vsel %vm585, %v746, %v753
      %v755 = vrot.slane %v750, 4
      %v757 = vshrl.u32 %v572, 16
      %v759 = vrot.slane %v757, 7
      %v760 = vshll.u32 %v572, 16
      %v762 = vor.u32 %v759, %v760
      %v763 = vrot.slane %v759, 4
      %v765 = vshrl.u32 %v573, 16
      %v767 = vrot.slane %v765, 7
      %v768 = vshll.u32 %v573, 16
      %v770 = vor.u32 %v767, %v768
      %v771 = vsel %vm585, %v763, %v770
      %v772 = vrot.slane %v767, 4
      %v774 = vshrl.u32 %v574, 16
      %v776 = vrot.slane %v774, 7
      %v777 = vshll.u32 %v574, 16
      %v779 = vor.u32 %v776, %v777
      %v780 = vrot.slane %v776, 4
      %v782 = vshrl.u32 %v575, 16
      %v784 = vrot.slane %v782, 7
      %v785 = vshll.u32 %v575, 16
      %v787 = vor.u32 %v784, %v785
      %v788 = vsel %vm585, %v780, %v787
      %v789 = vrot.slane %v784, 4
      %v791 = vshrl.u32 %v576, 16
      %v793 = vrot.slane %v791, 7
      %v794 = vshll.u32 %v576, 16
      %v796 = vor.u32 %v793, %v794
      %v797 = vrot.slane %v793, 4
      %v799 = vshrl.u32 %v577, 16
      %v801 = vrot.slane %v799, 7
      %v802 = vshll.u32 %v577, 16
      %v804 = vor.u32 %v801, %v802
      %v805 = vsel %vm585, %v797, %v804
      %v806 = vrot.slane %v801, 4
      %v808 = vshrl.u32 %v578, 16
      %v810 = vrot.slane %v808, 7
      %v811 = vshll.u32 %v578, 16
      %v813 = vor.u32 %v810, %v811
      %v814 = vrot.slane %v810, 4
      %v816 = vshrl.u32 %v579, 16
      %v818 = vrot.slane %v816, 7
      %v819 = vshll.u32 %v579, 16
      %v821 = vor.u32 %v818, %v819
      %v822 = vsel %vm585, %v814, %v821
      %v823 = vrot.slane %v818, 4
      %v825 = vshrl.u32 %v580, 16
      %v827 = vrot.slane %v825, 7
      %v828 = vshll.u32 %v580, 16
      %v830 = vor.u32 %v827, %v828
      %v831 = vrot.slane %v827, 4
      %v833 = vshrl.u32 %v581, 16
      %v835 = vrot.slane %v833, 7
      %v836 = vshll.u32 %v581, 16
      %v838 = vor.u32 %v835, %v836
      %v839 = vsel %vm585, %v831, %v838
      %v840 = vrot.slane %v835, 4
      %v842 = vshrl.u32 %v582, 16
      %v844 = vrot.slane %v842, 7
      %v845 = vshll.u32 %v582, 16
      %v847 = vor.u32 %v844, %v845
      %v848 = vrot.slane %v844, 4
      %v850 = vshrl.u32 %v583, 16
      %v852 = vrot.slane %v850, 7
      %v853 = vshll.u32 %v583, 16
      %v855 = vor.u32 %v852, %v853
      %v856 = vsel %vm585, %v848, %v855
      %v857 = vrot.slane %v852, 4
      %s906 = scalar_lea.vmem [#allocation2], 12
      %vm907 = vcmask 19456
      %vm908 = vmand %vm907, %vm400
      %v909 = vld [vmem:[%s906] sm:$0xf]
      %v910 = vsel %vm908, %v592, %v909
      %911 = vst [vmem:[%s906] sm:$0xf] %v910
      %912 = vst.msk [vmem:[%s906 + $0x4] sm:$0xf] %vm334, %v601
      %v913 = vld [vmem:[%s906 + $0x8] sm:$0x1]
      %v914 = vsel %vm345, %v602, %v913
      %915 = vst [vmem:[%s906 + $0x8] sm:$0x1] %v914
      %v916 = vld [vmem:[%s906 + $0xc] sm:$0xf]
      %v917 = vsel %vm908, %v609, %v916
      %918 = vst [vmem:[%s906 + $0xc] sm:$0xf] %v917
      %919 = vst.msk [vmem:[%s906 + $0x10] sm:$0xf] %vm334, %v618
      %v920 = vld [vmem:[%s906 + $0x14] sm:$0x1]
      %v921 = vsel %vm345, %v619, %v920
      %922 = vst [vmem:[%s906 + $0x14] sm:$0x1] %v921
      %v923 = vld [vmem:[%s906 + $0x18] sm:$0xf]
      %v924 = vsel %vm908, %v626, %v923
      %925 = vst [vmem:[%s906 + $0x18] sm:$0xf] %v924
      %926 = vst.msk [vmem:[%s906 + $0x1c] sm:$0xf] %vm334, %v635
      %v927 = vld [vmem:[%s906 + $0x20] sm:$0x1]
      %v928 = vsel %vm345, %v636, %v927
      %929 = vst [vmem:[%s906 + $0x20] sm:$0x1] %v928
      %v930 = vld [vmem:[%s906 + $0x24] sm:$0xf]
      %v931 = vsel %vm908, %v643, %v930
      %932 = vst [vmem:[%s906 + $0x24] sm:$0xf] %v931
      %933 = vst.msk [vmem:[%s906 + $0x28] sm:$0xf] %vm334, %v652
      %v934 = vld [vmem:[%s906 + $0x2c] sm:$0x1]
      %v935 = vsel %vm345, %v653, %v934
      %936 = vst [vmem:[%s906 + $0x2c] sm:$0x1] %v935
      %v937 = vld [vmem:[%s906 + $0x30] sm:$0xf]
      %v938 = vsel %vm908, %v660, %v937
      %939 = vst [vmem:[%s906 + $0x30] sm:$0xf] %v938
      %940 = vst.msk [vmem:[%s906 + $0x34] sm:$0xf] %vm334, %v669
      %v941 = vld [vmem:[%s906 + $0x38] sm:$0x1]
      %v942 = vsel %vm345, %v670, %v941
      %943 = vst [vmem:[%s906 + $0x38] sm:$0x1] %v942
      %v944 = vld [vmem:[%s906 + $0x3c] sm:$0xf]
      %v945 = vsel %vm908, %v677, %v944
      %946 = vst [vmem:[%s906 + $0x3c] sm:$0xf] %v945
      %947 = vst.msk [vmem:[%s906 + $0x40] sm:$0xf] %vm334, %v686
      %v948 = vld [vmem:[%s906 + $0x44] sm:$0x1]
      %v949 = vsel %vm345, %v687, %v948
      %950 = vst [vmem:[%s906 + $0x44] sm:$0x1] %v949
      %v951 = vld [vmem:[%s906 + $0x48] sm:$0xf]
      %v952 = vsel %vm908, %v694, %v951
      %953 = vst [vmem:[%s906 + $0x48] sm:$0xf] %v952
      %954 = vst.msk [vmem:[%s906 + $0x4c] sm:$0xf] %vm334, %v703
      %v955 = vld [vmem:[%s906 + $0x50] sm:$0x1]
      %v956 = vsel %vm345, %v704, %v955
      %957 = vst [vmem:[%s906 + $0x50] sm:$0x1] %v956
      %v958 = vld [vmem:[%s906 + $0x54] sm:$0xf]
      %v959 = vsel %vm908, %v711, %v958
      %960 = vst [vmem:[%s906 + $0x54] sm:$0xf] %v959
      %961 = vst.msk [vmem:[%s906 + $0x58] sm:$0xf] %vm334, %v720
      %v962 = vld [vmem:[%s906 + $0x5c] sm:$0x1]
      %v963 = vsel %vm345, %v721, %v962
      %964 = vst [vmem:[%s906 + $0x5c] sm:$0x1] %v963
      %v965 = vld [vmem:[%s906 + $0x60] sm:$0xf]
      %v966 = vsel %vm908, %v728, %v965
      %967 = vst [vmem:[%s906 + $0x60] sm:$0xf] %v966
      %968 = vst.msk [vmem:[%s906 + $0x64] sm:$0xf] %vm334, %v737
      %v969 = vld [vmem:[%s906 + $0x68] sm:$0x1]
      %v970 = vsel %vm345, %v738, %v969
      %971 = vst [vmem:[%s906 + $0x68] sm:$0x1] %v970
      %v972 = vld [vmem:[%s906 + $0x6c] sm:$0xf]
      %v973 = vsel %vm908, %v745, %v972
      %974 = vst [vmem:[%s906 + $0x6c] sm:$0xf] %v973
      %975 = vst.msk [vmem:[%s906 + $0x70] sm:$0xf] %vm334, %v754
      %v976 = vld [vmem:[%s906 + $0x74] sm:$0x1]
      %v977 = vsel %vm345, %v755, %v976
      %978 = vst [vmem:[%s906 + $0x74] sm:$0x1] %v977
      %v979 = vld [vmem:[%s906 + $0x78] sm:$0xf]
      %v980 = vsel %vm908, %v762, %v979
      %981 = vst [vmem:[%s906 + $0x78] sm:$0xf] %v980
      %982 = vst.msk [vmem:[%s906 + $0x7c] sm:$0xf] %vm334, %v771
      %v983 = vld [vmem:[%s906 + $0x80] sm:$0x1]
      %v984 = vsel %vm345, %v772, %v983
      %985 = vst [vmem:[%s906 + $0x80] sm:$0x1] %v984
      %v986 = vld [vmem:[%s906 + $0x84] sm:$0xf]
      %v987 = vsel %vm908, %v779, %v986
      %988 = vst [vmem:[%s906 + $0x84] sm:$0xf] %v987
      %989 = vst.msk [vmem:[%s906 + $0x88] sm:$0xf] %vm334, %v788
      %v990 = vld [vmem:[%s906 + $0x8c] sm:$0x1]
      %v991 = vsel %vm345, %v789, %v990
      %992 = vst [vmem:[%s906 + $0x8c] sm:$0x1] %v991
      %v993 = vld [vmem:[%s906 + $0x90] sm:$0xf]
      %v994 = vsel %vm908, %v796, %v993
      %995 = vst [vmem:[%s906 + $0x90] sm:$0xf] %v994
      %996 = vst.msk [vmem:[%s906 + $0x94] sm:$0xf] %vm334, %v805
      %v997 = vld [vmem:[%s906 + $0x98] sm:$0x1]
      %v998 = vsel %vm345, %v806, %v997
      %999 = vst [vmem:[%s906 + $0x98] sm:$0x1] %v998
      %v1000 = vld [vmem:[%s906 + $0x9c] sm:$0xf]
      %v1001 = vsel %vm908, %v813, %v1000
      %1002 = vst [vmem:[%s906 + $0x9c] sm:$0xf] %v1001
      %1003 = vst.msk [vmem:[%s906 + $0xa0] sm:$0xf] %vm334, %v822
      %v1004 = vld [vmem:[%s906 + $0xa4] sm:$0x1]
      %v1005 = vsel %vm345, %v823, %v1004
      %1006 = vst [vmem:[%s906 + $0xa4] sm:$0x1] %v1005
      %v1007 = vld [vmem:[%s906 + $0xa8] sm:$0xf]
      %v1008 = vsel %vm908, %v830, %v1007
      %1009 = vst [vmem:[%s906 + $0xa8] sm:$0xf] %v1008
      %1010 = vst.msk [vmem:[%s906 + $0xac] sm:$0xf] %vm334, %v839
      %v1011 = vld [vmem:[%s906 + $0xb0] sm:$0x1]
      %v1012 = vsel %vm345, %v840, %v1011
      %1013 = vst [vmem:[%s906 + $0xb0] sm:$0x1] %v1012
      %v1014 = vld [vmem:[%s906 + $0xb4] sm:$0xf]
      %v1015 = vsel %vm908, %v847, %v1014
      %1016 = vst [vmem:[%s906 + $0xb4] sm:$0xf] %v1015
      %1017 = vst.msk [vmem:[%s906 + $0xb8] sm:$0xf] %vm334, %v856
      %v1018 = vld [vmem:[%s906 + $0xbc] sm:$0x1]
      %v1019 = vsel %vm345, %v857, %v1018
      %1020 = vst [vmem:[%s906 + $0xbc] sm:$0x1] %v1019
      %v1021 = vld [vmem:[%s2] sm:$0x1]
      %v1022 = vld [vmem:[#allocation2] sm:$0xf]
      %v1023 = vld [vmem:[#allocation2 + $0x4] sm:$0xf]
      %v1024 = vld [vmem:[#allocation2 + $0xc] sm:$0xf]
      %v1025 = vld [vmem:[#allocation2 + $0x10] sm:$0xf]
      %v1026 = vld [vmem:[#allocation2 + $0x18] sm:$0xf]
      %v1027 = vld [vmem:[#allocation2 + $0x1c] sm:$0xf]
      %v1028 = vld [vmem:[#allocation2 + $0x24] sm:$0xf]
      %v1029 = vld [vmem:[#allocation2 + $0x28] sm:$0xf]
      %v1030 = vld [vmem:[#allocation2 + $0x30] sm:$0xf]
      %v1031 = vld [vmem:[#allocation2 + $0x34] sm:$0xf]
      %v1032 = vld [vmem:[#allocation2 + $0x3c] sm:$0xf]
      %v1033 = vld [vmem:[#allocation2 + $0x40] sm:$0xf]
      %v1034 = vld [vmem:[#allocation2 + $0x48] sm:$0xf]
      %v1035 = vld [vmem:[#allocation2 + $0x4c] sm:$0xf]
      %v1036 = vld [vmem:[#allocation2 + $0x54] sm:$0xf]
      %v1037 = vld [vmem:[#allocation2 + $0x58] sm:$0xf]
      %v1038 = vld [vmem:[#allocation2 + $0x60] sm:$0xf]
      %v1039 = vld [vmem:[#allocation2 + $0x64] sm:$0xf]
      %v1040 = vld [vmem:[#allocation2 + $0x6c] sm:$0xf]
      %v1041 = vld [vmem:[#allocation2 + $0x70] sm:$0xf]
      %v1042 = vld [vmem:[#allocation2 + $0x78] sm:$0xf]
      %v1043 = vld [vmem:[#allocation2 + $0x7c] sm:$0xf]
      %v1044 = vld [vmem:[#allocation2 + $0x84] sm:$0xf]
      %v1045 = vld [vmem:[#allocation2 + $0x88] sm:$0xf]
      %v1046 = vld [vmem:[#allocation2 + $0x90] sm:$0xf]
      %v1047 = vld [vmem:[#allocation2 + $0x94] sm:$0xf]
      %v1048 = vld [vmem:[#allocation2 + $0x9c] sm:$0xf]
      %v1049 = vld [vmem:[#allocation2 + $0xa0] sm:$0xf]
      %v1050 = vld [vmem:[#allocation2 + $0xa8] sm:$0xf]
      %v1051 = vld [vmem:[#allocation2 + $0xac] sm:$0xf]
      %v1052 = vld [vmem:[#allocation2 + $0xb4] sm:$0xf]
      %v1053 = vld [vmem:[#allocation2 + $0xb8] sm:$0xf]
      %v1054 = vld [vmem:[%s1] sm:$0x3]
      %v1055 = vld [vmem:[#allocation2 + $0x8] sm:$0x1]
      %v1056 = vld [vmem:[#allocation2 + $0x14] sm:$0x1]
      %v1057 = vld [vmem:[#allocation2 + $0x20] sm:$0x1]
      %v1058 = vld [vmem:[#allocation2 + $0x2c] sm:$0x1]
      %v1059 = vld [vmem:[#allocation2 + $0x38] sm:$0x1]
      %v1060 = vld [vmem:[#allocation2 + $0x44] sm:$0x1]
      %v1061 = vld [vmem:[#allocation2 + $0x50] sm:$0x1]
      %v1062 = vld [vmem:[#allocation2 + $0x5c] sm:$0x1]
      %v1063 = vld [vmem:[#allocation2 + $0x68] sm:$0x1]
      %v1064 = vld [vmem:[#allocation2 + $0x74] sm:$0x1]
      %v1065 = vld [vmem:[#allocation2 + $0x80] sm:$0x1]
      %v1066 = vld [vmem:[#allocation2 + $0x8c] sm:$0x1]
      %v1067 = vld [vmem:[#allocation2 + $0x98] sm:$0x1]
      %v1068 = vld [vmem:[#allocation2 + $0xa4] sm:$0x1]
      %v1069 = vld [vmem:[#allocation2 + $0xb0] sm:$0x1]
      %v1070 = vld [vmem:[#allocation2 + $0xbc] sm:$0x1]
      %vm1071 = vsmask.f32 3328
      %vm1072 = vsmask.f32 7440
      %vm1073 = vmor %vm1071, %vm1072
      %v1075 = vshrl.u32 %v1022, 16
      %v1077 = vrot.slane %v1075, 4
      %v1078 = vshll.u32 %v1022, 16
      %v1080 = vrot.slane %v1078, 5
      %v1081 = vor.u32 %v1077, %v1080
      %v1082 = vrot.slane %v1081, 4
      %v1084 = vshll.u32 %v1023, 16
      %v1086 = vrot.slane %v1084, 5
      %v1087 = vsel %vm1073, %v1082, %v1086
      %v1088 = vshrl.u32 %v1023, 16
      %v1090 = vrot.slane %v1088, 4
      %v1091 = vor.u32 %v1090, %v1086
      %v1092 = vrot.slane %v1091, 4
      %v1094 = vshll.u32 %v1055, 16
      %v1096 = vrot.slane %v1094, 5
      %v1097 = vsel %vm1073, %v1092, %v1096
      %v1099 = vshrl.u32 %v1024, 16
      %v1101 = vrot.slane %v1099, 4
      %v1102 = vshll.u32 %v1024, 16
      %v1104 = vrot.slane %v1102, 5
      %v1105 = vor.u32 %v1101, %v1104
      %v1106 = vrot.slane %v1105, 4
      %v1108 = vshll.u32 %v1025, 16
      %v1110 = vrot.slane %v1108, 5
      %v1111 = vsel %vm1073, %v1106, %v1110
      %v1112 = vshrl.u32 %v1025, 16
      %v1114 = vrot.slane %v1112, 4
      %v1115 = vor.u32 %v1114, %v1110
      %v1116 = vrot.slane %v1115, 4
      %v1118 = vshll.u32 %v1056, 16
      %v1120 = vrot.slane %v1118, 5
      %v1121 = vsel %vm1073, %v1116, %v1120
      %v1123 = vshrl.u32 %v1026, 16
      %v1125 = vrot.slane %v1123, 4
      %v1126 = vshll.u32 %v1026, 16
      %v1128 = vrot.slane %v1126, 5
      %v1129 = vor.u32 %v1125, %v1128
      %v1130 = vrot.slane %v1129, 4
      %v1132 = vshll.u32 %v1027, 16
      %v1134 = vrot.slane %v1132, 5
      %v1135 = vsel %vm1073, %v1130, %v1134
      %v1136 = vshrl.u32 %v1027, 16
      %v1138 = vrot.slane %v1136, 4
      %v1139 = vor.u32 %v1138, %v1134
      %v1140 = vrot.slane %v1139, 4
      %v1142 = vshll.u32 %v1057, 16
      %v1144 = vrot.slane %v1142, 5
      %v1145 = vsel %vm1073, %v1140, %v1144
      %v1147 = vshrl.u32 %v1028, 16
      %v1149 = vrot.slane %v1147, 4
      %v1150 = vshll.u32 %v1028, 16
      %v1152 = vrot.slane %v1150, 5
      %v1153 = vor.u32 %v1149, %v1152
      %v1154 = vrot.slane %v1153, 4
      %v1156 = vshll.u32 %v1029, 16
      %v1158 = vrot.slane %v1156, 5
      %v1159 = vsel %vm1073, %v1154, %v1158
      %v1160 = vshrl.u32 %v1029, 16
      %v1162 = vrot.slane %v1160, 4
      %v1163 = vor.u32 %v1162, %v1158
      %v1164 = vrot.slane %v1163, 4
      %v1166 = vshll.u32 %v1058, 16
      %v1168 = vrot.slane %v1166, 5
      %v1169 = vsel %vm1073, %v1164, %v1168
      %v1171 = vshrl.u32 %v1030, 16
      %v1173 = vrot.slane %v1171, 4
      %v1174 = vshll.u32 %v1030, 16
      %v1176 = vrot.slane %v1174, 5
      %v1177 = vor.u32 %v1173, %v1176
      %v1178 = vrot.slane %v1177, 4
      %v1180 = vshll.u32 %v1031, 16
      %v1182 = vrot.slane %v1180, 5
      %v1183 = vsel %vm1073, %v1178, %v1182
      %v1184 = vshrl.u32 %v1031, 16
      %v1186 = vrot.slane %v1184, 4
      %v1187 = vor.u32 %v1186, %v1182
      %v1188 = vrot.slane %v1187, 4
      %v1190 = vshll.u32 %v1059, 16
      %v1192 = vrot.slane %v1190, 5
      %v1193 = vsel %vm1073, %v1188, %v1192
      %v1195 = vshrl.u32 %v1032, 16
      %v1197 = vrot.slane %v1195, 4
      %v1198 = vshll.u32 %v1032, 16
      %v1200 = vrot.slane %v1198, 5
      %v1201 = vor.u32 %v1197, %v1200
      %v1202 = vrot.slane %v1201, 4
      %v1204 = vshll.u32 %v1033, 16
      %v1206 = vrot.slane %v1204, 5
      %v1207 = vsel %vm1073, %v1202, %v1206
      %v1208 = vshrl.u32 %v1033, 16
      %v1210 = vrot.slane %v1208, 4
      %v1211 = vor.u32 %v1210, %v1206
      %v1212 = vrot.slane %v1211, 4
      %v1214 = vshll.u32 %v1060, 16
      %v1216 = vrot.slane %v1214, 5
      %v1217 = vsel %vm1073, %v1212, %v1216
      %v1219 = vshrl.u32 %v1034, 16
      %v1221 = vrot.slane %v1219, 4
      %v1222 = vshll.u32 %v1034, 16
      %v1224 = vrot.slane %v1222, 5
      %v1225 = vor.u32 %v1221, %v1224
      %v1226 = vrot.slane %v1225, 4
      %v1228 = vshll.u32 %v1035, 16
      %v1230 = vrot.slane %v1228, 5
      %v1231 = vsel %vm1073, %v1226, %v1230
      %v1232 = vshrl.u32 %v1035, 16
      %v1234 = vrot.slane %v1232, 4
      %v1235 = vor.u32 %v1234, %v1230
      %v1236 = vrot.slane %v1235, 4
      %v1238 = vshll.u32 %v1061, 16
      %v1240 = vrot.slane %v1238, 5
      %v1241 = vsel %vm1073, %v1236, %v1240
      %v1243 = vshrl.u32 %v1036, 16
      %v1245 = vrot.slane %v1243, 4
      %v1246 = vshll.u32 %v1036, 16
      %v1248 = vrot.slane %v1246, 5
      %v1249 = vor.u32 %v1245, %v1248
      %v1250 = vrot.slane %v1249, 4
      %v1252 = vshll.u32 %v1037, 16
      %v1254 = vrot.slane %v1252, 5
      %v1255 = vsel %vm1073, %v1250, %v1254
      %v1256 = vshrl.u32 %v1037, 16
      %v1258 = vrot.slane %v1256, 4
      %v1259 = vor.u32 %v1258, %v1254
      %v1260 = vrot.slane %v1259, 4
      %v1262 = vshll.u32 %v1062, 16
      %v1264 = vrot.slane %v1262, 5
      %v1265 = vsel %vm1073, %v1260, %v1264
      %v1267 = vshrl.u32 %v1038, 16
      %v1269 = vrot.slane %v1267, 4
      %v1270 = vshll.u32 %v1038, 16
      %v1272 = vrot.slane %v1270, 5
      %v1273 = vor.u32 %v1269, %v1272
      %v1274 = vrot.slane %v1273, 4
      %v1276 = vshll.u32 %v1039, 16
      %v1278 = vrot.slane %v1276, 5
      %v1279 = vsel %vm1073, %v1274, %v1278
      %v1280 = vshrl.u32 %v1039, 16
      %v1282 = vrot.slane %v1280, 4
      %v1283 = vor.u32 %v1282, %v1278
      %v1284 = vrot.slane %v1283, 4
      %v1286 = vshll.u32 %v1063, 16
      %v1288 = vrot.slane %v1286, 5
      %v1289 = vsel %vm1073, %v1284, %v1288
      %v1291 = vshrl.u32 %v1040, 16
      %v1293 = vrot.slane %v1291, 4
      %v1294 = vshll.u32 %v1040, 16
      %v1296 = vrot.slane %v1294, 5
      %v1297 = vor.u32 %v1293, %v1296
      %v1298 = vrot.slane %v1297, 4
      %v1300 = vshll.u32 %v1041, 16
      %v1302 = vrot.slane %v1300, 5
      %v1303 = vsel %vm1073, %v1298, %v1302
      %v1304 = vshrl.u32 %v1041, 16
      %v1306 = vrot.slane %v1304, 4
      %v1307 = vor.u32 %v1306, %v1302
      %v1308 = vrot.slane %v1307, 4
      %v1310 = vshll.u32 %v1064, 16
      %v1312 = vrot.slane %v1310, 5
      %v1313 = vsel %vm1073, %v1308, %v1312
      %v1315 = vshrl.u32 %v1042, 16
      %v1317 = vrot.slane %v1315, 4
      %v1318 = vshll.u32 %v1042, 16
      %v1320 = vrot.slane %v1318, 5
      %v1321 = vor.u32 %v1317, %v1320
      %v1322 = vrot.slane %v1321, 4
      %v1324 = vshll.u32 %v1043, 16
      %v1326 = vrot.slane %v1324, 5
      %v1327 = vsel %vm1073, %v1322, %v1326
      %v1328 = vshrl.u32 %v1043, 16
      %v1330 = vrot.slane %v1328, 4
      %v1331 = vor.u32 %v1330, %v1326
      %v1332 = vrot.slane %v1331, 4
      %v1334 = vshll.u32 %v1065, 16
      %v1336 = vrot.slane %v1334, 5
      %v1337 = vsel %vm1073, %v1332, %v1336
      %v1339 = vshrl.u32 %v1044, 16
      %v1341 = vrot.slane %v1339, 4
      %v1342 = vshll.u32 %v1044, 16
      %v1344 = vrot.slane %v1342, 5
      %v1345 = vor.u32 %v1341, %v1344
      %v1346 = vrot.slane %v1345, 4
      %v1348 = vshll.u32 %v1045, 16
      %v1350 = vrot.slane %v1348, 5
      %v1351 = vsel %vm1073, %v1346, %v1350
      %v1352 = vshrl.u32 %v1045, 16
      %v1354 = vrot.slane %v1352, 4
      %v1355 = vor.u32 %v1354, %v1350
      %v1356 = vrot.slane %v1355, 4
      %v1358 = vshll.u32 %v1066, 16
      %v1360 = vrot.slane %v1358, 5
      %v1361 = vsel %vm1073, %v1356, %v1360
      %v1363 = vshrl.u32 %v1046, 16
      %v1365 = vrot.slane %v1363, 4
      %v1366 = vshll.u32 %v1046, 16
      %v1368 = vrot.slane %v1366, 5
      %v1369 = vor.u32 %v1365, %v1368
      %v1370 = vrot.slane %v1369, 4
      %v1372 = vshll.u32 %v1047, 16
      %v1374 = vrot.slane %v1372, 5
      %v1375 = vsel %vm1073, %v1370, %v1374
      %v1376 = vshrl.u32 %v1047, 16
      %v1378 = vrot.slane %v1376, 4
      %v1379 = vor.u32 %v1378, %v1374
      %v1380 = vrot.slane %v1379, 4
      %v1382 = vshll.u32 %v1067, 16
      %v1384 = vrot.slane %v1382, 5
      %v1385 = vsel %vm1073, %v1380, %v1384
      %v1387 = vshrl.u32 %v1048, 16
      %v1389 = vrot.slane %v1387, 4
      %v1390 = vshll.u32 %v1048, 16
      %v1392 = vrot.slane %v1390, 5
      %v1393 = vor.u32 %v1389, %v1392
      %v1394 = vrot.slane %v1393, 4
      %v1396 = vshll.u32 %v1049, 16
      %v1398 = vrot.slane %v1396, 5
      %v1399 = vsel %vm1073, %v1394, %v1398
      %v1400 = vshrl.u32 %v1049, 16
      %v1402 = vrot.slane %v1400, 4
      %v1403 = vor.u32 %v1402, %v1398
      %v1404 = vrot.slane %v1403, 4
      %v1406 = vshll.u32 %v1068, 16
      %v1408 = vrot.slane %v1406, 5
      %v1409 = vsel %vm1073, %v1404, %v1408
      %v1411 = vshrl.u32 %v1050, 16
      %v1413 = vrot.slane %v1411, 4
      %v1414 = vshll.u32 %v1050, 16
      %v1416 = vrot.slane %v1414, 5
      %v1417 = vor.u32 %v1413, %v1416
      %v1418 = vrot.slane %v1417, 4
      %v1420 = vshll.u32 %v1051, 16
      %v1422 = vrot.slane %v1420, 5
      %v1423 = vsel %vm1073, %v1418, %v1422
      %v1424 = vshrl.u32 %v1051, 16
      %v1426 = vrot.slane %v1424, 4
      %v1427 = vor.u32 %v1426, %v1422
      %v1428 = vrot.slane %v1427, 4
      %v1430 = vshll.u32 %v1069, 16
      %v1432 = vrot.slane %v1430, 5
      %v1433 = vsel %vm1073, %v1428, %v1432
      %v1435 = vshrl.u32 %v1052, 16
      %v1437 = vrot.slane %v1435, 4
      %v1438 = vshll.u32 %v1052, 16
      %v1440 = vrot.slane %v1438, 5
      %v1441 = vor.u32 %v1437, %v1440
      %v1442 = vrot.slane %v1441, 4
      %v1444 = vshll.u32 %v1053, 16
      %v1446 = vrot.slane %v1444, 5
      %v1447 = vsel %vm1073, %v1442, %v1446
      %v1448 = vshrl.u32 %v1053, 16
      %v1450 = vrot.slane %v1448, 4
      %v1451 = vor.u32 %v1450, %v1446
      %v1452 = vrot.slane %v1451, 4
      %v1454 = vshll.u32 %v1070, 16
      %v1456 = vrot.slane %v1454, 5
      %v1457 = vsel %vm1073, %v1452, %v1456
      %s1458 = scalar_lea.vmem %s1, 2
      %v1459 = vld [vmem:[%s1458] sm:$0x3]
      %v1460 = vunpack.c.l.b16 %v1087
      %v1461 = vunpack.c.l.b16 %v1097
      %v1462 = vunpack.c.l.b16 %v1111
      %v1463 = vunpack.c.l.b16 %v1121
      %v1464 = vunpack.c.l.b16 %v1135
      %v1465 = vunpack.c.l.b16 %v1145
      %v1466 = vunpack.c.l.b16 %v1159
      %v1467 = vunpack.c.l.b16 %v1169
      %v1468 = vunpack.c.l.b16 %v1183
      %v1469 = vunpack.c.l.b16 %v1193
      %v1470 = vunpack.c.l.b16 %v1207
      %v1471 = vunpack.c.l.b16 %v1217
      %v1472 = vunpack.c.l.b16 %v1231
      %v1473 = vunpack.c.l.b16 %v1241
      %v1474 = vunpack.c.l.b16 %v1255
      %v1475 = vunpack.c.l.b16 %v1265
      %v1476 = vunpack.c.l.b16 %v1279
      %v1477 = vunpack.c.l.b16 %v1289
      %v1478 = vunpack.c.l.b16 %v1303
      %v1479 = vunpack.c.l.b16 %v1313
      %v1480 = vunpack.c.l.b16 %v1327
      %v1481 = vunpack.c.l.b16 %v1337
      %v1482 = vunpack.c.l.b16 %v1351
      %v1483 = vunpack.c.l.b16 %v1361
      %v1484 = vunpack.c.l.b16 %v1375
      %v1485 = vunpack.c.l.b16 %v1385
      %v1486 = vunpack.c.l.b16 %v1399
      %v1487 = vunpack.c.l.b16 %v1409
      %v1488 = vunpack.c.l.b16 %v1423
      %v1489 = vunpack.c.l.b16 %v1433
      %v1490 = vunpack.c.l.b16 %v1447
      %v1491 = vunpack.c.l.b16 %v1457
      %v1492 = vpack.c.b16 %v1461, %v1460
      %v1493 = vpack.c.b16 %v1463, %v1462
      %v1494 = vpack.c.b16 %v1465, %v1464
      %v1495 = vpack.c.b16 %v1467, %v1466
      %v1496 = vpack.c.b16 %v1469, %v1468
      %v1497 = vpack.c.b16 %v1471, %v1470
      %v1498 = vpack.c.b16 %v1473, %v1472
      %v1499 = vpack.c.b16 %v1475, %v1474
      %v1500 = vpack.c.b16 %v1477, %v1476
      %v1501 = vpack.c.b16 %v1479, %v1478
      %v1502 = vpack.c.b16 %v1481, %v1480
      %v1503 = vpack.c.b16 %v1483, %v1482
      %v1504 = vpack.c.b16 %v1485, %v1484
      %v1505 = vpack.c.b16 %v1487, %v1486
      %v1506 = vpack.c.b16 %v1489, %v1488
      %v1507 = vpack.c.b16 %v1491, %v1490
      %vm1508 = vcmask 23552
      %v1510 = vsel %vm1508, %v1492, 0
      %v1513 = vsel %vm1508, %v1493, 0
      %v1516 = vsel %vm1508, %v1494, 0
      %v1519 = vsel %vm1508, %v1495, 0
      %v1522 = vsel %vm1508, %v1496, 0
      %v1525 = vsel %vm1508, %v1497, 0
      %v1528 = vsel %vm1508, %v1498, 0
      %v1531 = vsel %vm1508, %v1499, 0
      %v1534 = vsel %vm1508, %v1500, 0
      %v1537 = vsel %vm1508, %v1501, 0
      %v1540 = vsel %vm1508, %v1502, 0
      %v1543 = vsel %vm1508, %v1503, 0
      %v1546 = vsel %vm1508, %v1504, 0
      %v1549 = vsel %vm1508, %v1505, 0
      %v1552 = vsel %vm1508, %v1506, 0
      %v1555 = vsel %vm1508, %v1507, 0
      %vm1557 = vcmask 1040384
      %vm1558 = vcmask 1041408
      %v1559 = vsel %vm1557, 4294967295, 65535
      %v1560 = vsel %vm1558, %v1559, 0
      %v1562 = vand.u32 %v1459, %v1560
      %1564 = vmatprep.subr.bf16.mxu0 0
      %1565 = vmatpush1.bf16.msra.mxu0 %v1562
      %1566 = vmatprep.subr.bf16.mxu0 0
      %1567 = vmatpush1.bf16.msra.mxu0 0
      %1568 = vmatprep.subr.bf16.mxu0 0
      %1569 = vmatpush1.bf16.msra.mxu0 0
      %1570 = vmatprep.subr.bf16.mxu0 0
      %1571 = vmatpush1.bf16.msra.mxu0 0
      %1572 = vmatprep.subr.bf16.mxu0 0
      %1573 = vmatpush1.bf16.msra.mxu0 0
      %1574 = vmatprep.subr.bf16.mxu0 0
      %1575 = vmatpush1.bf16.msra.mxu0 0
      %1576 = vmatprep.subr.bf16.mxu0 0
      %1577 = vmatpush1.bf16.msra.mxu0 0
      %1578 = vmatprep.subr.bf16.mxu0 0
      %1579 = vmatpush1.bf16.msra.mxu0 0
      %1580 = vmatprep.subr.bf16.mxu0 0
      %1581 = vmatpush1.bf16.msra.mxu0 0
      %1582 = vmatprep.subr.bf16.mxu0 0
      %1583 = vmatpush1.bf16.msra.mxu0 0
      %1584 = vmatprep.subr.bf16.mxu0 0
      %1585 = vmatpush1.bf16.msra.mxu0 0
      %1586 = vmatprep.subr.bf16.mxu0 0
      %1587 = vmatpush1.bf16.msra.mxu0 0
      %1588 = vmatprep.subr.bf16.mxu0 0
      %1589 = vmatpush1.bf16.msra.mxu0 0
      %1590 = vmatprep.subr.bf16.mxu0 0
      %1591 = vmatpush1.bf16.msra.mxu0 0
      %1592 = vmatprep.subr.bf16.mxu0 0
      %1593 = vmatpush1.bf16.msra.mxu0 0
      %1594 = vmatprep.subr.bf16.mxu0 0
      %1595 = vmatpush1.bf16.msra.mxu0 0
      %1596 = vmatprep.mubr.bf16.mxu0 0
      %1597 = vmatmul.mubr.bf16.gmra.mrb[0].mxu0 %v1510
      %v1598 = vpop.f32.mrb[0].mxu0
      %v1599 = vadd.f32 0.0, %v1598
      %v1600 = vpop.f32.mrb[0].mxu0
      %v1601 = vpop.f32.mrb[0].mxu0
      %v1602 = vadd.f32 0.0, %v1601
      %v1603 = vpop.f32.mrb[0].mxu0
      %1604 = vmatprep.mubr.bf16.mxu0 0
      %1605 = vmatmul.mubr.bf16.gmra.mrb[0].mxu0 %v1513
      %v1606 = vpop.f32.mrb[0].mxu0
      %v1607 = vadd.f32 0.0, %v1606
      %v1608 = vpop.f32.mrb[0].mxu0
      %v1609 = vpop.f32.mrb[0].mxu0
      %v1610 = vadd.f32 0.0, %v1609
      %v1611 = vpop.f32.mrb[0].mxu0
      %1612 = vmatprep.mubr.bf16.mxu0 0
      %1613 = vmatmul.mubr.bf16.gmra.mrb[0].mxu0 %v1516
      %v1614 = vpop.f32.mrb[0].mxu0
      %v1615 = vadd.f32 0.0, %v1614
      %v1616 = vpop.f32.mrb[0].mxu0
      %v1617 = vpop.f32.mrb[0].mxu0
      %v1618 = vadd.f32 0.0, %v1617
      %v1619 = vpop.f32.mrb[0].mxu0
      %1620 = vmatprep.mubr.bf16.mxu0 0
      %1621 = vmatmul.mubr.bf16.gmra.mrb[0].mxu0 %v1519
      %v1622 = vpop.f32.mrb[0].mxu0
      %v1623 = vadd.f32 0.0, %v1622
      %v1624 = vpop.f32.mrb[0].mxu0
      %v1625 = vpop.f32.mrb[0].mxu0
      %v1626 = vadd.f32 0.0, %v1625
      %v1627 = vpop.f32.mrb[0].mxu0
      %1628 = vmatprep.mubr.bf16.mxu0 0
      %1629 = vmatmul.mubr.bf16.gmra.mrb[0].mxu0 %v1522
      %v1630 = vpop.f32.mrb[0].mxu0
      %v1631 = vadd.f32 0.0, %v1630
      %v1632 = vpop.f32.mrb[0].mxu0
      %v1633 = vpop.f32.mrb[0].mxu0
      %v1634 = vadd.f32 0.0, %v1633
      %v1635 = vpop.f32.mrb[0].mxu0
      %1636 = vmatprep.mubr.bf16.mxu0 0
      %1637 = vmatmul.mubr.bf16.gmra.mrb[0].mxu0 %v1525
      %v1638 = vpop.f32.mrb[0].mxu0
      %v1639 = vadd.f32 0.0, %v1638
      %v1640 = vpop.f32.mrb[0].mxu0
      %v1641 = vpop.f32.mrb[0].mxu0
      %v1642 = vadd.f32 0.0, %v1641
      %v1643 = vpop.f32.mrb[0].mxu0
      %1644 = vmatprep.mubr.bf16.mxu0 0
      %1645 = vmatmul.mubr.bf16.gmra.mrb[0].mxu0 %v1528
      %v1646 = vpop.f32.mrb[0].mxu0
      %v1647 = vadd.f32 0.0, %v1646
      %v1648 = vpop.f32.mrb[0].mxu0
      %v1649 = vpop.f32.mrb[0].mxu0
      %v1650 = vadd.f32 0.0, %v1649
      %v1651 = vpop.f32.mrb[0].mxu0
      %1652 = vmatprep.mubr.bf16.mxu0 0
      %1653 = vmatmul.mubr.bf16.gmra.mrb[0].mxu0 %v1531
      %v1654 = vpop.f32.mrb[0].mxu0
      %v1655 = vadd.f32 0.0, %v1654
      %v1656 = vpop.f32.mrb[0].mxu0
      %v1657 = vpop.f32.mrb[0].mxu0
      %v1658 = vadd.f32 0.0, %v1657
      %v1659 = vpop.f32.mrb[0].mxu0
      %1660 = vmatprep.mubr.bf16.mxu0 0
      %1661 = vmatmul.mubr.bf16.gmra.mrb[0].mxu0 %v1534
      %v1662 = vpop.f32.mrb[0].mxu0
      %v1663 = vadd.f32 0.0, %v1662
      %v1664 = vpop.f32.mrb[0].mxu0
      %v1665 = vpop.f32.mrb[0].mxu0
      %v1666 = vadd.f32 0.0, %v1665
      %v1667 = vpop.f32.mrb[0].mxu0
      %1668 = vmatprep.mubr.bf16.mxu0 0
      %1669 = vmatmul.mubr.bf16.gmra.mrb[0].mxu0 %v1537
      %v1670 = vpop.f32.mrb[0].mxu0
      %v1671 = vadd.f32 0.0, %v1670
      %v1672 = vpop.f32.mrb[0].mxu0
      %v1673 = vpop.f32.mrb[0].mxu0
      %v1674 = vadd.f32 0.0, %v1673
      %v1675 = vpop.f32.mrb[0].mxu0
      %1676 = vmatprep.mubr.bf16.mxu0 0
      %1677 = vmatmul.mubr.bf16.gmra.mrb[0].mxu0 %v1540
      %v1678 = vpop.f32.mrb[0].mxu0
      %v1679 = vadd.f32 0.0, %v1678
      %v1680 = vpop.f32.mrb[0].mxu0
      %v1681 = vpop.f32.mrb[0].mxu0
      %v1682 = vadd.f32 0.0, %v1681
      %v1683 = vpop.f32.mrb[0].mxu0
      %1684 = vmatprep.mubr.bf16.mxu0 0
      %1685 = vmatmul.mubr.bf16.gmra.mrb[0].mxu0 %v1543
      %v1686 = vpop.f32.mrb[0].mxu0
      %v1687 = vadd.f32 0.0, %v1686
      %v1688 = vpop.f32.mrb[0].mxu0
      %v1689 = vpop.f32.mrb[0].mxu0
      %v1690 = vadd.f32 0.0, %v1689
      %v1691 = vpop.f32.mrb[0].mxu0
      %1692 = vmatprep.mubr.bf16.mxu0 0
      %1693 = vmatmul.mubr.bf16.gmra.mrb[0].mxu0 %v1546
      %v1694 = vpop.f32.mrb[0].mxu0
      %v1695 = vadd.f32 0.0, %v1694
      %v1696 = vpop.f32.mrb[0].mxu0
      %v1697 = vpop.f32.mrb[0].mxu0
      %v1698 = vadd.f32 0.0, %v1697
      %v1699 = vpop.f32.mrb[0].mxu0
      %1700 = vmatprep.mubr.bf16.mxu0 0
      %1701 = vmatmul.mubr.bf16.gmra.mrb[0].mxu0 %v1549
      %v1702 = vpop.f32.mrb[0].mxu0
      %v1703 = vadd.f32 0.0, %v1702
      %v1704 = vpop.f32.mrb[0].mxu0
      %v1705 = vpop.f32.mrb[0].mxu0
      %v1706 = vadd.f32 0.0, %v1705
      %v1707 = vpop.f32.mrb[0].mxu0
      %1708 = vmatprep.mubr.bf16.mxu0 0
      %1709 = vmatmul.mubr.bf16.gmra.mrb[0].mxu0 %v1552
      %v1710 = vpop.f32.mrb[0].mxu0
      %v1711 = vadd.f32 0.0, %v1710
      %v1712 = vpop.f32.mrb[0].mxu0
      %v1713 = vpop.f32.mrb[0].mxu0
      %v1714 = vadd.f32 0.0, %v1713
      %v1715 = vpop.f32.mrb[0].mxu0
      %1716 = vmatprep.mubr.bf16.mxu0 0
      %1717 = vmatmul.mubr.bf16.gmra.mrb[0].mxu0 %v1555
      %v1718 = vpop.f32.mrb[0].mxu0
      %v1719 = vadd.f32 0.0, %v1718
      %v1720 = vpop.f32.mrb[0].mxu0
      %v1721 = vpop.f32.mrb[0].mxu0
      %v1722 = vadd.f32 0.0, %v1721
      %v1723 = vpop.f32.mrb[0].mxu0
      %1724 = vdwg.mxu0
      %v1757 = vunpack.c.l.b16 %v1022
      %v1758 = vunpack.c.l.b16 %v1023
      %v1759 = vunpack.c.l.b16 %v1024
      %v1760 = vunpack.c.l.b16 %v1025
      %v1761 = vunpack.c.l.b16 %v1026
      %v1762 = vunpack.c.l.b16 %v1027
      %v1763 = vunpack.c.l.b16 %v1028
      %v1764 = vunpack.c.l.b16 %v1029
      %v1765 = vunpack.c.l.b16 %v1030
      %v1766 = vunpack.c.l.b16 %v1031
      %v1767 = vunpack.c.l.b16 %v1032
      %v1768 = vunpack.c.l.b16 %v1033
      %v1769 = vunpack.c.l.b16 %v1034
      %v1770 = vunpack.c.l.b16 %v1035
      %v1771 = vunpack.c.l.b16 %v1036
      %v1772 = vunpack.c.l.b16 %v1037
      %v1773 = vunpack.c.l.b16 %v1038
      %v1774 = vunpack.c.l.b16 %v1039
      %v1775 = vunpack.c.l.b16 %v1040
      %v1776 = vunpack.c.l.b16 %v1041
      %v1777 = vunpack.c.l.b16 %v1042
      %v1778 = vunpack.c.l.b16 %v1043
      %v1779 = vunpack.c.l.b16 %v1044
      %v1780 = vunpack.c.l.b16 %v1045
      %v1781 = vunpack.c.l.b16 %v1046
      %v1782 = vunpack.c.l.b16 %v1047
      %v1783 = vunpack.c.l.b16 %v1048
      %v1784 = vunpack.c.l.b16 %v1049
      %v1785 = vunpack.c.l.b16 %v1050
      %v1786 = vunpack.c.l.b16 %v1051
      %v1787 = vunpack.c.l.b16 %v1052
      %v1788 = vunpack.c.l.b16 %v1053
      %v1789 = vpack.c.b16 %v1758, %v1757
      %v1790 = vpack.c.b16 %v1760, %v1759
      %v1791 = vpack.c.b16 %v1762, %v1761
      %v1792 = vpack.c.b16 %v1764, %v1763
      %v1793 = vpack.c.b16 %v1766, %v1765
      %v1794 = vpack.c.b16 %v1768, %v1767
      %v1795 = vpack.c.b16 %v1770, %v1769
      %v1796 = vpack.c.b16 %v1772, %v1771
      %v1797 = vpack.c.b16 %v1774, %v1773
      %v1798 = vpack.c.b16 %v1776, %v1775
      %v1799 = vpack.c.b16 %v1778, %v1777
      %v1800 = vpack.c.b16 %v1780, %v1779
      %v1801 = vpack.c.b16 %v1782, %v1781
      %v1802 = vpack.c.b16 %v1784, %v1783
      %v1803 = vpack.c.b16 %v1786, %v1785
      %v1804 = vpack.c.b16 %v1788, %v1787
      %v1806 = vsel %vm1508, %v1789, 0
      %v1809 = vsel %vm1508, %v1790, 0
      %v1812 = vsel %vm1508, %v1791, 0
      %v1815 = vsel %vm1508, %v1792, 0
      %v1818 = vsel %vm1508, %v1793, 0
      %v1821 = vsel %vm1508, %v1794, 0
      %v1824 = vsel %vm1508, %v1795, 0
      %v1827 = vsel %vm1508, %v1796, 0
      %v1830 = vsel %vm1508, %v1797, 0
      %v1833 = vsel %vm1508, %v1798, 0
      %v1836 = vsel %vm1508, %v1799, 0
      %v1839 = vsel %vm1508, %v1800, 0
      %v1842 = vsel %vm1508, %v1801, 0
      %v1845 = vsel %vm1508, %v1802, 0
      %v1848 = vsel %vm1508, %v1803, 0
      %v1851 = vsel %vm1508, %v1804, 0
      %v1854 = vand.u32 %v1054, %v1560
      %1856 = vmatprep.subr.bf16.mxu0 0
      %1857 = vmatpush1.bf16.msra.mxu0 %v1854
      %1858 = vmatprep.subr.bf16.mxu0 0
      %1859 = vmatpush1.bf16.msra.mxu0 0
      %1860 = vmatprep.subr.bf16.mxu0 0
      %1861 = vmatpush1.bf16.msra.mxu0 0
      %1862 = vmatprep.subr.bf16.mxu0 0
      %1863 = vmatpush1.bf16.msra.mxu0 0
      %1864 = vmatprep.subr.bf16.mxu0 0
      %1865 = vmatpush1.bf16.msra.mxu0 0
      %1866 = vmatprep.subr.bf16.mxu0 0
      %1867 = vmatpush1.bf16.msra.mxu0 0
      %1868 = vmatprep.subr.bf16.mxu0 0
      %1869 = vmatpush1.bf16.msra.mxu0 0
      %1870 = vmatprep.subr.bf16.mxu0 0
      %1871 = vmatpush1.bf16.msra.mxu0 0
      %1872 = vmatprep.subr.bf16.mxu0 0
      %1873 = vmatpush1.bf16.msra.mxu0 0
      %1874 = vmatprep.subr.bf16.mxu0 0
      %1875 = vmatpush1.bf16.msra.mxu0 0
      %1876 = vmatprep.subr.bf16.mxu0 0
      %1877 = vmatpush1.bf16.msra.mxu0 0
      %1878 = vmatprep.subr.bf16.mxu0 0
      %1879 = vmatpush1.bf16.msra.mxu0 0
      %1880 = vmatprep.subr.bf16.mxu0 0
      %1881 = vmatpush1.bf16.msra.mxu0 0
      %1882 = vmatprep.subr.bf16.mxu0 0
      %1883 = vmatpush1.bf16.msra.mxu0 0
      %1884 = vmatprep.subr.bf16.mxu0 0
      %1885 = vmatpush1.bf16.msra.mxu0 0
      %1886 = vmatprep.subr.bf16.mxu0 0
      %1887 = vmatpush1.bf16.msra.mxu0 0
      %1888 = vmatprep.mubr.bf16.mxu0 0
      %1889 = vmatmul.mubr.bf16.gmra.mrb[0].mxu0 %v1806
      %v1890 = vpop.f32.mrb[0].mxu0
      %v1891 = vadd.f32 %v1599, %v1890
      %v1892 = vpop.f32.mrb[0].mxu0
      %v1893 = vpop.f32.mrb[0].mxu0
      %v1894 = vadd.f32 %v1602, %v1893
      %v1895 = vpop.f32.mrb[0].mxu0
      %1896 = vmatprep.mubr.bf16.mxu0 0
      %1897 = vmatmul.mubr.bf16.gmra.mrb[0].mxu0 %v1809
      %v1898 = vpop.f32.mrb[0].mxu0
      %v1899 = vadd.f32 %v1607, %v1898
      %v1900 = vpop.f32.mrb[0].mxu0
      %v1901 = vpop.f32.mrb[0].mxu0
      %v1902 = vadd.f32 %v1610, %v1901
      %v1903 = vpop.f32.mrb[0].mxu0
      %1904 = vmatprep.mubr.bf16.mxu0 0
      %1905 = vmatmul.mubr.bf16.gmra.mrb[0].mxu0 %v1812
      %v1906 = vpop.f32.mrb[0].mxu0
      %v1907 = vadd.f32 %v1615, %v1906
      %v1908 = vpop.f32.mrb[0].mxu0
      %v1909 = vpop.f32.mrb[0].mxu0
      %v1910 = vadd.f32 %v1618, %v1909
      %v1911 = vpop.f32.mrb[0].mxu0
      %1912 = vmatprep.mubr.bf16.mxu0 0
      %1913 = vmatmul.mubr.bf16.gmra.mrb[0].mxu0 %v1815
      %v1914 = vpop.f32.mrb[0].mxu0
      %v1915 = vadd.f32 %v1623, %v1914
      %v1916 = vpop.f32.mrb[0].mxu0
      %v1917 = vpop.f32.mrb[0].mxu0
      %v1918 = vadd.f32 %v1626, %v1917
      %v1919 = vpop.f32.mrb[0].mxu0
      %1920 = vmatprep.mubr.bf16.mxu0 0
      %1921 = vmatmul.mubr.bf16.gmra.mrb[0].mxu0 %v1818
      %v1922 = vpop.f32.mrb[0].mxu0
      %v1923 = vadd.f32 %v1631, %v1922
      %v1924 = vpop.f32.mrb[0].mxu0
      %v1925 = vpop.f32.mrb[0].mxu0
      %v1926 = vadd.f32 %v1634, %v1925
      %v1927 = vpop.f32.mrb[0].mxu0
      %1928 = vmatprep.mubr.bf16.mxu0 0
      %1929 = vmatmul.mubr.bf16.gmra.mrb[0].mxu0 %v1821
      %v1930 = vpop.f32.mrb[0].mxu0
      %v1931 = vadd.f32 %v1639, %v1930
      %v1932 = vpop.f32.mrb[0].mxu0
      %v1933 = vpop.f32.mrb[0].mxu0
      %v1934 = vadd.f32 %v1642, %v1933
      %v1935 = vpop.f32.mrb[0].mxu0
      %1936 = vmatprep.mubr.bf16.mxu0 0
      %1937 = vmatmul.mubr.bf16.gmra.mrb[0].mxu0 %v1824
      %v1938 = vpop.f32.mrb[0].mxu0
      %v1939 = vadd.f32 %v1647, %v1938
      %v1940 = vpop.f32.mrb[0].mxu0
      %v1941 = vpop.f32.mrb[0].mxu0
      %v1942 = vadd.f32 %v1650, %v1941
      %v1943 = vpop.f32.mrb[0].mxu0
      %1944 = vmatprep.mubr.bf16.mxu0 0
      %1945 = vmatmul.mubr.bf16.gmra.mrb[0].mxu0 %v1827
      %v1946 = vpop.f32.mrb[0].mxu0
      %v1947 = vadd.f32 %v1655, %v1946
      %v1948 = vpop.f32.mrb[0].mxu0
      %v1949 = vpop.f32.mrb[0].mxu0
      %v1950 = vadd.f32 %v1658, %v1949
      %v1951 = vpop.f32.mrb[0].mxu0
      %1952 = vmatprep.mubr.bf16.mxu0 0
      %1953 = vmatmul.mubr.bf16.gmra.mrb[0].mxu0 %v1830
      %v1954 = vpop.f32.mrb[0].mxu0
      %v1955 = vadd.f32 %v1663, %v1954
      %v1956 = vpop.f32.mrb[0].mxu0
      %v1957 = vpop.f32.mrb[0].mxu0
      %v1958 = vadd.f32 %v1666, %v1957
      %v1959 = vpop.f32.mrb[0].mxu0
      %1960 = vmatprep.mubr.bf16.mxu0 0
      %1961 = vmatmul.mubr.bf16.gmra.mrb[0].mxu0 %v1833
      %v1962 = vpop.f32.mrb[0].mxu0
      %v1963 = vadd.f32 %v1671, %v1962
      %v1964 = vpop.f32.mrb[0].mxu0
      %v1965 = vpop.f32.mrb[0].mxu0
      %v1966 = vadd.f32 %v1674, %v1965
      %v1967 = vpop.f32.mrb[0].mxu0
      %1968 = vmatprep.mubr.bf16.mxu0 0
      %1969 = vmatmul.mubr.bf16.gmra.mrb[0].mxu0 %v1836
      %v1970 = vpop.f32.mrb[0].mxu0
      %v1971 = vadd.f32 %v1679, %v1970
      %v1972 = vpop.f32.mrb[0].mxu0
      %v1973 = vpop.f32.mrb[0].mxu0
      %v1974 = vadd.f32 %v1682, %v1973
      %v1975 = vpop.f32.mrb[0].mxu0
      %1976 = vmatprep.mubr.bf16.mxu0 0
      %1977 = vmatmul.mubr.bf16.gmra.mrb[0].mxu0 %v1839
      %v1978 = vpop.f32.mrb[0].mxu0
      %v1979 = vadd.f32 %v1687, %v1978
      %v1980 = vpop.f32.mrb[0].mxu0
      %v1981 = vpop.f32.mrb[0].mxu0
      %v1982 = vadd.f32 %v1690, %v1981
      %v1983 = vpop.f32.mrb[0].mxu0
      %1984 = vmatprep.mubr.bf16.mxu0 0
      %1985 = vmatmul.mubr.bf16.gmra.mrb[0].mxu0 %v1842
      %v1986 = vpop.f32.mrb[0].mxu0
      %v1987 = vadd.f32 %v1695, %v1986
      %v1988 = vpop.f32.mrb[0].mxu0
      %v1989 = vpop.f32.mrb[0].mxu0
      %v1990 = vadd.f32 %v1698, %v1989
      %v1991 = vpop.f32.mrb[0].mxu0
      %1992 = vmatprep.mubr.bf16.mxu0 0
      %1993 = vmatmul.mubr.bf16.gmra.mrb[0].mxu0 %v1845
      %v1994 = vpop.f32.mrb[0].mxu0
      %v1995 = vadd.f32 %v1703, %v1994
      %v1996 = vpop.f32.mrb[0].mxu0
      %v1997 = vpop.f32.mrb[0].mxu0
      %v1998 = vadd.f32 %v1706, %v1997
      %v1999 = vpop.f32.mrb[0].mxu0
      %2000 = vmatprep.mubr.bf16.mxu0 0
      %2001 = vmatmul.mubr.bf16.gmra.mrb[0].mxu0 %v1848
      %v2002 = vpop.f32.mrb[0].mxu0
      %v2003 = vadd.f32 %v1711, %v2002
      %v2004 = vpop.f32.mrb[0].mxu0
      %v2005 = vpop.f32.mrb[0].mxu0
      %v2006 = vadd.f32 %v1714, %v2005
      %v2007 = vpop.f32.mrb[0].mxu0
      %2008 = vmatprep.mubr.bf16.mxu0 0
      %2009 = vmatmul.mubr.bf16.gmra.mrb[0].mxu0 %v1851
      %v2010 = vpop.f32.mrb[0].mxu0
      %v2011 = vadd.f32 %v1719, %v2010
      %v2012 = vpop.f32.mrb[0].mxu0
      %v2013 = vpop.f32.mrb[0].mxu0
      %v2014 = vadd.f32 %v1722, %v2013
      %v2015 = vpop.f32.mrb[0].mxu0
      %2016 = vdwg.mxu0
      %v2017 = vld [vmem:[#allocation2] sm:$0xe]
      %v2018 = vld [vmem:[#allocation2 + $0xc] sm:$0xe]
      %v2019 = vld [vmem:[#allocation2 + $0x18] sm:$0xe]
      %v2020 = vld [vmem:[#allocation2 + $0x24] sm:$0xe]
      %v2021 = vld [vmem:[#allocation2 + $0x30] sm:$0xe]
      %v2022 = vld [vmem:[#allocation2 + $0x3c] sm:$0xe]
      %v2023 = vld [vmem:[#allocation2 + $0x48] sm:$0xe]
      %v2024 = vld [vmem:[#allocation2 + $0x54] sm:$0xe]
      %v2025 = vld [vmem:[#allocation2 + $0x60] sm:$0xe]
      %v2026 = vld [vmem:[#allocation2 + $0x6c] sm:$0xe]
      %v2027 = vld [vmem:[#allocation2 + $0x78] sm:$0xe]
      %v2028 = vld [vmem:[#allocation2 + $0x84] sm:$0xe]
      %v2029 = vld [vmem:[#allocation2 + $0x90] sm:$0xe]
      %v2030 = vld [vmem:[#allocation2 + $0x9c] sm:$0xe]
      %v2031 = vld [vmem:[#allocation2 + $0xa8] sm:$0xe]
      %v2032 = vld [vmem:[#allocation2 + $0xb4] sm:$0xe]
      %vm2065 = vcmask 1042432
      %vm2066 = vcmask 1046532
      %vm2067 = vmor %vm2065, %vm2066
      %v2068 = vrot.slane %v2017, 5
      %v2069 = vrot.slane %v2068, 4
      %v2070 = vrot.slane %v1023, 5
      %v2071 = vsel %vm2067, %v2069, %v2070
      %v2072 = vrot.slane %v2070, 4
      %v2073 = vrot.slane %v1055, 5
      %v2074 = vsel %vm2067, %v2072, %v2073
      %v2075 = vrot.slane %v2018, 5
      %v2076 = vrot.slane %v2075, 4
      %v2077 = vrot.slane %v1025, 5
      %v2078 = vsel %vm2067, %v2076, %v2077
      %v2079 = vrot.slane %v2077, 4
      %v2080 = vrot.slane %v1056, 5
      %v2081 = vsel %vm2067, %v2079, %v2080
      %v2082 = vrot.slane %v2019, 5
      %v2083 = vrot.slane %v2082, 4
      %v2084 = vrot.slane %v1027, 5
      %v2085 = vsel %vm2067, %v2083, %v2084
      %v2086 = vrot.slane %v2084, 4
      %v2087 = vrot.slane %v1057, 5
      %v2088 = vsel %vm2067, %v2086, %v2087
      %v2089 = vrot.slane %v2020, 5
      %v2090 = vrot.slane %v2089, 4
      %v2091 = vrot.slane %v1029, 5
      %v2092 = vsel %vm2067, %v2090, %v2091
      %v2093 = vrot.slane %v2091, 4
      %v2094 = vrot.slane %v1058, 5
      %v2095 = vsel %vm2067, %v2093, %v2094
      %v2096 = vrot.slane %v2021, 5
      %v2097 = vrot.slane %v2096, 4
      %v2098 = vrot.slane %v1031, 5
      %v2099 = vsel %vm2067, %v2097, %v2098
      %v2100 = vrot.slane %v2098, 4
      %v2101 = vrot.slane %v1059, 5
      %v2102 = vsel %vm2067, %v2100, %v2101
      %v2103 = vrot.slane %v2022, 5
      %v2104 = vrot.slane %v2103, 4
      %v2105 = vrot.slane %v1033, 5
      %v2106 = vsel %vm2067, %v2104, %v2105
      %v2107 = vrot.slane %v2105, 4
      %v2108 = vrot.slane %v1060, 5
      %v2109 = vsel %vm2067, %v2107, %v2108
      %v2110 = vrot.slane %v2023, 5
      %v2111 = vrot.slane %v2110, 4
      %v2112 = vrot.slane %v1035, 5
      %v2113 = vsel %vm2067, %v2111, %v2112
      %v2114 = vrot.slane %v2112, 4
      %v2115 = vrot.slane %v1061, 5
      %v2116 = vsel %vm2067, %v2114, %v2115
      %v2117 = vrot.slane %v2024, 5
      %v2118 = vrot.slane %v2117, 4
      %v2119 = vrot.slane %v1037, 5
      %v2120 = vsel %vm2067, %v2118, %v2119
      %v2121 = vrot.slane %v2119, 4
      %v2122 = vrot.slane %v1062, 5
      %v2123 = vsel %vm2067, %v2121, %v2122
      %v2124 = vrot.slane %v2025, 5
      %v2125 = vrot.slane %v2124, 4
      %v2126 = vrot.slane %v1039, 5
      %v2127 = vsel %vm2067, %v2125, %v2126
      %v2128 = vrot.slane %v2126, 4
      %v2129 = vrot.slane %v1063, 5
      %v2130 = vsel %vm2067, %v2128, %v2129
      %v2131 = vrot.slane %v2026, 5
      %v2132 = vrot.slane %v2131, 4
      %v2133 = vrot.slane %v1041, 5
      %v2134 = vsel %vm2067, %v2132, %v2133
      %v2135 = vrot.slane %v2133, 4
      %v2136 = vrot.slane %v1064, 5
      %v2137 = vsel %vm2067, %v2135, %v2136
      %v2138 = vrot.slane %v2027, 5
      %v2139 = vrot.slane %v2138, 4
      %v2140 = vrot.slane %v1043, 5
      %v2141 = vsel %vm2067, %v2139, %v2140
      %v2142 = vrot.slane %v2140, 4
      %v2143 = vrot.slane %v1065, 5
      %v2144 = vsel %vm2067, %v2142, %v2143
      %v2145 = vrot.slane %v2028, 5
      %v2146 = vrot.slane %v2145, 4
      %v2147 = vrot.slane %v1045, 5
      %v2148 = vsel %vm2067, %v2146, %v2147
      %v2149 = vrot.slane %v2147, 4
      %v2150 = vrot.slane %v1066, 5
      %v2151 = vsel %vm2067, %v2149, %v2150
      %v2152 = vrot.slane %v2029, 5
      %v2153 = vrot.slane %v2152, 4
      %v2154 = vrot.slane %v1047, 5
      %v2155 = vsel %vm2067, %v2153, %v2154
      %v2156 = vrot.slane %v2154, 4
      %v2157 = vrot.slane %v1067, 5
      %v2158 = vsel %vm2067, %v2156, %v2157
      %v2159 = vrot.slane %v2030, 5
      %v2160 = vrot.slane %v2159, 4
      %v2161 = vrot.slane %v1049, 5
      %v2162 = vsel %vm2067, %v2160, %v2161
      %v2163 = vrot.slane %v2161, 4
      %v2164 = vrot.slane %v1068, 5
      %v2165 = vsel %vm2067, %v2163, %v2164
      %v2166 = vrot.slane %v2031, 5
      %v2167 = vrot.slane %v2166, 4
      %v2168 = vrot.slane %v1051, 5
      %v2169 = vsel %vm2067, %v2167, %v2168
      %v2170 = vrot.slane %v2168, 4
      %v2171 = vrot.slane %v1069, 5
      %v2172 = vsel %vm2067, %v2170, %v2171
      %v2173 = vrot.slane %v2032, 5
      %v2174 = vrot.slane %v2173, 4
      %v2175 = vrot.slane %v1053, 5
      %v2176 = vsel %vm2067, %v2174, %v2175
      %v2177 = vrot.slane %v2175, 4
      %v2178 = vrot.slane %v1070, 5
      %v2179 = vsel %vm2067, %v2177, %v2178
      %s2180 = scalar_lea.vmem %s1, 4
      %v2181 = vld [vmem:[%s2180] sm:$0x3]
      %v2182 = vunpack.c.l.b16 %v2071
      %v2183 = vunpack.c.l.b16 %v2074
      %v2184 = vunpack.c.l.b16 %v2078
      %v2185 = vunpack.c.l.b16 %v2081
      %v2186 = vunpack.c.l.b16 %v2085
      %v2187 = vunpack.c.l.b16 %v2088
      %v2188 = vunpack.c.l.b16 %v2092
      %v2189 = vunpack.c.l.b16 %v2095
      %v2190 = vunpack.c.l.b16 %v2099
      %v2191 = vunpack.c.l.b16 %v2102
      %v2192 = vunpack.c.l.b16 %v2106
      %v2193 = vunpack.c.l.b16 %v2109
      %v2194 = vunpack.c.l.b16 %v2113
      %v2195 = vunpack.c.l.b16 %v2116
      %v2196 = vunpack.c.l.b16 %v2120
      %v2197 = vunpack.c.l.b16 %v2123
      %v2198 = vunpack.c.l.b16 %v2127
      %v2199 = vunpack.c.l.b16 %v2130
      %v2200 = vunpack.c.l.b16 %v2134
      %v2201 = vunpack.c.l.b16 %v2137
      %v2202 = vunpack.c.l.b16 %v2141
      %v2203 = vunpack.c.l.b16 %v2144
      %v2204 = vunpack.c.l.b16 %v2148
      %v2205 = vunpack.c.l.b16 %v2151
      %v2206 = vunpack.c.l.b16 %v2155
      %v2207 = vunpack.c.l.b16 %v2158
      %v2208 = vunpack.c.l.b16 %v2162
      %v2209 = vunpack.c.l.b16 %v2165
      %v2210 = vunpack.c.l.b16 %v2169
      %v2211 = vunpack.c.l.b16 %v2172
      %v2212 = vunpack.c.l.b16 %v2176
      %v2213 = vunpack.c.l.b16 %v2179
      %v2214 = vpack.c.b16 %v2183, %v2182
      %v2215 = vpack.c.b16 %v2185, %v2184
      %v2216 = vpack.c.b16 %v2187, %v2186
      %v2217 = vpack.c.b16 %v2189, %v2188
      %v2218 = vpack.c.b16 %v2191, %v2190
      %v2219 = vpack.c.b16 %v2193, %v2192
      %v2220 = vpack.c.b16 %v2195, %v2194
      %v2221 = vpack.c.b16 %v2197, %v2196
      %v2222 = vpack.c.b16 %v2199, %v2198
      %v2223 = vpack.c.b16 %v2201, %v2200
      %v2224 = vpack.c.b16 %v2203, %v2202
      %v2225 = vpack.c.b16 %v2205, %v2204
      %v2226 = vpack.c.b16 %v2207, %v2206
      %v2227 = vpack.c.b16 %v2209, %v2208
      %v2228 = vpack.c.b16 %v2211, %v2210
      %v2229 = vpack.c.b16 %v2213, %v2212
      %v2231 = vsel %vm1508, %v2214, 0
      %v2234 = vsel %vm1508, %v2215, 0
      %v2237 = vsel %vm1508, %v2216, 0
      %v2240 = vsel %vm1508, %v2217, 0
      %v2243 = vsel %vm1508, %v2218, 0
      %v2246 = vsel %vm1508, %v2219, 0
      %v2249 = vsel %vm1508, %v2220, 0
      %v2252 = vsel %vm1508, %v2221, 0
      %v2255 = vsel %vm1508, %v2222, 0
      %v2258 = vsel %vm1508, %v2223, 0
      %v2261 = vsel %vm1508, %v2224, 0
      %v2264 = vsel %vm1508, %v2225, 0
      %v2267 = vsel %vm1508, %v2226, 0
      %v2270 = vsel %vm1508, %v2227, 0
      %v2273 = vsel %vm1508, %v2228, 0
      %v2276 = vsel %vm1508, %v2229, 0
      %v2279 = vand.u32 %v2181, %v1560
      %2281 = vmatprep.subr.bf16.mxu0 0
      %2282 = vmatpush1.bf16.msra.mxu0 %v2279
      %2283 = vmatprep.subr.bf16.mxu0 0
      %2284 = vmatpush1.bf16.msra.mxu0 0
      %2285 = vmatprep.subr.bf16.mxu0 0
      %2286 = vmatpush1.bf16.msra.mxu0 0
      %2287 = vmatprep.subr.bf16.mxu0 0
      %2288 = vmatpush1.bf16.msra.mxu0 0
      %2289 = vmatprep.subr.bf16.mxu0 0
      %2290 = vmatpush1.bf16.msra.mxu0 0
      %2291 = vmatprep.subr.bf16.mxu0 0
      %2292 = vmatpush1.bf16.msra.mxu0 0
      %2293 = vmatprep.subr.bf16.mxu0 0
      %2294 = vmatpush1.bf16.msra.mxu0 0
      %2295 = vmatprep.subr.bf16.mxu0 0
      %2296 = vmatpush1.bf16.msra.mxu0 0
      %2297 = vmatprep.subr.bf16.mxu0 0
      %2298 = vmatpush1.bf16.msra.mxu0 0
      %2299 = vmatprep.subr.bf16.mxu0 0
      %2300 = vmatpush1.bf16.msra.mxu0 0
      %2301 = vmatprep.subr.bf16.mxu0 0
      %2302 = vmatpush1.bf16.msra.mxu0 0
      %2303 = vmatprep.subr.bf16.mxu0 0
      %2304 = vmatpush1.bf16.msra.mxu0 0
      %2305 = vmatprep.subr.bf16.mxu0 0
      %2306 = vmatpush1.bf16.msra.mxu0 0
      %2307 = vmatprep.subr.bf16.mxu0 0
      %2308 = vmatpush1.bf16.msra.mxu0 0
      %2309 = vmatprep.subr.bf16.mxu0 0
      %2310 = vmatpush1.bf16.msra.mxu0 0
      %2311 = vmatprep.subr.bf16.mxu0 0
      %2312 = vmatpush1.bf16.msra.mxu0 0
      %2313 = vmatprep.mubr.bf16.mxu0 0
      %2314 = vmatmul.mubr.bf16.gmra.mrb[0].mxu0 %v2231
      %v2315 = vpop.f32.mrb[0].mxu0
      %v2316 = vadd.f32 0.0, %v2315
      %v2317 = vpop.f32.mrb[0].mxu0
      %v2318 = vpop.f32.mrb[0].mxu0
      %v2319 = vadd.f32 0.0, %v2318
      %v2320 = vpop.f32.mrb[0].mxu0
      %2321 = vmatprep.mubr.bf16.mxu0 0
      %2322 = vmatmul.mubr.bf16.gmra.mrb[0].mxu0 %v2234
      %v2323 = vpop.f32.mrb[0].mxu0
      %v2324 = vadd.f32 0.0, %v2323
      %v2325 = vpop.f32.mrb[0].mxu0
      %v2326 = vpop.f32.mrb[0].mxu0
      %v2327 = vadd.f32 0.0, %v2326
      %v2328 = vpop.f32.mrb[0].mxu0
      %2329 = vmatprep.mubr.bf16.mxu0 0
      %2330 = vmatmul.mubr.bf16.gmra.mrb[0].mxu0 %v2237
      %v2331 = vpop.f32.mrb[0].mxu0
      %v2332 = vadd.f32 0.0, %v2331
      %v2333 = vpop.f32.mrb[0].mxu0
      %v2334 = vpop.f32.mrb[0].mxu0
      %v2335 = vadd.f32 0.0, %v2334
      %v2336 = vpop.f32.mrb[0].mxu0
      %2337 = vmatprep.mubr.bf16.mxu0 0
      %2338 = vmatmul.mubr.bf16.gmra.mrb[0].mxu0 %v2240
      %v2339 = vpop.f32.mrb[0].mxu0
      %v2340 = vadd.f32 0.0, %v2339
      %v2341 = vpop.f32.mrb[0].mxu0
      %v2342 = vpop.f32.mrb[0].mxu0
      %v2343 = vadd.f32 0.0, %v2342
      %v2344 = vpop.f32.mrb[0].mxu0
      %2345 = vmatprep.mubr.bf16.mxu0 0
      %2346 = vmatmul.mubr.bf16.gmra.mrb[0].mxu0 %v2243
      %v2347 = vpop.f32.mrb[0].mxu0
      %v2348 = vadd.f32 0.0, %v2347
      %v2349 = vpop.f32.mrb[0].mxu0
      %v2350 = vpop.f32.mrb[0].mxu0
      %v2351 = vadd.f32 0.0, %v2350
      %v2352 = vpop.f32.mrb[0].mxu0
      %2353 = vmatprep.mubr.bf16.mxu0 0
      %2354 = vmatmul.mubr.bf16.gmra.mrb[0].mxu0 %v2246
      %v2355 = vpop.f32.mrb[0].mxu0
      %v2356 = vadd.f32 0.0, %v2355
      %v2357 = vpop.f32.mrb[0].mxu0
      %v2358 = vpop.f32.mrb[0].mxu0
      %v2359 = vadd.f32 0.0, %v2358
      %v2360 = vpop.f32.mrb[0].mxu0
      %2361 = vmatprep.mubr.bf16.mxu0 0
      %2362 = vmatmul.mubr.bf16.gmra.mrb[0].mxu0 %v2249
      %v2363 = vpop.f32.mrb[0].mxu0
      %v2364 = vadd.f32 0.0, %v2363
      %v2365 = vpop.f32.mrb[0].mxu0
      %v2366 = vpop.f32.mrb[0].mxu0
      %v2367 = vadd.f32 0.0, %v2366
      %v2368 = vpop.f32.mrb[0].mxu0
      %2369 = vmatprep.mubr.bf16.mxu0 0
      %2370 = vmatmul.mubr.bf16.gmra.mrb[0].mxu0 %v2252
      %v2371 = vpop.f32.mrb[0].mxu0
      %v2372 = vadd.f32 0.0, %v2371
      %v2373 = vpop.f32.mrb[0].mxu0
      %v2374 = vpop.f32.mrb[0].mxu0
      %v2375 = vadd.f32 0.0, %v2374
      %v2376 = vpop.f32.mrb[0].mxu0
      %2377 = vmatprep.mubr.bf16.mxu0 0
      %2378 = vmatmul.mubr.bf16.gmra.mrb[0].mxu0 %v2255
      %v2379 = vpop.f32.mrb[0].mxu0
      %v2380 = vadd.f32 0.0, %v2379
      %v2381 = vpop.f32.mrb[0].mxu0
      %v2382 = vpop.f32.mrb[0].mxu0
      %v2383 = vadd.f32 0.0, %v2382
      %v2384 = vpop.f32.mrb[0].mxu0
      %2385 = vmatprep.mubr.bf16.mxu0 0
      %2386 = vmatmul.mubr.bf16.gmra.mrb[0].mxu0 %v2258
      %v2387 = vpop.f32.mrb[0].mxu0
      %v2388 = vadd.f32 0.0, %v2387
      %v2389 = vpop.f32.mrb[0].mxu0
      %v2390 = vpop.f32.mrb[0].mxu0
      %v2391 = vadd.f32 0.0, %v2390
      %v2392 = vpop.f32.mrb[0].mxu0
      %2393 = vmatprep.mubr.bf16.mxu0 0
      %2394 = vmatmul.mubr.bf16.gmra.mrb[0].mxu0 %v2261
      %v2395 = vpop.f32.mrb[0].mxu0
      %v2396 = vadd.f32 0.0, %v2395
      %v2397 = vpop.f32.mrb[0].mxu0
      %v2398 = vpop.f32.mrb[0].mxu0
      %v2399 = vadd.f32 0.0, %v2398
      %v2400 = vpop.f32.mrb[0].mxu0
      %2401 = vmatprep.mubr.bf16.mxu0 0
      %2402 = vmatmul.mubr.bf16.gmra.mrb[0].mxu0 %v2264
      %v2403 = vpop.f32.mrb[0].mxu0
      %v2404 = vadd.f32 0.0, %v2403
      %v2405 = vpop.f32.mrb[0].mxu0
      %v2406 = vpop.f32.mrb[0].mxu0
      %v2407 = vadd.f32 0.0, %v2406
      %v2408 = vpop.f32.mrb[0].mxu0
      %2409 = vmatprep.mubr.bf16.mxu0 0
      %2410 = vmatmul.mubr.bf16.gmra.mrb[0].mxu0 %v2267
      %v2411 = vpop.f32.mrb[0].mxu0
      %v2412 = vadd.f32 0.0, %v2411
      %v2413 = vpop.f32.mrb[0].mxu0
      %v2414 = vpop.f32.mrb[0].mxu0
      %v2415 = vadd.f32 0.0, %v2414
      %v2416 = vpop.f32.mrb[0].mxu0
      %2417 = vmatprep.mubr.bf16.mxu0 0
      %2418 = vmatmul.mubr.bf16.gmra.mrb[0].mxu0 %v2270
      %v2419 = vpop.f32.mrb[0].mxu0
      %v2420 = vadd.f32 0.0, %v2419
      %v2421 = vpop.f32.mrb[0].mxu0
      %v2422 = vpop.f32.mrb[0].mxu0
      %v2423 = vadd.f32 0.0, %v2422
      %v2424 = vpop.f32.mrb[0].mxu0
      %2425 = vmatprep.mubr.bf16.mxu0 0
      %2426 = vmatmul.mubr.bf16.gmra.mrb[0].mxu0 %v2273
      %v2427 = vpop.f32.mrb[0].mxu0
      %v2428 = vadd.f32 0.0, %v2427
      %v2429 = vpop.f32.mrb[0].mxu0
      %v2430 = vpop.f32.mrb[0].mxu0
      %v2431 = vadd.f32 0.0, %v2430
      %v2432 = vpop.f32.mrb[0].mxu0
      %2433 = vmatprep.mubr.bf16.mxu0 0
      %2434 = vmatmul.mubr.bf16.gmra.mrb[0].mxu0 %v2276
      %v2435 = vpop.f32.mrb[0].mxu0
      %v2436 = vadd.f32 0.0, %v2435
      %v2437 = vpop.f32.mrb[0].mxu0
      %v2438 = vpop.f32.mrb[0].mxu0
      %v2439 = vadd.f32 0.0, %v2438
      %v2440 = vpop.f32.mrb[0].mxu0
      %2441 = vdwg.mxu0
      %v2442 = vadd.f32 %v1891, %v2316
      %v2443 = vadd.f32 %v1894, %v2319
      %v2444 = vadd.f32 %v1899, %v2324
      %v2445 = vadd.f32 %v1902, %v2327
      %v2446 = vadd.f32 %v1907, %v2332
      %v2447 = vadd.f32 %v1910, %v2335
      %v2448 = vadd.f32 %v1915, %v2340
      %v2449 = vadd.f32 %v1918, %v2343
      %v2450 = vadd.f32 %v1923, %v2348
      %v2451 = vadd.f32 %v1926, %v2351
      %v2452 = vadd.f32 %v1931, %v2356
      %v2453 = vadd.f32 %v1934, %v2359
      %v2454 = vadd.f32 %v1939, %v2364
      %v2455 = vadd.f32 %v1942, %v2367
      %v2456 = vadd.f32 %v1947, %v2372
      %v2457 = vadd.f32 %v1950, %v2375
      %v2458 = vadd.f32 %v1955, %v2380
      %v2459 = vadd.f32 %v1958, %v2383
      %v2460 = vadd.f32 %v1963, %v2388
      %v2461 = vadd.f32 %v1966, %v2391
      %v2462 = vadd.f32 %v1971, %v2396
      %v2463 = vadd.f32 %v1974, %v2399
      %v2464 = vadd.f32 %v1979, %v2404
      %v2465 = vadd.f32 %v1982, %v2407
      %v2466 = vadd.f32 %v1987, %v2412
      %v2467 = vadd.f32 %v1990, %v2415
      %v2468 = vadd.f32 %v1995, %v2420
      %v2469 = vadd.f32 %v1998, %v2423
      %v2470 = vadd.f32 %v2003, %v2428
      %v2471 = vadd.f32 %v2006, %v2431
      %v2472 = vadd.f32 %v2011, %v2436
      %v2473 = vadd.f32 %v2014, %v2439
      %v2474 = vld [vmem:[%s906] sm:$0xf]
      %v2475 = vld [vmem:[%s906 + $0x4] sm:$0xf]
      %v2476 = vld [vmem:[%s906 + $0xc] sm:$0xf]
      %v2477 = vld [vmem:[%s906 + $0x10] sm:$0xf]
      %v2478 = vld [vmem:[%s906 + $0x18] sm:$0xf]
      %v2479 = vld [vmem:[%s906 + $0x1c] sm:$0xf]
      %v2480 = vld [vmem:[%s906 + $0x24] sm:$0xf]
      %v2481 = vld [vmem:[%s906 + $0x28] sm:$0xf]
      %v2482 = vld [vmem:[%s906 + $0x30] sm:$0xf]
      %v2483 = vld [vmem:[%s906 + $0x34] sm:$0xf]
      %v2484 = vld [vmem:[%s906 + $0x3c] sm:$0xf]
      %v2485 = vld [vmem:[%s906 + $0x40] sm:$0xf]
      %v2486 = vld [vmem:[%s906 + $0x48] sm:$0xf]
      %v2487 = vld [vmem:[%s906 + $0x4c] sm:$0xf]
      %v2488 = vld [vmem:[%s906 + $0x54] sm:$0xf]
      %v2489 = vld [vmem:[%s906 + $0x58] sm:$0xf]
      %v2490 = vld [vmem:[%s906 + $0x60] sm:$0xf]
      %v2491 = vld [vmem:[%s906 + $0x64] sm:$0xf]
      %v2492 = vld [vmem:[%s906 + $0x6c] sm:$0xf]
      %v2493 = vld [vmem:[%s906 + $0x70] sm:$0xf]
      %v2494 = vld [vmem:[%s906 + $0x78] sm:$0xf]
      %v2495 = vld [vmem:[%s906 + $0x7c] sm:$0xf]
      %v2496 = vld [vmem:[%s906 + $0x84] sm:$0xf]
      %v2497 = vld [vmem:[%s906 + $0x88] sm:$0xf]
      %v2498 = vld [vmem:[%s906 + $0x90] sm:$0xf]
      %v2499 = vld [vmem:[%s906 + $0x94] sm:$0xf]
      %v2500 = vld [vmem:[%s906 + $0x9c] sm:$0xf]
      %v2501 = vld [vmem:[%s906 + $0xa0] sm:$0xf]
      %v2502 = vld [vmem:[%s906 + $0xa8] sm:$0xf]
      %v2503 = vld [vmem:[%s906 + $0xac] sm:$0xf]
      %v2504 = vld [vmem:[%s906 + $0xb4] sm:$0xf]
      %v2505 = vld [vmem:[%s906 + $0xb8] sm:$0xf]
      %s2506 = scalar_lea.vmem %s1, 6
      %v2507 = vld [vmem:[%s2506] sm:$0x3]
      %v2540 = vunpack.c.l.b16 %v2474
      %v2541 = vunpack.c.l.b16 %v2475
      %v2542 = vunpack.c.l.b16 %v2476
      %v2543 = vunpack.c.l.b16 %v2477
      %v2544 = vunpack.c.l.b16 %v2478
      %v2545 = vunpack.c.l.b16 %v2479
      %v2546 = vunpack.c.l.b16 %v2480
      %v2547 = vunpack.c.l.b16 %v2481
      %v2548 = vunpack.c.l.b16 %v2482
      %v2549 = vunpack.c.l.b16 %v2483
      %v2550 = vunpack.c.l.b16 %v2484
      %v2551 = vunpack.c.l.b16 %v2485
      %v2552 = vunpack.c.l.b16 %v2486
      %v2553 = vunpack.c.l.b16 %v2487
      %v2554 = vunpack.c.l.b16 %v2488
      %v2555 = vunpack.c.l.b16 %v2489
      %v2556 = vunpack.c.l.b16 %v2490
      %v2557 = vunpack.c.l.b16 %v2491
      %v2558 = vunpack.c.l.b16 %v2492
      %v2559 = vunpack.c.l.b16 %v2493
      %v2560 = vunpack.c.l.b16 %v2494
      %v2561 = vunpack.c.l.b16 %v2495
      %v2562 = vunpack.c.l.b16 %v2496
      %v2563 = vunpack.c.l.b16 %v2497
      %v2564 = vunpack.c.l.b16 %v2498
      %v2565 = vunpack.c.l.b16 %v2499
      %v2566 = vunpack.c.l.b16 %v2500
      %v2567 = vunpack.c.l.b16 %v2501
      %v2568 = vunpack.c.l.b16 %v2502
      %v2569 = vunpack.c.l.b16 %v2503
      %v2570 = vunpack.c.l.b16 %v2504
      %v2571 = vunpack.c.l.b16 %v2505
      %v2572 = vpack.c.b16 %v2541, %v2540
      %v2573 = vpack.c.b16 %v2543, %v2542
      %v2574 = vpack.c.b16 %v2545, %v2544
      %v2575 = vpack.c.b16 %v2547, %v2546
      %v2576 = vpack.c.b16 %v2549, %v2548
      %v2577 = vpack.c.b16 %v2551, %v2550
      %v2578 = vpack.c.b16 %v2553, %v2552
      %v2579 = vpack.c.b16 %v2555, %v2554
      %v2580 = vpack.c.b16 %v2557, %v2556
      %v2581 = vpack.c.b16 %v2559, %v2558
      %v2582 = vpack.c.b16 %v2561, %v2560
      %v2583 = vpack.c.b16 %v2563, %v2562
      %v2584 = vpack.c.b16 %v2565, %v2564
      %v2585 = vpack.c.b16 %v2567, %v2566
      %v2586 = vpack.c.b16 %v2569, %v2568
      %v2587 = vpack.c.b16 %v2571, %v2570
      %v2589 = vsel %vm1508, %v2572, 0
      %v2592 = vsel %vm1508, %v2573, 0
      %v2595 = vsel %vm1508, %v2574, 0
      %v2598 = vsel %vm1508, %v2575, 0
      %v2601 = vsel %vm1508, %v2576, 0
      %v2604 = vsel %vm1508, %v2577, 0
      %v2607 = vsel %vm1508, %v2578, 0
      %v2610 = vsel %vm1508, %v2579, 0
      %v2613 = vsel %vm1508, %v2580, 0
      %v2616 = vsel %vm1508, %v2581, 0
      %v2619 = vsel %vm1508, %v2582, 0
      %v2622 = vsel %vm1508, %v2583, 0
      %v2625 = vsel %vm1508, %v2584, 0
      %v2628 = vsel %vm1508, %v2585, 0
      %v2631 = vsel %vm1508, %v2586, 0
      %v2634 = vsel %vm1508, %v2587, 0
      %v2637 = vand.u32 %v2507, %v1560
      %2639 = vmatprep.subr.bf16.mxu0 0
      %2640 = vmatpush1.bf16.msra.mxu0 %v2637
      %2641 = vmatprep.subr.bf16.mxu0 0
      %2642 = vmatpush1.bf16.msra.mxu0 0
      %2643 = vmatprep.subr.bf16.mxu0 0
      %2644 = vmatpush1.bf16.msra.mxu0 0
      %2645 = vmatprep.subr.bf16.mxu0 0
      %2646 = vmatpush1.bf16.msra.mxu0 0
      %2647 = vmatprep.subr.bf16.mxu0 0
      %2648 = vmatpush1.bf16.msra.mxu0 0
      %2649 = vmatprep.subr.bf16.mxu0 0
      %2650 = vmatpush1.bf16.msra.mxu0 0
      %2651 = vmatprep.subr.bf16.mxu0 0
      %2652 = vmatpush1.bf16.msra.mxu0 0
      %2653 = vmatprep.subr.bf16.mxu0 0
      %2654 = vmatpush1.bf16.msra.mxu0 0
      %2655 = vmatprep.subr.bf16.mxu0 0
      %2656 = vmatpush1.bf16.msra.mxu0 0
      %2657 = vmatprep.subr.bf16.mxu0 0
      %2658 = vmatpush1.bf16.msra.mxu0 0
      %2659 = vmatprep.subr.bf16.mxu0 0
      %2660 = vmatpush1.bf16.msra.mxu0 0
      %2661 = vmatprep.subr.bf16.mxu0 0
      %2662 = vmatpush1.bf16.msra.mxu0 0
      %2663 = vmatprep.subr.bf16.mxu0 0
      %2664 = vmatpush1.bf16.msra.mxu0 0
      %2665 = vmatprep.subr.bf16.mxu0 0
      %2666 = vmatpush1.bf16.msra.mxu0 0
      %2667 = vmatprep.subr.bf16.mxu0 0
      %2668 = vmatpush1.bf16.msra.mxu0 0
      %2669 = vmatprep.subr.bf16.mxu0 0
      %2670 = vmatpush1.bf16.msra.mxu0 0
      %2671 = vmatprep.mubr.bf16.mxu0 0
      %2672 = vmatmul.mubr.bf16.gmra.mrb[0].mxu0 %v2589
      %v2673 = vpop.f32.mrb[0].mxu0
      %v2674 = vadd.f32 0.0, %v2673
      %v2675 = vpop.f32.mrb[0].mxu0
      %v2676 = vpop.f32.mrb[0].mxu0
      %v2677 = vadd.f32 0.0, %v2676
      %v2678 = vpop.f32.mrb[0].mxu0
      %2679 = vmatprep.mubr.bf16.mxu0 0
      %2680 = vmatmul.mubr.bf16.gmra.mrb[0].mxu0 %v2592
      %v2681 = vpop.f32.mrb[0].mxu0
      %v2682 = vadd.f32 0.0, %v2681
      %v2683 = vpop.f32.mrb[0].mxu0
      %v2684 = vpop.f32.mrb[0].mxu0
      %v2685 = vadd.f32 0.0, %v2684
      %v2686 = vpop.f32.mrb[0].mxu0
      %2687 = vmatprep.mubr.bf16.mxu0 0
      %2688 = vmatmul.mubr.bf16.gmra.mrb[0].mxu0 %v2595
      %v2689 = vpop.f32.mrb[0].mxu0
      %v2690 = vadd.f32 0.0, %v2689
      %v2691 = vpop.f32.mrb[0].mxu0
      %v2692 = vpop.f32.mrb[0].mxu0
      %v2693 = vadd.f32 0.0, %v2692
      %v2694 = vpop.f32.mrb[0].mxu0
      %2695 = vmatprep.mubr.bf16.mxu0 0
      %2696 = vmatmul.mubr.bf16.gmra.mrb[0].mxu0 %v2598
      %v2697 = vpop.f32.mrb[0].mxu0
      %v2698 = vadd.f32 0.0, %v2697
      %v2699 = vpop.f32.mrb[0].mxu0
      %v2700 = vpop.f32.mrb[0].mxu0
      %v2701 = vadd.f32 0.0, %v2700
      %v2702 = vpop.f32.mrb[0].mxu0
      %2703 = vmatprep.mubr.bf16.mxu0 0
      %2704 = vmatmul.mubr.bf16.gmra.mrb[0].mxu0 %v2601
      %v2705 = vpop.f32.mrb[0].mxu0
      %v2706 = vadd.f32 0.0, %v2705
      %v2707 = vpop.f32.mrb[0].mxu0
      %v2708 = vpop.f32.mrb[0].mxu0
      %v2709 = vadd.f32 0.0, %v2708
      %v2710 = vpop.f32.mrb[0].mxu0
      %2711 = vmatprep.mubr.bf16.mxu0 0
      %2712 = vmatmul.mubr.bf16.gmra.mrb[0].mxu0 %v2604
      %v2713 = vpop.f32.mrb[0].mxu0
      %v2714 = vadd.f32 0.0, %v2713
      %v2715 = vpop.f32.mrb[0].mxu0
      %v2716 = vpop.f32.mrb[0].mxu0
      %v2717 = vadd.f32 0.0, %v2716
      %v2718 = vpop.f32.mrb[0].mxu0
      %2719 = vmatprep.mubr.bf16.mxu0 0
      %2720 = vmatmul.mubr.bf16.gmra.mrb[0].mxu0 %v2607
      %v2721 = vpop.f32.mrb[0].mxu0
      %v2722 = vadd.f32 0.0, %v2721
      %v2723 = vpop.f32.mrb[0].mxu0
      %v2724 = vpop.f32.mrb[0].mxu0
      %v2725 = vadd.f32 0.0, %v2724
      %v2726 = vpop.f32.mrb[0].mxu0
      %2727 = vmatprep.mubr.bf16.mxu0 0
      %2728 = vmatmul.mubr.bf16.gmra.mrb[0].mxu0 %v2610
      %v2729 = vpop.f32.mrb[0].mxu0
      %v2730 = vadd.f32 0.0, %v2729
      %v2731 = vpop.f32.mrb[0].mxu0
      %v2732 = vpop.f32.mrb[0].mxu0
      %v2733 = vadd.f32 0.0, %v2732
      %v2734 = vpop.f32.mrb[0].mxu0
      %2735 = vmatprep.mubr.bf16.mxu0 0
      %2736 = vmatmul.mubr.bf16.gmra.mrb[0].mxu0 %v2613
      %v2737 = vpop.f32.mrb[0].mxu0
      %v2738 = vadd.f32 0.0, %v2737
      %v2739 = vpop.f32.mrb[0].mxu0
      %v2740 = vpop.f32.mrb[0].mxu0
      %v2741 = vadd.f32 0.0, %v2740
      %v2742 = vpop.f32.mrb[0].mxu0
      %2743 = vmatprep.mubr.bf16.mxu0 0
      %2744 = vmatmul.mubr.bf16.gmra.mrb[0].mxu0 %v2616
      %v2745 = vpop.f32.mrb[0].mxu0
      %v2746 = vadd.f32 0.0, %v2745
      %v2747 = vpop.f32.mrb[0].mxu0
      %v2748 = vpop.f32.mrb[0].mxu0
      %v2749 = vadd.f32 0.0, %v2748
      %v2750 = vpop.f32.mrb[0].mxu0
      %2751 = vmatprep.mubr.bf16.mxu0 0
      %2752 = vmatmul.mubr.bf16.gmra.mrb[0].mxu0 %v2619
      %v2753 = vpop.f32.mrb[0].mxu0
      %v2754 = vadd.f32 0.0, %v2753
      %v2755 = vpop.f32.mrb[0].mxu0
      %v2756 = vpop.f32.mrb[0].mxu0
      %v2757 = vadd.f32 0.0, %v2756
      %v2758 = vpop.f32.mrb[0].mxu0
      %2759 = vmatprep.mubr.bf16.mxu0 0
      %2760 = vmatmul.mubr.bf16.gmra.mrb[0].mxu0 %v2622
      %v2761 = vpop.f32.mrb[0].mxu0
      %v2762 = vadd.f32 0.0, %v2761
      %v2763 = vpop.f32.mrb[0].mxu0
      %v2764 = vpop.f32.mrb[0].mxu0
      %v2765 = vadd.f32 0.0, %v2764
      %v2766 = vpop.f32.mrb[0].mxu0
      %2767 = vmatprep.mubr.bf16.mxu0 0
      %2768 = vmatmul.mubr.bf16.gmra.mrb[0].mxu0 %v2625
      %v2769 = vpop.f32.mrb[0].mxu0
      %v2770 = vadd.f32 0.0, %v2769
      %v2771 = vpop.f32.mrb[0].mxu0
      %v2772 = vpop.f32.mrb[0].mxu0
      %v2773 = vadd.f32 0.0, %v2772
      %v2774 = vpop.f32.mrb[0].mxu0
      %2775 = vmatprep.mubr.bf16.mxu0 0
      %2776 = vmatmul.mubr.bf16.gmra.mrb[0].mxu0 %v2628
      %v2777 = vpop.f32.mrb[0].mxu0
      %v2778 = vadd.f32 0.0, %v2777
      %v2779 = vpop.f32.mrb[0].mxu0
      %v2780 = vpop.f32.mrb[0].mxu0
      %v2781 = vadd.f32 0.0, %v2780
      %v2782 = vpop.f32.mrb[0].mxu0
      %2783 = vmatprep.mubr.bf16.mxu0 0
      %2784 = vmatmul.mubr.bf16.gmra.mrb[0].mxu0 %v2631
      %v2785 = vpop.f32.mrb[0].mxu0
      %v2786 = vadd.f32 0.0, %v2785
      %v2787 = vpop.f32.mrb[0].mxu0
      %v2788 = vpop.f32.mrb[0].mxu0
      %v2789 = vadd.f32 0.0, %v2788
      %v2790 = vpop.f32.mrb[0].mxu0
      %2791 = vmatprep.mubr.bf16.mxu0 0
      %2792 = vmatmul.mubr.bf16.gmra.mrb[0].mxu0 %v2634
      %v2793 = vpop.f32.mrb[0].mxu0
      %v2794 = vadd.f32 0.0, %v2793
      %v2795 = vpop.f32.mrb[0].mxu0
      %v2796 = vpop.f32.mrb[0].mxu0
      %v2797 = vadd.f32 0.0, %v2796
      %v2798 = vpop.f32.mrb[0].mxu0
      %2799 = vdwg.mxu0
      %v2800 = vadd.f32 %v2442, %v2674
      %v2801 = vadd.f32 %v2443, %v2677
      %v2802 = vadd.f32 %v2444, %v2682
      %v2803 = vadd.f32 %v2445, %v2685
      %v2804 = vadd.f32 %v2446, %v2690
      %v2805 = vadd.f32 %v2447, %v2693
      %v2806 = vadd.f32 %v2448, %v2698
      %v2807 = vadd.f32 %v2449, %v2701
      %v2808 = vadd.f32 %v2450, %v2706
      %v2809 = vadd.f32 %v2451, %v2709
      %v2810 = vadd.f32 %v2452, %v2714
      %v2811 = vadd.f32 %v2453, %v2717
      %v2812 = vadd.f32 %v2454, %v2722
      %v2813 = vadd.f32 %v2455, %v2725
      %v2814 = vadd.f32 %v2456, %v2730
      %v2815 = vadd.f32 %v2457, %v2733
      %v2816 = vadd.f32 %v2458, %v2738
      %v2817 = vadd.f32 %v2459, %v2741
      %v2818 = vadd.f32 %v2460, %v2746
      %v2819 = vadd.f32 %v2461, %v2749
      %v2820 = vadd.f32 %v2462, %v2754
      %v2821 = vadd.f32 %v2463, %v2757
      %v2822 = vadd.f32 %v2464, %v2762
      %v2823 = vadd.f32 %v2465, %v2765
      %v2824 = vadd.f32 %v2466, %v2770
      %v2825 = vadd.f32 %v2467, %v2773
      %v2826 = vadd.f32 %v2468, %v2778
      %v2827 = vadd.f32 %v2469, %v2781
      %v2828 = vadd.f32 %v2470, %v2786
      %v2829 = vadd.f32 %v2471, %v2789
      %v2830 = vadd.f32 %v2472, %v2794
      %v2831 = vadd.f32 %v2473, %v2797
      %v2832 = vld [vmem:[%s906] sm:$0xf]
      %v2833 = vld [vmem:[%s906 + $0x4] sm:$0xf]
      %v2834 = vld [vmem:[%s906 + $0x8] sm:$0x1]
      %v2835 = vld [vmem:[%s906 + $0xc] sm:$0xf]
      %v2836 = vld [vmem:[%s906 + $0x10] sm:$0xf]
      %v2837 = vld [vmem:[%s906 + $0x14] sm:$0x1]
      %v2838 = vld [vmem:[%s906 + $0x18] sm:$0xf]
      %v2839 = vld [vmem:[%s906 + $0x1c] sm:$0xf]
      %v2840 = vld [vmem:[%s906 + $0x20] sm:$0x1]
      %v2841 = vld [vmem:[%s906 + $0x24] sm:$0xf]
      %v2842 = vld [vmem:[%s906 + $0x28] sm:$0xf]
      %v2843 = vld [vmem:[%s906 + $0x2c] sm:$0x1]
      %v2844 = vld [vmem:[%s906 + $0x30] sm:$0xf]
      %v2845 = vld [vmem:[%s906 + $0x34] sm:$0xf]
      %v2846 = vld [vmem:[%s906 + $0x38] sm:$0x1]
      %v2847 = vld [vmem:[%s906 + $0x3c] sm:$0xf]
      %v2848 = vld [vmem:[%s906 + $0x40] sm:$0xf]
      %v2849 = vld [vmem:[%s906 + $0x44] sm:$0x1]
      %v2850 = vld [vmem:[%s906 + $0x48] sm:$0xf]
      %v2851 = vld [vmem:[%s906 + $0x4c] sm:$0xf]
      %v2852 = vld [vmem:[%s906 + $0x50] sm:$0x1]
      %v2853 = vld [vmem:[%s906 + $0x54] sm:$0xf]
      %v2854 = vld [vmem:[%s906 + $0x58] sm:$0xf]
      %v2855 = vld [vmem:[%s906 + $0x5c] sm:$0x1]
      %v2856 = vld [vmem:[%s906 + $0x60] sm:$0xf]
      %v2857 = vld [vmem:[%s906 + $0x64] sm:$0xf]
      %v2858 = vld [vmem:[%s906 + $0x68] sm:$0x1]
      %v2859 = vld [vmem:[%s906 + $0x6c] sm:$0xf]
      %v2860 = vld [vmem:[%s906 + $0x70] sm:$0xf]
      %v2861 = vld [vmem:[%s906 + $0x74] sm:$0x1]
      %v2862 = vld [vmem:[%s906 + $0x78] sm:$0xf]
      %v2863 = vld [vmem:[%s906 + $0x7c] sm:$0xf]
      %v2864 = vld [vmem:[%s906 + $0x80] sm:$0x1]
      %v2865 = vld [vmem:[%s906 + $0x84] sm:$0xf]
      %v2866 = vld [vmem:[%s906 + $0x88] sm:$0xf]
      %v2867 = vld [vmem:[%s906 + $0x8c] sm:$0x1]
      %v2868 = vld [vmem:[%s906 + $0x90] sm:$0xf]
      %v2869 = vld [vmem:[%s906 + $0x94] sm:$0xf]
      %v2870 = vld [vmem:[%s906 + $0x98] sm:$0x1]
      %v2871 = vld [vmem:[%s906 + $0x9c] sm:$0xf]
      %v2872 = vld [vmem:[%s906 + $0xa0] sm:$0xf]
      %v2873 = vld [vmem:[%s906 + $0xa4] sm:$0x1]
      %v2874 = vld [vmem:[%s906 + $0xa8] sm:$0xf]
      %v2875 = vld [vmem:[%s906 + $0xac] sm:$0xf]
      %v2876 = vld [vmem:[%s906 + $0xb0] sm:$0x1]
      %v2877 = vld [vmem:[%s906 + $0xb4] sm:$0xf]
      %v2878 = vld [vmem:[%s906 + $0xb8] sm:$0xf]
      %v2879 = vld [vmem:[%s906 + $0xbc] sm:$0x1]
      %v2881 = vshrl.u32 %v2832, 16
      %v2883 = vrot.slane %v2881, 4
      %v2884 = vshll.u32 %v2832, 16
      %v2886 = vrot.slane %v2884, 5
      %v2887 = vor.u32 %v2883, %v2886
      %v2888 = vrot.slane %v2887, 4
      %v2890 = vshll.u32 %v2833, 16
      %v2892 = vrot.slane %v2890, 5
      %v2893 = vsel %vm1073, %v2888, %v2892
      %v2894 = vshrl.u32 %v2833, 16
      %v2896 = vrot.slane %v2894, 4
      %v2897 = vor.u32 %v2896, %v2892
      %v2898 = vrot.slane %v2897, 4
      %v2900 = vshll.u32 %v2834, 16
      %v2902 = vrot.slane %v2900, 5
      %v2903 = vsel %vm1073, %v2898, %v2902
      %v2905 = vshrl.u32 %v2835, 16
      %v2907 = vrot.slane %v2905, 4
      %v2908 = vshll.u32 %v2835, 16
      %v2910 = vrot.slane %v2908, 5
      %v2911 = vor.u32 %v2907, %v2910
      %v2912 = vrot.slane %v2911, 4
      %v2914 = vshll.u32 %v2836, 16
      %v2916 = vrot.slane %v2914, 5
      %v2917 = vsel %vm1073, %v2912, %v2916
      %v2918 = vshrl.u32 %v2836, 16
      %v2920 = vrot.slane %v2918, 4
      %v2921 = vor.u32 %v2920, %v2916
      %v2922 = vrot.slane %v2921, 4
      %v2924 = vshll.u32 %v2837, 16
      %v2926 = vrot.slane %v2924, 5
      %v2927 = vsel %vm1073, %v2922, %v2926
      %v2929 = vshrl.u32 %v2838, 16
      %v2931 = vrot.slane %v2929, 4
      %v2932 = vshll.u32 %v2838, 16
      %v2934 = vrot.slane %v2932, 5
      %v2935 = vor.u32 %v2931, %v2934
      %v2936 = vrot.slane %v2935, 4
      %v2938 = vshll.u32 %v2839, 16
      %v2940 = vrot.slane %v2938, 5
      %v2941 = vsel %vm1073, %v2936, %v2940
      %v2942 = vshrl.u32 %v2839, 16
      %v2944 = vrot.slane %v2942, 4
      %v2945 = vor.u32 %v2944, %v2940
      %v2946 = vrot.slane %v2945, 4
      %v2948 = vshll.u32 %v2840, 16
      %v2950 = vrot.slane %v2948, 5
      %v2951 = vsel %vm1073, %v2946, %v2950
      %v2953 = vshrl.u32 %v2841, 16
      %v2955 = vrot.slane %v2953, 4
      %v2956 = vshll.u32 %v2841, 16
      %v2958 = vrot.slane %v2956, 5
      %v2959 = vor.u32 %v2955, %v2958
      %v2960 = vrot.slane %v2959, 4
      %v2962 = vshll.u32 %v2842, 16
      %v2964 = vrot.slane %v2962, 5
      %v2965 = vsel %vm1073, %v2960, %v2964
      %v2966 = vshrl.u32 %v2842, 16
      %v2968 = vrot.slane %v2966, 4
      %v2969 = vor.u32 %v2968, %v2964
      %v2970 = vrot.slane %v2969, 4
      %v2972 = vshll.u32 %v2843, 16
      %v2974 = vrot.slane %v2972, 5
      %v2975 = vsel %vm1073, %v2970, %v2974
      %v2977 = vshrl.u32 %v2844, 16
      %v2979 = vrot.slane %v2977, 4
      %v2980 = vshll.u32 %v2844, 16
      %v2982 = vrot.slane %v2980, 5
      %v2983 = vor.u32 %v2979, %v2982
      %v2984 = vrot.slane %v2983, 4
      %v2986 = vshll.u32 %v2845, 16
      %v2988 = vrot.slane %v2986, 5
      %v2989 = vsel %vm1073, %v2984, %v2988
      %v2990 = vshrl.u32 %v2845, 16
      %v2992 = vrot.slane %v2990, 4
      %v2993 = vor.u32 %v2992, %v2988
      %v2994 = vrot.slane %v2993, 4
      %v2996 = vshll.u32 %v2846, 16
      %v2998 = vrot.slane %v2996, 5
      %v2999 = vsel %vm1073, %v2994, %v2998
      %v3001 = vshrl.u32 %v2847, 16
      %v3003 = vrot.slane %v3001, 4
      %v3004 = vshll.u32 %v2847, 16
      %v3006 = vrot.slane %v3004, 5
      %v3007 = vor.u32 %v3003, %v3006
      %v3008 = vrot.slane %v3007, 4
      %v3010 = vshll.u32 %v2848, 16
      %v3012 = vrot.slane %v3010, 5
      %v3013 = vsel %vm1073, %v3008, %v3012
      %v3014 = vshrl.u32 %v2848, 16
      %v3016 = vrot.slane %v3014, 4
      %v3017 = vor.u32 %v3016, %v3012
      %v3018 = vrot.slane %v3017, 4
      %v3020 = vshll.u32 %v2849, 16
      %v3022 = vrot.slane %v3020, 5
      %v3023 = vsel %vm1073, %v3018, %v3022
      %v3025 = vshrl.u32 %v2850, 16
      %v3027 = vrot.slane %v3025, 4
      %v3028 = vshll.u32 %v2850, 16
      %v3030 = vrot.slane %v3028, 5
      %v3031 = vor.u32 %v3027, %v3030
      %v3032 = vrot.slane %v3031, 4
      %v3034 = vshll.u32 %v2851, 16
      %v3036 = vrot.slane %v3034, 5
      %v3037 = vsel %vm1073, %v3032, %v3036
      %v3038 = vshrl.u32 %v2851, 16
      %v3040 = vrot.slane %v3038, 4
      %v3041 = vor.u32 %v3040, %v3036
      %v3042 = vrot.slane %v3041, 4
      %v3044 = vshll.u32 %v2852, 16
      %v3046 = vrot.slane %v3044, 5
      %v3047 = vsel %vm1073, %v3042, %v3046
      %v3049 = vshrl.u32 %v2853, 16
      %v3051 = vrot.slane %v3049, 4
      %v3052 = vshll.u32 %v2853, 16
      %v3054 = vrot.slane %v3052, 5
      %v3055 = vor.u32 %v3051, %v3054
      %v3056 = vrot.slane %v3055, 4
      %v3058 = vshll.u32 %v2854, 16
      %v3060 = vrot.slane %v3058, 5
      %v3061 = vsel %vm1073, %v3056, %v3060
      %v3062 = vshrl.u32 %v2854, 16
      %v3064 = vrot.slane %v3062, 4
      %v3065 = vor.u32 %v3064, %v3060
      %v3066 = vrot.slane %v3065, 4
      %v3068 = vshll.u32 %v2855, 16
      %v3070 = vrot.slane %v3068, 5
      %v3071 = vsel %vm1073, %v3066, %v3070
      %v3073 = vshrl.u32 %v2856, 16
      %v3075 = vrot.slane %v3073, 4
      %v3076 = vshll.u32 %v2856, 16
      %v3078 = vrot.slane %v3076, 5
      %v3079 = vor.u32 %v3075, %v3078
      %v3080 = vrot.slane %v3079, 4
      %v3082 = vshll.u32 %v2857, 16
      %v3084 = vrot.slane %v3082, 5
      %v3085 = vsel %vm1073, %v3080, %v3084
      %v3086 = vshrl.u32 %v2857, 16
      %v3088 = vrot.slane %v3086, 4
      %v3089 = vor.u32 %v3088, %v3084
      %v3090 = vrot.slane %v3089, 4
      %v3092 = vshll.u32 %v2858, 16
      %v3094 = vrot.slane %v3092, 5
      %v3095 = vsel %vm1073, %v3090, %v3094
      %v3097 = vshrl.u32 %v2859, 16
      %v3099 = vrot.slane %v3097, 4
      %v3100 = vshll.u32 %v2859, 16
      %v3102 = vrot.slane %v3100, 5
      %v3103 = vor.u32 %v3099, %v3102
      %v3104 = vrot.slane %v3103, 4
      %v3106 = vshll.u32 %v2860, 16
      %v3108 = vrot.slane %v3106, 5
      %v3109 = vsel %vm1073, %v3104, %v3108
      %v3110 = vshrl.u32 %v2860, 16
      %v3112 = vrot.slane %v3110, 4
      %v3113 = vor.u32 %v3112, %v3108
      %v3114 = vrot.slane %v3113, 4
      %v3116 = vshll.u32 %v2861, 16
      %v3118 = vrot.slane %v3116, 5
      %v3119 = vsel %vm1073, %v3114, %v3118
      %v3121 = vshrl.u32 %v2862, 16
      %v3123 = vrot.slane %v3121, 4
      %v3124 = vshll.u32 %v2862, 16
      %v3126 = vrot.slane %v3124, 5
      %v3127 = vor.u32 %v3123, %v3126
      %v3128 = vrot.slane %v3127, 4
      %v3130 = vshll.u32 %v2863, 16
      %v3132 = vrot.slane %v3130, 5
      %v3133 = vsel %vm1073, %v3128, %v3132
      %v3134 = vshrl.u32 %v2863, 16
      %v3136 = vrot.slane %v3134, 4
      %v3137 = vor.u32 %v3136, %v3132
      %v3138 = vrot.slane %v3137, 4
      %v3140 = vshll.u32 %v2864, 16
      %v3142 = vrot.slane %v3140, 5
      %v3143 = vsel %vm1073, %v3138, %v3142
      %v3145 = vshrl.u32 %v2865, 16
      %v3147 = vrot.slane %v3145, 4
      %v3148 = vshll.u32 %v2865, 16
      %v3150 = vrot.slane %v3148, 5
      %v3151 = vor.u32 %v3147, %v3150
      %v3152 = vrot.slane %v3151, 4
      %v3154 = vshll.u32 %v2866, 16
      %v3156 = vrot.slane %v3154, 5
      %v3157 = vsel %vm1073, %v3152, %v3156
      %v3158 = vshrl.u32 %v2866, 16
      %v3160 = vrot.slane %v3158, 4
      %v3161 = vor.u32 %v3160, %v3156
      %v3162 = vrot.slane %v3161, 4
      %v3164 = vshll.u32 %v2867, 16
      %v3166 = vrot.slane %v3164, 5
      %v3167 = vsel %vm1073, %v3162, %v3166
      %v3169 = vshrl.u32 %v2868, 16
      %v3171 = vrot.slane %v3169, 4
      %v3172 = vshll.u32 %v2868, 16
      %v3174 = vrot.slane %v3172, 5
      %v3175 = vor.u32 %v3171, %v3174
      %v3176 = vrot.slane %v3175, 4
      %v3178 = vshll.u32 %v2869, 16
      %v3180 = vrot.slane %v3178, 5
      %v3181 = vsel %vm1073, %v3176, %v3180
      %v3182 = vshrl.u32 %v2869, 16
      %v3184 = vrot.slane %v3182, 4
      %v3185 = vor.u32 %v3184, %v3180
      %v3186 = vrot.slane %v3185, 4
      %v3188 = vshll.u32 %v2870, 16
      %v3190 = vrot.slane %v3188, 5
      %v3191 = vsel %vm1073, %v3186, %v3190
      %v3193 = vshrl.u32 %v2871, 16
      %v3195 = vrot.slane %v3193, 4
      %v3196 = vshll.u32 %v2871, 16
      %v3198 = vrot.slane %v3196, 5
      %v3199 = vor.u32 %v3195, %v3198
      %v3200 = vrot.slane %v3199, 4
      %v3202 = vshll.u32 %v2872, 16
      %v3204 = vrot.slane %v3202, 5
      %v3205 = vsel %vm1073, %v3200, %v3204
      %v3206 = vshrl.u32 %v2872, 16
      %v3208 = vrot.slane %v3206, 4
      %v3209 = vor.u32 %v3208, %v3204
      %v3210 = vrot.slane %v3209, 4
      %v3212 = vshll.u32 %v2873, 16
      %v3214 = vrot.slane %v3212, 5
      %v3215 = vsel %vm1073, %v3210, %v3214
      %v3217 = vshrl.u32 %v2874, 16
      %v3219 = vrot.slane %v3217, 4
      %v3220 = vshll.u32 %v2874, 16
      %v3222 = vrot.slane %v3220, 5
      %v3223 = vor.u32 %v3219, %v3222
      %v3224 = vrot.slane %v3223, 4
      %v3226 = vshll.u32 %v2875, 16
      %v3228 = vrot.slane %v3226, 5
      %v3229 = vsel %vm1073, %v3224, %v3228
      %v3230 = vshrl.u32 %v2875, 16
      %v3232 = vrot.slane %v3230, 4
      %v3233 = vor.u32 %v3232, %v3228
      %v3234 = vrot.slane %v3233, 4
      %v3236 = vshll.u32 %v2876, 16
      %v3238 = vrot.slane %v3236, 5
      %v3239 = vsel %vm1073, %v3234, %v3238
      %v3241 = vshrl.u32 %v2877, 16
      %v3243 = vrot.slane %v3241, 4
      %v3244 = vshll.u32 %v2877, 16
      %v3246 = vrot.slane %v3244, 5
      %v3247 = vor.u32 %v3243, %v3246
      %v3248 = vrot.slane %v3247, 4
      %v3250 = vshll.u32 %v2878, 16
      %v3252 = vrot.slane %v3250, 5
      %v3253 = vsel %vm1073, %v3248, %v3252
      %v3254 = vshrl.u32 %v2878, 16
      %v3256 = vrot.slane %v3254, 4
      %v3257 = vor.u32 %v3256, %v3252
      %v3258 = vrot.slane %v3257, 4
      %v3260 = vshll.u32 %v2879, 16
      %v3262 = vrot.slane %v3260, 5
      %v3263 = vsel %vm1073, %v3258, %v3262
      %s3264 = scalar_lea.vmem %s1, 8
      %v3265 = vld [vmem:[%s3264] sm:$0x3]
      %v3266 = vunpack.c.l.b16 %v2893
      %v3267 = vunpack.c.l.b16 %v2903
      %v3268 = vunpack.c.l.b16 %v2917
      %v3269 = vunpack.c.l.b16 %v2927
      %v3270 = vunpack.c.l.b16 %v2941
      %v3271 = vunpack.c.l.b16 %v2951
      %v3272 = vunpack.c.l.b16 %v2965
      %v3273 = vunpack.c.l.b16 %v2975
      %v3274 = vunpack.c.l.b16 %v2989
      %v3275 = vunpack.c.l.b16 %v2999
      %v3276 = vunpack.c.l.b16 %v3013
      %v3277 = vunpack.c.l.b16 %v3023
      %v3278 = vunpack.c.l.b16 %v3037
      %v3279 = vunpack.c.l.b16 %v3047
      %v3280 = vunpack.c.l.b16 %v3061
      %v3281 = vunpack.c.l.b16 %v3071
      %v3282 = vunpack.c.l.b16 %v3085
      %v3283 = vunpack.c.l.b16 %v3095
      %v3284 = vunpack.c.l.b16 %v3109
      %v3285 = vunpack.c.l.b16 %v3119
      %v3286 = vunpack.c.l.b16 %v3133
      %v3287 = vunpack.c.l.b16 %v3143
      %v3288 = vunpack.c.l.b16 %v3157
      %v3289 = vunpack.c.l.b16 %v3167
      %v3290 = vunpack.c.l.b16 %v3181
      %v3291 = vunpack.c.l.b16 %v3191
      %v3292 = vunpack.c.l.b16 %v3205
      %v3293 = vunpack.c.l.b16 %v3215
      %v3294 = vunpack.c.l.b16 %v3229
      %v3295 = vunpack.c.l.b16 %v3239
      %v3296 = vunpack.c.l.b16 %v3253
      %v3297 = vunpack.c.l.b16 %v3263
      %v3298 = vpack.c.b16 %v3267, %v3266
      %v3299 = vpack.c.b16 %v3269, %v3268
      %v3300 = vpack.c.b16 %v3271, %v3270
      %v3301 = vpack.c.b16 %v3273, %v3272
      %v3302 = vpack.c.b16 %v3275, %v3274
      %v3303 = vpack.c.b16 %v3277, %v3276
      %v3304 = vpack.c.b16 %v3279, %v3278
      %v3305 = vpack.c.b16 %v3281, %v3280
      %v3306 = vpack.c.b16 %v3283, %v3282
      %v3307 = vpack.c.b16 %v3285, %v3284
      %v3308 = vpack.c.b16 %v3287, %v3286
      %v3309 = vpack.c.b16 %v3289, %v3288
      %v3310 = vpack.c.b16 %v3291, %v3290
      %v3311 = vpack.c.b16 %v3293, %v3292
      %v3312 = vpack.c.b16 %v3295, %v3294
      %v3313 = vpack.c.b16 %v3297, %v3296
      %v3315 = vsel %vm1508, %v3298, 0
      %v3318 = vsel %vm1508, %v3299, 0
      %v3321 = vsel %vm1508, %v3300, 0
      %v3324 = vsel %vm1508, %v3301, 0
      %v3327 = vsel %vm1508, %v3302, 0
      %v3330 = vsel %vm1508, %v3303, 0
      %v3333 = vsel %vm1508, %v3304, 0
      %v3336 = vsel %vm1508, %v3305, 0
      %v3339 = vsel %vm1508, %v3306, 0
      %v3342 = vsel %vm1508, %v3307, 0
      %v3345 = vsel %vm1508, %v3308, 0
      %v3348 = vsel %vm1508, %v3309, 0
      %v3351 = vsel %vm1508, %v3310, 0
      %v3354 = vsel %vm1508, %v3311, 0
      %v3357 = vsel %vm1508, %v3312, 0
      %v3360 = vsel %vm1508, %v3313, 0
      %v3363 = vand.u32 %v3265, %v1560
      %3365 = vmatprep.subr.bf16.mxu0 0
      %3366 = vmatpush1.bf16.msra.mxu0 %v3363
      %3367 = vmatprep.subr.bf16.mxu0 0
      %3368 = vmatpush1.bf16.msra.mxu0 0
      %3369 = vmatprep.subr.bf16.mxu0 0
      %3370 = vmatpush1.bf16.msra.mxu0 0
      %3371 = vmatprep.subr.bf16.mxu0 0
      %3372 = vmatpush1.bf16.msra.mxu0 0
      %3373 = vmatprep.subr.bf16.mxu0 0
      %3374 = vmatpush1.bf16.msra.mxu0 0
      %3375 = vmatprep.subr.bf16.mxu0 0
      %3376 = vmatpush1.bf16.msra.mxu0 0
      %3377 = vmatprep.subr.bf16.mxu0 0
      %3378 = vmatpush1.bf16.msra.mxu0 0
      %3379 = vmatprep.subr.bf16.mxu0 0
      %3380 = vmatpush1.bf16.msra.mxu0 0
      %3381 = vmatprep.subr.bf16.mxu0 0
      %3382 = vmatpush1.bf16.msra.mxu0 0
      %3383 = vmatprep.subr.bf16.mxu0 0
      %3384 = vmatpush1.bf16.msra.mxu0 0
      %3385 = vmatprep.subr.bf16.mxu0 0
      %3386 = vmatpush1.bf16.msra.mxu0 0
      %3387 = vmatprep.subr.bf16.mxu0 0
      %3388 = vmatpush1.bf16.msra.mxu0 0
      %3389 = vmatprep.subr.bf16.mxu0 0
      %3390 = vmatpush1.bf16.msra.mxu0 0
      %3391 = vmatprep.subr.bf16.mxu0 0
      %3392 = vmatpush1.bf16.msra.mxu0 0
      %3393 = vmatprep.subr.bf16.mxu0 0
      %3394 = vmatpush1.bf16.msra.mxu0 0
      %3395 = vmatprep.subr.bf16.mxu0 0
      %3396 = vmatpush1.bf16.msra.mxu0 0
      %3397 = vmatprep.mubr.bf16.mxu0 0
      %3398 = vmatmul.mubr.bf16.gmra.mrb[0].mxu0 %v3315
      %v3399 = vpop.f32.mrb[0].mxu0
      %v3400 = vadd.f32 0.0, %v3399
      %v3401 = vpop.f32.mrb[0].mxu0
      %v3402 = vpop.f32.mrb[0].mxu0
      %v3403 = vadd.f32 0.0, %v3402
      %v3404 = vpop.f32.mrb[0].mxu0
      %3405 = vmatprep.mubr.bf16.mxu0 0
      %3406 = vmatmul.mubr.bf16.gmra.mrb[0].mxu0 %v3318
      %v3407 = vpop.f32.mrb[0].mxu0
      %v3408 = vadd.f32 0.0, %v3407
      %v3409 = vpop.f32.mrb[0].mxu0
      %v3410 = vpop.f32.mrb[0].mxu0
      %v3411 = vadd.f32 0.0, %v3410
      %v3412 = vpop.f32.mrb[0].mxu0
      %3413 = vmatprep.mubr.bf16.mxu0 0
      %3414 = vmatmul.mubr.bf16.gmra.mrb[0].mxu0 %v3321
      %v3415 = vpop.f32.mrb[0].mxu0
      %v3416 = vadd.f32 0.0, %v3415
      %v3417 = vpop.f32.mrb[0].mxu0
      %v3418 = vpop.f32.mrb[0].mxu0
      %v3419 = vadd.f32 0.0, %v3418
      %v3420 = vpop.f32.mrb[0].mxu0
      %3421 = vmatprep.mubr.bf16.mxu0 0
      %3422 = vmatmul.mubr.bf16.gmra.mrb[0].mxu0 %v3324
      %v3423 = vpop.f32.mrb[0].mxu0
      %v3424 = vadd.f32 0.0, %v3423
      %v3425 = vpop.f32.mrb[0].mxu0
      %v3426 = vpop.f32.mrb[0].mxu0
      %v3427 = vadd.f32 0.0, %v3426
      %v3428 = vpop.f32.mrb[0].mxu0
      %3429 = vmatprep.mubr.bf16.mxu0 0
      %3430 = vmatmul.mubr.bf16.gmra.mrb[0].mxu0 %v3327
      %v3431 = vpop.f32.mrb[0].mxu0
      %v3432 = vadd.f32 0.0, %v3431
      %v3433 = vpop.f32.mrb[0].mxu0
      %v3434 = vpop.f32.mrb[0].mxu0
      %v3435 = vadd.f32 0.0, %v3434
      %v3436 = vpop.f32.mrb[0].mxu0
      %3437 = vmatprep.mubr.bf16.mxu0 0
      %3438 = vmatmul.mubr.bf16.gmra.mrb[0].mxu0 %v3330
      %v3439 = vpop.f32.mrb[0].mxu0
      %v3440 = vadd.f32 0.0, %v3439
      %v3441 = vpop.f32.mrb[0].mxu0
      %v3442 = vpop.f32.mrb[0].mxu0
      %v3443 = vadd.f32 0.0, %v3442
      %v3444 = vpop.f32.mrb[0].mxu0
      %3445 = vmatprep.mubr.bf16.mxu0 0
      %3446 = vmatmul.mubr.bf16.gmra.mrb[0].mxu0 %v3333
      %v3447 = vpop.f32.mrb[0].mxu0
      %v3448 = vadd.f32 0.0, %v3447
      %v3449 = vpop.f32.mrb[0].mxu0
      %v3450 = vpop.f32.mrb[0].mxu0
      %v3451 = vadd.f32 0.0, %v3450
      %v3452 = vpop.f32.mrb[0].mxu0
      %3453 = vmatprep.mubr.bf16.mxu0 0
      %3454 = vmatmul.mubr.bf16.gmra.mrb[0].mxu0 %v3336
      %v3455 = vpop.f32.mrb[0].mxu0
      %v3456 = vadd.f32 0.0, %v3455
      %v3457 = vpop.f32.mrb[0].mxu0
      %v3458 = vpop.f32.mrb[0].mxu0
      %v3459 = vadd.f32 0.0, %v3458
      %v3460 = vpop.f32.mrb[0].mxu0
      %3461 = vmatprep.mubr.bf16.mxu0 0
      %3462 = vmatmul.mubr.bf16.gmra.mrb[0].mxu0 %v3339
      %v3463 = vpop.f32.mrb[0].mxu0
      %v3464 = vadd.f32 0.0, %v3463
      %v3465 = vpop.f32.mrb[0].mxu0
      %v3466 = vpop.f32.mrb[0].mxu0
      %v3467 = vadd.f32 0.0, %v3466
      %v3468 = vpop.f32.mrb[0].mxu0
      %3469 = vmatprep.mubr.bf16.mxu0 0
      %3470 = vmatmul.mubr.bf16.gmra.mrb[0].mxu0 %v3342
      %v3471 = vpop.f32.mrb[0].mxu0
      %v3472 = vadd.f32 0.0, %v3471
      %v3473 = vpop.f32.mrb[0].mxu0
      %v3474 = vpop.f32.mrb[0].mxu0
      %v3475 = vadd.f32 0.0, %v3474
      %v3476 = vpop.f32.mrb[0].mxu0
      %3477 = vmatprep.mubr.bf16.mxu0 0
      %3478 = vmatmul.mubr.bf16.gmra.mrb[0].mxu0 %v3345
      %v3479 = vpop.f32.mrb[0].mxu0
      %v3480 = vadd.f32 0.0, %v3479
      %v3481 = vpop.f32.mrb[0].mxu0
      %v3482 = vpop.f32.mrb[0].mxu0
      %v3483 = vadd.f32 0.0, %v3482
      %v3484 = vpop.f32.mrb[0].mxu0
      %3485 = vmatprep.mubr.bf16.mxu0 0
      %3486 = vmatmul.mubr.bf16.gmra.mrb[0].mxu0 %v3348
      %v3487 = vpop.f32.mrb[0].mxu0
      %v3488 = vadd.f32 0.0, %v3487
      %v3489 = vpop.f32.mrb[0].mxu0
      %v3490 = vpop.f32.mrb[0].mxu0
      %v3491 = vadd.f32 0.0, %v3490
      %v3492 = vpop.f32.mrb[0].mxu0
      %3493 = vmatprep.mubr.bf16.mxu0 0
      %3494 = vmatmul.mubr.bf16.gmra.mrb[0].mxu0 %v3351
      %v3495 = vpop.f32.mrb[0].mxu0
      %v3496 = vadd.f32 0.0, %v3495
      %v3497 = vpop.f32.mrb[0].mxu0
      %v3498 = vpop.f32.mrb[0].mxu0
      %v3499 = vadd.f32 0.0, %v3498
      %v3500 = vpop.f32.mrb[0].mxu0
      %3501 = vmatprep.mubr.bf16.mxu0 0
      %3502 = vmatmul.mubr.bf16.gmra.mrb[0].mxu0 %v3354
      %v3503 = vpop.f32.mrb[0].mxu0
      %v3504 = vadd.f32 0.0, %v3503
      %v3505 = vpop.f32.mrb[0].mxu0
      %v3506 = vpop.f32.mrb[0].mxu0
      %v3507 = vadd.f32 0.0, %v3506
      %v3508 = vpop.f32.mrb[0].mxu0
      %3509 = vmatprep.mubr.bf16.mxu0 0
      %3510 = vmatmul.mubr.bf16.gmra.mrb[0].mxu0 %v3357
      %v3511 = vpop.f32.mrb[0].mxu0
      %v3512 = vadd.f32 0.0, %v3511
      %v3513 = vpop.f32.mrb[0].mxu0
      %v3514 = vpop.f32.mrb[0].mxu0
      %v3515 = vadd.f32 0.0, %v3514
      %v3516 = vpop.f32.mrb[0].mxu0
      %3517 = vmatprep.mubr.bf16.mxu0 0
      %3518 = vmatmul.mubr.bf16.gmra.mrb[0].mxu0 %v3360
      %v3519 = vpop.f32.mrb[0].mxu0
      %v3520 = vadd.f32 0.0, %v3519
      %v3521 = vpop.f32.mrb[0].mxu0
      %v3522 = vpop.f32.mrb[0].mxu0
      %v3523 = vadd.f32 0.0, %v3522
      %v3524 = vpop.f32.mrb[0].mxu0
      %3525 = vdwg.mxu0
      %v3526 = vadd.f32 %v2800, %v3400
      %v3527 = vadd.f32 %v2801, %v3403
      %v3528 = vadd.f32 %v2802, %v3408
      %v3529 = vadd.f32 %v2803, %v3411
      %v3530 = vadd.f32 %v2804, %v3416
      %v3531 = vadd.f32 %v2805, %v3419
      %v3532 = vadd.f32 %v2806, %v3424
      %v3533 = vadd.f32 %v2807, %v3427
      %v3534 = vadd.f32 %v2808, %v3432
      %v3535 = vadd.f32 %v2809, %v3435
      %v3536 = vadd.f32 %v2810, %v3440
      %v3537 = vadd.f32 %v2811, %v3443
      %v3538 = vadd.f32 %v2812, %v3448
      %v3539 = vadd.f32 %v2813, %v3451
      %v3540 = vadd.f32 %v2814, %v3456
      %v3541 = vadd.f32 %v2815, %v3459
      %v3542 = vadd.f32 %v2816, %v3464
      %v3543 = vadd.f32 %v2817, %v3467
      %v3544 = vadd.f32 %v2818, %v3472
      %v3545 = vadd.f32 %v2819, %v3475
      %v3546 = vadd.f32 %v2820, %v3480
      %v3547 = vadd.f32 %v2821, %v3483
      %v3548 = vadd.f32 %v2822, %v3488
      %v3549 = vadd.f32 %v2823, %v3491
      %v3550 = vadd.f32 %v2824, %v3496
      %v3551 = vadd.f32 %v2825, %v3499
      %v3552 = vadd.f32 %v2826, %v3504
      %v3553 = vadd.f32 %v2827, %v3507
      %v3554 = vadd.f32 %v2828, %v3512
      %v3555 = vadd.f32 %v2829, %v3515
      %v3556 = vadd.f32 %v2830, %v3520
      %v3557 = vadd.f32 %v2831, %v3523
      %v3558 = vld [vmem:[%s906] sm:$0xe]
      %v3559 = vld [vmem:[%s906 + $0xc] sm:$0xe]
      %v3560 = vld [vmem:[%s906 + $0x18] sm:$0xe]
      %v3561 = vld [vmem:[%s906 + $0x24] sm:$0xe]
      %v3562 = vld [vmem:[%s906 + $0x30] sm:$0xe]
      %v3563 = vld [vmem:[%s906 + $0x3c] sm:$0xe]
      %v3564 = vld [vmem:[%s906 + $0x48] sm:$0xe]
      %v3565 = vld [vmem:[%s906 + $0x54] sm:$0xe]
      %v3566 = vld [vmem:[%s906 + $0x60] sm:$0xe]
      %v3567 = vld [vmem:[%s906 + $0x6c] sm:$0xe]
      %v3568 = vld [vmem:[%s906 + $0x78] sm:$0xe]
      %v3569 = vld [vmem:[%s906 + $0x84] sm:$0xe]
      %v3570 = vld [vmem:[%s906 + $0x90] sm:$0xe]
      %v3571 = vld [vmem:[%s906 + $0x9c] sm:$0xe]
      %v3572 = vld [vmem:[%s906 + $0xa8] sm:$0xe]
      %v3573 = vld [vmem:[%s906 + $0xb4] sm:$0xe]
      %v3622 = vrot.slane %v3558, 5
      %v3623 = vrot.slane %v3622, 4
      %v3624 = vrot.slane %v2833, 5
      %v3625 = vsel %vm2067, %v3623, %v3624
      %v3626 = vrot.slane %v3624, 4
      %v3627 = vrot.slane %v2834, 5
      %v3628 = vsel %vm2067, %v3626, %v3627
      %v3629 = vrot.slane %v3559, 5
      %v3630 = vrot.slane %v3629, 4
      %v3631 = vrot.slane %v2836, 5
      %v3632 = vsel %vm2067, %v3630, %v3631
      %v3633 = vrot.slane %v3631, 4
      %v3634 = vrot.slane %v2837, 5
      %v3635 = vsel %vm2067, %v3633, %v3634
      %v3636 = vrot.slane %v3560, 5
      %v3637 = vrot.slane %v3636, 4
      %v3638 = vrot.slane %v2839, 5
      %v3639 = vsel %vm2067, %v3637, %v3638
      %v3640 = vrot.slane %v3638, 4
      %v3641 = vrot.slane %v2840, 5
      %v3642 = vsel %vm2067, %v3640, %v3641
      %v3643 = vrot.slane %v3561, 5
      %v3644 = vrot.slane %v3643, 4
      %v3645 = vrot.slane %v2842, 5
      %v3646 = vsel %vm2067, %v3644, %v3645
      %v3647 = vrot.slane %v3645, 4
      %v3648 = vrot.slane %v2843, 5
      %v3649 = vsel %vm2067, %v3647, %v3648
      %v3650 = vrot.slane %v3562, 5
      %v3651 = vrot.slane %v3650, 4
      %v3652 = vrot.slane %v2845, 5
      %v3653 = vsel %vm2067, %v3651, %v3652
      %v3654 = vrot.slane %v3652, 4
      %v3655 = vrot.slane %v2846, 5
      %v3656 = vsel %vm2067, %v3654, %v3655
      %v3657 = vrot.slane %v3563, 5
      %v3658 = vrot.slane %v3657, 4
      %v3659 = vrot.slane %v2848, 5
      %v3660 = vsel %vm2067, %v3658, %v3659
      %v3661 = vrot.slane %v3659, 4
      %v3662 = vrot.slane %v2849, 5
      %v3663 = vsel %vm2067, %v3661, %v3662
      %v3664 = vrot.slane %v3564, 5
      %v3665 = vrot.slane %v3664, 4
      %v3666 = vrot.slane %v2851, 5
      %v3667 = vsel %vm2067, %v3665, %v3666
      %v3668 = vrot.slane %v3666, 4
      %v3669 = vrot.slane %v2852, 5
      %v3670 = vsel %vm2067, %v3668, %v3669
      %v3671 = vrot.slane %v3565, 5
      %v3672 = vrot.slane %v3671, 4
      %v3673 = vrot.slane %v2854, 5
      %v3674 = vsel %vm2067, %v3672, %v3673
      %v3675 = vrot.slane %v3673, 4
      %v3676 = vrot.slane %v2855, 5
      %v3677 = vsel %vm2067, %v3675, %v3676
      %v3678 = vrot.slane %v3566, 5
      %v3679 = vrot.slane %v3678, 4
      %v3680 = vrot.slane %v2857, 5
      %v3681 = vsel %vm2067, %v3679, %v3680
      %v3682 = vrot.slane %v3680, 4
      %v3683 = vrot.slane %v2858, 5
      %v3684 = vsel %vm2067, %v3682, %v3683
      %v3685 = vrot.slane %v3567, 5
      %v3686 = vrot.slane %v3685, 4
      %v3687 = vrot.slane %v2860, 5
      %v3688 = vsel %vm2067, %v3686, %v3687
      %v3689 = vrot.slane %v3687, 4
      %v3690 = vrot.slane %v2861, 5
      %v3691 = vsel %vm2067, %v3689, %v3690
      %v3692 = vrot.slane %v3568, 5
      %v3693 = vrot.slane %v3692, 4
      %v3694 = vrot.slane %v2863, 5
      %v3695 = vsel %vm2067, %v3693, %v3694
      %v3696 = vrot.slane %v3694, 4
      %v3697 = vrot.slane %v2864, 5
      %v3698 = vsel %vm2067, %v3696, %v3697
      %v3699 = vrot.slane %v3569, 5
      %v3700 = vrot.slane %v3699, 4
      %v3701 = vrot.slane %v2866, 5
      %v3702 = vsel %vm2067, %v3700, %v3701
      %v3703 = vrot.slane %v3701, 4
      %v3704 = vrot.slane %v2867, 5
      %v3705 = vsel %vm2067, %v3703, %v3704
      %v3706 = vrot.slane %v3570, 5
      %v3707 = vrot.slane %v3706, 4
      %v3708 = vrot.slane %v2869, 5
      %v3709 = vsel %vm2067, %v3707, %v3708
      %v3710 = vrot.slane %v3708, 4
      %v3711 = vrot.slane %v2870, 5
      %v3712 = vsel %vm2067, %v3710, %v3711
      %v3713 = vrot.slane %v3571, 5
      %v3714 = vrot.slane %v3713, 4
      %v3715 = vrot.slane %v2872, 5
      %v3716 = vsel %vm2067, %v3714, %v3715
      %v3717 = vrot.slane %v3715, 4
      %v3718 = vrot.slane %v2873, 5
      %v3719 = vsel %vm2067, %v3717, %v3718
      %v3720 = vrot.slane %v3572, 5
      %v3721 = vrot.slane %v3720, 4
      %v3722 = vrot.slane %v2875, 5
      %v3723 = vsel %vm2067, %v3721, %v3722
      %v3724 = vrot.slane %v3722, 4
      %v3725 = vrot.slane %v2876, 5
      %v3726 = vsel %vm2067, %v3724, %v3725
      %v3727 = vrot.slane %v3573, 5
      %v3728 = vrot.slane %v3727, 4
      %v3729 = vrot.slane %v2878, 5
      %v3730 = vsel %vm2067, %v3728, %v3729
      %v3731 = vrot.slane %v3729, 4
      %v3732 = vrot.slane %v2879, 5
      %v3733 = vsel %vm2067, %v3731, %v3732
      %s3734 = scalar_lea.vmem %s1, 10
      %v3735 = vld [vmem:[%s3734] sm:$0x3]
      %v3736 = vunpack.c.l.b16 %v3625
      %v3737 = vunpack.c.l.b16 %v3628
      %v3738 = vunpack.c.l.b16 %v3632
      %v3739 = vunpack.c.l.b16 %v3635
      %v3740 = vunpack.c.l.b16 %v3639
      %v3741 = vunpack.c.l.b16 %v3642
      %v3742 = vunpack.c.l.b16 %v3646
      %v3743 = vunpack.c.l.b16 %v3649
      %v3744 = vunpack.c.l.b16 %v3653
      %v3745 = vunpack.c.l.b16 %v3656
      %v3746 = vunpack.c.l.b16 %v3660
      %v3747 = vunpack.c.l.b16 %v3663
      %v3748 = vunpack.c.l.b16 %v3667
      %v3749 = vunpack.c.l.b16 %v3670
      %v3750 = vunpack.c.l.b16 %v3674
      %v3751 = vunpack.c.l.b16 %v3677
      %v3752 = vunpack.c.l.b16 %v3681
      %v3753 = vunpack.c.l.b16 %v3684
      %v3754 = vunpack.c.l.b16 %v3688
      %v3755 = vunpack.c.l.b16 %v3691
      %v3756 = vunpack.c.l.b16 %v3695
      %v3757 = vunpack.c.l.b16 %v3698
      %v3758 = vunpack.c.l.b16 %v3702
      %v3759 = vunpack.c.l.b16 %v3705
      %v3760 = vunpack.c.l.b16 %v3709
      %v3761 = vunpack.c.l.b16 %v3712
      %v3762 = vunpack.c.l.b16 %v3716
      %v3763 = vunpack.c.l.b16 %v3719
      %v3764 = vunpack.c.l.b16 %v3723
      %v3765 = vunpack.c.l.b16 %v3726
      %v3766 = vunpack.c.l.b16 %v3730
      %v3767 = vunpack.c.l.b16 %v3733
      %v3768 = vpack.c.b16 %v3737, %v3736
      %v3769 = vpack.c.b16 %v3739, %v3738
      %v3770 = vpack.c.b16 %v3741, %v3740
      %v3771 = vpack.c.b16 %v3743, %v3742
      %v3772 = vpack.c.b16 %v3745, %v3744
      %v3773 = vpack.c.b16 %v3747, %v3746
      %v3774 = vpack.c.b16 %v3749, %v3748
      %v3775 = vpack.c.b16 %v3751, %v3750
      %v3776 = vpack.c.b16 %v3753, %v3752
      %v3777 = vpack.c.b16 %v3755, %v3754
      %v3778 = vpack.c.b16 %v3757, %v3756
      %v3779 = vpack.c.b16 %v3759, %v3758
      %v3780 = vpack.c.b16 %v3761, %v3760
      %v3781 = vpack.c.b16 %v3763, %v3762
      %v3782 = vpack.c.b16 %v3765, %v3764
      %v3783 = vpack.c.b16 %v3767, %v3766
      %v3785 = vsel %vm1508, %v3768, 0
      %v3788 = vsel %vm1508, %v3769, 0
      %v3791 = vsel %vm1508, %v3770, 0
      %v3794 = vsel %vm1508, %v3771, 0
      %v3797 = vsel %vm1508, %v3772, 0
      %v3800 = vsel %vm1508, %v3773, 0
      %v3803 = vsel %vm1508, %v3774, 0
      %v3806 = vsel %vm1508, %v3775, 0
      %v3809 = vsel %vm1508, %v3776, 0
      %v3812 = vsel %vm1508, %v3777, 0
      %v3815 = vsel %vm1508, %v3778, 0
      %v3818 = vsel %vm1508, %v3779, 0
      %v3821 = vsel %vm1508, %v3780, 0
      %v3824 = vsel %vm1508, %v3781, 0
      %v3827 = vsel %vm1508, %v3782, 0
      %v3830 = vsel %vm1508, %v3783, 0
      %v3833 = vand.u32 %v3735, %v1560
      %3835 = vmatprep.subr.bf16.mxu0 0
      %3836 = vmatpush1.bf16.msra.mxu0 %v3833
      %3837 = vmatprep.subr.bf16.mxu0 0
      %3838 = vmatpush1.bf16.msra.mxu0 0
      %3839 = vmatprep.subr.bf16.mxu0 0
      %3840 = vmatpush1.bf16.msra.mxu0 0
      %3841 = vmatprep.subr.bf16.mxu0 0
      %3842 = vmatpush1.bf16.msra.mxu0 0
      %3843 = vmatprep.subr.bf16.mxu0 0
      %3844 = vmatpush1.bf16.msra.mxu0 0
      %3845 = vmatprep.subr.bf16.mxu0 0
      %3846 = vmatpush1.bf16.msra.mxu0 0
      %3847 = vmatprep.subr.bf16.mxu0 0
      %3848 = vmatpush1.bf16.msra.mxu0 0
      %3849 = vmatprep.subr.bf16.mxu0 0
      %3850 = vmatpush1.bf16.msra.mxu0 0
      %3851 = vmatprep.subr.bf16.mxu0 0
      %3852 = vmatpush1.bf16.msra.mxu0 0
      %3853 = vmatprep.subr.bf16.mxu0 0
      %3854 = vmatpush1.bf16.msra.mxu0 0
      %3855 = vmatprep.subr.bf16.mxu0 0
      %3856 = vmatpush1.bf16.msra.mxu0 0
      %3857 = vmatprep.subr.bf16.mxu0 0
      %3858 = vmatpush1.bf16.msra.mxu0 0
      %3859 = vmatprep.subr.bf16.mxu0 0
      %3860 = vmatpush1.bf16.msra.mxu0 0
      %3861 = vmatprep.subr.bf16.mxu0 0
      %3862 = vmatpush1.bf16.msra.mxu0 0
      %3863 = vmatprep.subr.bf16.mxu0 0
      %3864 = vmatpush1.bf16.msra.mxu0 0
      %3865 = vmatprep.subr.bf16.mxu0 0
      %3866 = vmatpush1.bf16.msra.mxu0 0
      %3867 = vmatprep.mubr.bf16.mxu0 0
      %3868 = vmatmul.mubr.bf16.gmra.mrb[0].mxu0 %v3785
      %v3869 = vpop.f32.mrb[0].mxu0
      %v3870 = vadd.f32 0.0, %v3869
      %v3871 = vpop.f32.mrb[0].mxu0
      %v3872 = vpop.f32.mrb[0].mxu0
      %v3873 = vadd.f32 0.0, %v3872
      %v3874 = vpop.f32.mrb[0].mxu0
      %3875 = vmatprep.mubr.bf16.mxu0 0
      %3876 = vmatmul.mubr.bf16.gmra.mrb[0].mxu0 %v3788
      %v3877 = vpop.f32.mrb[0].mxu0
      %v3878 = vadd.f32 0.0, %v3877
      %v3879 = vpop.f32.mrb[0].mxu0
      %v3880 = vpop.f32.mrb[0].mxu0
      %v3881 = vadd.f32 0.0, %v3880
      %v3882 = vpop.f32.mrb[0].mxu0
      %3883 = vmatprep.mubr.bf16.mxu0 0
      %3884 = vmatmul.mubr.bf16.gmra.mrb[0].mxu0 %v3791
      %v3885 = vpop.f32.mrb[0].mxu0
      %v3886 = vadd.f32 0.0, %v3885
      %v3887 = vpop.f32.mrb[0].mxu0
      %v3888 = vpop.f32.mrb[0].mxu0
      %v3889 = vadd.f32 0.0, %v3888
      %v3890 = vpop.f32.mrb[0].mxu0
      %3891 = vmatprep.mubr.bf16.mxu0 0
      %3892 = vmatmul.mubr.bf16.gmra.mrb[0].mxu0 %v3794
      %v3893 = vpop.f32.mrb[0].mxu0
      %v3894 = vadd.f32 0.0, %v3893
      %v3895 = vpop.f32.mrb[0].mxu0
      %v3896 = vpop.f32.mrb[0].mxu0
      %v3897 = vadd.f32 0.0, %v3896
      %v3898 = vpop.f32.mrb[0].mxu0
      %3899 = vmatprep.mubr.bf16.mxu0 0
      %3900 = vmatmul.mubr.bf16.gmra.mrb[0].mxu0 %v3797
      %v3901 = vpop.f32.mrb[0].mxu0
      %v3902 = vadd.f32 0.0, %v3901
      %v3903 = vpop.f32.mrb[0].mxu0
      %v3904 = vpop.f32.mrb[0].mxu0
      %v3905 = vadd.f32 0.0, %v3904
      %v3906 = vpop.f32.mrb[0].mxu0
      %3907 = vmatprep.mubr.bf16.mxu0 0
      %3908 = vmatmul.mubr.bf16.gmra.mrb[0].mxu0 %v3800
      %v3909 = vpop.f32.mrb[0].mxu0
      %v3910 = vadd.f32 0.0, %v3909
      %v3911 = vpop.f32.mrb[0].mxu0
      %v3912 = vpop.f32.mrb[0].mxu0
      %v3913 = vadd.f32 0.0, %v3912
      %v3914 = vpop.f32.mrb[0].mxu0
      %3915 = vmatprep.mubr.bf16.mxu0 0
      %3916 = vmatmul.mubr.bf16.gmra.mrb[0].mxu0 %v3803
      %v3917 = vpop.f32.mrb[0].mxu0
      %v3918 = vadd.f32 0.0, %v3917
      %v3919 = vpop.f32.mrb[0].mxu0
      %v3920 = vpop.f32.mrb[0].mxu0
      %v3921 = vadd.f32 0.0, %v3920
      %v3922 = vpop.f32.mrb[0].mxu0
      %3923 = vmatprep.mubr.bf16.mxu0 0
      %3924 = vmatmul.mubr.bf16.gmra.mrb[0].mxu0 %v3806
      %v3925 = vpop.f32.mrb[0].mxu0
      %v3926 = vadd.f32 0.0, %v3925
      %v3927 = vpop.f32.mrb[0].mxu0
      %v3928 = vpop.f32.mrb[0].mxu0
      %v3929 = vadd.f32 0.0, %v3928
      %v3930 = vpop.f32.mrb[0].mxu0
      %3931 = vmatprep.mubr.bf16.mxu0 0
      %3932 = vmatmul.mubr.bf16.gmra.mrb[0].mxu0 %v3809
      %v3933 = vpop.f32.mrb[0].mxu0
      %v3934 = vadd.f32 0.0, %v3933
      %v3935 = vpop.f32.mrb[0].mxu0
      %v3936 = vpop.f32.mrb[0].mxu0
      %v3937 = vadd.f32 0.0, %v3936
      %v3938 = vpop.f32.mrb[0].mxu0
      %3939 = vmatprep.mubr.bf16.mxu0 0
      %3940 = vmatmul.mubr.bf16.gmra.mrb[0].mxu0 %v3812
      %v3941 = vpop.f32.mrb[0].mxu0
      %v3942 = vadd.f32 0.0, %v3941
      %v3943 = vpop.f32.mrb[0].mxu0
      %v3944 = vpop.f32.mrb[0].mxu0
      %v3945 = vadd.f32 0.0, %v3944
      %v3946 = vpop.f32.mrb[0].mxu0
      %3947 = vmatprep.mubr.bf16.mxu0 0
      %3948 = vmatmul.mubr.bf16.gmra.mrb[0].mxu0 %v3815
      %v3949 = vpop.f32.mrb[0].mxu0
      %v3950 = vadd.f32 0.0, %v3949
      %v3951 = vpop.f32.mrb[0].mxu0
      %v3952 = vpop.f32.mrb[0].mxu0
      %v3953 = vadd.f32 0.0, %v3952
      %v3954 = vpop.f32.mrb[0].mxu0
      %3955 = vmatprep.mubr.bf16.mxu0 0
      %3956 = vmatmul.mubr.bf16.gmra.mrb[0].mxu0 %v3818
      %v3957 = vpop.f32.mrb[0].mxu0
      %v3958 = vadd.f32 0.0, %v3957
      %v3959 = vpop.f32.mrb[0].mxu0
      %v3960 = vpop.f32.mrb[0].mxu0
      %v3961 = vadd.f32 0.0, %v3960
      %v3962 = vpop.f32.mrb[0].mxu0
      %3963 = vmatprep.mubr.bf16.mxu0 0
      %3964 = vmatmul.mubr.bf16.gmra.mrb[0].mxu0 %v3821
      %v3965 = vpop.f32.mrb[0].mxu0
      %v3966 = vadd.f32 0.0, %v3965
      %v3967 = vpop.f32.mrb[0].mxu0
      %v3968 = vpop.f32.mrb[0].mxu0
      %v3969 = vadd.f32 0.0, %v3968
      %v3970 = vpop.f32.mrb[0].mxu0
      %3971 = vmatprep.mubr.bf16.mxu0 0
      %3972 = vmatmul.mubr.bf16.gmra.mrb[0].mxu0 %v3824
      %v3973 = vpop.f32.mrb[0].mxu0
      %v3974 = vadd.f32 0.0, %v3973
      %v3975 = vpop.f32.mrb[0].mxu0
      %v3976 = vpop.f32.mrb[0].mxu0
      %v3977 = vadd.f32 0.0, %v3976
      %v3978 = vpop.f32.mrb[0].mxu0
      %3979 = vmatprep.mubr.bf16.mxu0 0
      %3980 = vmatmul.mubr.bf16.gmra.mrb[0].mxu0 %v3827
      %v3981 = vpop.f32.mrb[0].mxu0
      %v3982 = vadd.f32 0.0, %v3981
      %v3983 = vpop.f32.mrb[0].mxu0
      %v3984 = vpop.f32.mrb[0].mxu0
      %v3985 = vadd.f32 0.0, %v3984
      %v3986 = vpop.f32.mrb[0].mxu0
      %3987 = vmatprep.mubr.bf16.mxu0 0
      %3988 = vmatmul.mubr.bf16.gmra.mrb[0].mxu0 %v3830
      %v3989 = vpop.f32.mrb[0].mxu0
      %v3990 = vadd.f32 0.0, %v3989
      %v3991 = vpop.f32.mrb[0].mxu0
      %v3992 = vpop.f32.mrb[0].mxu0
      %v3993 = vadd.f32 0.0, %v3992
      %v3994 = vpop.f32.mrb[0].mxu0
      %3995 = vdwg.mxu0
      %v3996 = vadd.f32 %v3526, %v3870
      %v3997 = vadd.f32 %v3527, %v3873
      %v3998 = vadd.f32 %v3528, %v3878
      %v3999 = vadd.f32 %v3529, %v3881
      %v4000 = vadd.f32 %v3530, %v3886
      %v4001 = vadd.f32 %v3531, %v3889
      %v4002 = vadd.f32 %v3532, %v3894
      %v4003 = vadd.f32 %v3533, %v3897
      %v4004 = vadd.f32 %v3534, %v3902
      %v4005 = vadd.f32 %v3535, %v3905
      %v4006 = vadd.f32 %v3536, %v3910
      %v4007 = vadd.f32 %v3537, %v3913
      %v4008 = vadd.f32 %v3538, %v3918
      %v4009 = vadd.f32 %v3539, %v3921
      %v4010 = vadd.f32 %v3540, %v3926
      %v4011 = vadd.f32 %v3541, %v3929
      %v4012 = vadd.f32 %v3542, %v3934
      %v4013 = vadd.f32 %v3543, %v3937
      %v4014 = vadd.f32 %v3544, %v3942
      %v4015 = vadd.f32 %v3545, %v3945
      %v4016 = vadd.f32 %v3546, %v3950
      %v4017 = vadd.f32 %v3547, %v3953
      %v4018 = vadd.f32 %v3548, %v3958
      %v4019 = vadd.f32 %v3549, %v3961
      %v4020 = vadd.f32 %v3550, %v3966
      %v4021 = vadd.f32 %v3551, %v3969
      %v4022 = vadd.f32 %v3552, %v3974
      %v4023 = vadd.f32 %v3553, %v3977
      %v4024 = vadd.f32 %v3554, %v3982
      %v4025 = vadd.f32 %v3555, %v3985
      %v4026 = vadd.f32 %v3556, %v3990
      %v4027 = vadd.f32 %v3557, %v3993
      %s4028 = scalar_lea.vmem [#allocation2], 24
      %v4029 = vld [vmem:[%s4028] sm:$0xf]
      %v4030 = vld [vmem:[%s4028 + $0x4] sm:$0xf]
      %v4031 = vld [vmem:[%s4028 + $0xc] sm:$0xf]
      %v4032 = vld [vmem:[%s4028 + $0x10] sm:$0xf]
      %v4033 = vld [vmem:[%s4028 + $0x18] sm:$0xf]
      %v4034 = vld [vmem:[%s4028 + $0x1c] sm:$0xf]
      %v4035 = vld [vmem:[%s4028 + $0x24] sm:$0xf]
      %v4036 = vld [vmem:[%s4028 + $0x28] sm:$0xf]
      %v4037 = vld [vmem:[%s4028 + $0x30] sm:$0xf]
      %v4038 = vld [vmem:[%s4028 + $0x34] sm:$0xf]
      %v4039 = vld [vmem:[%s4028 + $0x3c] sm:$0xf]
      %v4040 = vld [vmem:[%s4028 + $0x40] sm:$0xf]
      %v4041 = vld [vmem:[%s4028 + $0x48] sm:$0xf]
      %v4042 = vld [vmem:[%s4028 + $0x4c] sm:$0xf]
      %v4043 = vld [vmem:[%s4028 + $0x54] sm:$0xf]
      %v4044 = vld [vmem:[%s4028 + $0x58] sm:$0xf]
      %v4045 = vld [vmem:[%s4028 + $0x60] sm:$0xf]
      %v4046 = vld [vmem:[%s4028 + $0x64] sm:$0xf]
      %v4047 = vld [vmem:[%s4028 + $0x6c] sm:$0xf]
      %v4048 = vld [vmem:[%s4028 + $0x70] sm:$0xf]
      %v4049 = vld [vmem:[%s4028 + $0x78] sm:$0xf]
      %v4050 = vld [vmem:[%s4028 + $0x7c] sm:$0xf]
      %v4051 = vld [vmem:[%s4028 + $0x84] sm:$0xf]
      %v4052 = vld [vmem:[%s4028 + $0x88] sm:$0xf]
      %v4053 = vld [vmem:[%s4028 + $0x90] sm:$0xf]
      %v4054 = vld [vmem:[%s4028 + $0x94] sm:$0xf]
      %v4055 = vld [vmem:[%s4028 + $0x9c] sm:$0xf]
      %v4056 = vld [vmem:[%s4028 + $0xa0] sm:$0xf]
      %v4057 = vld [vmem:[%s4028 + $0xa8] sm:$0xf]
      %v4058 = vld [vmem:[%s4028 + $0xac] sm:$0xf]
      %v4059 = vld [vmem:[%s4028 + $0xb4] sm:$0xf]
      %v4060 = vld [vmem:[%s4028 + $0xb8] sm:$0xf]
      %s4061 = scalar_lea.vmem %s1, 12
      %v4062 = vld [vmem:[%s4061] sm:$0x3]
      %v4095 = vunpack.c.l.b16 %v4029
      %v4096 = vunpack.c.l.b16 %v4030
      %v4097 = vunpack.c.l.b16 %v4031
      %v4098 = vunpack.c.l.b16 %v4032
      %v4099 = vunpack.c.l.b16 %v4033
      %v4100 = vunpack.c.l.b16 %v4034
      %v4101 = vunpack.c.l.b16 %v4035
      %v4102 = vunpack.c.l.b16 %v4036
      %v4103 = vunpack.c.l.b16 %v4037
      %v4104 = vunpack.c.l.b16 %v4038
      %v4105 = vunpack.c.l.b16 %v4039
      %v4106 = vunpack.c.l.b16 %v4040
      %v4107 = vunpack.c.l.b16 %v4041
      %v4108 = vunpack.c.l.b16 %v4042
      %v4109 = vunpack.c.l.b16 %v4043
      %v4110 = vunpack.c.l.b16 %v4044
      %v4111 = vunpack.c.l.b16 %v4045
      %v4112 = vunpack.c.l.b16 %v4046
      %v4113 = vunpack.c.l.b16 %v4047
      %v4114 = vunpack.c.l.b16 %v4048
      %v4115 = vunpack.c.l.b16 %v4049
      %v4116 = vunpack.c.l.b16 %v4050
      %v4117 = vunpack.c.l.b16 %v4051
      %v4118 = vunpack.c.l.b16 %v4052
      %v4119 = vunpack.c.l.b16 %v4053
      %v4120 = vunpack.c.l.b16 %v4054
      %v4121 = vunpack.c.l.b16 %v4055
      %v4122 = vunpack.c.l.b16 %v4056
      %v4123 = vunpack.c.l.b16 %v4057
      %v4124 = vunpack.c.l.b16 %v4058
      %v4125 = vunpack.c.l.b16 %v4059
      %v4126 = vunpack.c.l.b16 %v4060
      %v4127 = vpack.c.b16 %v4096, %v4095
      %v4128 = vpack.c.b16 %v4098, %v4097
      %v4129 = vpack.c.b16 %v4100, %v4099
      %v4130 = vpack.c.b16 %v4102, %v4101
      %v4131 = vpack.c.b16 %v4104, %v4103
      %v4132 = vpack.c.b16 %v4106, %v4105
      %v4133 = vpack.c.b16 %v4108, %v4107
      %v4134 = vpack.c.b16 %v4110, %v4109
      %v4135 = vpack.c.b16 %v4112, %v4111
      %v4136 = vpack.c.b16 %v4114, %v4113
      %v4137 = vpack.c.b16 %v4116, %v4115
      %v4138 = vpack.c.b16 %v4118, %v4117
      %v4139 = vpack.c.b16 %v4120, %v4119
      %v4140 = vpack.c.b16 %v4122, %v4121
      %v4141 = vpack.c.b16 %v4124, %v4123
      %v4142 = vpack.c.b16 %v4126, %v4125
      %v4144 = vsel %vm1508, %v4127, 0
      %v4147 = vsel %vm1508, %v4128, 0
      %v4150 = vsel %vm1508, %v4129, 0
      %v4153 = vsel %vm1508, %v4130, 0
      %v4156 = vsel %vm1508, %v4131, 0
      %v4159 = vsel %vm1508, %v4132, 0
      %v4162 = vsel %vm1508, %v4133, 0
      %v4165 = vsel %vm1508, %v4134, 0
      %v4168 = vsel %vm1508, %v4135, 0
      %v4171 = vsel %vm1508, %v4136, 0
      %v4174 = vsel %vm1508, %v4137, 0
      %v4177 = vsel %vm1508, %v4138, 0
      %v4180 = vsel %vm1508, %v4139, 0
      %v4183 = vsel %vm1508, %v4140, 0
      %v4186 = vsel %vm1508, %v4141, 0
      %v4189 = vsel %vm1508, %v4142, 0
      %v4192 = vand.u32 %v4062, %v1560
      %4194 = vmatprep.subr.bf16.mxu0 0
      %4195 = vmatpush1.bf16.msra.mxu0 %v4192
      %4196 = vmatprep.subr.bf16.mxu0 0
      %4197 = vmatpush1.bf16.msra.mxu0 0
      %4198 = vmatprep.subr.bf16.mxu0 0
      %4199 = vmatpush1.bf16.msra.mxu0 0
      %4200 = vmatprep.subr.bf16.mxu0 0
      %4201 = vmatpush1.bf16.msra.mxu0 0
      %4202 = vmatprep.subr.bf16.mxu0 0
      %4203 = vmatpush1.bf16.msra.mxu0 0
      %4204 = vmatprep.subr.bf16.mxu0 0
      %4205 = vmatpush1.bf16.msra.mxu0 0
      %4206 = vmatprep.subr.bf16.mxu0 0
      %4207 = vmatpush1.bf16.msra.mxu0 0
      %4208 = vmatprep.subr.bf16.mxu0 0
      %4209 = vmatpush1.bf16.msra.mxu0 0
      %4210 = vmatprep.subr.bf16.mxu0 0
      %4211 = vmatpush1.bf16.msra.mxu0 0
      %4212 = vmatprep.subr.bf16.mxu0 0
      %4213 = vmatpush1.bf16.msra.mxu0 0
      %4214 = vmatprep.subr.bf16.mxu0 0
      %4215 = vmatpush1.bf16.msra.mxu0 0
      %4216 = vmatprep.subr.bf16.mxu0 0
      %4217 = vmatpush1.bf16.msra.mxu0 0
      %4218 = vmatprep.subr.bf16.mxu0 0
      %4219 = vmatpush1.bf16.msra.mxu0 0
      %4220 = vmatprep.subr.bf16.mxu0 0
      %4221 = vmatpush1.bf16.msra.mxu0 0
      %4222 = vmatprep.subr.bf16.mxu0 0
      %4223 = vmatpush1.bf16.msra.mxu0 0
      %4224 = vmatprep.subr.bf16.mxu0 0
      %4225 = vmatpush1.bf16.msra.mxu0 0
      %4226 = vmatprep.mubr.bf16.mxu0 0
      %4227 = vmatmul.mubr.bf16.gmra.mrb[0].mxu0 %v4144
      %v4228 = vpop.f32.mrb[0].mxu0
      %v4229 = vadd.f32 0.0, %v4228
      %v4230 = vpop.f32.mrb[0].mxu0
      %v4231 = vpop.f32.mrb[0].mxu0
      %v4232 = vadd.f32 0.0, %v4231
      %v4233 = vpop.f32.mrb[0].mxu0
      %4234 = vmatprep.mubr.bf16.mxu0 0
      %4235 = vmatmul.mubr.bf16.gmra.mrb[0].mxu0 %v4147
      %v4236 = vpop.f32.mrb[0].mxu0
      %v4237 = vadd.f32 0.0, %v4236
      %v4238 = vpop.f32.mrb[0].mxu0
      %v4239 = vpop.f32.mrb[0].mxu0
      %v4240 = vadd.f32 0.0, %v4239
      %v4241 = vpop.f32.mrb[0].mxu0
      %4242 = vmatprep.mubr.bf16.mxu0 0
      %4243 = vmatmul.mubr.bf16.gmra.mrb[0].mxu0 %v4150
      %v4244 = vpop.f32.mrb[0].mxu0
      %v4245 = vadd.f32 0.0, %v4244
      %v4246 = vpop.f32.mrb[0].mxu0
      %v4247 = vpop.f32.mrb[0].mxu0
      %v4248 = vadd.f32 0.0, %v4247
      %v4249 = vpop.f32.mrb[0].mxu0
      %4250 = vmatprep.mubr.bf16.mxu0 0
      %4251 = vmatmul.mubr.bf16.gmra.mrb[0].mxu0 %v4153
      %v4252 = vpop.f32.mrb[0].mxu0
      %v4253 = vadd.f32 0.0, %v4252
      %v4254 = vpop.f32.mrb[0].mxu0
      %v4255 = vpop.f32.mrb[0].mxu0
      %v4256 = vadd.f32 0.0, %v4255
      %v4257 = vpop.f32.mrb[0].mxu0
      %4258 = vmatprep.mubr.bf16.mxu0 0
      %4259 = vmatmul.mubr.bf16.gmra.mrb[0].mxu0 %v4156
      %v4260 = vpop.f32.mrb[0].mxu0
      %v4261 = vadd.f32 0.0, %v4260
      %v4262 = vpop.f32.mrb[0].mxu0
      %v4263 = vpop.f32.mrb[0].mxu0
      %v4264 = vadd.f32 0.0, %v4263
      %v4265 = vpop.f32.mrb[0].mxu0
      %4266 = vmatprep.mubr.bf16.mxu0 0
      %4267 = vmatmul.mubr.bf16.gmra.mrb[0].mxu0 %v4159
      %v4268 = vpop.f32.mrb[0].mxu0
      %v4269 = vadd.f32 0.0, %v4268
      %v4270 = vpop.f32.mrb[0].mxu0
      %v4271 = vpop.f32.mrb[0].mxu0
      %v4272 = vadd.f32 0.0, %v4271
      %v4273 = vpop.f32.mrb[0].mxu0
      %4274 = vmatprep.mubr.bf16.mxu0 0
      %4275 = vmatmul.mubr.bf16.gmra.mrb[0].mxu0 %v4162
      %v4276 = vpop.f32.mrb[0].mxu0
      %v4277 = vadd.f32 0.0, %v4276
      %v4278 = vpop.f32.mrb[0].mxu0
      %v4279 = vpop.f32.mrb[0].mxu0
      %v4280 = vadd.f32 0.0, %v4279
      %v4281 = vpop.f32.mrb[0].mxu0
      %4282 = vmatprep.mubr.bf16.mxu0 0
      %4283 = vmatmul.mubr.bf16.gmra.mrb[0].mxu0 %v4165
      %v4284 = vpop.f32.mrb[0].mxu0
      %v4285 = vadd.f32 0.0, %v4284
      %v4286 = vpop.f32.mrb[0].mxu0
      %v4287 = vpop.f32.mrb[0].mxu0
      %v4288 = vadd.f32 0.0, %v4287
      %v4289 = vpop.f32.mrb[0].mxu0
      %4290 = vmatprep.mubr.bf16.mxu0 0
      %4291 = vmatmul.mubr.bf16.gmra.mrb[0].mxu0 %v4168
      %v4292 = vpop.f32.mrb[0].mxu0
      %v4293 = vadd.f32 0.0, %v4292
      %v4294 = vpop.f32.mrb[0].mxu0
      %v4295 = vpop.f32.mrb[0].mxu0
      %v4296 = vadd.f32 0.0, %v4295
      %v4297 = vpop.f32.mrb[0].mxu0
      %4298 = vmatprep.mubr.bf16.mxu0 0
      %4299 = vmatmul.mubr.bf16.gmra.mrb[0].mxu0 %v4171
      %v4300 = vpop.f32.mrb[0].mxu0
      %v4301 = vadd.f32 0.0, %v4300
      %v4302 = vpop.f32.mrb[0].mxu0
      %v4303 = vpop.f32.mrb[0].mxu0
      %v4304 = vadd.f32 0.0, %v4303
      %v4305 = vpop.f32.mrb[0].mxu0
      %4306 = vmatprep.mubr.bf16.mxu0 0
      %4307 = vmatmul.mubr.bf16.gmra.mrb[0].mxu0 %v4174
      %v4308 = vpop.f32.mrb[0].mxu0
      %v4309 = vadd.f32 0.0, %v4308
      %v4310 = vpop.f32.mrb[0].mxu0
      %v4311 = vpop.f32.mrb[0].mxu0
      %v4312 = vadd.f32 0.0, %v4311
      %v4313 = vpop.f32.mrb[0].mxu0
      %4314 = vmatprep.mubr.bf16.mxu0 0
      %4315 = vmatmul.mubr.bf16.gmra.mrb[0].mxu0 %v4177
      %v4316 = vpop.f32.mrb[0].mxu0
      %v4317 = vadd.f32 0.0, %v4316
      %v4318 = vpop.f32.mrb[0].mxu0
      %v4319 = vpop.f32.mrb[0].mxu0
      %v4320 = vadd.f32 0.0, %v4319
      %v4321 = vpop.f32.mrb[0].mxu0
      %4322 = vmatprep.mubr.bf16.mxu0 0
      %4323 = vmatmul.mubr.bf16.gmra.mrb[0].mxu0 %v4180
      %v4324 = vpop.f32.mrb[0].mxu0
      %v4325 = vadd.f32 0.0, %v4324
      %v4326 = vpop.f32.mrb[0].mxu0
      %v4327 = vpop.f32.mrb[0].mxu0
      %v4328 = vadd.f32 0.0, %v4327
      %v4329 = vpop.f32.mrb[0].mxu0
      %4330 = vmatprep.mubr.bf16.mxu0 0
      %4331 = vmatmul.mubr.bf16.gmra.mrb[0].mxu0 %v4183
      %v4332 = vpop.f32.mrb[0].mxu0
      %v4333 = vadd.f32 0.0, %v4332
      %v4334 = vpop.f32.mrb[0].mxu0
      %v4335 = vpop.f32.mrb[0].mxu0
      %v4336 = vadd.f32 0.0, %v4335
      %v4337 = vpop.f32.mrb[0].mxu0
      %4338 = vmatprep.mubr.bf16.mxu0 0
      %4339 = vmatmul.mubr.bf16.gmra.mrb[0].mxu0 %v4186
      %v4340 = vpop.f32.mrb[0].mxu0
      %v4341 = vadd.f32 0.0, %v4340
      %v4342 = vpop.f32.mrb[0].mxu0
      %v4343 = vpop.f32.mrb[0].mxu0
      %v4344 = vadd.f32 0.0, %v4343
      %v4345 = vpop.f32.mrb[0].mxu0
      %4346 = vmatprep.mubr.bf16.mxu0 0
      %4347 = vmatmul.mubr.bf16.gmra.mrb[0].mxu0 %v4189
      %v4348 = vpop.f32.mrb[0].mxu0
      %v4349 = vadd.f32 0.0, %v4348
      %v4350 = vpop.f32.mrb[0].mxu0
      %v4351 = vpop.f32.mrb[0].mxu0
      %v4352 = vadd.f32 0.0, %v4351
      %v4353 = vpop.f32.mrb[0].mxu0
      %4354 = vdwg.mxu0
      %v4355 = vadd.f32 %v3996, %v4229
      %v4356 = vadd.f32 %v3997, %v4232
      %v4357 = vadd.f32 %v3998, %v4237
      %v4358 = vadd.f32 %v3999, %v4240
      %v4359 = vadd.f32 %v4000, %v4245
      %v4360 = vadd.f32 %v4001, %v4248
      %v4361 = vadd.f32 %v4002, %v4253
      %v4362 = vadd.f32 %v4003, %v4256
      %v4363 = vadd.f32 %v4004, %v4261
      %v4364 = vadd.f32 %v4005, %v4264
      %v4365 = vadd.f32 %v4006, %v4269
      %v4366 = vadd.f32 %v4007, %v4272
      %v4367 = vadd.f32 %v4008, %v4277
      %v4368 = vadd.f32 %v4009, %v4280
      %v4369 = vadd.f32 %v4010, %v4285
      %v4370 = vadd.f32 %v4011, %v4288
      %v4371 = vadd.f32 %v4012, %v4293
      %v4372 = vadd.f32 %v4013, %v4296
      %v4373 = vadd.f32 %v4014, %v4301
      %v4374 = vadd.f32 %v4015, %v4304
      %v4375 = vadd.f32 %v4016, %v4309
      %v4376 = vadd.f32 %v4017, %v4312
      %v4377 = vadd.f32 %v4018, %v4317
      %v4378 = vadd.f32 %v4019, %v4320
      %v4379 = vadd.f32 %v4020, %v4325
      %v4380 = vadd.f32 %v4021, %v4328
      %v4381 = vadd.f32 %v4022, %v4333
      %v4382 = vadd.f32 %v4023, %v4336
      %v4383 = vadd.f32 %v4024, %v4341
      %v4384 = vadd.f32 %v4025, %v4344
      %v4385 = vadd.f32 %v4026, %v4349
      %v4386 = vadd.f32 %v4027, %v4352
      %v4387 = vld [vmem:[%s4028] sm:$0xf]
      %v4388 = vld [vmem:[%s4028 + $0x4] sm:$0xf]
      %v4389 = vld [vmem:[%s4028 + $0x8] sm:$0x1]
      %v4390 = vld [vmem:[%s4028 + $0xc] sm:$0xf]
      %v4391 = vld [vmem:[%s4028 + $0x10] sm:$0xf]
      %v4392 = vld [vmem:[%s4028 + $0x14] sm:$0x1]
      %v4393 = vld [vmem:[%s4028 + $0x18] sm:$0xf]
      %v4394 = vld [vmem:[%s4028 + $0x1c] sm:$0xf]
      %v4395 = vld [vmem:[%s4028 + $0x20] sm:$0x1]
      %v4396 = vld [vmem:[%s4028 + $0x24] sm:$0xf]
      %v4397 = vld [vmem:[%s4028 + $0x28] sm:$0xf]
      %v4398 = vld [vmem:[%s4028 + $0x2c] sm:$0x1]
      %v4399 = vld [vmem:[%s4028 + $0x30] sm:$0xf]
      %v4400 = vld [vmem:[%s4028 + $0x34] sm:$0xf]
      %v4401 = vld [vmem:[%s4028 + $0x38] sm:$0x1]
      %v4402 = vld [vmem:[%s4028 + $0x3c] sm:$0xf]
      %v4403 = vld [vmem:[%s4028 + $0x40] sm:$0xf]
      %v4404 = vld [vmem:[%s4028 + $0x44] sm:$0x1]
      %v4405 = vld [vmem:[%s4028 + $0x48] sm:$0xf]
      %v4406 = vld [vmem:[%s4028 + $0x4c] sm:$0xf]
      %v4407 = vld [vmem:[%s4028 + $0x50] sm:$0x1]
      %v4408 = vld [vmem:[%s4028 + $0x54] sm:$0xf]
      %v4409 = vld [vmem:[%s4028 + $0x58] sm:$0xf]
      %v4410 = vld [vmem:[%s4028 + $0x5c] sm:$0x1]
      %v4411 = vld [vmem:[%s4028 + $0x60] sm:$0xf]
      %v4412 = vld [vmem:[%s4028 + $0x64] sm:$0xf]
      %v4413 = vld [vmem:[%s4028 + $0x68] sm:$0x1]
      %v4414 = vld [vmem:[%s4028 + $0x6c] sm:$0xf]
      %v4415 = vld [vmem:[%s4028 + $0x70] sm:$0xf]
      %v4416 = vld [vmem:[%s4028 + $0x74] sm:$0x1]
      %v4417 = vld [vmem:[%s4028 + $0x78] sm:$0xf]
      %v4418 = vld [vmem:[%s4028 + $0x7c] sm:$0xf]
      %v4419 = vld [vmem:[%s4028 + $0x80] sm:$0x1]
      %v4420 = vld [vmem:[%s4028 + $0x84] sm:$0xf]
      %v4421 = vld [vmem:[%s4028 + $0x88] sm:$0xf]
      %v4422 = vld [vmem:[%s4028 + $0x8c] sm:$0x1]
      %v4423 = vld [vmem:[%s4028 + $0x90] sm:$0xf]
      %v4424 = vld [vmem:[%s4028 + $0x94] sm:$0xf]
      %v4425 = vld [vmem:[%s4028 + $0x98] sm:$0x1]
      %v4426 = vld [vmem:[%s4028 + $0x9c] sm:$0xf]
      %v4427 = vld [vmem:[%s4028 + $0xa0] sm:$0xf]
      %v4428 = vld [vmem:[%s4028 + $0xa4] sm:$0x1]
      %v4429 = vld [vmem:[%s4028 + $0xa8] sm:$0xf]
      %v4430 = vld [vmem:[%s4028 + $0xac] sm:$0xf]
      %v4431 = vld [vmem:[%s4028 + $0xb0] sm:$0x1]
      %v4432 = vld [vmem:[%s4028 + $0xb4] sm:$0xf]
      %v4433 = vld [vmem:[%s4028 + $0xb8] sm:$0xf]
      %v4434 = vld [vmem:[%s4028 + $0xbc] sm:$0x1]
      %v4436 = vshrl.u32 %v4387, 16
      %v4438 = vrot.slane %v4436, 4
      %v4439 = vshll.u32 %v4387, 16
      %v4441 = vrot.slane %v4439, 5
      %v4442 = vor.u32 %v4438, %v4441
      %v4443 = vrot.slane %v4442, 4
      %v4445 = vshll.u32 %v4388, 16
      %v4447 = vrot.slane %v4445, 5
      %v4448 = vsel %vm1073, %v4443, %v4447
      %v4449 = vshrl.u32 %v4388, 16
      %v4451 = vrot.slane %v4449, 4
      %v4452 = vor.u32 %v4451, %v4447
      %v4453 = vrot.slane %v4452, 4
      %v4455 = vshll.u32 %v4389, 16
      %v4457 = vrot.slane %v4455, 5
      %v4458 = vsel %vm1073, %v4453, %v4457
      %v4460 = vshrl.u32 %v4390, 16
      %v4462 = vrot.slane %v4460, 4
      %v4463 = vshll.u32 %v4390, 16
      %v4465 = vrot.slane %v4463, 5
      %v4466 = vor.u32 %v4462, %v4465
      %v4467 = vrot.slane %v4466, 4
      %v4469 = vshll.u32 %v4391, 16
      %v4471 = vrot.slane %v4469, 5
      %v4472 = vsel %vm1073, %v4467, %v4471
      %v4473 = vshrl.u32 %v4391, 16
      %v4475 = vrot.slane %v4473, 4
      %v4476 = vor.u32 %v4475, %v4471
      %v4477 = vrot.slane %v4476, 4
      %v4479 = vshll.u32 %v4392, 16
      %v4481 = vrot.slane %v4479, 5
      %v4482 = vsel %vm1073, %v4477, %v4481
      %v4484 = vshrl.u32 %v4393, 16
      %v4486 = vrot.slane %v4484, 4
      %v4487 = vshll.u32 %v4393, 16
      %v4489 = vrot.slane %v4487, 5
      %v4490 = vor.u32 %v4486, %v4489
      %v4491 = vrot.slane %v4490, 4
      %v4493 = vshll.u32 %v4394, 16
      %v4495 = vrot.slane %v4493, 5
      %v4496 = vsel %vm1073, %v4491, %v4495
      %v4497 = vshrl.u32 %v4394, 16
      %v4499 = vrot.slane %v4497, 4
      %v4500 = vor.u32 %v4499, %v4495
      %v4501 = vrot.slane %v4500, 4
      %v4503 = vshll.u32 %v4395, 16
      %v4505 = vrot.slane %v4503, 5
      %v4506 = vsel %vm1073, %v4501, %v4505
      %v4508 = vshrl.u32 %v4396, 16
      %v4510 = vrot.slane %v4508, 4
      %v4511 = vshll.u32 %v4396, 16
      %v4513 = vrot.slane %v4511, 5
      %v4514 = vor.u32 %v4510, %v4513
      %v4515 = vrot.slane %v4514, 4
      %v4517 = vshll.u32 %v4397, 16
      %v4519 = vrot.slane %v4517, 5
      %v4520 = vsel %vm1073, %v4515, %v4519
      %v4521 = vshrl.u32 %v4397, 16
      %v4523 = vrot.slane %v4521, 4
      %v4524 = vor.u32 %v4523, %v4519
      %v4525 = vrot.slane %v4524, 4
      %v4527 = vshll.u32 %v4398, 16
      %v4529 = vrot.slane %v4527, 5
      %v4530 = vsel %vm1073, %v4525, %v4529
      %v4532 = vshrl.u32 %v4399, 16
      %v4534 = vrot.slane %v4532, 4
      %v4535 = vshll.u32 %v4399, 16
      %v4537 = vrot.slane %v4535, 5
      %v4538 = vor.u32 %v4534, %v4537
      %v4539 = vrot.slane %v4538, 4
      %v4541 = vshll.u32 %v4400, 16
      %v4543 = vrot.slane %v4541, 5
      %v4544 = vsel %vm1073, %v4539, %v4543
      %v4545 = vshrl.u32 %v4400, 16
      %v4547 = vrot.slane %v4545, 4
      %v4548 = vor.u32 %v4547, %v4543
      %v4549 = vrot.slane %v4548, 4
      %v4551 = vshll.u32 %v4401, 16
      %v4553 = vrot.slane %v4551, 5
      %v4554 = vsel %vm1073, %v4549, %v4553
      %v4556 = vshrl.u32 %v4402, 16
      %v4558 = vrot.slane %v4556, 4
      %v4559 = vshll.u32 %v4402, 16
      %v4561 = vrot.slane %v4559, 5
      %v4562 = vor.u32 %v4558, %v4561
      %v4563 = vrot.slane %v4562, 4
      %v4565 = vshll.u32 %v4403, 16
      %v4567 = vrot.slane %v4565, 5
      %v4568 = vsel %vm1073, %v4563, %v4567
      %v4569 = vshrl.u32 %v4403, 16
      %v4571 = vrot.slane %v4569, 4
      %v4572 = vor.u32 %v4571, %v4567
      %v4573 = vrot.slane %v4572, 4
      %v4575 = vshll.u32 %v4404, 16
      %v4577 = vrot.slane %v4575, 5
      %v4578 = vsel %vm1073, %v4573, %v4577
      %v4580 = vshrl.u32 %v4405, 16
      %v4582 = vrot.slane %v4580, 4
      %v4583 = vshll.u32 %v4405, 16
      %v4585 = vrot.slane %v4583, 5
      %v4586 = vor.u32 %v4582, %v4585
      %v4587 = vrot.slane %v4586, 4
      %v4589 = vshll.u32 %v4406, 16
      %v4591 = vrot.slane %v4589, 5
      %v4592 = vsel %vm1073, %v4587, %v4591
      %v4593 = vshrl.u32 %v4406, 16
      %v4595 = vrot.slane %v4593, 4
      %v4596 = vor.u32 %v4595, %v4591
      %v4597 = vrot.slane %v4596, 4
      %v4599 = vshll.u32 %v4407, 16
      %v4601 = vrot.slane %v4599, 5
      %v4602 = vsel %vm1073, %v4597, %v4601
      %v4604 = vshrl.u32 %v4408, 16
      %v4606 = vrot.slane %v4604, 4
      %v4607 = vshll.u32 %v4408, 16
      %v4609 = vrot.slane %v4607, 5
      %v4610 = vor.u32 %v4606, %v4609
      %v4611 = vrot.slane %v4610, 4
      %v4613 = vshll.u32 %v4409, 16
      %v4615 = vrot.slane %v4613, 5
      %v4616 = vsel %vm1073, %v4611, %v4615
      %v4617 = vshrl.u32 %v4409, 16
      %v4619 = vrot.slane %v4617, 4
      %v4620 = vor.u32 %v4619, %v4615
      %v4621 = vrot.slane %v4620, 4
      %v4623 = vshll.u32 %v4410, 16
      %v4625 = vrot.slane %v4623, 5
      %v4626 = vsel %vm1073, %v4621, %v4625
      %v4628 = vshrl.u32 %v4411, 16
      %v4630 = vrot.slane %v4628, 4
      %v4631 = vshll.u32 %v4411, 16
      %v4633 = vrot.slane %v4631, 5
      %v4634 = vor.u32 %v4630, %v4633
      %v4635 = vrot.slane %v4634, 4
      %v4637 = vshll.u32 %v4412, 16
      %v4639 = vrot.slane %v4637, 5
      %v4640 = vsel %vm1073, %v4635, %v4639
      %v4641 = vshrl.u32 %v4412, 16
      %v4643 = vrot.slane %v4641, 4
      %v4644 = vor.u32 %v4643, %v4639
      %v4645 = vrot.slane %v4644, 4
      %v4647 = vshll.u32 %v4413, 16
      %v4649 = vrot.slane %v4647, 5
      %v4650 = vsel %vm1073, %v4645, %v4649
      %v4652 = vshrl.u32 %v4414, 16
      %v4654 = vrot.slane %v4652, 4
      %v4655 = vshll.u32 %v4414, 16
      %v4657 = vrot.slane %v4655, 5
      %v4658 = vor.u32 %v4654, %v4657
      %v4659 = vrot.slane %v4658, 4
      %v4661 = vshll.u32 %v4415, 16
      %v4663 = vrot.slane %v4661, 5
      %v4664 = vsel %vm1073, %v4659, %v4663
      %v4665 = vshrl.u32 %v4415, 16
      %v4667 = vrot.slane %v4665, 4
      %v4668 = vor.u32 %v4667, %v4663
      %v4669 = vrot.slane %v4668, 4
      %v4671 = vshll.u32 %v4416, 16
      %v4673 = vrot.slane %v4671, 5
      %v4674 = vsel %vm1073, %v4669, %v4673
      %v4676 = vshrl.u32 %v4417, 16
      %v4678 = vrot.slane %v4676, 4
      %v4679 = vshll.u32 %v4417, 16
      %v4681 = vrot.slane %v4679, 5
      %v4682 = vor.u32 %v4678, %v4681
      %v4683 = vrot.slane %v4682, 4
      %v4685 = vshll.u32 %v4418, 16
      %v4687 = vrot.slane %v4685, 5
      %v4688 = vsel %vm1073, %v4683, %v4687
      %v4689 = vshrl.u32 %v4418, 16
      %v4691 = vrot.slane %v4689, 4
      %v4692 = vor.u32 %v4691, %v4687
      %v4693 = vrot.slane %v4692, 4
      %v4695 = vshll.u32 %v4419, 16
      %v4697 = vrot.slane %v4695, 5
      %v4698 = vsel %vm1073, %v4693, %v4697
      %v4700 = vshrl.u32 %v4420, 16
      %v4702 = vrot.slane %v4700, 4
      %v4703 = vshll.u32 %v4420, 16
      %v4705 = vrot.slane %v4703, 5
      %v4706 = vor.u32 %v4702, %v4705
      %v4707 = vrot.slane %v4706, 4
      %v4709 = vshll.u32 %v4421, 16
      %v4711 = vrot.slane %v4709, 5
      %v4712 = vsel %vm1073, %v4707, %v4711
      %v4713 = vshrl.u32 %v4421, 16
      %v4715 = vrot.slane %v4713, 4
      %v4716 = vor.u32 %v4715, %v4711
      %v4717 = vrot.slane %v4716, 4
      %v4719 = vshll.u32 %v4422, 16
      %v4721 = vrot.slane %v4719, 5
      %v4722 = vsel %vm1073, %v4717, %v4721
      %v4724 = vshrl.u32 %v4423, 16
      %v4726 = vrot.slane %v4724, 4
      %v4727 = vshll.u32 %v4423, 16
      %v4729 = vrot.slane %v4727, 5
      %v4730 = vor.u32 %v4726, %v4729
      %v4731 = vrot.slane %v4730, 4
      %v4733 = vshll.u32 %v4424, 16
      %v4735 = vrot.slane %v4733, 5
      %v4736 = vsel %vm1073, %v4731, %v4735
      %v4737 = vshrl.u32 %v4424, 16
      %v4739 = vrot.slane %v4737, 4
      %v4740 = vor.u32 %v4739, %v4735
      %v4741 = vrot.slane %v4740, 4
      %v4743 = vshll.u32 %v4425, 16
      %v4745 = vrot.slane %v4743, 5
      %v4746 = vsel %vm1073, %v4741, %v4745
      %v4748 = vshrl.u32 %v4426, 16
      %v4750 = vrot.slane %v4748, 4
      %v4751 = vshll.u32 %v4426, 16
      %v4753 = vrot.slane %v4751, 5
      %v4754 = vor.u32 %v4750, %v4753
      %v4755 = vrot.slane %v4754, 4
      %v4757 = vshll.u32 %v4427, 16
      %v4759 = vrot.slane %v4757, 5
      %v4760 = vsel %vm1073, %v4755, %v4759
      %v4761 = vshrl.u32 %v4427, 16
      %v4763 = vrot.slane %v4761, 4
      %v4764 = vor.u32 %v4763, %v4759
      %v4765 = vrot.slane %v4764, 4
      %v4767 = vshll.u32 %v4428, 16
      %v4769 = vrot.slane %v4767, 5
      %v4770 = vsel %vm1073, %v4765, %v4769
      %v4772 = vshrl.u32 %v4429, 16
      %v4774 = vrot.slane %v4772, 4
      %v4775 = vshll.u32 %v4429, 16
      %v4777 = vrot.slane %v4775, 5
      %v4778 = vor.u32 %v4774, %v4777
      %v4779 = vrot.slane %v4778, 4
      %v4781 = vshll.u32 %v4430, 16
      %v4783 = vrot.slane %v4781, 5
      %v4784 = vsel %vm1073, %v4779, %v4783
      %v4785 = vshrl.u32 %v4430, 16
      %v4787 = vrot.slane %v4785, 4
      %v4788 = vor.u32 %v4787, %v4783
      %v4789 = vrot.slane %v4788, 4
      %v4791 = vshll.u32 %v4431, 16
      %v4793 = vrot.slane %v4791, 5
      %v4794 = vsel %vm1073, %v4789, %v4793
      %v4796 = vshrl.u32 %v4432, 16
      %v4798 = vrot.slane %v4796, 4
      %v4799 = vshll.u32 %v4432, 16
      %v4801 = vrot.slane %v4799, 5
      %v4802 = vor.u32 %v4798, %v4801
      %v4803 = vrot.slane %v4802, 4
      %v4805 = vshll.u32 %v4433, 16
      %v4807 = vrot.slane %v4805, 5
      %v4808 = vsel %vm1073, %v4803, %v4807
      %v4809 = vshrl.u32 %v4433, 16
      %v4811 = vrot.slane %v4809, 4
      %v4812 = vor.u32 %v4811, %v4807
      %v4813 = vrot.slane %v4812, 4
      %v4815 = vshll.u32 %v4434, 16
      %v4817 = vrot.slane %v4815, 5
      %v4818 = vsel %vm1073, %v4813, %v4817
      %s4819 = scalar_lea.vmem %s1, 14
      %v4820 = vld [vmem:[%s4819] sm:$0x3]
      %v4821 = vunpack.c.l.b16 %v4448
      %v4822 = vunpack.c.l.b16 %v4458
      %v4823 = vunpack.c.l.b16 %v4472
      %v4824 = vunpack.c.l.b16 %v4482
      %v4825 = vunpack.c.l.b16 %v4496
      %v4826 = vunpack.c.l.b16 %v4506
      %v4827 = vunpack.c.l.b16 %v4520
      %v4828 = vunpack.c.l.b16 %v4530
      %v4829 = vunpack.c.l.b16 %v4544
      %v4830 = vunpack.c.l.b16 %v4554
      %v4831 = vunpack.c.l.b16 %v4568
      %v4832 = vunpack.c.l.b16 %v4578
      %v4833 = vunpack.c.l.b16 %v4592
      %v4834 = vunpack.c.l.b16 %v4602
      %v4835 = vunpack.c.l.b16 %v4616
      %v4836 = vunpack.c.l.b16 %v4626
      %v4837 = vunpack.c.l.b16 %v4640
      %v4838 = vunpack.c.l.b16 %v4650
      %v4839 = vunpack.c.l.b16 %v4664
      %v4840 = vunpack.c.l.b16 %v4674
      %v4841 = vunpack.c.l.b16 %v4688
      %v4842 = vunpack.c.l.b16 %v4698
      %v4843 = vunpack.c.l.b16 %v4712
      %v4844 = vunpack.c.l.b16 %v4722
      %v4845 = vunpack.c.l.b16 %v4736
      %v4846 = vunpack.c.l.b16 %v4746
      %v4847 = vunpack.c.l.b16 %v4760
      %v4848 = vunpack.c.l.b16 %v4770
      %v4849 = vunpack.c.l.b16 %v4784
      %v4850 = vunpack.c.l.b16 %v4794
      %v4851 = vunpack.c.l.b16 %v4808
      %v4852 = vunpack.c.l.b16 %v4818
      %v4853 = vpack.c.b16 %v4822, %v4821
      %v4854 = vpack.c.b16 %v4824, %v4823
      %v4855 = vpack.c.b16 %v4826, %v4825
      %v4856 = vpack.c.b16 %v4828, %v4827
      %v4857 = vpack.c.b16 %v4830, %v4829
      %v4858 = vpack.c.b16 %v4832, %v4831
      %v4859 = vpack.c.b16 %v4834, %v4833
      %v4860 = vpack.c.b16 %v4836, %v4835
      %v4861 = vpack.c.b16 %v4838, %v4837
      %v4862 = vpack.c.b16 %v4840, %v4839
      %v4863 = vpack.c.b16 %v4842, %v4841
      %v4864 = vpack.c.b16 %v4844, %v4843
      %v4865 = vpack.c.b16 %v4846, %v4845
      %v4866 = vpack.c.b16 %v4848, %v4847
      %v4867 = vpack.c.b16 %v4850, %v4849
      %v4868 = vpack.c.b16 %v4852, %v4851
      %v4870 = vsel %vm1508, %v4853, 0
      %v4873 = vsel %vm1508, %v4854, 0
      %v4876 = vsel %vm1508, %v4855, 0
      %v4879 = vsel %vm1508, %v4856, 0
      %v4882 = vsel %vm1508, %v4857, 0
      %v4885 = vsel %vm1508, %v4858, 0
      %v4888 = vsel %vm1508, %v4859, 0
      %v4891 = vsel %vm1508, %v4860, 0
      %v4894 = vsel %vm1508, %v4861, 0
      %v4897 = vsel %vm1508, %v4862, 0
      %v4900 = vsel %vm1508, %v4863, 0
      %v4903 = vsel %vm1508, %v4864, 0
      %v4906 = vsel %vm1508, %v4865, 0
      %v4909 = vsel %vm1508, %v4866, 0
      %v4912 = vsel %vm1508, %v4867, 0
      %v4915 = vsel %vm1508, %v4868, 0
      %v4918 = vand.u32 %v4820, %v1560
      %4920 = vmatprep.subr.bf16.mxu0 0
      %4921 = vmatpush1.bf16.msra.mxu0 %v4918
      %4922 = vmatprep.subr.bf16.mxu0 0
      %4923 = vmatpush1.bf16.msra.mxu0 0
      %4924 = vmatprep.subr.bf16.mxu0 0
      %4925 = vmatpush1.bf16.msra.mxu0 0
      %4926 = vmatprep.subr.bf16.mxu0 0
      %4927 = vmatpush1.bf16.msra.mxu0 0
      %4928 = vmatprep.subr.bf16.mxu0 0
      %4929 = vmatpush1.bf16.msra.mxu0 0
      %4930 = vmatprep.subr.bf16.mxu0 0
      %4931 = vmatpush1.bf16.msra.mxu0 0
      %4932 = vmatprep.subr.bf16.mxu0 0
      %4933 = vmatpush1.bf16.msra.mxu0 0
      %4934 = vmatprep.subr.bf16.mxu0 0
      %4935 = vmatpush1.bf16.msra.mxu0 0
      %4936 = vmatprep.subr.bf16.mxu0 0
      %4937 = vmatpush1.bf16.msra.mxu0 0
      %4938 = vmatprep.subr.bf16.mxu0 0
      %4939 = vmatpush1.bf16.msra.mxu0 0
      %4940 = vmatprep.subr.bf16.mxu0 0
      %4941 = vmatpush1.bf16.msra.mxu0 0
      %4942 = vmatprep.subr.bf16.mxu0 0
      %4943 = vmatpush1.bf16.msra.mxu0 0
      %4944 = vmatprep.subr.bf16.mxu0 0
      %4945 = vmatpush1.bf16.msra.mxu0 0
      %4946 = vmatprep.subr.bf16.mxu0 0
      %4947 = vmatpush1.bf16.msra.mxu0 0
      %4948 = vmatprep.subr.bf16.mxu0 0
      %4949 = vmatpush1.bf16.msra.mxu0 0
      %4950 = vmatprep.subr.bf16.mxu0 0
      %4951 = vmatpush1.bf16.msra.mxu0 0
      %4952 = vmatprep.mubr.bf16.mxu0 0
      %4953 = vmatmul.mubr.bf16.gmra.mrb[0].mxu0 %v4870
      %v4954 = vpop.f32.mrb[0].mxu0
      %v4955 = vadd.f32 0.0, %v4954
      %v4956 = vpop.f32.mrb[0].mxu0
      %v4957 = vpop.f32.mrb[0].mxu0
      %v4958 = vadd.f32 0.0, %v4957
      %v4959 = vpop.f32.mrb[0].mxu0
      %4960 = vmatprep.mubr.bf16.mxu0 0
      %4961 = vmatmul.mubr.bf16.gmra.mrb[0].mxu0 %v4873
      %v4962 = vpop.f32.mrb[0].mxu0
      %v4963 = vadd.f32 0.0, %v4962
      %v4964 = vpop.f32.mrb[0].mxu0
      %v4965 = vpop.f32.mrb[0].mxu0
      %v4966 = vadd.f32 0.0, %v4965
      %v4967 = vpop.f32.mrb[0].mxu0
      %4968 = vmatprep.mubr.bf16.mxu0 0
      %4969 = vmatmul.mubr.bf16.gmra.mrb[0].mxu0 %v4876
      %v4970 = vpop.f32.mrb[0].mxu0
      %v4971 = vadd.f32 0.0, %v4970
      %v4972 = vpop.f32.mrb[0].mxu0
      %v4973 = vpop.f32.mrb[0].mxu0
      %v4974 = vadd.f32 0.0, %v4973
      %v4975 = vpop.f32.mrb[0].mxu0
      %4976 = vmatprep.mubr.bf16.mxu0 0
      %4977 = vmatmul.mubr.bf16.gmra.mrb[0].mxu0 %v4879
      %v4978 = vpop.f32.mrb[0].mxu0
      %v4979 = vadd.f32 0.0, %v4978
      %v4980 = vpop.f32.mrb[0].mxu0
      %v4981 = vpop.f32.mrb[0].mxu0
      %v4982 = vadd.f32 0.0, %v4981
      %v4983 = vpop.f32.mrb[0].mxu0
      %4984 = vmatprep.mubr.bf16.mxu0 0
      %4985 = vmatmul.mubr.bf16.gmra.mrb[0].mxu0 %v4882
      %v4986 = vpop.f32.mrb[0].mxu0
      %v4987 = vadd.f32 0.0, %v4986
      %v4988 = vpop.f32.mrb[0].mxu0
      %v4989 = vpop.f32.mrb[0].mxu0
      %v4990 = vadd.f32 0.0, %v4989
      %v4991 = vpop.f32.mrb[0].mxu0
      %4992 = vmatprep.mubr.bf16.mxu0 0
      %4993 = vmatmul.mubr.bf16.gmra.mrb[0].mxu0 %v4885
      %v4994 = vpop.f32.mrb[0].mxu0
      %v4995 = vadd.f32 0.0, %v4994
      %v4996 = vpop.f32.mrb[0].mxu0
      %v4997 = vpop.f32.mrb[0].mxu0
      %v4998 = vadd.f32 0.0, %v4997
      %v4999 = vpop.f32.mrb[0].mxu0
      %5000 = vmatprep.mubr.bf16.mxu0 0
      %5001 = vmatmul.mubr.bf16.gmra.mrb[0].mxu0 %v4888
      %v5002 = vpop.f32.mrb[0].mxu0
      %v5003 = vadd.f32 0.0, %v5002
      %v5004 = vpop.f32.mrb[0].mxu0
      %v5005 = vpop.f32.mrb[0].mxu0
      %v5006 = vadd.f32 0.0, %v5005
      %v5007 = vpop.f32.mrb[0].mxu0
      %5008 = vmatprep.mubr.bf16.mxu0 0
      %5009 = vmatmul.mubr.bf16.gmra.mrb[0].mxu0 %v4891
      %v5010 = vpop.f32.mrb[0].mxu0
      %v5011 = vadd.f32 0.0, %v5010
      %v5012 = vpop.f32.mrb[0].mxu0
      %v5013 = vpop.f32.mrb[0].mxu0
      %v5014 = vadd.f32 0.0, %v5013
      %v5015 = vpop.f32.mrb[0].mxu0
      %5016 = vmatprep.mubr.bf16.mxu0 0
      %5017 = vmatmul.mubr.bf16.gmra.mrb[0].mxu0 %v4894
      %v5018 = vpop.f32.mrb[0].mxu0
      %v5019 = vadd.f32 0.0, %v5018
      %v5020 = vpop.f32.mrb[0].mxu0
      %v5021 = vpop.f32.mrb[0].mxu0
      %v5022 = vadd.f32 0.0, %v5021
      %v5023 = vpop.f32.mrb[0].mxu0
      %5024 = vmatprep.mubr.bf16.mxu0 0
      %5025 = vmatmul.mubr.bf16.gmra.mrb[0].mxu0 %v4897
      %v5026 = vpop.f32.mrb[0].mxu0
      %v5027 = vadd.f32 0.0, %v5026
      %v5028 = vpop.f32.mrb[0].mxu0
      %v5029 = vpop.f32.mrb[0].mxu0
      %v5030 = vadd.f32 0.0, %v5029
      %v5031 = vpop.f32.mrb[0].mxu0
      %5032 = vmatprep.mubr.bf16.mxu0 0
      %5033 = vmatmul.mubr.bf16.gmra.mrb[0].mxu0 %v4900
      %v5034 = vpop.f32.mrb[0].mxu0
      %v5035 = vadd.f32 0.0, %v5034
      %v5036 = vpop.f32.mrb[0].mxu0
      %v5037 = vpop.f32.mrb[0].mxu0
      %v5038 = vadd.f32 0.0, %v5037
      %v5039 = vpop.f32.mrb[0].mxu0
      %5040 = vmatprep.mubr.bf16.mxu0 0
      %5041 = vmatmul.mubr.bf16.gmra.mrb[0].mxu0 %v4903
      %v5042 = vpop.f32.mrb[0].mxu0
      %v5043 = vadd.f32 0.0, %v5042
      %v5044 = vpop.f32.mrb[0].mxu0
      %v5045 = vpop.f32.mrb[0].mxu0
      %v5046 = vadd.f32 0.0, %v5045
      %v5047 = vpop.f32.mrb[0].mxu0
      %5048 = vmatprep.mubr.bf16.mxu0 0
      %5049 = vmatmul.mubr.bf16.gmra.mrb[0].mxu0 %v4906
      %v5050 = vpop.f32.mrb[0].mxu0
      %v5051 = vadd.f32 0.0, %v5050
      %v5052 = vpop.f32.mrb[0].mxu0
      %v5053 = vpop.f32.mrb[0].mxu0
      %v5054 = vadd.f32 0.0, %v5053
      %v5055 = vpop.f32.mrb[0].mxu0
      %5056 = vmatprep.mubr.bf16.mxu0 0
      %5057 = vmatmul.mubr.bf16.gmra.mrb[0].mxu0 %v4909
      %v5058 = vpop.f32.mrb[0].mxu0
      %v5059 = vadd.f32 0.0, %v5058
      %v5060 = vpop.f32.mrb[0].mxu0
      %v5061 = vpop.f32.mrb[0].mxu0
      %v5062 = vadd.f32 0.0, %v5061
      %v5063 = vpop.f32.mrb[0].mxu0
      %5064 = vmatprep.mubr.bf16.mxu0 0
      %5065 = vmatmul.mubr.bf16.gmra.mrb[0].mxu0 %v4912
      %v5066 = vpop.f32.mrb[0].mxu0
      %v5067 = vadd.f32 0.0, %v5066
      %v5068 = vpop.f32.mrb[0].mxu0
      %v5069 = vpop.f32.mrb[0].mxu0
      %v5070 = vadd.f32 0.0, %v5069
      %v5071 = vpop.f32.mrb[0].mxu0
      %5072 = vmatprep.mubr.bf16.mxu0 0
      %5073 = vmatmul.mubr.bf16.gmra.mrb[0].mxu0 %v4915
      %v5074 = vpop.f32.mrb[0].mxu0
      %v5075 = vadd.f32 0.0, %v5074
      %v5076 = vpop.f32.mrb[0].mxu0
      %v5077 = vpop.f32.mrb[0].mxu0
      %v5078 = vadd.f32 0.0, %v5077
      %v5079 = vpop.f32.mrb[0].mxu0
      %5080 = vdwg.mxu0
      %v5081 = vadd.f32 %v4355, %v4955
      %v5082 = vadd.f32 %v4356, %v4958
      %v5083 = vadd.f32 %v4357, %v4963
      %v5084 = vadd.f32 %v4358, %v4966
      %v5085 = vadd.f32 %v4359, %v4971
      %v5086 = vadd.f32 %v4360, %v4974
      %v5087 = vadd.f32 %v4361, %v4979
      %v5088 = vadd.f32 %v4362, %v4982
      %v5089 = vadd.f32 %v4363, %v4987
      %v5090 = vadd.f32 %v4364, %v4990
      %v5091 = vadd.f32 %v4365, %v4995
      %v5092 = vadd.f32 %v4366, %v4998
      %v5093 = vadd.f32 %v4367, %v5003
      %v5094 = vadd.f32 %v4368, %v5006
      %v5095 = vadd.f32 %v4369, %v5011
      %v5096 = vadd.f32 %v4370, %v5014
      %v5097 = vadd.f32 %v4371, %v5019
      %v5098 = vadd.f32 %v4372, %v5022
      %v5099 = vadd.f32 %v4373, %v5027
      %v5100 = vadd.f32 %v4374, %v5030
      %v5101 = vadd.f32 %v4375, %v5035
      %v5102 = vadd.f32 %v4376, %v5038
      %v5103 = vadd.f32 %v4377, %v5043
      %v5104 = vadd.f32 %v4378, %v5046
      %v5105 = vadd.f32 %v4379, %v5051
      %v5106 = vadd.f32 %v4380, %v5054
      %v5107 = vadd.f32 %v4381, %v5059
      %v5108 = vadd.f32 %v4382, %v5062
      %v5109 = vadd.f32 %v4383, %v5067
      %v5110 = vadd.f32 %v4384, %v5070
      %v5111 = vadd.f32 %v4385, %v5075
      %v5112 = vadd.f32 %v4386, %v5078
      %v5113 = vld [vmem:[%s4028] sm:$0xe]
      %v5114 = vld [vmem:[%s4028 + $0xc] sm:$0xe]
      %v5115 = vld [vmem:[%s4028 + $0x18] sm:$0xe]
      %v5116 = vld [vmem:[%s4028 + $0x24] sm:$0xe]
      %v5117 = vld [vmem:[%s4028 + $0x30] sm:$0xe]
      %v5118 = vld [vmem:[%s4028 + $0x3c] sm:$0xe]
      %v5119 = vld [vmem:[%s4028 + $0x48] sm:$0xe]
      %v5120 = vld [vmem:[%s4028 + $0x54] sm:$0xe]
      %v5121 = vld [vmem:[%s4028 + $0x60] sm:$0xe]
      %v5122 = vld [vmem:[%s4028 + $0x6c] sm:$0xe]
      %v5123 = vld [vmem:[%s4028 + $0x78] sm:$0xe]
      %v5124 = vld [vmem:[%s4028 + $0x84] sm:$0xe]
      %v5125 = vld [vmem:[%s4028 + $0x90] sm:$0xe]
      %v5126 = vld [vmem:[%s4028 + $0x9c] sm:$0xe]
      %v5127 = vld [vmem:[%s4028 + $0xa8] sm:$0xe]
      %v5128 = vld [vmem:[%s4028 + $0xb4] sm:$0xe]
      %v5177 = vrot.slane %v5113, 5
      %v5178 = vrot.slane %v5177, 4
      %v5179 = vrot.slane %v4388, 5
      %v5180 = vsel %vm2067, %v5178, %v5179
      %v5181 = vrot.slane %v5179, 4
      %v5182 = vrot.slane %v4389, 5
      %v5183 = vsel %vm2067, %v5181, %v5182
      %v5184 = vrot.slane %v5114, 5
      %v5185 = vrot.slane %v5184, 4
      %v5186 = vrot.slane %v4391, 5
      %v5187 = vsel %vm2067, %v5185, %v5186
      %v5188 = vrot.slane %v5186, 4
      %v5189 = vrot.slane %v4392, 5
      %v5190 = vsel %vm2067, %v5188, %v5189
      %v5191 = vrot.slane %v5115, 5
      %v5192 = vrot.slane %v5191, 4
      %v5193 = vrot.slane %v4394, 5
      %v5194 = vsel %vm2067, %v5192, %v5193
      %v5195 = vrot.slane %v5193, 4
      %v5196 = vrot.slane %v4395, 5
      %v5197 = vsel %vm2067, %v5195, %v5196
      %v5198 = vrot.slane %v5116, 5
      %v5199 = vrot.slane %v5198, 4
      %v5200 = vrot.slane %v4397, 5
      %v5201 = vsel %vm2067, %v5199, %v5200
      %v5202 = vrot.slane %v5200, 4
      %v5203 = vrot.slane %v4398, 5
      %v5204 = vsel %vm2067, %v5202, %v5203
      %v5205 = vrot.slane %v5117, 5
      %v5206 = vrot.slane %v5205, 4
      %v5207 = vrot.slane %v4400, 5
      %v5208 = vsel %vm2067, %v5206, %v5207
      %v5209 = vrot.slane %v5207, 4
      %v5210 = vrot.slane %v4401, 5
      %v5211 = vsel %vm2067, %v5209, %v5210
      %v5212 = vrot.slane %v5118, 5
      %v5213 = vrot.slane %v5212, 4
      %v5214 = vrot.slane %v4403, 5
      %v5215 = vsel %vm2067, %v5213, %v5214
      %v5216 = vrot.slane %v5214, 4
      %v5217 = vrot.slane %v4404, 5
      %v5218 = vsel %vm2067, %v5216, %v5217
      %v5219 = vrot.slane %v5119, 5
      %v5220 = vrot.slane %v5219, 4
      %v5221 = vrot.slane %v4406, 5
      %v5222 = vsel %vm2067, %v5220, %v5221
      %v5223 = vrot.slane %v5221, 4
      %v5224 = vrot.slane %v4407, 5
      %v5225 = vsel %vm2067, %v5223, %v5224
      %v5226 = vrot.slane %v5120, 5
      %v5227 = vrot.slane %v5226, 4
      %v5228 = vrot.slane %v4409, 5
      %v5229 = vsel %vm2067, %v5227, %v5228
      %v5230 = vrot.slane %v5228, 4
      %v5231 = vrot.slane %v4410, 5
      %v5232 = vsel %vm2067, %v5230, %v5231
      %v5233 = vrot.slane %v5121, 5
      %v5234 = vrot.slane %v5233, 4
      %v5235 = vrot.slane %v4412, 5
      %v5236 = vsel %vm2067, %v5234, %v5235
      %v5237 = vrot.slane %v5235, 4
      %v5238 = vrot.slane %v4413, 5
      %v5239 = vsel %vm2067, %v5237, %v5238
      %v5240 = vrot.slane %v5122, 5
      %v5241 = vrot.slane %v5240, 4
      %v5242 = vrot.slane %v4415, 5
      %v5243 = vsel %vm2067, %v5241, %v5242
      %v5244 = vrot.slane %v5242, 4
      %v5245 = vrot.slane %v4416, 5
      %v5246 = vsel %vm2067, %v5244, %v5245
      %v5247 = vrot.slane %v5123, 5
      %v5248 = vrot.slane %v5247, 4
      %v5249 = vrot.slane %v4418, 5
      %v5250 = vsel %vm2067, %v5248, %v5249
      %v5251 = vrot.slane %v5249, 4
      %v5252 = vrot.slane %v4419, 5
      %v5253 = vsel %vm2067, %v5251, %v5252
      %v5254 = vrot.slane %v5124, 5
      %v5255 = vrot.slane %v5254, 4
      %v5256 = vrot.slane %v4421, 5
      %v5257 = vsel %vm2067, %v5255, %v5256
      %v5258 = vrot.slane %v5256, 4
      %v5259 = vrot.slane %v4422, 5
      %v5260 = vsel %vm2067, %v5258, %v5259
      %v5261 = vrot.slane %v5125, 5
      %v5262 = vrot.slane %v5261, 4
      %v5263 = vrot.slane %v4424, 5
      %v5264 = vsel %vm2067, %v5262, %v5263
      %v5265 = vrot.slane %v5263, 4
      %v5266 = vrot.slane %v4425, 5
      %v5267 = vsel %vm2067, %v5265, %v5266
      %v5268 = vrot.slane %v5126, 5
      %v5269 = vrot.slane %v5268, 4
      %v5270 = vrot.slane %v4427, 5
      %v5271 = vsel %vm2067, %v5269, %v5270
      %v5272 = vrot.slane %v5270, 4
      %v5273 = vrot.slane %v4428, 5
      %v5274 = vsel %vm2067, %v5272, %v5273
      %v5275 = vrot.slane %v5127, 5
      %v5276 = vrot.slane %v5275, 4
      %v5277 = vrot.slane %v4430, 5
      %v5278 = vsel %vm2067, %v5276, %v5277
      %v5279 = vrot.slane %v5277, 4
      %v5280 = vrot.slane %v4431, 5
      %v5281 = vsel %vm2067, %v5279, %v5280
      %v5282 = vrot.slane %v5128, 5
      %v5283 = vrot.slane %v5282, 4
      %v5284 = vrot.slane %v4433, 5
      %v5285 = vsel %vm2067, %v5283, %v5284
      %v5286 = vrot.slane %v5284, 4
      %v5287 = vrot.slane %v4434, 5
      %v5288 = vsel %vm2067, %v5286, %v5287
      %s5289 = scalar_lea.vmem %s1, 16
      %v5290 = vld [vmem:[%s5289] sm:$0x3]
      %v5291 = vunpack.c.l.b16 %v5180
      %v5292 = vunpack.c.l.b16 %v5183
      %v5293 = vunpack.c.l.b16 %v5187
      %v5294 = vunpack.c.l.b16 %v5190
      %v5295 = vunpack.c.l.b16 %v5194
      %v5296 = vunpack.c.l.b16 %v5197
      %v5297 = vunpack.c.l.b16 %v5201
      %v5298 = vunpack.c.l.b16 %v5204
      %v5299 = vunpack.c.l.b16 %v5208
      %v5300 = vunpack.c.l.b16 %v5211
      %v5301 = vunpack.c.l.b16 %v5215
      %v5302 = vunpack.c.l.b16 %v5218
      %v5303 = vunpack.c.l.b16 %v5222
      %v5304 = vunpack.c.l.b16 %v5225
      %v5305 = vunpack.c.l.b16 %v5229
      %v5306 = vunpack.c.l.b16 %v5232
      %v5307 = vunpack.c.l.b16 %v5236
      %v5308 = vunpack.c.l.b16 %v5239
      %v5309 = vunpack.c.l.b16 %v5243
      %v5310 = vunpack.c.l.b16 %v5246
      %v5311 = vunpack.c.l.b16 %v5250
      %v5312 = vunpack.c.l.b16 %v5253
      %v5313 = vunpack.c.l.b16 %v5257
      %v5314 = vunpack.c.l.b16 %v5260
      %v5315 = vunpack.c.l.b16 %v5264
      %v5316 = vunpack.c.l.b16 %v5267
      %v5317 = vunpack.c.l.b16 %v5271
      %v5318 = vunpack.c.l.b16 %v5274
      %v5319 = vunpack.c.l.b16 %v5278
      %v5320 = vunpack.c.l.b16 %v5281
      %v5321 = vunpack.c.l.b16 %v5285
      %v5322 = vunpack.c.l.b16 %v5288
      %v5323 = vpack.c.b16 %v5292, %v5291
      %v5324 = vpack.c.b16 %v5294, %v5293
      %v5325 = vpack.c.b16 %v5296, %v5295
      %v5326 = vpack.c.b16 %v5298, %v5297
      %v5327 = vpack.c.b16 %v5300, %v5299
      %v5328 = vpack.c.b16 %v5302, %v5301
      %v5329 = vpack.c.b16 %v5304, %v5303
      %v5330 = vpack.c.b16 %v5306, %v5305
      %v5331 = vpack.c.b16 %v5308, %v5307
      %v5332 = vpack.c.b16 %v5310, %v5309
      %v5333 = vpack.c.b16 %v5312, %v5311
      %v5334 = vpack.c.b16 %v5314, %v5313
      %v5335 = vpack.c.b16 %v5316, %v5315
      %v5336 = vpack.c.b16 %v5318, %v5317
      %v5337 = vpack.c.b16 %v5320, %v5319
      %v5338 = vpack.c.b16 %v5322, %v5321
      %v5340 = vsel %vm1508, %v5323, 0
      %v5343 = vsel %vm1508, %v5324, 0
      %v5346 = vsel %vm1508, %v5325, 0
      %v5349 = vsel %vm1508, %v5326, 0
      %v5352 = vsel %vm1508, %v5327, 0
      %v5355 = vsel %vm1508, %v5328, 0
      %v5358 = vsel %vm1508, %v5329, 0
      %v5361 = vsel %vm1508, %v5330, 0
      %v5364 = vsel %vm1508, %v5331, 0
      %v5367 = vsel %vm1508, %v5332, 0
      %v5370 = vsel %vm1508, %v5333, 0
      %v5373 = vsel %vm1508, %v5334, 0
      %v5376 = vsel %vm1508, %v5335, 0
      %v5379 = vsel %vm1508, %v5336, 0
      %v5382 = vsel %vm1508, %v5337, 0
      %v5385 = vsel %vm1508, %v5338, 0
      %v5388 = vand.u32 %v5290, %v1560
      %5390 = vmatprep.subr.bf16.mxu0 0
      %5391 = vmatpush1.bf16.msra.mxu0 %v5388
      %5392 = vmatprep.subr.bf16.mxu0 0
      %5393 = vmatpush1.bf16.msra.mxu0 0
      %5394 = vmatprep.subr.bf16.mxu0 0
      %5395 = vmatpush1.bf16.msra.mxu0 0
      %5396 = vmatprep.subr.bf16.mxu0 0
      %5397 = vmatpush1.bf16.msra.mxu0 0
      %5398 = vmatprep.subr.bf16.mxu0 0
      %5399 = vmatpush1.bf16.msra.mxu0 0
      %5400 = vmatprep.subr.bf16.mxu0 0
      %5401 = vmatpush1.bf16.msra.mxu0 0
      %5402 = vmatprep.subr.bf16.mxu0 0
      %5403 = vmatpush1.bf16.msra.mxu0 0
      %5404 = vmatprep.subr.bf16.mxu0 0
      %5405 = vmatpush1.bf16.msra.mxu0 0
      %5406 = vmatprep.subr.bf16.mxu0 0
      %5407 = vmatpush1.bf16.msra.mxu0 0
      %5408 = vmatprep.subr.bf16.mxu0 0
      %5409 = vmatpush1.bf16.msra.mxu0 0
      %5410 = vmatprep.subr.bf16.mxu0 0
      %5411 = vmatpush1.bf16.msra.mxu0 0
      %5412 = vmatprep.subr.bf16.mxu0 0
      %5413 = vmatpush1.bf16.msra.mxu0 0
      %5414 = vmatprep.subr.bf16.mxu0 0
      %5415 = vmatpush1.bf16.msra.mxu0 0
      %5416 = vmatprep.subr.bf16.mxu0 0
      %5417 = vmatpush1.bf16.msra.mxu0 0
      %5418 = vmatprep.subr.bf16.mxu0 0
      %5419 = vmatpush1.bf16.msra.mxu0 0
      %5420 = vmatprep.subr.bf16.mxu0 0
      %5421 = vmatpush1.bf16.msra.mxu0 0
      %5422 = vmatprep.mubr.bf16.mxu0 0
      %5423 = vmatmul.mubr.bf16.gmra.mrb[0].mxu0 %v5340
      %v5424 = vpop.f32.mrb[0].mxu0
      %v5425 = vadd.f32 0.0, %v5424
      %v5426 = vpop.f32.mrb[0].mxu0
      %v5427 = vpop.f32.mrb[0].mxu0
      %v5428 = vadd.f32 0.0, %v5427
      %v5429 = vpop.f32.mrb[0].mxu0
      %5430 = vmatprep.mubr.bf16.mxu0 0
      %5431 = vmatmul.mubr.bf16.gmra.mrb[0].mxu0 %v5343
      %v5432 = vpop.f32.mrb[0].mxu0
      %v5433 = vadd.f32 0.0, %v5432
      %v5434 = vpop.f32.mrb[0].mxu0
      %v5435 = vpop.f32.mrb[0].mxu0
      %v5436 = vadd.f32 0.0, %v5435
      %v5437 = vpop.f32.mrb[0].mxu0
      %5438 = vmatprep.mubr.bf16.mxu0 0
      %5439 = vmatmul.mubr.bf16.gmra.mrb[0].mxu0 %v5346
      %v5440 = vpop.f32.mrb[0].mxu0
      %v5441 = vadd.f32 0.0, %v5440
      %v5442 = vpop.f32.mrb[0].mxu0
      %v5443 = vpop.f32.mrb[0].mxu0
      %v5444 = vadd.f32 0.0, %v5443
      %v5445 = vpop.f32.mrb[0].mxu0
      %5446 = vmatprep.mubr.bf16.mxu0 0
      %5447 = vmatmul.mubr.bf16.gmra.mrb[0].mxu0 %v5349
      %v5448 = vpop.f32.mrb[0].mxu0
      %v5449 = vadd.f32 0.0, %v5448
      %v5450 = vpop.f32.mrb[0].mxu0
      %v5451 = vpop.f32.mrb[0].mxu0
      %v5452 = vadd.f32 0.0, %v5451
      %v5453 = vpop.f32.mrb[0].mxu0
      %5454 = vmatprep.mubr.bf16.mxu0 0
      %5455 = vmatmul.mubr.bf16.gmra.mrb[0].mxu0 %v5352
      %v5456 = vpop.f32.mrb[0].mxu0
      %v5457 = vadd.f32 0.0, %v5456
      %v5458 = vpop.f32.mrb[0].mxu0
      %v5459 = vpop.f32.mrb[0].mxu0
      %v5460 = vadd.f32 0.0, %v5459
      %v5461 = vpop.f32.mrb[0].mxu0
      %5462 = vmatprep.mubr.bf16.mxu0 0
      %5463 = vmatmul.mubr.bf16.gmra.mrb[0].mxu0 %v5355
      %v5464 = vpop.f32.mrb[0].mxu0
      %v5465 = vadd.f32 0.0, %v5464
      %v5466 = vpop.f32.mrb[0].mxu0
      %v5467 = vpop.f32.mrb[0].mxu0
      %v5468 = vadd.f32 0.0, %v5467
      %v5469 = vpop.f32.mrb[0].mxu0
      %5470 = vmatprep.mubr.bf16.mxu0 0
      %5471 = vmatmul.mubr.bf16.gmra.mrb[0].mxu0 %v5358
      %v5472 = vpop.f32.mrb[0].mxu0
      %v5473 = vadd.f32 0.0, %v5472
      %v5474 = vpop.f32.mrb[0].mxu0
      %v5475 = vpop.f32.mrb[0].mxu0
      %v5476 = vadd.f32 0.0, %v5475
      %v5477 = vpop.f32.mrb[0].mxu0
      %5478 = vmatprep.mubr.bf16.mxu0 0
      %5479 = vmatmul.mubr.bf16.gmra.mrb[0].mxu0 %v5361
      %v5480 = vpop.f32.mrb[0].mxu0
      %v5481 = vadd.f32 0.0, %v5480
      %v5482 = vpop.f32.mrb[0].mxu0
      %v5483 = vpop.f32.mrb[0].mxu0
      %v5484 = vadd.f32 0.0, %v5483
      %v5485 = vpop.f32.mrb[0].mxu0
      %5486 = vmatprep.mubr.bf16.mxu0 0
      %5487 = vmatmul.mubr.bf16.gmra.mrb[0].mxu0 %v5364
      %v5488 = vpop.f32.mrb[0].mxu0
      %v5489 = vadd.f32 0.0, %v5488
      %v5490 = vpop.f32.mrb[0].mxu0
      %v5491 = vpop.f32.mrb[0].mxu0
      %v5492 = vadd.f32 0.0, %v5491
      %v5493 = vpop.f32.mrb[0].mxu0
      %5494 = vmatprep.mubr.bf16.mxu0 0
      %5495 = vmatmul.mubr.bf16.gmra.mrb[0].mxu0 %v5367
      %v5496 = vpop.f32.mrb[0].mxu0
      %v5497 = vadd.f32 0.0, %v5496
      %v5498 = vpop.f32.mrb[0].mxu0
      %v5499 = vpop.f32.mrb[0].mxu0
      %v5500 = vadd.f32 0.0, %v5499
      %v5501 = vpop.f32.mrb[0].mxu0
      %5502 = vmatprep.mubr.bf16.mxu0 0
      %5503 = vmatmul.mubr.bf16.gmra.mrb[0].mxu0 %v5370
      %v5504 = vpop.f32.mrb[0].mxu0
      %v5505 = vadd.f32 0.0, %v5504
      %v5506 = vpop.f32.mrb[0].mxu0
      %v5507 = vpop.f32.mrb[0].mxu0
      %v5508 = vadd.f32 0.0, %v5507
      %v5509 = vpop.f32.mrb[0].mxu0
      %5510 = vmatprep.mubr.bf16.mxu0 0
      %5511 = vmatmul.mubr.bf16.gmra.mrb[0].mxu0 %v5373
      %v5512 = vpop.f32.mrb[0].mxu0
      %v5513 = vadd.f32 0.0, %v5512
      %v5514 = vpop.f32.mrb[0].mxu0
      %v5515 = vpop.f32.mrb[0].mxu0
      %v5516 = vadd.f32 0.0, %v5515
      %v5517 = vpop.f32.mrb[0].mxu0
      %5518 = vmatprep.mubr.bf16.mxu0 0
      %5519 = vmatmul.mubr.bf16.gmra.mrb[0].mxu0 %v5376
      %v5520 = vpop.f32.mrb[0].mxu0
      %v5521 = vadd.f32 0.0, %v5520
      %v5522 = vpop.f32.mrb[0].mxu0
      %v5523 = vpop.f32.mrb[0].mxu0
      %v5524 = vadd.f32 0.0, %v5523
      %v5525 = vpop.f32.mrb[0].mxu0
      %5526 = vmatprep.mubr.bf16.mxu0 0
      %5527 = vmatmul.mubr.bf16.gmra.mrb[0].mxu0 %v5379
      %v5528 = vpop.f32.mrb[0].mxu0
      %v5529 = vadd.f32 0.0, %v5528
      %v5530 = vpop.f32.mrb[0].mxu0
      %v5531 = vpop.f32.mrb[0].mxu0
      %v5532 = vadd.f32 0.0, %v5531
      %v5533 = vpop.f32.mrb[0].mxu0
      %5534 = vmatprep.mubr.bf16.mxu0 0
      %5535 = vmatmul.mubr.bf16.gmra.mrb[0].mxu0 %v5382
      %v5536 = vpop.f32.mrb[0].mxu0
      %v5537 = vadd.f32 0.0, %v5536
      %v5538 = vpop.f32.mrb[0].mxu0
      %v5539 = vpop.f32.mrb[0].mxu0
      %v5540 = vadd.f32 0.0, %v5539
      %v5541 = vpop.f32.mrb[0].mxu0
      %5542 = vmatprep.mubr.bf16.mxu0 0
      %5543 = vmatmul.mubr.bf16.gmra.mrb[0].mxu0 %v5385
      %v5544 = vpop.f32.mrb[0].mxu0
      %v5545 = vadd.f32 0.0, %v5544
      %v5546 = vpop.f32.mrb[0].mxu0
      %v5547 = vpop.f32.mrb[0].mxu0
      %v5548 = vadd.f32 0.0, %v5547
      %v5549 = vpop.f32.mrb[0].mxu0
      %5550 = vdwg.mxu0
      %v5551 = vadd.f32 %v5081, %v5425
      %v5552 = vadd.f32 %v5082, %v5428
      %v5553 = vadd.f32 %v5083, %v5433
      %v5554 = vadd.f32 %v5084, %v5436
      %v5555 = vadd.f32 %v5085, %v5441
      %v5556 = vadd.f32 %v5086, %v5444
      %v5557 = vadd.f32 %v5087, %v5449
      %v5558 = vadd.f32 %v5088, %v5452
      %v5559 = vadd.f32 %v5089, %v5457
      %v5560 = vadd.f32 %v5090, %v5460
      %v5561 = vadd.f32 %v5091, %v5465
      %v5562 = vadd.f32 %v5092, %v5468
      %v5563 = vadd.f32 %v5093, %v5473
      %v5564 = vadd.f32 %v5094, %v5476
      %v5565 = vadd.f32 %v5095, %v5481
      %v5566 = vadd.f32 %v5096, %v5484
      %v5567 = vadd.f32 %v5097, %v5489
      %v5568 = vadd.f32 %v5098, %v5492
      %v5569 = vadd.f32 %v5099, %v5497
      %v5570 = vadd.f32 %v5100, %v5500
      %v5571 = vadd.f32 %v5101, %v5505
      %v5572 = vadd.f32 %v5102, %v5508
      %v5573 = vadd.f32 %v5103, %v5513
      %v5574 = vadd.f32 %v5104, %v5516
      %v5575 = vadd.f32 %v5105, %v5521
      %v5576 = vadd.f32 %v5106, %v5524
      %v5577 = vadd.f32 %v5107, %v5529
      %v5578 = vadd.f32 %v5108, %v5532
      %v5579 = vadd.f32 %v5109, %v5537
      %v5580 = vadd.f32 %v5110, %v5540
      %v5581 = vadd.f32 %v5111, %v5545
      %v5582 = vadd.f32 %v5112, %v5548
      %v5584 = vlaneseq
      %v5585 = vshrl.u32 %v5584, 7
      %v5586 = vsub.s32 0, %v5585
      %v5587 = vrot.slane %v1021, %v5586
      %v5589 = vadd.f32 %v5551, %v5587
      %v5590 = vadd.f32 %v5552, %v5587
      %v5591 = vadd.f32 %v5553, %v5587
      %v5592 = vadd.f32 %v5554, %v5587
      %v5593 = vadd.f32 %v5555, %v5587
      %v5594 = vadd.f32 %v5556, %v5587
      %v5595 = vadd.f32 %v5557, %v5587
      %v5596 = vadd.f32 %v5558, %v5587
      %v5597 = vadd.f32 %v5559, %v5587
      %v5598 = vadd.f32 %v5560, %v5587
      %v5599 = vadd.f32 %v5561, %v5587
      %v5600 = vadd.f32 %v5562, %v5587
      %v5601 = vadd.f32 %v5563, %v5587
      %v5602 = vadd.f32 %v5564, %v5587
      %v5603 = vadd.f32 %v5565, %v5587
      %v5604 = vadd.f32 %v5566, %v5587
      %v5605 = vadd.f32 %v5567, %v5587
      %v5606 = vadd.f32 %v5568, %v5587
      %v5607 = vadd.f32 %v5569, %v5587
      %v5608 = vadd.f32 %v5570, %v5587
      %v5609 = vadd.f32 %v5571, %v5587
      %v5610 = vadd.f32 %v5572, %v5587
      %v5611 = vadd.f32 %v5573, %v5587
      %v5612 = vadd.f32 %v5574, %v5587
      %v5613 = vadd.f32 %v5575, %v5587
      %v5614 = vadd.f32 %v5576, %v5587
      %v5615 = vadd.f32 %v5577, %v5587
      %v5616 = vadd.f32 %v5578, %v5587
      %v5617 = vadd.f32 %v5579, %v5587
      %v5618 = vadd.f32 %v5580, %v5587
      %v5619 = vadd.f32 %v5581, %v5587
      %v5620 = vadd.f32 %v5582, %v5587
      %v5621 = vmax.f32 %v5589, 0.0
      %v5622 = vmax.f32 %v5590, 0.0
      %v5623 = vmax.f32 %v5591, 0.0
      %v5624 = vmax.f32 %v5592, 0.0
      %v5625 = vmax.f32 %v5593, 0.0
      %v5626 = vmax.f32 %v5594, 0.0
      %v5627 = vmax.f32 %v5595, 0.0
      %v5628 = vmax.f32 %v5596, 0.0
      %v5629 = vmax.f32 %v5597, 0.0
      %v5630 = vmax.f32 %v5598, 0.0
      %v5631 = vmax.f32 %v5599, 0.0
      %v5632 = vmax.f32 %v5600, 0.0
      %v5633 = vmax.f32 %v5601, 0.0
      %v5634 = vmax.f32 %v5602, 0.0
      %v5635 = vmax.f32 %v5603, 0.0
      %v5636 = vmax.f32 %v5604, 0.0
      %v5637 = vmax.f32 %v5605, 0.0
      %v5638 = vmax.f32 %v5606, 0.0
      %v5639 = vmax.f32 %v5607, 0.0
      %v5640 = vmax.f32 %v5608, 0.0
      %v5641 = vmax.f32 %v5609, 0.0
      %v5642 = vmax.f32 %v5610, 0.0
      %v5643 = vmax.f32 %v5611, 0.0
      %v5644 = vmax.f32 %v5612, 0.0
      %v5645 = vmax.f32 %v5613, 0.0
      %v5646 = vmax.f32 %v5614, 0.0
      %v5647 = vmax.f32 %v5615, 0.0
      %v5648 = vmax.f32 %v5616, 0.0
      %v5649 = vmax.f32 %v5617, 0.0
      %v5650 = vmax.f32 %v5618, 0.0
      %v5651 = vmax.f32 %v5619, 0.0
      %v5652 = vmax.f32 %v5620, 0.0
      %v5685 = vcombine.high %v5621, %v5621
      %v5687 = vunpack.c.l.s4 1983009808
      %v5688 = vunpack.c.0.s8 %v5687
      %v5689 = vlaneseq
      %v5690 = vshrl.u32 %v5689, 7
      %v5691 = vsub.s32 %v5688, %v5690
      %v5692 = vrot.slane %v5621, %v5691
      %v5694 = vunpack.c.l.s4 1983009808
      %v5695 = vunpack.c.0.s8 %v5694
      %v5696 = vlaneseq
      %v5697 = vshrl.u32 %v5696, 7
      %v5698 = vsub.s32 %v5695, %v5697
      %v5699 = vrot.slane %v5685, %v5698
      %v5700 = vcombine.high %v5692, %v5692
      %v5701 = vcombine.high %v5699, %v5699
      %v5702 = vcombine.high %v5622, %v5622
      %v5704 = vunpack.c.l.s4 1983009808
      %v5705 = vunpack.c.0.s8 %v5704
      %v5706 = vlaneseq
      %v5707 = vshrl.u32 %v5706, 7
      %v5708 = vsub.s32 %v5705, %v5707
      %v5709 = vrot.slane %v5622, %v5708
      %v5711 = vunpack.c.l.s4 1983009808
      %v5712 = vunpack.c.0.s8 %v5711
      %v5713 = vlaneseq
      %v5714 = vshrl.u32 %v5713, 7
      %v5715 = vsub.s32 %v5712, %v5714
      %v5716 = vrot.slane %v5702, %v5715
      %v5717 = vcombine.high %v5709, %v5709
      %v5718 = vcombine.high %v5716, %v5716
      %v5719 = vcombine.high %v5623, %v5623
      %v5721 = vunpack.c.l.s4 1983009808
      %v5722 = vunpack.c.0.s8 %v5721
      %v5723 = vlaneseq
      %v5724 = vshrl.u32 %v5723, 7
      %v5725 = vsub.s32 %v5722, %v5724
      %v5726 = vrot.slane %v5623, %v5725
      %v5728 = vunpack.c.l.s4 1983009808
      %v5729 = vunpack.c.0.s8 %v5728
      %v5730 = vlaneseq
      %v5731 = vshrl.u32 %v5730, 7
      %v5732 = vsub.s32 %v5729, %v5731
      %v5733 = vrot.slane %v5719, %v5732
      %v5734 = vcombine.high %v5726, %v5726
      %v5735 = vcombine.high %v5733, %v5733
      %v5736 = vcombine.high %v5624, %v5624
      %v5738 = vunpack.c.l.s4 1983009808
      %v5739 = vunpack.c.0.s8 %v5738
      %v5740 = vlaneseq
      %v5741 = vshrl.u32 %v5740, 7
      %v5742 = vsub.s32 %v5739, %v5741
      %v5743 = vrot.slane %v5624, %v5742
      %v5745 = vunpack.c.l.s4 1983009808
      %v5746 = vunpack.c.0.s8 %v5745
      %v5747 = vlaneseq
      %v5748 = vshrl.u32 %v5747, 7
      %v5749 = vsub.s32 %v5746, %v5748
      %v5750 = vrot.slane %v5736, %v5749
      %v5751 = vcombine.high %v5743, %v5743
      %v5752 = vcombine.high %v5750, %v5750
      %v5753 = vcombine.high %v5625, %v5625
      %v5755 = vunpack.c.l.s4 1983009808
      %v5756 = vunpack.c.0.s8 %v5755
      %v5757 = vlaneseq
      %v5758 = vshrl.u32 %v5757, 7
      %v5759 = vsub.s32 %v5756, %v5758
      %v5760 = vrot.slane %v5625, %v5759
      %v5762 = vunpack.c.l.s4 1983009808
      %v5763 = vunpack.c.0.s8 %v5762
      %v5764 = vlaneseq
      %v5765 = vshrl.u32 %v5764, 7
      %v5766 = vsub.s32 %v5763, %v5765
      %v5767 = vrot.slane %v5753, %v5766
      %v5768 = vcombine.high %v5760, %v5760
      %v5769 = vcombine.high %v5767, %v5767
      %v5770 = vcombine.high %v5626, %v5626
      %v5772 = vunpack.c.l.s4 1983009808
      %v5773 = vunpack.c.0.s8 %v5772
      %v5774 = vlaneseq
      %v5775 = vshrl.u32 %v5774, 7
      %v5776 = vsub.s32 %v5773, %v5775
      %v5777 = vrot.slane %v5626, %v5776
      %v5779 = vunpack.c.l.s4 1983009808
      %v5780 = vunpack.c.0.s8 %v5779
      %v5781 = vlaneseq
      %v5782 = vshrl.u32 %v5781, 7
      %v5783 = vsub.s32 %v5780, %v5782
      %v5784 = vrot.slane %v5770, %v5783
      %v5785 = vcombine.high %v5777, %v5777
      %v5786 = vcombine.high %v5784, %v5784
      %v5787 = vcombine.high %v5627, %v5627
      %v5789 = vunpack.c.l.s4 1983009808
      %v5790 = vunpack.c.0.s8 %v5789
      %v5791 = vlaneseq
      %v5792 = vshrl.u32 %v5791, 7
      %v5793 = vsub.s32 %v5790, %v5792
      %v5794 = vrot.slane %v5627, %v5793
      %v5796 = vunpack.c.l.s4 1983009808
      %v5797 = vunpack.c.0.s8 %v5796
      %v5798 = vlaneseq
      %v5799 = vshrl.u32 %v5798, 7
      %v5800 = vsub.s32 %v5797, %v5799
      %v5801 = vrot.slane %v5787, %v5800
      %v5802 = vcombine.high %v5794, %v5794
      %v5803 = vcombine.high %v5801, %v5801
      %v5804 = vcombine.high %v5628, %v5628
      %v5806 = vunpack.c.l.s4 1983009808
      %v5807 = vunpack.c.0.s8 %v5806
      %v5808 = vlaneseq
      %v5809 = vshrl.u32 %v5808, 7
      %v5810 = vsub.s32 %v5807, %v5809
      %v5811 = vrot.slane %v5628, %v5810
      %v5813 = vunpack.c.l.s4 1983009808
      %v5814 = vunpack.c.0.s8 %v5813
      %v5815 = vlaneseq
      %v5816 = vshrl.u32 %v5815, 7
      %v5817 = vsub.s32 %v5814, %v5816
      %v5818 = vrot.slane %v5804, %v5817
      %v5819 = vcombine.high %v5811, %v5811
      %v5820 = vcombine.high %v5818, %v5818
      %v5821 = vcombine.high %v5629, %v5629
      %v5823 = vunpack.c.l.s4 1983009808
      %v5824 = vunpack.c.0.s8 %v5823
      %v5825 = vlaneseq
      %v5826 = vshrl.u32 %v5825, 7
      %v5827 = vsub.s32 %v5824, %v5826
      %v5828 = vrot.slane %v5629, %v5827
      %v5830 = vunpack.c.l.s4 1983009808
      %v5831 = vunpack.c.0.s8 %v5830
      %v5832 = vlaneseq
      %v5833 = vshrl.u32 %v5832, 7
      %v5834 = vsub.s32 %v5831, %v5833
      %v5835 = vrot.slane %v5821, %v5834
      %v5836 = vcombine.high %v5828, %v5828
      %v5837 = vcombine.high %v5835, %v5835
      %v5838 = vcombine.high %v5630, %v5630
      %v5840 = vunpack.c.l.s4 1983009808
      %v5841 = vunpack.c.0.s8 %v5840
      %v5842 = vlaneseq
      %v5843 = vshrl.u32 %v5842, 7
      %v5844 = vsub.s32 %v5841, %v5843
      %v5845 = vrot.slane %v5630, %v5844
      %v5847 = vunpack.c.l.s4 1983009808
      %v5848 = vunpack.c.0.s8 %v5847
      %v5849 = vlaneseq
      %v5850 = vshrl.u32 %v5849, 7
      %v5851 = vsub.s32 %v5848, %v5850
      %v5852 = vrot.slane %v5838, %v5851
      %v5853 = vcombine.high %v5845, %v5845
      %v5854 = vcombine.high %v5852, %v5852
      %v5855 = vcombine.high %v5631, %v5631
      %v5857 = vunpack.c.l.s4 1983009808
      %v5858 = vunpack.c.0.s8 %v5857
      %v5859 = vlaneseq
      %v5860 = vshrl.u32 %v5859, 7
      %v5861 = vsub.s32 %v5858, %v5860
      %v5862 = vrot.slane %v5631, %v5861
      %v5864 = vunpack.c.l.s4 1983009808
      %v5865 = vunpack.c.0.s8 %v5864
      %v5866 = vlaneseq
      %v5867 = vshrl.u32 %v5866, 7
      %v5868 = vsub.s32 %v5865, %v5867
      %v5869 = vrot.slane %v5855, %v5868
      %v5870 = vcombine.high %v5862, %v5862
      %v5871 = vcombine.high %v5869, %v5869
      %v5872 = vcombine.high %v5632, %v5632
      %v5874 = vunpack.c.l.s4 1983009808
      %v5875 = vunpack.c.0.s8 %v5874
      %v5876 = vlaneseq
      %v5877 = vshrl.u32 %v5876, 7
      %v5878 = vsub.s32 %v5875, %v5877
      %v5879 = vrot.slane %v5632, %v5878
      %v5881 = vunpack.c.l.s4 1983009808
      %v5882 = vunpack.c.0.s8 %v5881
      %v5883 = vlaneseq
      %v5884 = vshrl.u32 %v5883, 7
      %v5885 = vsub.s32 %v5882, %v5884
      %v5886 = vrot.slane %v5872, %v5885
      %v5887 = vcombine.high %v5879, %v5879
      %v5888 = vcombine.high %v5886, %v5886
      %v5889 = vcombine.high %v5633, %v5633
      %v5891 = vunpack.c.l.s4 1983009808
      %v5892 = vunpack.c.0.s8 %v5891
      %v5893 = vlaneseq
      %v5894 = vshrl.u32 %v5893, 7
      %v5895 = vsub.s32 %v5892, %v5894
      %v5896 = vrot.slane %v5633, %v5895
      %v5898 = vunpack.c.l.s4 1983009808
      %v5899 = vunpack.c.0.s8 %v5898
      %v5900 = vlaneseq
      %v5901 = vshrl.u32 %v5900, 7
      %v5902 = vsub.s32 %v5899, %v5901
      %v5903 = vrot.slane %v5889, %v5902
      %v5904 = vcombine.high %v5896, %v5896
      %v5905 = vcombine.high %v5903, %v5903
      %v5906 = vcombine.high %v5634, %v5634
      %v5908 = vunpack.c.l.s4 1983009808
      %v5909 = vunpack.c.0.s8 %v5908
      %v5910 = vlaneseq
      %v5911 = vshrl.u32 %v5910, 7
      %v5912 = vsub.s32 %v5909, %v5911
      %v5913 = vrot.slane %v5634, %v5912
      %v5915 = vunpack.c.l.s4 1983009808
      %v5916 = vunpack.c.0.s8 %v5915
      %v5917 = vlaneseq
      %v5918 = vshrl.u32 %v5917, 7
      %v5919 = vsub.s32 %v5916, %v5918
      %v5920 = vrot.slane %v5906, %v5919
      %v5921 = vcombine.high %v5913, %v5913
      %v5922 = vcombine.high %v5920, %v5920
      %v5923 = vcombine.high %v5635, %v5635
      %v5925 = vunpack.c.l.s4 1983009808
      %v5926 = vunpack.c.0.s8 %v5925
      %v5927 = vlaneseq
      %v5928 = vshrl.u32 %v5927, 7
      %v5929 = vsub.s32 %v5926, %v5928
      %v5930 = vrot.slane %v5635, %v5929
      %v5932 = vunpack.c.l.s4 1983009808
      %v5933 = vunpack.c.0.s8 %v5932
      %v5934 = vlaneseq
      %v5935 = vshrl.u32 %v5934, 7
      %v5936 = vsub.s32 %v5933, %v5935
      %v5937 = vrot.slane %v5923, %v5936
      %v5938 = vcombine.high %v5930, %v5930
      %v5939 = vcombine.high %v5937, %v5937
      %v5940 = vcombine.high %v5636, %v5636
      %v5942 = vunpack.c.l.s4 1983009808
      %v5943 = vunpack.c.0.s8 %v5942
      %v5944 = vlaneseq
      %v5945 = vshrl.u32 %v5944, 7
      %v5946 = vsub.s32 %v5943, %v5945
      %v5947 = vrot.slane %v5636, %v5946
      %v5949 = vunpack.c.l.s4 1983009808
      %v5950 = vunpack.c.0.s8 %v5949
      %v5951 = vlaneseq
      %v5952 = vshrl.u32 %v5951, 7
      %v5953 = vsub.s32 %v5950, %v5952
      %v5954 = vrot.slane %v5940, %v5953
      %v5955 = vcombine.high %v5947, %v5947
      %v5956 = vcombine.high %v5954, %v5954
      %v5957 = vcombine.high %v5637, %v5637
      %v5959 = vunpack.c.l.s4 1983009808
      %v5960 = vunpack.c.0.s8 %v5959
      %v5961 = vlaneseq
      %v5962 = vshrl.u32 %v5961, 7
      %v5963 = vsub.s32 %v5960, %v5962
      %v5964 = vrot.slane %v5637, %v5963
      %v5966 = vunpack.c.l.s4 1983009808
      %v5967 = vunpack.c.0.s8 %v5966
      %v5968 = vlaneseq
      %v5969 = vshrl.u32 %v5968, 7
      %v5970 = vsub.s32 %v5967, %v5969
      %v5971 = vrot.slane %v5957, %v5970
      %v5972 = vcombine.high %v5964, %v5964
      %v5973 = vcombine.high %v5971, %v5971
      %v5974 = vcombine.high %v5638, %v5638
      %v5976 = vunpack.c.l.s4 1983009808
      %v5977 = vunpack.c.0.s8 %v5976
      %v5978 = vlaneseq
      %v5979 = vshrl.u32 %v5978, 7
      %v5980 = vsub.s32 %v5977, %v5979
      %v5981 = vrot.slane %v5638, %v5980
      %v5983 = vunpack.c.l.s4 1983009808
      %v5984 = vunpack.c.0.s8 %v5983
      %v5985 = vlaneseq
      %v5986 = vshrl.u32 %v5985, 7
      %v5987 = vsub.s32 %v5984, %v5986
      %v5988 = vrot.slane %v5974, %v5987
      %v5989 = vcombine.high %v5981, %v5981
      %v5990 = vcombine.high %v5988, %v5988
      %v5991 = vcombine.high %v5639, %v5639
      %v5993 = vunpack.c.l.s4 1983009808
      %v5994 = vunpack.c.0.s8 %v5993
      %v5995 = vlaneseq
      %v5996 = vshrl.u32 %v5995, 7
      %v5997 = vsub.s32 %v5994, %v5996
      %v5998 = vrot.slane %v5639, %v5997
      %v6000 = vunpack.c.l.s4 1983009808
      %v6001 = vunpack.c.0.s8 %v6000
      %v6002 = vlaneseq
      %v6003 = vshrl.u32 %v6002, 7
      %v6004 = vsub.s32 %v6001, %v6003
      %v6005 = vrot.slane %v5991, %v6004
      %v6006 = vcombine.high %v5998, %v5998
      %v6007 = vcombine.high %v6005, %v6005
      %v6008 = vcombine.high %v5640, %v5640
      %v6010 = vunpack.c.l.s4 1983009808
      %v6011 = vunpack.c.0.s8 %v6010
      %v6012 = vlaneseq
      %v6013 = vshrl.u32 %v6012, 7
      %v6014 = vsub.s32 %v6011, %v6013
      %v6015 = vrot.slane %v5640, %v6014
      %v6017 = vunpack.c.l.s4 1983009808
      %v6018 = vunpack.c.0.s8 %v6017
      %v6019 = vlaneseq
      %v6020 = vshrl.u32 %v6019, 7
      %v6021 = vsub.s32 %v6018, %v6020
      %v6022 = vrot.slane %v6008, %v6021
      %v6023 = vcombine.high %v6015, %v6015
      %v6024 = vcombine.high %v6022, %v6022
      %v6025 = vcombine.high %v5641, %v5641
      %v6027 = vunpack.c.l.s4 1983009808
      %v6028 = vunpack.c.0.s8 %v6027
      %v6029 = vlaneseq
      %v6030 = vshrl.u32 %v6029, 7
      %v6031 = vsub.s32 %v6028, %v6030
      %v6032 = vrot.slane %v5641, %v6031
      %v6034 = vunpack.c.l.s4 1983009808
      %v6035 = vunpack.c.0.s8 %v6034
      %v6036 = vlaneseq
      %v6037 = vshrl.u32 %v6036, 7
      %v6038 = vsub.s32 %v6035, %v6037
      %v6039 = vrot.slane %v6025, %v6038
      %v6040 = vcombine.high %v6032, %v6032
      %v6041 = vcombine.high %v6039, %v6039
      %v6042 = vcombine.high %v5642, %v5642
      %v6044 = vunpack.c.l.s4 1983009808
      %v6045 = vunpack.c.0.s8 %v6044
      %v6046 = vlaneseq
      %v6047 = vshrl.u32 %v6046, 7
      %v6048 = vsub.s32 %v6045, %v6047
      %v6049 = vrot.slane %v5642, %v6048
      %v6051 = vunpack.c.l.s4 1983009808
      %v6052 = vunpack.c.0.s8 %v6051
      %v6053 = vlaneseq
      %v6054 = vshrl.u32 %v6053, 7
      %v6055 = vsub.s32 %v6052, %v6054
      %v6056 = vrot.slane %v6042, %v6055
      %v6057 = vcombine.high %v6049, %v6049
      %v6058 = vcombine.high %v6056, %v6056
      %v6059 = vcombine.high %v5643, %v5643
      %v6061 = vunpack.c.l.s4 1983009808
      %v6062 = vunpack.c.0.s8 %v6061
      %v6063 = vlaneseq
      %v6064 = vshrl.u32 %v6063, 7
      %v6065 = vsub.s32 %v6062, %v6064
      %v6066 = vrot.slane %v5643, %v6065
      %v6068 = vunpack.c.l.s4 1983009808
      %v6069 = vunpack.c.0.s8 %v6068
      %v6070 = vlaneseq
      %v6071 = vshrl.u32 %v6070, 7
      %v6072 = vsub.s32 %v6069, %v6071
      %v6073 = vrot.slane %v6059, %v6072
      %v6074 = vcombine.high %v6066, %v6066
      %v6075 = vcombine.high %v6073, %v6073
      %v6076 = vcombine.high %v5644, %v5644
      %v6078 = vunpack.c.l.s4 1983009808
      %v6079 = vunpack.c.0.s8 %v6078
      %v6080 = vlaneseq
      %v6081 = vshrl.u32 %v6080, 7
      %v6082 = vsub.s32 %v6079, %v6081
      %v6083 = vrot.slane %v5644, %v6082
      %v6085 = vunpack.c.l.s4 1983009808
      %v6086 = vunpack.c.0.s8 %v6085
      %v6087 = vlaneseq
      %v6088 = vshrl.u32 %v6087, 7
      %v6089 = vsub.s32 %v6086, %v6088
      %v6090 = vrot.slane %v6076, %v6089
      %v6091 = vcombine.high %v6083, %v6083
      %v6092 = vcombine.high %v6090, %v6090
      %v6093 = vcombine.high %v5645, %v5645
      %v6095 = vunpack.c.l.s4 1983009808
      %v6096 = vunpack.c.0.s8 %v6095
      %v6097 = vlaneseq
      %v6098 = vshrl.u32 %v6097, 7
      %v6099 = vsub.s32 %v6096, %v6098
      %v6100 = vrot.slane %v5645, %v6099
      %v6102 = vunpack.c.l.s4 1983009808
      %v6103 = vunpack.c.0.s8 %v6102
      %v6104 = vlaneseq
      %v6105 = vshrl.u32 %v6104, 7
      %v6106 = vsub.s32 %v6103, %v6105
      %v6107 = vrot.slane %v6093, %v6106
      %v6108 = vcombine.high %v6100, %v6100
      %v6109 = vcombine.high %v6107, %v6107
      %v6110 = vcombine.high %v5646, %v5646
      %v6112 = vunpack.c.l.s4 1983009808
      %v6113 = vunpack.c.0.s8 %v6112
      %v6114 = vlaneseq
      %v6115 = vshrl.u32 %v6114, 7
      %v6116 = vsub.s32 %v6113, %v6115
      %v6117 = vrot.slane %v5646, %v6116
      %v6119 = vunpack.c.l.s4 1983009808
      %v6120 = vunpack.c.0.s8 %v6119
      %v6121 = vlaneseq
      %v6122 = vshrl.u32 %v6121, 7
      %v6123 = vsub.s32 %v6120, %v6122
      %v6124 = vrot.slane %v6110, %v6123
      %v6125 = vcombine.high %v6117, %v6117
      %v6126 = vcombine.high %v6124, %v6124
      %v6127 = vcombine.high %v5647, %v5647
      %v6129 = vunpack.c.l.s4 1983009808
      %v6130 = vunpack.c.0.s8 %v6129
      %v6131 = vlaneseq
      %v6132 = vshrl.u32 %v6131, 7
      %v6133 = vsub.s32 %v6130, %v6132
      %v6134 = vrot.slane %v5647, %v6133
      %v6136 = vunpack.c.l.s4 1983009808
      %v6137 = vunpack.c.0.s8 %v6136
      %v6138 = vlaneseq
      %v6139 = vshrl.u32 %v6138, 7
      %v6140 = vsub.s32 %v6137, %v6139
      %v6141 = vrot.slane %v6127, %v6140
      %v6142 = vcombine.high %v6134, %v6134
      %v6143 = vcombine.high %v6141, %v6141
      %v6144 = vcombine.high %v5648, %v5648
      %v6146 = vunpack.c.l.s4 1983009808
      %v6147 = vunpack.c.0.s8 %v6146
      %v6148 = vlaneseq
      %v6149 = vshrl.u32 %v6148, 7
      %v6150 = vsub.s32 %v6147, %v6149
      %v6151 = vrot.slane %v5648, %v6150
      %v6153 = vunpack.c.l.s4 1983009808
      %v6154 = vunpack.c.0.s8 %v6153
      %v6155 = vlaneseq
      %v6156 = vshrl.u32 %v6155, 7
      %v6157 = vsub.s32 %v6154, %v6156
      %v6158 = vrot.slane %v6144, %v6157
      %v6159 = vcombine.high %v6151, %v6151
      %v6160 = vcombine.high %v6158, %v6158
      %v6161 = vcombine.high %v5649, %v5649
      %v6163 = vunpack.c.l.s4 1983009808
      %v6164 = vunpack.c.0.s8 %v6163
      %v6165 = vlaneseq
      %v6166 = vshrl.u32 %v6165, 7
      %v6167 = vsub.s32 %v6164, %v6166
      %v6168 = vrot.slane %v5649, %v6167
      %v6170 = vunpack.c.l.s4 1983009808
      %v6171 = vunpack.c.0.s8 %v6170
      %v6172 = vlaneseq
      %v6173 = vshrl.u32 %v6172, 7
      %v6174 = vsub.s32 %v6171, %v6173
      %v6175 = vrot.slane %v6161, %v6174
      %v6176 = vcombine.high %v6168, %v6168
      %v6177 = vcombine.high %v6175, %v6175
      %v6178 = vcombine.high %v5650, %v5650
      %v6180 = vunpack.c.l.s4 1983009808
      %v6181 = vunpack.c.0.s8 %v6180
      %v6182 = vlaneseq
      %v6183 = vshrl.u32 %v6182, 7
      %v6184 = vsub.s32 %v6181, %v6183
      %v6185 = vrot.slane %v5650, %v6184
      %v6187 = vunpack.c.l.s4 1983009808
      %v6188 = vunpack.c.0.s8 %v6187
      %v6189 = vlaneseq
      %v6190 = vshrl.u32 %v6189, 7
      %v6191 = vsub.s32 %v6188, %v6190
      %v6192 = vrot.slane %v6178, %v6191
      %v6193 = vcombine.high %v6185, %v6185
      %v6194 = vcombine.high %v6192, %v6192
      %v6195 = vcombine.high %v5651, %v5651
      %v6197 = vunpack.c.l.s4 1983009808
      %v6198 = vunpack.c.0.s8 %v6197
      %v6199 = vlaneseq
      %v6200 = vshrl.u32 %v6199, 7
      %v6201 = vsub.s32 %v6198, %v6200
      %v6202 = vrot.slane %v5651, %v6201
      %v6204 = vunpack.c.l.s4 1983009808
      %v6205 = vunpack.c.0.s8 %v6204
      %v6206 = vlaneseq
      %v6207 = vshrl.u32 %v6206, 7
      %v6208 = vsub.s32 %v6205, %v6207
      %v6209 = vrot.slane %v6195, %v6208
      %v6210 = vcombine.high %v6202, %v6202
      %v6211 = vcombine.high %v6209, %v6209
      %v6212 = vcombine.high %v5652, %v5652
      %v6214 = vunpack.c.l.s4 1983009808
      %v6215 = vunpack.c.0.s8 %v6214
      %v6216 = vlaneseq
      %v6217 = vshrl.u32 %v6216, 7
      %v6218 = vsub.s32 %v6215, %v6217
      %v6219 = vrot.slane %v5652, %v6218
      %v6221 = vunpack.c.l.s4 1983009808
      %v6222 = vunpack.c.0.s8 %v6221
      %v6223 = vlaneseq
      %v6224 = vshrl.u32 %v6223, 7
      %v6225 = vsub.s32 %v6222, %v6224
      %v6226 = vrot.slane %v6212, %v6225
      %v6227 = vcombine.high %v6219, %v6219
      %v6228 = vcombine.high %v6226, %v6226
      %v6357 = vrot.slane %v5692, 7
      %v6358 = vrot.slane %v6357, 2
      %v6359 = vrot.slane %v5700, 7
      %v6360 = vrot.slane %v6359, 2
      %v6361 = vrot.slane %v5699, 7
      %v6362 = vrot.slane %v6361, 2
      %v6363 = vrot.slane %v5701, 7
      %v6364 = vrot.slane %v6363, 2
      %v6365 = vrot.slane %v5709, 7
      %v6366 = vrot.slane %v6365, 2
      %v6367 = vrot.slane %v5717, 7
      %v6368 = vrot.slane %v6367, 2
      %v6369 = vrot.slane %v5716, 7
      %v6370 = vrot.slane %v6369, 2
      %v6371 = vrot.slane %v5718, 7
      %v6372 = vrot.slane %v6371, 2
      %v6373 = vrot.slane %v5726, 7
      %v6374 = vrot.slane %v6373, 2
      %v6375 = vrot.slane %v5734, 7
      %v6376 = vrot.slane %v6375, 2
      %v6377 = vrot.slane %v5733, 7
      %v6378 = vrot.slane %v6377, 2
      %v6379 = vrot.slane %v5735, 7
      %v6380 = vrot.slane %v6379, 2
      %v6381 = vrot.slane %v5743, 7
      %v6382 = vrot.slane %v6381, 2
      %v6383 = vrot.slane %v5751, 7
      %v6384 = vrot.slane %v6383, 2
      %v6385 = vrot.slane %v5750, 7
      %v6386 = vrot.slane %v6385, 2
      %v6387 = vrot.slane %v5752, 7
      %v6388 = vrot.slane %v6387, 2
      %v6389 = vrot.slane %v5760, 7
      %v6390 = vrot.slane %v6389, 2
      %v6391 = vrot.slane %v5768, 7
      %v6392 = vrot.slane %v6391, 2
      %v6393 = vrot.slane %v5767, 7
      %v6394 = vrot.slane %v6393, 2
      %v6395 = vrot.slane %v5769, 7
      %v6396 = vrot.slane %v6395, 2
      %v6397 = vrot.slane %v5777, 7
      %v6398 = vrot.slane %v6397, 2
      %v6399 = vrot.slane %v5785, 7
      %v6400 = vrot.slane %v6399, 2
      %v6401 = vrot.slane %v5784, 7
      %v6402 = vrot.slane %v6401, 2
      %v6403 = vrot.slane %v5786, 7
      %v6404 = vrot.slane %v6403, 2
      %v6405 = vrot.slane %v5794, 7
      %v6406 = vrot.slane %v6405, 2
      %v6407 = vrot.slane %v5802, 7
      %v6408 = vrot.slane %v6407, 2
      %v6409 = vrot.slane %v5801, 7
      %v6410 = vrot.slane %v6409, 2
      %v6411 = vrot.slane %v5803, 7
      %v6412 = vrot.slane %v6411, 2
      %v6413 = vrot.slane %v5811, 7
      %v6414 = vrot.slane %v6413, 2
      %v6415 = vrot.slane %v5819, 7
      %v6416 = vrot.slane %v6415, 2
      %v6417 = vrot.slane %v5818, 7
      %v6418 = vrot.slane %v6417, 2
      %v6419 = vrot.slane %v5820, 7
      %v6420 = vrot.slane %v6419, 2
      %v6421 = vrot.slane %v5828, 7
      %v6422 = vrot.slane %v6421, 2
      %v6423 = vrot.slane %v5836, 7
      %v6424 = vrot.slane %v6423, 2
      %v6425 = vrot.slane %v5835, 7
      %v6426 = vrot.slane %v6425, 2
      %v6427 = vrot.slane %v5837, 7
      %v6428 = vrot.slane %v6427, 2
      %v6429 = vrot.slane %v5845, 7
      %v6430 = vrot.slane %v6429, 2
      %v6431 = vrot.slane %v5853, 7
      %v6432 = vrot.slane %v6431, 2
      %v6433 = vrot.slane %v5852, 7
      %v6434 = vrot.slane %v6433, 2
      %v6435 = vrot.slane %v5854, 7
      %v6436 = vrot.slane %v6435, 2
      %v6437 = vrot.slane %v5862, 7
      %v6438 = vrot.slane %v6437, 2
      %v6439 = vrot.slane %v5870, 7
      %v6440 = vrot.slane %v6439, 2
      %v6441 = vrot.slane %v5869, 7
      %v6442 = vrot.slane %v6441, 2
      %v6443 = vrot.slane %v5871, 7
      %v6444 = vrot.slane %v6443, 2
      %v6445 = vrot.slane %v5879, 7
      %v6446 = vrot.slane %v6445, 2
      %v6447 = vrot.slane %v5887, 7
      %v6448 = vrot.slane %v6447, 2
      %v6449 = vrot.slane %v5886, 7
      %v6450 = vrot.slane %v6449, 2
      %v6451 = vrot.slane %v5888, 7
      %v6452 = vrot.slane %v6451, 2
      %v6453 = vrot.slane %v5896, 7
      %v6454 = vrot.slane %v6453, 2
      %v6455 = vrot.slane %v5904, 7
      %v6456 = vrot.slane %v6455, 2
      %v6457 = vrot.slane %v5903, 7
      %v6458 = vrot.slane %v6457, 2
      %v6459 = vrot.slane %v5905, 7
      %v6460 = vrot.slane %v6459, 2
      %v6461 = vrot.slane %v5913, 7
      %v6462 = vrot.slane %v6461, 2
      %v6463 = vrot.slane %v5921, 7
      %v6464 = vrot.slane %v6463, 2
      %v6465 = vrot.slane %v5920, 7
      %v6466 = vrot.slane %v6465, 2
      %v6467 = vrot.slane %v5922, 7
      %v6468 = vrot.slane %v6467, 2
      %v6469 = vrot.slane %v5930, 7
      %v6470 = vrot.slane %v6469, 2
      %v6471 = vrot.slane %v5938, 7
      %v6472 = vrot.slane %v6471, 2
      %v6473 = vrot.slane %v5937, 7
      %v6474 = vrot.slane %v6473, 2
      %v6475 = vrot.slane %v5939, 7
      %v6476 = vrot.slane %v6475, 2
      %v6477 = vrot.slane %v5947, 7
      %v6478 = vrot.slane %v6477, 2
      %v6479 = vrot.slane %v5955, 7
      %v6480 = vrot.slane %v6479, 2
      %v6481 = vrot.slane %v5954, 7
      %v6482 = vrot.slane %v6481, 2
      %v6483 = vrot.slane %v5956, 7
      %v6484 = vrot.slane %v6483, 2
      %v6485 = vrot.slane %v5964, 7
      %v6486 = vrot.slane %v6485, 2
      %v6487 = vrot.slane %v5972, 7
      %v6488 = vrot.slane %v6487, 2
      %v6489 = vrot.slane %v5971, 7
      %v6490 = vrot.slane %v6489, 2
      %v6491 = vrot.slane %v5973, 7
      %v6492 = vrot.slane %v6491, 2
      %v6493 = vrot.slane %v5981, 7
      %v6494 = vrot.slane %v6493, 2
      %v6495 = vrot.slane %v5989, 7
      %v6496 = vrot.slane %v6495, 2
      %v6497 = vrot.slane %v5988, 7
      %v6498 = vrot.slane %v6497, 2
      %v6499 = vrot.slane %v5990, 7
      %v6500 = vrot.slane %v6499, 2
      %v6501 = vrot.slane %v5998, 7
      %v6502 = vrot.slane %v6501, 2
      %v6503 = vrot.slane %v6006, 7
      %v6504 = vrot.slane %v6503, 2
      %v6505 = vrot.slane %v6005, 7
      %v6506 = vrot.slane %v6505, 2
      %v6507 = vrot.slane %v6007, 7
      %v6508 = vrot.slane %v6507, 2
      %v6509 = vrot.slane %v6015, 7
      %v6510 = vrot.slane %v6509, 2
      %v6511 = vrot.slane %v6023, 7
      %v6512 = vrot.slane %v6511, 2
      %v6513 = vrot.slane %v6022, 7
      %v6514 = vrot.slane %v6513, 2
      %v6515 = vrot.slane %v6024, 7
      %v6516 = vrot.slane %v6515, 2
      %v6517 = vrot.slane %v6032, 7
      %v6518 = vrot.slane %v6517, 2
      %v6519 = vrot.slane %v6040, 7
      %v6520 = vrot.slane %v6519, 2
      %v6521 = vrot.slane %v6039, 7
      %v6522 = vrot.slane %v6521, 2
      %v6523 = vrot.slane %v6041, 7
      %v6524 = vrot.slane %v6523, 2
      %v6525 = vrot.slane %v6049, 7
      %v6526 = vrot.slane %v6525, 2
      %v6527 = vrot.slane %v6057, 7
      %v6528 = vrot.slane %v6527, 2
      %v6529 = vrot.slane %v6056, 7
      %v6530 = vrot.slane %v6529, 2
      %v6531 = vrot.slane %v6058, 7
      %v6532 = vrot.slane %v6531, 2
      %v6533 = vrot.slane %v6066, 7
      %v6534 = vrot.slane %v6533, 2
      %v6535 = vrot.slane %v6074, 7
      %v6536 = vrot.slane %v6535, 2
      %v6537 = vrot.slane %v6073, 7
      %v6538 = vrot.slane %v6537, 2
      %v6539 = vrot.slane %v6075, 7
      %v6540 = vrot.slane %v6539, 2
      %v6541 = vrot.slane %v6083, 7
      %v6542 = vrot.slane %v6541, 2
      %v6543 = vrot.slane %v6091, 7
      %v6544 = vrot.slane %v6543, 2
      %v6545 = vrot.slane %v6090, 7
      %v6546 = vrot.slane %v6545, 2
      %v6547 = vrot.slane %v6092, 7
      %v6548 = vrot.slane %v6547, 2
      %v6549 = vrot.slane %v6100, 7
      %v6550 = vrot.slane %v6549, 2
      %v6551 = vrot.slane %v6108, 7
      %v6552 = vrot.slane %v6551, 2
      %v6553 = vrot.slane %v6107, 7
      %v6554 = vrot.slane %v6553, 2
      %v6555 = vrot.slane %v6109, 7
      %v6556 = vrot.slane %v6555, 2
      %v6557 = vrot.slane %v6117, 7
      %v6558 = vrot.slane %v6557, 2
      %v6559 = vrot.slane %v6125, 7
      %v6560 = vrot.slane %v6559, 2
      %v6561 = vrot.slane %v6124, 7
      %v6562 = vrot.slane %v6561, 2
      %v6563 = vrot.slane %v6126, 7
      %v6564 = vrot.slane %v6563, 2
      %v6565 = vrot.slane %v6134, 7
      %v6566 = vrot.slane %v6565, 2
      %v6567 = vrot.slane %v6142, 7
      %v6568 = vrot.slane %v6567, 2
      %v6569 = vrot.slane %v6141, 7
      %v6570 = vrot.slane %v6569, 2
      %v6571 = vrot.slane %v6143, 7
      %v6572 = vrot.slane %v6571, 2
      %v6573 = vrot.slane %v6151, 7
      %v6574 = vrot.slane %v6573, 2
      %v6575 = vrot.slane %v6159, 7
      %v6576 = vrot.slane %v6575, 2
      %v6577 = vrot.slane %v6158, 7
      %v6578 = vrot.slane %v6577, 2
      %v6579 = vrot.slane %v6160, 7
      %v6580 = vrot.slane %v6579, 2
      %v6581 = vrot.slane %v6168, 7
      %v6582 = vrot.slane %v6581, 2
      %v6583 = vrot.slane %v6176, 7
      %v6584 = vrot.slane %v6583, 2
      %v6585 = vrot.slane %v6175, 7
      %v6586 = vrot.slane %v6585, 2
      %v6587 = vrot.slane %v6177, 7
      %v6588 = vrot.slane %v6587, 2
      %v6589 = vrot.slane %v6185, 7
      %v6590 = vrot.slane %v6589, 2
      %v6591 = vrot.slane %v6193, 7
      %v6592 = vrot.slane %v6591, 2
      %v6593 = vrot.slane %v6192, 7
      %v6594 = vrot.slane %v6593, 2
      %v6595 = vrot.slane %v6194, 7
      %v6596 = vrot.slane %v6595, 2
      %v6597 = vrot.slane %v6202, 7
      %v6598 = vrot.slane %v6597, 2
      %v6599 = vrot.slane %v6210, 7
      %v6600 = vrot.slane %v6599, 2
      %v6601 = vrot.slane %v6209, 7
      %v6602 = vrot.slane %v6601, 2
      %v6603 = vrot.slane %v6211, 7
      %v6604 = vrot.slane %v6603, 2
      %v6605 = vrot.slane %v6219, 7
      %v6606 = vrot.slane %v6605, 2
      %v6607 = vrot.slane %v6227, 7
      %v6608 = vrot.slane %v6607, 2
      %v6609 = vrot.slane %v6226, 7
      %v6610 = vrot.slane %v6609, 2
      %v6611 = vrot.slane %v6228, 7
      %v6612 = vrot.slane %v6611, 2
      %v6741 = vmax.f32 %v5692, %v6358
      %v6742 = vmax.f32 %v5700, %v6360
      %v6743 = vmax.f32 %v5699, %v6362
      %v6744 = vmax.f32 %v5701, %v6364
      %v6745 = vmax.f32 %v5709, %v6366
      %v6746 = vmax.f32 %v5717, %v6368
      %v6747 = vmax.f32 %v5716, %v6370
      %v6748 = vmax.f32 %v5718, %v6372
      %v6749 = vmax.f32 %v5726, %v6374
      %v6750 = vmax.f32 %v5734, %v6376
      %v6751 = vmax.f32 %v5733, %v6378
      %v6752 = vmax.f32 %v5735, %v6380
      %v6753 = vmax.f32 %v5743, %v6382
      %v6754 = vmax.f32 %v5751, %v6384
      %v6755 = vmax.f32 %v5750, %v6386
      %v6756 = vmax.f32 %v5752, %v6388
      %v6757 = vmax.f32 %v5760, %v6390
      %v6758 = vmax.f32 %v5768, %v6392
      %v6759 = vmax.f32 %v5767, %v6394
      %v6760 = vmax.f32 %v5769, %v6396
      %v6761 = vmax.f32 %v5777, %v6398
      %v6762 = vmax.f32 %v5785, %v6400
      %v6763 = vmax.f32 %v5784, %v6402
      %v6764 = vmax.f32 %v5786, %v6404
      %v6765 = vmax.f32 %v5794, %v6406
      %v6766 = vmax.f32 %v5802, %v6408
      %v6767 = vmax.f32 %v5801, %v6410
      %v6768 = vmax.f32 %v5803, %v6412
      %v6769 = vmax.f32 %v5811, %v6414
      %v6770 = vmax.f32 %v5819, %v6416
      %v6771 = vmax.f32 %v5818, %v6418
      %v6772 = vmax.f32 %v5820, %v6420
      %v6773 = vmax.f32 %v5828, %v6422
      %v6774 = vmax.f32 %v5836, %v6424
      %v6775 = vmax.f32 %v5835, %v6426
      %v6776 = vmax.f32 %v5837, %v6428
      %v6777 = vmax.f32 %v5845, %v6430
      %v6778 = vmax.f32 %v5853, %v6432
      %v6779 = vmax.f32 %v5852, %v6434
      %v6780 = vmax.f32 %v5854, %v6436
      %v6781 = vmax.f32 %v5862, %v6438
      %v6782 = vmax.f32 %v5870, %v6440
      %v6783 = vmax.f32 %v5869, %v6442
      %v6784 = vmax.f32 %v5871, %v6444
      %v6785 = vmax.f32 %v5879, %v6446
      %v6786 = vmax.f32 %v5887, %v6448
      %v6787 = vmax.f32 %v5886, %v6450
      %v6788 = vmax.f32 %v5888, %v6452
      %v6789 = vmax.f32 %v5896, %v6454
      %v6790 = vmax.f32 %v5904, %v6456
      %v6791 = vmax.f32 %v5903, %v6458
      %v6792 = vmax.f32 %v5905, %v6460
      %v6793 = vmax.f32 %v5913, %v6462
      %v6794 = vmax.f32 %v5921, %v6464
      %v6795 = vmax.f32 %v5920, %v6466
      %v6796 = vmax.f32 %v5922, %v6468
      %v6797 = vmax.f32 %v5930, %v6470
      %v6798 = vmax.f32 %v5938, %v6472
      %v6799 = vmax.f32 %v5937, %v6474
      %v6800 = vmax.f32 %v5939, %v6476
      %v6801 = vmax.f32 %v5947, %v6478
      %v6802 = vmax.f32 %v5955, %v6480
      %v6803 = vmax.f32 %v5954, %v6482
      %v6804 = vmax.f32 %v5956, %v6484
      %v6805 = vmax.f32 %v5964, %v6486
      %v6806 = vmax.f32 %v5972, %v6488
      %v6807 = vmax.f32 %v5971, %v6490
      %v6808 = vmax.f32 %v5973, %v6492
      %v6809 = vmax.f32 %v5981, %v6494
      %v6810 = vmax.f32 %v5989, %v6496
      %v6811 = vmax.f32 %v5988, %v6498
      %v6812 = vmax.f32 %v5990, %v6500
      %v6813 = vmax.f32 %v5998, %v6502
      %v6814 = vmax.f32 %v6006, %v6504
      %v6815 = vmax.f32 %v6005, %v6506
      %v6816 = vmax.f32 %v6007, %v6508
      %v6817 = vmax.f32 %v6015, %v6510
      %v6818 = vmax.f32 %v6023, %v6512
      %v6819 = vmax.f32 %v6022, %v6514
      %v6820 = vmax.f32 %v6024, %v6516
      %v6821 = vmax.f32 %v6032, %v6518
      %v6822 = vmax.f32 %v6040, %v6520
      %v6823 = vmax.f32 %v6039, %v6522
      %v6824 = vmax.f32 %v6041, %v6524
      %v6825 = vmax.f32 %v6049, %v6526
      %v6826 = vmax.f32 %v6057, %v6528
      %v6827 = vmax.f32 %v6056, %v6530
      %v6828 = vmax.f32 %v6058, %v6532
      %v6829 = vmax.f32 %v6066, %v6534
      %v6830 = vmax.f32 %v6074, %v6536
      %v6831 = vmax.f32 %v6073, %v6538
      %v6832 = vmax.f32 %v6075, %v6540
      %v6833 = vmax.f32 %v6083, %v6542
      %v6834 = vmax.f32 %v6091, %v6544
      %v6835 = vmax.f32 %v6090, %v6546
      %v6836 = vmax.f32 %v6092, %v6548
      %v6837 = vmax.f32 %v6100, %v6550
      %v6838 = vmax.f32 %v6108, %v6552
      %v6839 = vmax.f32 %v6107, %v6554
      %v6840 = vmax.f32 %v6109, %v6556
      %v6841 = vmax.f32 %v6117, %v6558
      %v6842 = vmax.f32 %v6125, %v6560
      %v6843 = vmax.f32 %v6124, %v6562
      %v6844 = vmax.f32 %v6126, %v6564
      %v6845 = vmax.f32 %v6134, %v6566
      %v6846 = vmax.f32 %v6142, %v6568
      %v6847 = vmax.f32 %v6141, %v6570
      %v6848 = vmax.f32 %v6143, %v6572
      %v6849 = vmax.f32 %v6151, %v6574
      %v6850 = vmax.f32 %v6159, %v6576
      %v6851 = vmax.f32 %v6158, %v6578
      %v6852 = vmax.f32 %v6160, %v6580
      %v6853 = vmax.f32 %v6168, %v6582
      %v6854 = vmax.f32 %v6176, %v6584
      %v6855 = vmax.f32 %v6175, %v6586
      %v6856 = vmax.f32 %v6177, %v6588
      %v6857 = vmax.f32 %v6185, %v6590
      %v6858 = vmax.f32 %v6193, %v6592
      %v6859 = vmax.f32 %v6192, %v6594
      %v6860 = vmax.f32 %v6194, %v6596
      %v6861 = vmax.f32 %v6202, %v6598
      %v6862 = vmax.f32 %v6210, %v6600
      %v6863 = vmax.f32 %v6209, %v6602
      %v6864 = vmax.f32 %v6211, %v6604
      %v6865 = vmax.f32 %v6219, %v6606
      %v6866 = vmax.f32 %v6227, %v6608
      %v6867 = vmax.f32 %v6226, %v6610
      %v6868 = vmax.f32 %v6228, %v6612
      %v6869 = vmax.f32 %v6741, %v6749
      %v6870 = vmax.f32 %v6742, %v6750
      %v6871 = vmax.f32 %v6743, %v6751
      %v6872 = vmax.f32 %v6744, %v6752
      %v6873 = vmax.f32 %v6745, %v6753
      %v6874 = vmax.f32 %v6746, %v6754
      %v6875 = vmax.f32 %v6747, %v6755
      %v6876 = vmax.f32 %v6748, %v6756
      %v6877 = vmax.f32 %v6757, %v6765
      %v6878 = vmax.f32 %v6758, %v6766
      %v6879 = vmax.f32 %v6759, %v6767
      %v6880 = vmax.f32 %v6760, %v6768
      %v6881 = vmax.f32 %v6761, %v6769
      %v6882 = vmax.f32 %v6762, %v6770
      %v6883 = vmax.f32 %v6763, %v6771
      %v6884 = vmax.f32 %v6764, %v6772
      %v6885 = vmax.f32 %v6773, %v6781
      %v6886 = vmax.f32 %v6774, %v6782
      %v6887 = vmax.f32 %v6775, %v6783
      %v6888 = vmax.f32 %v6776, %v6784
      %v6889 = vmax.f32 %v6777, %v6785
      %v6890 = vmax.f32 %v6778, %v6786
      %v6891 = vmax.f32 %v6779, %v6787
      %v6892 = vmax.f32 %v6780, %v6788
      %v6893 = vmax.f32 %v6789, %v6797
      %v6894 = vmax.f32 %v6790, %v6798
      %v6895 = vmax.f32 %v6791, %v6799
      %v6896 = vmax.f32 %v6792, %v6800
      %v6897 = vmax.f32 %v6793, %v6801
      %v6898 = vmax.f32 %v6794, %v6802
      %v6899 = vmax.f32 %v6795, %v6803
      %v6900 = vmax.f32 %v6796, %v6804
      %v6901 = vmax.f32 %v6805, %v6813
      %v6902 = vmax.f32 %v6806, %v6814
      %v6903 = vmax.f32 %v6807, %v6815
      %v6904 = vmax.f32 %v6808, %v6816
      %v6905 = vmax.f32 %v6809, %v6817
      %v6906 = vmax.f32 %v6810, %v6818
      %v6907 = vmax.f32 %v6811, %v6819
      %v6908 = vmax.f32 %v6812, %v6820
      %v6909 = vmax.f32 %v6821, %v6829
      %v6910 = vmax.f32 %v6822, %v6830
      %v6911 = vmax.f32 %v6823, %v6831
      %v6912 = vmax.f32 %v6824, %v6832
      %v6913 = vmax.f32 %v6825, %v6833
      %v6914 = vmax.f32 %v6826, %v6834
      %v6915 = vmax.f32 %v6827, %v6835
      %v6916 = vmax.f32 %v6828, %v6836
      %v6917 = vmax.f32 %v6837, %v6845
      %v6918 = vmax.f32 %v6838, %v6846
      %v6919 = vmax.f32 %v6839, %v6847
      %v6920 = vmax.f32 %v6840, %v6848
      %v6921 = vmax.f32 %v6841, %v6849
      %v6922 = vmax.f32 %v6842, %v6850
      %v6923 = vmax.f32 %v6843, %v6851
      %v6924 = vmax.f32 %v6844, %v6852
      %v6925 = vmax.f32 %v6853, %v6861
      %v6926 = vmax.f32 %v6854, %v6862
      %v6927 = vmax.f32 %v6855, %v6863
      %v6928 = vmax.f32 %v6856, %v6864
      %v6929 = vmax.f32 %v6857, %v6865
      %v6930 = vmax.f32 %v6858, %v6866
      %v6931 = vmax.f32 %v6859, %v6867
      %v6932 = vmax.f32 %v6860, %v6868
      %vm6933 = vcmask 125952
      %6934 = vst.msk [vmem:[#allocation3] sm:$0xf] %vm6933, 0
      %vm6935 = vcmask 122880
      %6936 = vst.msk [vmem:[#allocation3 + $0x4] sm:$0x1] %vm6935, 0
      %s6937 = scalar_lea.vmem [#allocation3], 72
      %6938 = vst.msk [vmem:[%s6937] sm:$0xf] %vm6933, 0
      %6939 = vst.msk [vmem:[%s6937 + $0x4] sm:$0x1] %vm6935, 0
      %vm6940 = vcmask 122880
      %vm6941 = vmand %vm6940, %vm344
      %v6942 = vld [vmem:[#allocation3] sm:$0x1]
      %v6943 = vsel %vm6941, 0, %v6942
      %6944 = vst [vmem:[#allocation3] sm:$0x1] %v6943
      %v6945 = vld [vmem:[#allocation3 + $0x8] sm:$0x1]
      %v6946 = vsel %vm6941, 0, %v6945
      %6947 = vst [vmem:[#allocation3 + $0x8] sm:$0x1] %v6946
      %v6948 = vld [vmem:[#allocation3 + $0x10] sm:$0x1]
      %v6949 = vsel %vm6941, 0, %v6948
      %6950 = vst [vmem:[#allocation3 + $0x10] sm:$0x1] %v6949
      %v6951 = vld [vmem:[#allocation3 + $0x18] sm:$0x1]
      %v6952 = vsel %vm6941, 0, %v6951
      %6953 = vst [vmem:[#allocation3 + $0x18] sm:$0x1] %v6952
      %v6954 = vld [vmem:[#allocation3 + $0x20] sm:$0x1]
      %v6955 = vsel %vm6941, 0, %v6954
      %6956 = vst [vmem:[#allocation3 + $0x20] sm:$0x1] %v6955
      %v6957 = vld [vmem:[#allocation3 + $0x28] sm:$0x1]
      %v6958 = vsel %vm6941, 0, %v6957
      %6959 = vst [vmem:[#allocation3 + $0x28] sm:$0x1] %v6958
      %v6960 = vld [vmem:[#allocation3 + $0x30] sm:$0x1]
      %v6961 = vsel %vm6941, 0, %v6960
      %6962 = vst [vmem:[#allocation3 + $0x30] sm:$0x1] %v6961
      %v6963 = vld [vmem:[#allocation3 + $0x38] sm:$0x1]
      %v6964 = vsel %vm6941, 0, %v6963
      %6965 = vst [vmem:[#allocation3 + $0x38] sm:$0x1] %v6964
      %v6966 = vld [vmem:[#allocation3 + $0x40] sm:$0x1]
      %v6967 = vsel %vm6941, 0, %v6966
      %6968 = vst [vmem:[#allocation3 + $0x40] sm:$0x1] %v6967
      %v6969 = vld [vmem:[#allocation3 + $0x48] sm:$0x1]
      %v6970 = vsel %vm6941, 0, %v6969
      %6971 = vst [vmem:[#allocation3 + $0x48] sm:$0x1] %v6970
      %vm6972 = vmand %vm6940, %vm400
      %v6973 = vld [vmem:[#allocation3 + $0x4] sm:$0x1]
      %v6974 = vsel %vm6972, 0, %v6973
      %6975 = vst [vmem:[#allocation3 + $0x4] sm:$0x1] %v6974
      %v6976 = vld [vmem:[#allocation3 + $0xc] sm:$0x1]
      %v6977 = vsel %vm6972, 0, %v6976
      %6978 = vst [vmem:[#allocation3 + $0xc] sm:$0x1] %v6977
      %v6979 = vld [vmem:[#allocation3 + $0x14] sm:$0x1]
      %v6980 = vsel %vm6972, 0, %v6979
      %6981 = vst [vmem:[#allocation3 + $0x14] sm:$0x1] %v6980
      %v6982 = vld [vmem:[#allocation3 + $0x1c] sm:$0x1]
      %v6983 = vsel %vm6972, 0, %v6982
      %6984 = vst [vmem:[#allocation3 + $0x1c] sm:$0x1] %v6983
      %v6985 = vld [vmem:[#allocation3 + $0x24] sm:$0x1]
      %v6986 = vsel %vm6972, 0, %v6985
      %6987 = vst [vmem:[#allocation3 + $0x24] sm:$0x1] %v6986
      %v6988 = vld [vmem:[#allocation3 + $0x2c] sm:$0x1]
      %v6989 = vsel %vm6972, 0, %v6988
      %6990 = vst [vmem:[#allocation3 + $0x2c] sm:$0x1] %v6989
      %v6991 = vld [vmem:[#allocation3 + $0x34] sm:$0x1]
      %v6992 = vsel %vm6972, 0, %v6991
      %6993 = vst [vmem:[#allocation3 + $0x34] sm:$0x1] %v6992
      %v6994 = vld [vmem:[#allocation3 + $0x3c] sm:$0x1]
      %v6995 = vsel %vm6972, 0, %v6994
      %6996 = vst [vmem:[#allocation3 + $0x3c] sm:$0x1] %v6995
      %v6997 = vld [vmem:[#allocation3 + $0x44] sm:$0x1]
      %v6998 = vsel %vm6972, 0, %v6997
      %6999 = vst [vmem:[#allocation3 + $0x44] sm:$0x1] %v6998
      %v7000 = vld [vmem:[#allocation3 + $0x4c] sm:$0x1]
      %v7001 = vsel %vm6972, 0, %v7000
      %7002 = vst [vmem:[#allocation3 + $0x4c] sm:$0x1] %v7001
      %v7003 = vpack.c.bf16 %v6869, %v6869
      %v7004 = vpack.c.bf16 %v6870, %v6870
      %v7005 = vpack.c.bf16 %v6871, %v6871
      %v7006 = vpack.c.bf16 %v6872, %v6872
      %v7007 = vpack.c.bf16 %v6873, %v6873
      %v7008 = vpack.c.bf16 %v6874, %v6874
      %v7009 = vpack.c.bf16 %v6875, %v6875
      %v7010 = vpack.c.bf16 %v6876, %v6876
      %v7011 = vpack.c.bf16 %v6877, %v6877
      %v7012 = vpack.c.bf16 %v6878, %v6878
      %v7013 = vpack.c.bf16 %v6879, %v6879
      %v7014 = vpack.c.bf16 %v6880, %v6880
      %v7015 = vpack.c.bf16 %v6881, %v6881
      %v7016 = vpack.c.bf16 %v6882, %v6882
      %v7017 = vpack.c.bf16 %v6883, %v6883
      %v7018 = vpack.c.bf16 %v6884, %v6884
      %v7019 = vpack.c.bf16 %v6885, %v6885
      %v7020 = vpack.c.bf16 %v6886, %v6886
      %v7021 = vpack.c.bf16 %v6887, %v6887
      %v7022 = vpack.c.bf16 %v6888, %v6888
      %v7023 = vpack.c.bf16 %v6889, %v6889
      %v7024 = vpack.c.bf16 %v6890, %v6890
      %v7025 = vpack.c.bf16 %v6891, %v6891
      %v7026 = vpack.c.bf16 %v6892, %v6892
      %v7027 = vpack.c.bf16 %v6893, %v6893
      %v7028 = vpack.c.bf16 %v6894, %v6894
      %v7029 = vpack.c.bf16 %v6895, %v6895
      %v7030 = vpack.c.bf16 %v6896, %v6896
      %v7031 = vpack.c.bf16 %v6897, %v6897
      %v7032 = vpack.c.bf16 %v6898, %v6898
      %v7033 = vpack.c.bf16 %v6899, %v6899
      %v7034 = vpack.c.bf16 %v6900, %v6900
      %v7035 = vpack.c.bf16 %v6901, %v6901
      %v7036 = vpack.c.bf16 %v6902, %v6902
      %v7037 = vpack.c.bf16 %v6903, %v6903
      %v7038 = vpack.c.bf16 %v6904, %v6904
      %v7039 = vpack.c.bf16 %v6905, %v6905
      %v7040 = vpack.c.bf16 %v6906, %v6906
      %v7041 = vpack.c.bf16 %v6907, %v6907
      %v7042 = vpack.c.bf16 %v6908, %v6908
      %v7043 = vpack.c.bf16 %v6909, %v6909
      %v7044 = vpack.c.bf16 %v6910, %v6910
      %v7045 = vpack.c.bf16 %v6911, %v6911
      %v7046 = vpack.c.bf16 %v6912, %v6912
      %v7047 = vpack.c.bf16 %v6913, %v6913
      %v7048 = vpack.c.bf16 %v6914, %v6914
      %v7049 = vpack.c.bf16 %v6915, %v6915
      %v7050 = vpack.c.bf16 %v6916, %v6916
      %v7051 = vpack.c.bf16 %v6917, %v6917
      %v7052 = vpack.c.bf16 %v6918, %v6918
      %v7053 = vpack.c.bf16 %v6919, %v6919
      %v7054 = vpack.c.bf16 %v6920, %v6920
      %v7055 = vpack.c.bf16 %v6921, %v6921
      %v7056 = vpack.c.bf16 %v6922, %v6922
      %v7057 = vpack.c.bf16 %v6923, %v6923
      %v7058 = vpack.c.bf16 %v6924, %v6924
      %v7059 = vpack.c.bf16 %v6925, %v6925
      %v7060 = vpack.c.bf16 %v6926, %v6926
      %v7061 = vpack.c.bf16 %v6927, %v6927
      %v7062 = vpack.c.bf16 %v6928, %v6928
      %v7063 = vpack.c.bf16 %v6929, %v6929
      %v7064 = vpack.c.bf16 %v6930, %v6930
      %v7065 = vpack.c.bf16 %v6931, %v6931
      %v7066 = vpack.c.bf16 %v6932, %v6932
      %v7131 = vunpack.c.l.b16 %v7003
      %v7132 = vunpack.c.l.b16 %v7004
      %v7133 = vunpack.c.l.b16 %v7005
      %v7134 = vunpack.c.l.b16 %v7006
      %v7135 = vunpack.c.l.b16 %v7007
      %v7136 = vunpack.c.l.b16 %v7008
      %v7137 = vunpack.c.l.b16 %v7009
      %v7138 = vunpack.c.l.b16 %v7010
      %v7139 = vunpack.c.l.b16 %v7011
      %v7140 = vunpack.c.l.b16 %v7012
      %v7141 = vunpack.c.l.b16 %v7013
      %v7142 = vunpack.c.l.b16 %v7014
      %v7143 = vunpack.c.l.b16 %v7015
      %v7144 = vunpack.c.l.b16 %v7016
      %v7145 = vunpack.c.l.b16 %v7017
      %v7146 = vunpack.c.l.b16 %v7018
      %v7147 = vunpack.c.l.b16 %v7019
      %v7148 = vunpack.c.l.b16 %v7020
      %v7149 = vunpack.c.l.b16 %v7021
      %v7150 = vunpack.c.l.b16 %v7022
      %v7151 = vunpack.c.l.b16 %v7023
      %v7152 = vunpack.c.l.b16 %v7024
      %v7153 = vunpack.c.l.b16 %v7025
      %v7154 = vunpack.c.l.b16 %v7026
      %v7155 = vunpack.c.l.b16 %v7027
      %v7156 = vunpack.c.l.b16 %v7028
      %v7157 = vunpack.c.l.b16 %v7029
      %v7158 = vunpack.c.l.b16 %v7030
      %v7159 = vunpack.c.l.b16 %v7031
      %v7160 = vunpack.c.l.b16 %v7032
      %v7161 = vunpack.c.l.b16 %v7033
      %v7162 = vunpack.c.l.b16 %v7034
      %v7163 = vunpack.c.l.b16 %v7035
      %v7164 = vunpack.c.l.b16 %v7036
      %v7165 = vunpack.c.l.b16 %v7037
      %v7166 = vunpack.c.l.b16 %v7038
      %v7167 = vunpack.c.l.b16 %v7039
      %v7168 = vunpack.c.l.b16 %v7040
      %v7169 = vunpack.c.l.b16 %v7041
      %v7170 = vunpack.c.l.b16 %v7042
      %v7171 = vunpack.c.l.b16 %v7043
      %v7172 = vunpack.c.l.b16 %v7044
      %v7173 = vunpack.c.l.b16 %v7045
      %v7174 = vunpack.c.l.b16 %v7046
      %v7175 = vunpack.c.l.b16 %v7047
      %v7176 = vunpack.c.l.b16 %v7048
      %v7177 = vunpack.c.l.b16 %v7049
      %v7178 = vunpack.c.l.b16 %v7050
      %v7179 = vunpack.c.l.b16 %v7051
      %v7180 = vunpack.c.l.b16 %v7052
      %v7181 = vunpack.c.l.b16 %v7053
      %v7182 = vunpack.c.l.b16 %v7054
      %v7183 = vunpack.c.l.b16 %v7055
      %v7184 = vunpack.c.l.b16 %v7056
      %v7185 = vunpack.c.l.b16 %v7057
      %v7186 = vunpack.c.l.b16 %v7058
      %v7187 = vunpack.c.l.b16 %v7059
      %v7188 = vunpack.c.l.b16 %v7060
      %v7189 = vunpack.c.l.b16 %v7061
      %v7190 = vunpack.c.l.b16 %v7062
      %v7191 = vunpack.c.l.b16 %v7063
      %v7192 = vunpack.c.l.b16 %v7064
      %v7193 = vunpack.c.l.b16 %v7065
      %v7194 = vunpack.c.l.b16 %v7066
      %v7195 = vpack.c.b16 %v7131, %v7131
      %v7196 = vpack.c.b16 %v7132, %v7132
      %v7197 = vpack.c.b16 %v7133, %v7133
      %v7198 = vpack.c.b16 %v7134, %v7134
      %v7199 = vpack.c.b16 %v7135, %v7135
      %v7200 = vpack.c.b16 %v7136, %v7136
      %v7201 = vpack.c.b16 %v7137, %v7137
      %v7202 = vpack.c.b16 %v7138, %v7138
      %v7203 = vpack.c.b16 %v7139, %v7139
      %v7204 = vpack.c.b16 %v7140, %v7140
      %v7205 = vpack.c.b16 %v7141, %v7141
      %v7206 = vpack.c.b16 %v7142, %v7142
      %v7207 = vpack.c.b16 %v7143, %v7143
      %v7208 = vpack.c.b16 %v7144, %v7144
      %v7209 = vpack.c.b16 %v7145, %v7145
      %v7210 = vpack.c.b16 %v7146, %v7146
      %v7211 = vpack.c.b16 %v7147, %v7147
      %v7212 = vpack.c.b16 %v7148, %v7148
      %v7213 = vpack.c.b16 %v7149, %v7149
      %v7214 = vpack.c.b16 %v7150, %v7150
      %v7215 = vpack.c.b16 %v7151, %v7151
      %v7216 = vpack.c.b16 %v7152, %v7152
      %v7217 = vpack.c.b16 %v7153, %v7153
      %v7218 = vpack.c.b16 %v7154, %v7154
      %v7219 = vpack.c.b16 %v7155, %v7155
      %v7220 = vpack.c.b16 %v7156, %v7156
      %v7221 = vpack.c.b16 %v7157, %v7157
      %v7222 = vpack.c.b16 %v7158, %v7158
      %v7223 = vpack.c.b16 %v7159, %v7159
      %v7224 = vpack.c.b16 %v7160, %v7160
      %v7225 = vpack.c.b16 %v7161, %v7161
      %v7226 = vpack.c.b16 %v7162, %v7162
      %v7227 = vpack.c.b16 %v7163, %v7163
      %v7228 = vpack.c.b16 %v7164, %v7164
      %v7229 = vpack.c.b16 %v7165, %v7165
      %v7230 = vpack.c.b16 %v7166, %v7166
      %v7231 = vpack.c.b16 %v7167, %v7167
      %v7232 = vpack.c.b16 %v7168, %v7168
      %v7233 = vpack.c.b16 %v7169, %v7169
      %v7234 = vpack.c.b16 %v7170, %v7170
      %v7235 = vpack.c.b16 %v7171, %v7171
      %v7236 = vpack.c.b16 %v7172, %v7172
      %v7237 = vpack.c.b16 %v7173, %v7173
      %v7238 = vpack.c.b16 %v7174, %v7174
      %v7239 = vpack.c.b16 %v7175, %v7175
      %v7240 = vpack.c.b16 %v7176, %v7176
      %v7241 = vpack.c.b16 %v7177, %v7177
      %v7242 = vpack.c.b16 %v7178, %v7178
      %v7243 = vpack.c.b16 %v7179, %v7179
      %v7244 = vpack.c.b16 %v7180, %v7180
      %v7245 = vpack.c.b16 %v7181, %v7181
      %v7246 = vpack.c.b16 %v7182, %v7182
      %v7247 = vpack.c.b16 %v7183, %v7183
      %v7248 = vpack.c.b16 %v7184, %v7184
      %v7249 = vpack.c.b16 %v7185, %v7185
      %v7250 = vpack.c.b16 %v7186, %v7186
      %v7251 = vpack.c.b16 %v7187, %v7187
      %v7252 = vpack.c.b16 %v7188, %v7188
      %v7253 = vpack.c.b16 %v7189, %v7189
      %v7254 = vpack.c.b16 %v7190, %v7190
      %v7255 = vpack.c.b16 %v7191, %v7191
      %v7256 = vpack.c.b16 %v7192, %v7192
      %v7257 = vpack.c.b16 %v7193, %v7193
      %v7258 = vpack.c.b16 %v7194, %v7194
      %v7259 = vunpack.c.l.b16 %v7195
      %v7260 = vunpack.c.l.b16 %v7196
      %v7261 = vunpack.c.l.b16 %v7197
      %v7262 = vunpack.c.l.b16 %v7198
      %v7263 = vunpack.c.l.b16 %v7199
      %v7264 = vunpack.c.l.b16 %v7200
      %v7265 = vunpack.c.l.b16 %v7201
      %v7266 = vunpack.c.l.b16 %v7202
      %v7267 = vunpack.c.l.b16 %v7203
      %v7268 = vunpack.c.l.b16 %v7204
      %v7269 = vunpack.c.l.b16 %v7205
      %v7270 = vunpack.c.l.b16 %v7206
      %v7271 = vunpack.c.l.b16 %v7207
      %v7272 = vunpack.c.l.b16 %v7208
      %v7273 = vunpack.c.l.b16 %v7209
      %v7274 = vunpack.c.l.b16 %v7210
      %v7275 = vunpack.c.l.b16 %v7211
      %v7276 = vunpack.c.l.b16 %v7212
      %v7277 = vunpack.c.l.b16 %v7213
      %v7278 = vunpack.c.l.b16 %v7214
      %v7279 = vunpack.c.l.b16 %v7215
      %v7280 = vunpack.c.l.b16 %v7216
      %v7281 = vunpack.c.l.b16 %v7217
      %v7282 = vunpack.c.l.b16 %v7218
      %v7283 = vunpack.c.l.b16 %v7219
      %v7284 = vunpack.c.l.b16 %v7220
      %v7285 = vunpack.c.l.b16 %v7221
      %v7286 = vunpack.c.l.b16 %v7222
      %v7287 = vunpack.c.l.b16 %v7223
      %v7288 = vunpack.c.l.b16 %v7224
      %v7289 = vunpack.c.l.b16 %v7225
      %v7290 = vunpack.c.l.b16 %v7226
      %v7291 = vunpack.c.l.b16 %v7227
      %v7292 = vunpack.c.l.b16 %v7228
      %v7293 = vunpack.c.l.b16 %v7229
      %v7294 = vunpack.c.l.b16 %v7230
      %v7295 = vunpack.c.l.b16 %v7231
      %v7296 = vunpack.c.l.b16 %v7232
      %v7297 = vunpack.c.l.b16 %v7233
      %v7298 = vunpack.c.l.b16 %v7234
      %v7299 = vunpack.c.l.b16 %v7235
      %v7300 = vunpack.c.l.b16 %v7236
      %v7301 = vunpack.c.l.b16 %v7237
      %v7302 = vunpack.c.l.b16 %v7238
      %v7303 = vunpack.c.l.b16 %v7239
      %v7304 = vunpack.c.l.b16 %v7240
      %v7305 = vunpack.c.l.b16 %v7241
      %v7306 = vunpack.c.l.b16 %v7242
      %v7307 = vunpack.c.l.b16 %v7243
      %v7308 = vunpack.c.l.b16 %v7244
      %v7309 = vunpack.c.l.b16 %v7245
      %v7310 = vunpack.c.l.b16 %v7246
      %v7311 = vunpack.c.l.b16 %v7247
      %v7312 = vunpack.c.l.b16 %v7248
      %v7313 = vunpack.c.l.b16 %v7249
      %v7314 = vunpack.c.l.b16 %v7250
      %v7315 = vunpack.c.l.b16 %v7251
      %v7316 = vunpack.c.l.b16 %v7252
      %v7317 = vunpack.c.l.b16 %v7253
      %v7318 = vunpack.c.l.b16 %v7254
      %v7319 = vunpack.c.l.b16 %v7255
      %v7320 = vunpack.c.l.b16 %v7256
      %v7321 = vunpack.c.l.b16 %v7257
      %v7322 = vunpack.c.l.b16 %v7258
      %v7323 = vrot.slane %v7259, 7
      %v7324 = vrot.slane %v7260, 6
      %vm7325 = vcmask 1042434
      %v7326 = vsel %vm7325, %v7324, %v7323
      %v7327 = vrot.slane %v7261, 5
      %vm7328 = vcmask 1043459
      %v7329 = vsel %vm7328, %v7327, %v7326
      %v7330 = vrot.slane %v7262, 4
      %vm7331 = vcmask 1044484
      %v7332 = vsel %vm7331, %v7330, %v7329
      %v7333 = vrot.slane %v7263, 3
      %vm7334 = vcmask 1045509
      %v7335 = vsel %vm7334, %v7333, %v7332
      %v7336 = vrot.slane %v7264, 2
      %vm7337 = vcmask 1046534
      %v7338 = vsel %vm7337, %v7336, %v7335
      %v7339 = vrot.slane %v7265, 1
      %vm7340 = vcmask 1047559
      %v7341 = vsel %vm7340, %v7339, %v7338
      %v7342 = vrot.slane %v7267, 7
      %v7343 = vrot.slane %v7268, 6
      %v7344 = vsel %vm7325, %v7343, %v7342
      %v7345 = vrot.slane %v7269, 5
      %v7346 = vsel %vm7328, %v7345, %v7344
      %v7347 = vrot.slane %v7270, 4
      %v7348 = vsel %vm7331, %v7347, %v7346
      %v7349 = vrot.slane %v7271, 3
      %v7350 = vsel %vm7334, %v7349, %v7348
      %v7351 = vrot.slane %v7272, 2
      %v7352 = vsel %vm7337, %v7351, %v7350
      %v7353 = vrot.slane %v7273, 1
      %v7354 = vsel %vm7340, %v7353, %v7352
      %v7355 = vrot.slane %v7275, 7
      %v7356 = vrot.slane %v7276, 6
      %v7357 = vsel %vm7325, %v7356, %v7355
      %v7358 = vrot.slane %v7277, 5
      %v7359 = vsel %vm7328, %v7358, %v7357
      %v7360 = vrot.slane %v7278, 4
      %v7361 = vsel %vm7331, %v7360, %v7359
      %v7362 = vrot.slane %v7279, 3
      %v7363 = vsel %vm7334, %v7362, %v7361
      %v7364 = vrot.slane %v7280, 2
      %v7365 = vsel %vm7337, %v7364, %v7363
      %v7366 = vrot.slane %v7281, 1
      %v7367 = vsel %vm7340, %v7366, %v7365
      %v7368 = vrot.slane %v7283, 7
      %v7369 = vrot.slane %v7284, 6
      %v7370 = vsel %vm7325, %v7369, %v7368
      %v7371 = vrot.slane %v7285, 5
      %v7372 = vsel %vm7328, %v7371, %v7370
      %v7373 = vrot.slane %v7286, 4
      %v7374 = vsel %vm7331, %v7373, %v7372
      %v7375 = vrot.slane %v7287, 3
      %v7376 = vsel %vm7334, %v7375, %v7374
      %v7377 = vrot.slane %v7288, 2
      %v7378 = vsel %vm7337, %v7377, %v7376
      %v7379 = vrot.slane %v7289, 1
      %v7380 = vsel %vm7340, %v7379, %v7378
      %v7381 = vrot.slane %v7291, 7
      %v7382 = vrot.slane %v7292, 6
      %v7383 = vsel %vm7325, %v7382, %v7381
      %v7384 = vrot.slane %v7293, 5
      %v7385 = vsel %vm7328, %v7384, %v7383
      %v7386 = vrot.slane %v7294, 4
      %v7387 = vsel %vm7331, %v7386, %v7385
      %v7388 = vrot.slane %v7295, 3
      %v7389 = vsel %vm7334, %v7388, %v7387
      %v7390 = vrot.slane %v7296, 2
      %v7391 = vsel %vm7337, %v7390, %v7389
      %v7392 = vrot.slane %v7297, 1
      %v7393 = vsel %vm7340, %v7392, %v7391
      %v7394 = vrot.slane %v7299, 7
      %v7395 = vrot.slane %v7300, 6
      %v7396 = vsel %vm7325, %v7395, %v7394
      %v7397 = vrot.slane %v7301, 5
      %v7398 = vsel %vm7328, %v7397, %v7396
      %v7399 = vrot.slane %v7302, 4
      %v7400 = vsel %vm7331, %v7399, %v7398
      %v7401 = vrot.slane %v7303, 3
      %v7402 = vsel %vm7334, %v7401, %v7400
      %v7403 = vrot.slane %v7304, 2
      %v7404 = vsel %vm7337, %v7403, %v7402
      %v7405 = vrot.slane %v7305, 1
      %v7406 = vsel %vm7340, %v7405, %v7404
      %v7407 = vrot.slane %v7307, 7
      %v7408 = vrot.slane %v7308, 6
      %v7409 = vsel %vm7325, %v7408, %v7407
      %v7410 = vrot.slane %v7309, 5
      %v7411 = vsel %vm7328, %v7410, %v7409
      %v7412 = vrot.slane %v7310, 4
      %v7413 = vsel %vm7331, %v7412, %v7411
      %v7414 = vrot.slane %v7311, 3
      %v7415 = vsel %vm7334, %v7414, %v7413
      %v7416 = vrot.slane %v7312, 2
      %v7417 = vsel %vm7337, %v7416, %v7415
      %v7418 = vrot.slane %v7313, 1
      %v7419 = vsel %vm7340, %v7418, %v7417
      %v7420 = vrot.slane %v7315, 7
      %v7421 = vrot.slane %v7316, 6
      %v7422 = vsel %vm7325, %v7421, %v7420
      %v7423 = vrot.slane %v7317, 5
      %v7424 = vsel %vm7328, %v7423, %v7422
      %v7425 = vrot.slane %v7318, 4
      %v7426 = vsel %vm7331, %v7425, %v7424
      %v7427 = vrot.slane %v7319, 3
      %v7428 = vsel %vm7334, %v7427, %v7426
      %v7429 = vrot.slane %v7320, 2
      %v7430 = vsel %vm7337, %v7429, %v7428
      %v7431 = vrot.slane %v7321, 1
      %v7432 = vsel %vm7340, %v7431, %v7430
      %v7433 = vpack.c.b16 %v7341, %v7341
      %v7434 = vpack.c.b16 %v7266, %v7266
      %v7435 = vpack.c.b16 %v7354, %v7354
      %v7436 = vpack.c.b16 %v7274, %v7274
      %v7437 = vpack.c.b16 %v7367, %v7367
      %v7438 = vpack.c.b16 %v7282, %v7282
      %v7439 = vpack.c.b16 %v7380, %v7380
      %v7440 = vpack.c.b16 %v7290, %v7290
      %v7441 = vpack.c.b16 %v7393, %v7393
      %v7442 = vpack.c.b16 %v7298, %v7298
      %v7443 = vpack.c.b16 %v7406, %v7406
      %v7444 = vpack.c.b16 %v7306, %v7306
      %v7445 = vpack.c.b16 %v7419, %v7419
      %v7446 = vpack.c.b16 %v7314, %v7314
      %v7447 = vpack.c.b16 %v7432, %v7432
      %v7448 = vpack.c.b16 %v7322, %v7322
      %s7465 = scalar_lea.vmem [#allocation3], 8
      %vm7466 = vcmask 125952
      %vm7467 = vmand %vm7466, %vm400
      %v7468 = vld [vmem:[%s7465] sm:$0xf]
      %v7469 = vsel %vm7467, %v7433, %v7468
      %7470 = vst [vmem:[%s7465] sm:$0xf] %v7469
      %v7471 = vld [vmem:[%s7465 + $0x4] sm:$0x1]
      %v7472 = vsel %vm6941, %v7434, %v7471
      %7473 = vst [vmem:[%s7465 + $0x4] sm:$0x1] %v7472
      %v7474 = vld [vmem:[%s7465 + $0x8] sm:$0xf]
      %v7475 = vsel %vm7467, %v7435, %v7474
      %7476 = vst [vmem:[%s7465 + $0x8] sm:$0xf] %v7475
      %v7477 = vld [vmem:[%s7465 + $0xc] sm:$0x1]
      %v7478 = vsel %vm6941, %v7436, %v7477
      %7479 = vst [vmem:[%s7465 + $0xc] sm:$0x1] %v7478
      %v7480 = vld [vmem:[%s7465 + $0x10] sm:$0xf]
      %v7481 = vsel %vm7467, %v7437, %v7480
      %7482 = vst [vmem:[%s7465 + $0x10] sm:$0xf] %v7481
      %v7483 = vld [vmem:[%s7465 + $0x14] sm:$0x1]
      %v7484 = vsel %vm6941, %v7438, %v7483
      %7485 = vst [vmem:[%s7465 + $0x14] sm:$0x1] %v7484
      %v7486 = vld [vmem:[%s7465 + $0x18] sm:$0xf]
      %v7487 = vsel %vm7467, %v7439, %v7486
      %7488 = vst [vmem:[%s7465 + $0x18] sm:$0xf] %v7487
      %v7489 = vld [vmem:[%s7465 + $0x1c] sm:$0x1]
      %v7490 = vsel %vm6941, %v7440, %v7489
      %7491 = vst [vmem:[%s7465 + $0x1c] sm:$0x1] %v7490
      %v7492 = vld [vmem:[%s7465 + $0x20] sm:$0xf]
      %v7493 = vsel %vm7467, %v7441, %v7492
      %7494 = vst [vmem:[%s7465 + $0x20] sm:$0xf] %v7493
      %v7495 = vld [vmem:[%s7465 + $0x24] sm:$0x1]
      %v7496 = vsel %vm6941, %v7442, %v7495
      %7497 = vst [vmem:[%s7465 + $0x24] sm:$0x1] %v7496
      %v7498 = vld [vmem:[%s7465 + $0x28] sm:$0xf]
      %v7499 = vsel %vm7467, %v7443, %v7498
      %7500 = vst [vmem:[%s7465 + $0x28] sm:$0xf] %v7499
      %v7501 = vld [vmem:[%s7465 + $0x2c] sm:$0x1]
      %v7502 = vsel %vm6941, %v7444, %v7501
      %7503 = vst [vmem:[%s7465 + $0x2c] sm:$0x1] %v7502
      %v7504 = vld [vmem:[%s7465 + $0x30] sm:$0xf]
      %v7505 = vsel %vm7467, %v7445, %v7504
      %7506 = vst [vmem:[%s7465 + $0x30] sm:$0xf] %v7505
      %v7507 = vld [vmem:[%s7465 + $0x34] sm:$0x1]
      %v7508 = vsel %vm6941, %v7446, %v7507
      %7509 = vst [vmem:[%s7465 + $0x34] sm:$0x1] %v7508
      %v7510 = vld [vmem:[%s7465 + $0x38] sm:$0xf]
      %v7511 = vsel %vm7467, %v7447, %v7510
      %7512 = vst [vmem:[%s7465 + $0x38] sm:$0xf] %v7511
      %v7513 = vld [vmem:[%s7465 + $0x3c] sm:$0x1]
      %v7514 = vsel %vm6941, %v7448, %v7513
      %7515 = vst [vmem:[%s7465 + $0x3c] sm:$0x1] %v7514
      %v7516 = vld [vmem:[%s4] sm:$0x1]
      %v7517 = vld [vmem:[#allocation3] sm:$0xf]
      %v7518 = vld [vmem:[#allocation3 + $0x8] sm:$0xf]
      %v7519 = vld [vmem:[#allocation3 + $0x10] sm:$0xf]
      %v7520 = vld [vmem:[#allocation3 + $0x18] sm:$0xf]
      %v7521 = vld [vmem:[#allocation3 + $0x20] sm:$0xf]
      %v7522 = vld [vmem:[#allocation3 + $0x28] sm:$0xf]
      %v7523 = vld [vmem:[#allocation3 + $0x30] sm:$0xf]
      %v7524 = vld [vmem:[#allocation3 + $0x38] sm:$0xf]
      %v7525 = vld [vmem:[%s3] sm:$0xf]
      %v7526 = vld [vmem:[%s3 + $0x4] sm:$0xf]
      %v7527 = vld [vmem:[#allocation3 + $0x4] sm:$0x1]
      %v7528 = vld [vmem:[#allocation3 + $0xc] sm:$0x1]
      %v7529 = vld [vmem:[#allocation3 + $0x14] sm:$0x1]
      %v7530 = vld [vmem:[#allocation3 + $0x1c] sm:$0x1]
      %v7531 = vld [vmem:[#allocation3 + $0x24] sm:$0x1]
      %v7532 = vld [vmem:[#allocation3 + $0x2c] sm:$0x1]
      %v7533 = vld [vmem:[#allocation3 + $0x34] sm:$0x1]
      %v7534 = vld [vmem:[#allocation3 + $0x3c] sm:$0x1]
      %v7536 = vshrl.u32 %v7517, 16
      %v7538 = vrot.slane %v7536, 4
      %v7539 = vshll.u32 %v7517, 16
      %v7541 = vrot.slane %v7539, 5
      %v7542 = vor.u32 %v7538, %v7541
      %v7543 = vrot.slane %v7542, 4
      %v7545 = vshll.u32 %v7527, 16
      %v7547 = vrot.slane %v7545, 5
      %v7548 = vsel %vm1073, %v7543, %v7547
      %v7550 = vshrl.u32 %v7518, 16
      %v7552 = vrot.slane %v7550, 4
      %v7553 = vshll.u32 %v7518, 16
      %v7555 = vrot.slane %v7553, 5
      %v7556 = vor.u32 %v7552, %v7555
      %v7557 = vrot.slane %v7556, 4
      %v7559 = vshll.u32 %v7528, 16
      %v7561 = vrot.slane %v7559, 5
      %v7562 = vsel %vm1073, %v7557, %v7561
      %v7564 = vshrl.u32 %v7519, 16
      %v7566 = vrot.slane %v7564, 4
      %v7567 = vshll.u32 %v7519, 16
      %v7569 = vrot.slane %v7567, 5
      %v7570 = vor.u32 %v7566, %v7569
      %v7571 = vrot.slane %v7570, 4
      %v7573 = vshll.u32 %v7529, 16
      %v7575 = vrot.slane %v7573, 5
      %v7576 = vsel %vm1073, %v7571, %v7575
      %v7578 = vshrl.u32 %v7520, 16
      %v7580 = vrot.slane %v7578, 4
      %v7581 = vshll.u32 %v7520, 16
      %v7583 = vrot.slane %v7581, 5
      %v7584 = vor.u32 %v7580, %v7583
      %v7585 = vrot.slane %v7584, 4
      %v7587 = vshll.u32 %v7530, 16
      %v7589 = vrot.slane %v7587, 5
      %v7590 = vsel %vm1073, %v7585, %v7589
      %v7592 = vshrl.u32 %v7521, 16
      %v7594 = vrot.slane %v7592, 4
      %v7595 = vshll.u32 %v7521, 16
      %v7597 = vrot.slane %v7595, 5
      %v7598 = vor.u32 %v7594, %v7597
      %v7599 = vrot.slane %v7598, 4
      %v7601 = vshll.u32 %v7531, 16
      %v7603 = vrot.slane %v7601, 5
      %v7604 = vsel %vm1073, %v7599, %v7603
      %v7606 = vshrl.u32 %v7522, 16
      %v7608 = vrot.slane %v7606, 4
      %v7609 = vshll.u32 %v7522, 16
      %v7611 = vrot.slane %v7609, 5
      %v7612 = vor.u32 %v7608, %v7611
      %v7613 = vrot.slane %v7612, 4
      %v7615 = vshll.u32 %v7532, 16
      %v7617 = vrot.slane %v7615, 5
      %v7618 = vsel %vm1073, %v7613, %v7617
      %v7620 = vshrl.u32 %v7523, 16
      %v7622 = vrot.slane %v7620, 4
      %v7623 = vshll.u32 %v7523, 16
      %v7625 = vrot.slane %v7623, 5
      %v7626 = vor.u32 %v7622, %v7625
      %v7627 = vrot.slane %v7626, 4
      %v7629 = vshll.u32 %v7533, 16
      %v7631 = vrot.slane %v7629, 5
      %v7632 = vsel %vm1073, %v7627, %v7631
      %v7634 = vshrl.u32 %v7524, 16
      %v7636 = vrot.slane %v7634, 4
      %v7637 = vshll.u32 %v7524, 16
      %v7639 = vrot.slane %v7637, 5
      %v7640 = vor.u32 %v7636, %v7639
      %v7641 = vrot.slane %v7640, 4
      %v7643 = vshll.u32 %v7534, 16
      %v7645 = vrot.slane %v7643, 5
      %v7646 = vsel %vm1073, %v7641, %v7645
      %s7647 = scalar_lea.vmem %s3, 8
      %v7648 = vld [vmem:[%s7647] sm:$0xf]
      %v7649 = vld [vmem:[%s7647 + $0x4] sm:$0xf]
      %v7650 = vunpack.c.l.b16 %v7548
      %v7651 = vunpack.c.l.b16 %v7562
      %v7652 = vunpack.c.l.b16 %v7576
      %v7653 = vunpack.c.l.b16 %v7590
      %v7654 = vunpack.c.l.b16 %v7604
      %v7655 = vunpack.c.l.b16 %v7618
      %v7656 = vunpack.c.l.b16 %v7632
      %v7657 = vunpack.c.l.b16 %v7646
      %v7658 = vpack.c.b16 %v7651, %v7650
      %v7659 = vpack.c.b16 %v7653, %v7652
      %v7660 = vpack.c.b16 %v7655, %v7654
      %v7661 = vpack.c.b16 %v7657, %v7656
      %v7664 = vunpack.c.l.b16 %v7648
      %v7665 = vunpack.c.l.b16 %v7649
      %v7666 = vpack.c.b16 %v7665, %v7664
      %vm7668 = vcmask 130048
      %v7670 = vsel %vm7668, %v7658, 0
      %v7673 = vsel %vm7668, %v7659, 0
      %v7676 = vsel %vm7668, %v7660, 0
      %v7679 = vsel %vm7668, %v7661, 0
      %7681 = vmatprep.subr.bf16.mxu0 0
      %7682 = vmatpush1.bf16.msra.mxu0 %v7666
      %7683 = vmatprep.subr.bf16.mxu0 0
      %7684 = vmatpush1.bf16.msra.mxu0 0
      %7685 = vmatprep.subr.bf16.mxu0 0
      %7686 = vmatpush1.bf16.msra.mxu0 0
      %7687 = vmatprep.subr.bf16.mxu0 0
      %7688 = vmatpush1.bf16.msra.mxu0 0
      %7689 = vmatprep.subr.bf16.mxu0 0
      %7690 = vmatpush1.bf16.msra.mxu0 0
      %7691 = vmatprep.subr.bf16.mxu0 0
      %7692 = vmatpush1.bf16.msra.mxu0 0
      %7693 = vmatprep.subr.bf16.mxu0 0
      %7694 = vmatpush1.bf16.msra.mxu0 0
      %7695 = vmatprep.subr.bf16.mxu0 0
      %7696 = vmatpush1.bf16.msra.mxu0 0
      %7697 = vmatprep.subr.bf16.mxu0 0
      %7698 = vmatpush1.bf16.msra.mxu0 0
      %7699 = vmatprep.subr.bf16.mxu0 0
      %7700 = vmatpush1.bf16.msra.mxu0 0
      %7701 = vmatprep.subr.bf16.mxu0 0
      %7702 = vmatpush1.bf16.msra.mxu0 0
      %7703 = vmatprep.subr.bf16.mxu0 0
      %7704 = vmatpush1.bf16.msra.mxu0 0
      %7705 = vmatprep.subr.bf16.mxu0 0
      %7706 = vmatpush1.bf16.msra.mxu0 0
      %7707 = vmatprep.subr.bf16.mxu0 0
      %7708 = vmatpush1.bf16.msra.mxu0 0
      %7709 = vmatprep.subr.bf16.mxu0 0
      %7710 = vmatpush1.bf16.msra.mxu0 0
      %7711 = vmatprep.subr.bf16.mxu0 0
      %7712 = vmatpush1.bf16.msra.mxu0 0
      %7713 = vmatprep.mubr.bf16.mxu0 0
      %7714 = vmatmul.mubr.bf16.gmra.mrb[0].mxu0 %v7670
      %v7715 = vpop.f32.mrb[0].mxu0
      %v7716 = vadd.f32 0.0, %v7715
      %v7717 = vpop.f32.mrb[0].mxu0
      %v7718 = vpop.f32.mrb[0].mxu0
      %v7719 = vadd.f32 0.0, %v7718
      %v7720 = vpop.f32.mrb[0].mxu0
      %7721 = vmatprep.mubr.bf16.mxu0 0
      %7722 = vmatmul.mubr.bf16.gmra.mrb[0].mxu0 %v7673
      %v7723 = vpop.f32.mrb[0].mxu0
      %v7724 = vadd.f32 0.0, %v7723
      %v7725 = vpop.f32.mrb[0].mxu0
      %v7726 = vpop.f32.mrb[0].mxu0
      %v7727 = vadd.f32 0.0, %v7726
      %v7728 = vpop.f32.mrb[0].mxu0
      %7729 = vmatprep.mubr.bf16.mxu0 0
      %7730 = vmatmul.mubr.bf16.gmra.mrb[0].mxu0 %v7676
      %v7731 = vpop.f32.mrb[0].mxu0
      %v7732 = vadd.f32 0.0, %v7731
      %v7733 = vpop.f32.mrb[0].mxu0
      %v7734 = vpop.f32.mrb[0].mxu0
      %v7735 = vadd.f32 0.0, %v7734
      %v7736 = vpop.f32.mrb[0].mxu0
      %7737 = vmatprep.mubr.bf16.mxu0 0
      %7738 = vmatmul.mubr.bf16.gmra.mrb[0].mxu0 %v7679
      %v7739 = vpop.f32.mrb[0].mxu0
      %v7740 = vadd.f32 0.0, %v7739
      %v7741 = vpop.f32.mrb[0].mxu0
      %v7742 = vpop.f32.mrb[0].mxu0
      %v7743 = vadd.f32 0.0, %v7742
      %v7744 = vpop.f32.mrb[0].mxu0
      %7745 = vdwg.mxu0
      %v7754 = vunpack.c.l.b16 %v7517
      %v7755 = vunpack.c.l.b16 %v7518
      %v7756 = vunpack.c.l.b16 %v7519
      %v7757 = vunpack.c.l.b16 %v7520
      %v7758 = vunpack.c.l.b16 %v7521
      %v7759 = vunpack.c.l.b16 %v7522
      %v7760 = vunpack.c.l.b16 %v7523
      %v7761 = vunpack.c.l.b16 %v7524
      %v7762 = vpack.c.b16 %v7755, %v7754
      %v7763 = vpack.c.b16 %v7757, %v7756
      %v7764 = vpack.c.b16 %v7759, %v7758
      %v7765 = vpack.c.b16 %v7761, %v7760
      %v7768 = vunpack.c.l.b16 %v7525
      %v7769 = vunpack.c.l.b16 %v7526
      %v7770 = vpack.c.b16 %v7769, %v7768
      %v7773 = vsel %vm7668, %v7762, 0
      %v7776 = vsel %vm7668, %v7763, 0
      %v7779 = vsel %vm7668, %v7764, 0
      %v7782 = vsel %vm7668, %v7765, 0
      %7784 = vmatprep.subr.bf16.mxu0 0
      %7785 = vmatpush1.bf16.msra.mxu0 %v7770
      %7786 = vmatprep.subr.bf16.mxu0 0
      %7787 = vmatpush1.bf16.msra.mxu0 0
      %7788 = vmatprep.subr.bf16.mxu0 0
      %7789 = vmatpush1.bf16.msra.mxu0 0
      %7790 = vmatprep.subr.bf16.mxu0 0
      %7791 = vmatpush1.bf16.msra.mxu0 0
      %7792 = vmatprep.subr.bf16.mxu0 0
      %7793 = vmatpush1.bf16.msra.mxu0 0
      %7794 = vmatprep.subr.bf16.mxu0 0
      %7795 = vmatpush1.bf16.msra.mxu0 0
      %7796 = vmatprep.subr.bf16.mxu0 0
      %7797 = vmatpush1.bf16.msra.mxu0 0
      %7798 = vmatprep.subr.bf16.mxu0 0
      %7799 = vmatpush1.bf16.msra.mxu0 0
      %7800 = vmatprep.subr.bf16.mxu0 0
      %7801 = vmatpush1.bf16.msra.mxu0 0
      %7802 = vmatprep.subr.bf16.mxu0 0
      %7803 = vmatpush1.bf16.msra.mxu0 0
      %7804 = vmatprep.subr.bf16.mxu0 0
      %7805 = vmatpush1.bf16.msra.mxu0 0
      %7806 = vmatprep.subr.bf16.mxu0 0
      %7807 = vmatpush1.bf16.msra.mxu0 0
      %7808 = vmatprep.subr.bf16.mxu0 0
      %7809 = vmatpush1.bf16.msra.mxu0 0
      %7810 = vmatprep.subr.bf16.mxu0 0
      %7811 = vmatpush1.bf16.msra.mxu0 0
      %7812 = vmatprep.subr.bf16.mxu0 0
      %7813 = vmatpush1.bf16.msra.mxu0 0
      %7814 = vmatprep.subr.bf16.mxu0 0
      %7815 = vmatpush1.bf16.msra.mxu0 0
      %7816 = vmatprep.mubr.bf16.mxu0 0
      %7817 = vmatmul.mubr.bf16.gmra.mrb[0].mxu0 %v7773
      %v7818 = vpop.f32.mrb[0].mxu0
      %v7819 = vadd.f32 %v7716, %v7818
      %v7820 = vpop.f32.mrb[0].mxu0
      %v7821 = vpop.f32.mrb[0].mxu0
      %v7822 = vadd.f32 %v7719, %v7821
      %v7823 = vpop.f32.mrb[0].mxu0
      %7824 = vmatprep.mubr.bf16.mxu0 0
      %7825 = vmatmul.mubr.bf16.gmra.mrb[0].mxu0 %v7776
      %v7826 = vpop.f32.mrb[0].mxu0
      %v7827 = vadd.f32 %v7724, %v7826
      %v7828 = vpop.f32.mrb[0].mxu0
      %v7829 = vpop.f32.mrb[0].mxu0
      %v7830 = vadd.f32 %v7727, %v7829
      %v7831 = vpop.f32.mrb[0].mxu0
      %7832 = vmatprep.mubr.bf16.mxu0 0
      %7833 = vmatmul.mubr.bf16.gmra.mrb[0].mxu0 %v7779
      %v7834 = vpop.f32.mrb[0].mxu0
      %v7835 = vadd.f32 %v7732, %v7834
      %v7836 = vpop.f32.mrb[0].mxu0
      %v7837 = vpop.f32.mrb[0].mxu0
      %v7838 = vadd.f32 %v7735, %v7837
      %v7839 = vpop.f32.mrb[0].mxu0
      %7840 = vmatprep.mubr.bf16.mxu0 0
      %7841 = vmatmul.mubr.bf16.gmra.mrb[0].mxu0 %v7782
      %v7842 = vpop.f32.mrb[0].mxu0
      %v7843 = vadd.f32 %v7740, %v7842
      %v7844 = vpop.f32.mrb[0].mxu0
      %v7845 = vpop.f32.mrb[0].mxu0
      %v7846 = vadd.f32 %v7743, %v7845
      %v7847 = vpop.f32.mrb[0].mxu0
      %7848 = vdwg.mxu0
      %v7849 = vld [vmem:[#allocation3] sm:$0xe]
      %v7850 = vld [vmem:[#allocation3 + $0x8] sm:$0xe]
      %v7851 = vld [vmem:[#allocation3 + $0x10] sm:$0xe]
      %v7852 = vld [vmem:[#allocation3 + $0x18] sm:$0xe]
      %v7853 = vld [vmem:[#allocation3 + $0x20] sm:$0xe]
      %v7854 = vld [vmem:[#allocation3 + $0x28] sm:$0xe]
      %v7855 = vld [vmem:[#allocation3 + $0x30] sm:$0xe]
      %v7856 = vld [vmem:[#allocation3 + $0x38] sm:$0xe]
      %v7873 = vrot.slane %v7849, 5
      %v7874 = vrot.slane %v7873, 4
      %v7875 = vrot.slane %v7527, 5
      %v7876 = vsel %vm2067, %v7874, %v7875
      %v7877 = vrot.slane %v7850, 5
      %v7878 = vrot.slane %v7877, 4
      %v7879 = vrot.slane %v7528, 5
      %v7880 = vsel %vm2067, %v7878, %v7879
      %v7881 = vrot.slane %v7851, 5
      %v7882 = vrot.slane %v7881, 4
      %v7883 = vrot.slane %v7529, 5
      %v7884 = vsel %vm2067, %v7882, %v7883
      %v7885 = vrot.slane %v7852, 5
      %v7886 = vrot.slane %v7885, 4
      %v7887 = vrot.slane %v7530, 5
      %v7888 = vsel %vm2067, %v7886, %v7887
      %v7889 = vrot.slane %v7853, 5
      %v7890 = vrot.slane %v7889, 4
      %v7891 = vrot.slane %v7531, 5
      %v7892 = vsel %vm2067, %v7890, %v7891
      %v7893 = vrot.slane %v7854, 5
      %v7894 = vrot.slane %v7893, 4
      %v7895 = vrot.slane %v7532, 5
      %v7896 = vsel %vm2067, %v7894, %v7895
      %v7897 = vrot.slane %v7855, 5
      %v7898 = vrot.slane %v7897, 4
      %v7899 = vrot.slane %v7533, 5
      %v7900 = vsel %vm2067, %v7898, %v7899
      %v7901 = vrot.slane %v7856, 5
      %v7902 = vrot.slane %v7901, 4
      %v7903 = vrot.slane %v7534, 5
      %v7904 = vsel %vm2067, %v7902, %v7903
      %s7905 = scalar_lea.vmem %s3, 16
      %v7906 = vld [vmem:[%s7905] sm:$0xf]
      %v7907 = vld [vmem:[%s7905 + $0x4] sm:$0xf]
      %v7908 = vunpack.c.l.b16 %v7876
      %v7909 = vunpack.c.l.b16 %v7880
      %v7910 = vunpack.c.l.b16 %v7884
      %v7911 = vunpack.c.l.b16 %v7888
      %v7912 = vunpack.c.l.b16 %v7892
      %v7913 = vunpack.c.l.b16 %v7896
      %v7914 = vunpack.c.l.b16 %v7900
      %v7915 = vunpack.c.l.b16 %v7904
      %v7916 = vpack.c.b16 %v7909, %v7908
      %v7917 = vpack.c.b16 %v7911, %v7910
      %v7918 = vpack.c.b16 %v7913, %v7912
      %v7919 = vpack.c.b16 %v7915, %v7914
      %v7922 = vunpack.c.l.b16 %v7906
      %v7923 = vunpack.c.l.b16 %v7907
      %v7924 = vpack.c.b16 %v7923, %v7922
      %v7927 = vsel %vm7668, %v7916, 0
      %v7930 = vsel %vm7668, %v7917, 0
      %v7933 = vsel %vm7668, %v7918, 0
      %v7936 = vsel %vm7668, %v7919, 0
      %7938 = vmatprep.subr.bf16.mxu0 0
      %7939 = vmatpush1.bf16.msra.mxu0 %v7924
      %7940 = vmatprep.subr.bf16.mxu0 0
      %7941 = vmatpush1.bf16.msra.mxu0 0
      %7942 = vmatprep.subr.bf16.mxu0 0
      %7943 = vmatpush1.bf16.msra.mxu0 0
      %7944 = vmatprep.subr.bf16.mxu0 0
      %7945 = vmatpush1.bf16.msra.mxu0 0
      %7946 = vmatprep.subr.bf16.mxu0 0
      %7947 = vmatpush1.bf16.msra.mxu0 0
      %7948 = vmatprep.subr.bf16.mxu0 0
      %7949 = vmatpush1.bf16.msra.mxu0 0
      %7950 = vmatprep.subr.bf16.mxu0 0
      %7951 = vmatpush1.bf16.msra.mxu0 0
      %7952 = vmatprep.subr.bf16.mxu0 0
      %7953 = vmatpush1.bf16.msra.mxu0 0
      %7954 = vmatprep.subr.bf16.mxu0 0
      %7955 = vmatpush1.bf16.msra.mxu0 0
      %7956 = vmatprep.subr.bf16.mxu0 0
      %7957 = vmatpush1.bf16.msra.mxu0 0
      %7958 = vmatprep.subr.bf16.mxu0 0
      %7959 = vmatpush1.bf16.msra.mxu0 0
      %7960 = vmatprep.subr.bf16.mxu0 0
      %7961 = vmatpush1.bf16.msra.mxu0 0
      %7962 = vmatprep.subr.bf16.mxu0 0
      %7963 = vmatpush1.bf16.msra.mxu0 0
      %7964 = vmatprep.subr.bf16.mxu0 0
      %7965 = vmatpush1.bf16.msra.mxu0 0
      %7966 = vmatprep.subr.bf16.mxu0 0
      %7967 = vmatpush1.bf16.msra.mxu0 0
      %7968 = vmatprep.subr.bf16.mxu0 0
      %7969 = vmatpush1.bf16.msra.mxu0 0
      %7970 = vmatprep.mubr.bf16.mxu0 0
      %7971 = vmatmul.mubr.bf16.gmra.mrb[0].mxu0 %v7927
      %v7972 = vpop.f32.mrb[0].mxu0
      %v7973 = vadd.f32 0.0, %v7972
      %v7974 = vpop.f32.mrb[0].mxu0
      %v7975 = vpop.f32.mrb[0].mxu0
      %v7976 = vadd.f32 0.0, %v7975
      %v7977 = vpop.f32.mrb[0].mxu0
      %7978 = vmatprep.mubr.bf16.mxu0 0
      %7979 = vmatmul.mubr.bf16.gmra.mrb[0].mxu0 %v7930
      %v7980 = vpop.f32.mrb[0].mxu0
      %v7981 = vadd.f32 0.0, %v7980
      %v7982 = vpop.f32.mrb[0].mxu0
      %v7983 = vpop.f32.mrb[0].mxu0
      %v7984 = vadd.f32 0.0, %v7983
      %v7985 = vpop.f32.mrb[0].mxu0
      %7986 = vmatprep.mubr.bf16.mxu0 0
      %7987 = vmatmul.mubr.bf16.gmra.mrb[0].mxu0 %v7933
      %v7988 = vpop.f32.mrb[0].mxu0
      %v7989 = vadd.f32 0.0, %v7988
      %v7990 = vpop.f32.mrb[0].mxu0
      %v7991 = vpop.f32.mrb[0].mxu0
      %v7992 = vadd.f32 0.0, %v7991
      %v7993 = vpop.f32.mrb[0].mxu0
      %7994 = vmatprep.mubr.bf16.mxu0 0
      %7995 = vmatmul.mubr.bf16.gmra.mrb[0].mxu0 %v7936
      %v7996 = vpop.f32.mrb[0].mxu0
      %v7997 = vadd.f32 0.0, %v7996
      %v7998 = vpop.f32.mrb[0].mxu0
      %v7999 = vpop.f32.mrb[0].mxu0
      %v8000 = vadd.f32 0.0, %v7999
      %v8001 = vpop.f32.mrb[0].mxu0
      %8002 = vdwg.mxu0
      %v8003 = vadd.f32 %v7819, %v7973
      %v8004 = vadd.f32 %v7822, %v7976
      %v8005 = vadd.f32 %v7827, %v7981
      %v8006 = vadd.f32 %v7830, %v7984
      %v8007 = vadd.f32 %v7835, %v7989
      %v8008 = vadd.f32 %v7838, %v7992
      %v8009 = vadd.f32 %v7843, %v7997
      %v8010 = vadd.f32 %v7846, %v8000
      %v8011 = vld [vmem:[%s7465] sm:$0xf]
      %v8012 = vld [vmem:[%s7465 + $0x8] sm:$0xf]
      %v8013 = vld [vmem:[%s7465 + $0x10] sm:$0xf]
      %v8014 = vld [vmem:[%s7465 + $0x18] sm:$0xf]
      %v8015 = vld [vmem:[%s7465 + $0x20] sm:$0xf]
      %v8016 = vld [vmem:[%s7465 + $0x28] sm:$0xf]
      %v8017 = vld [vmem:[%s7465 + $0x30] sm:$0xf]
      %v8018 = vld [vmem:[%s7465 + $0x38] sm:$0xf]
      %s8019 = scalar_lea.vmem %s3, 24
      %v8020 = vld [vmem:[%s8019] sm:$0xf]
      %v8021 = vld [vmem:[%s8019 + $0x4] sm:$0xf]
      %v8030 = vunpack.c.l.b16 %v8011
      %v8031 = vunpack.c.l.b16 %v8012
      %v8032 = vunpack.c.l.b16 %v8013
      %v8033 = vunpack.c.l.b16 %v8014
      %v8034 = vunpack.c.l.b16 %v8015
      %v8035 = vunpack.c.l.b16 %v8016
      %v8036 = vunpack.c.l.b16 %v8017
      %v8037 = vunpack.c.l.b16 %v8018
      %v8038 = vpack.c.b16 %v8031, %v8030
      %v8039 = vpack.c.b16 %v8033, %v8032
      %v8040 = vpack.c.b16 %v8035, %v8034
      %v8041 = vpack.c.b16 %v8037, %v8036
      %v8044 = vunpack.c.l.b16 %v8020
      %v8045 = vunpack.c.l.b16 %v8021
      %v8046 = vpack.c.b16 %v8045, %v8044
      %v8049 = vsel %vm7668, %v8038, 0
      %v8052 = vsel %vm7668, %v8039, 0
      %v8055 = vsel %vm7668, %v8040, 0
      %v8058 = vsel %vm7668, %v8041, 0
      %8060 = vmatprep.subr.bf16.mxu0 0
      %8061 = vmatpush1.bf16.msra.mxu0 %v8046
      %8062 = vmatprep.subr.bf16.mxu0 0
      %8063 = vmatpush1.bf16.msra.mxu0 0
      %8064 = vmatprep.subr.bf16.mxu0 0
      %8065 = vmatpush1.bf16.msra.mxu0 0
      %8066 = vmatprep.subr.bf16.mxu0 0
      %8067 = vmatpush1.bf16.msra.mxu0 0
      %8068 = vmatprep.subr.bf16.mxu0 0
      %8069 = vmatpush1.bf16.msra.mxu0 0
      %8070 = vmatprep.subr.bf16.mxu0 0
      %8071 = vmatpush1.bf16.msra.mxu0 0
      %8072 = vmatprep.subr.bf16.mxu0 0
      %8073 = vmatpush1.bf16.msra.mxu0 0
      %8074 = vmatprep.subr.bf16.mxu0 0
      %8075 = vmatpush1.bf16.msra.mxu0 0
      %8076 = vmatprep.subr.bf16.mxu0 0
      %8077 = vmatpush1.bf16.msra.mxu0 0
      %8078 = vmatprep.subr.bf16.mxu0 0
      %8079 = vmatpush1.bf16.msra.mxu0 0
      %8080 = vmatprep.subr.bf16.mxu0 0
      %8081 = vmatpush1.bf16.msra.mxu0 0
      %8082 = vmatprep.subr.bf16.mxu0 0
      %8083 = vmatpush1.bf16.msra.mxu0 0
      %8084 = vmatprep.subr.bf16.mxu0 0
      %8085 = vmatpush1.bf16.msra.mxu0 0
      %8086 = vmatprep.subr.bf16.mxu0 0
      %8087 = vmatpush1.bf16.msra.mxu0 0
      %8088 = vmatprep.subr.bf16.mxu0 0
      %8089 = vmatpush1.bf16.msra.mxu0 0
      %8090 = vmatprep.subr.bf16.mxu0 0
      %8091 = vmatpush1.bf16.msra.mxu0 0
      %8092 = vmatprep.mubr.bf16.mxu0 0
      %8093 = vmatmul.mubr.bf16.gmra.mrb[0].mxu0 %v8049
      %v8094 = vpop.f32.mrb[0].mxu0
      %v8095 = vadd.f32 0.0, %v8094
      %v8096 = vpop.f32.mrb[0].mxu0
      %v8097 = vpop.f32.mrb[0].mxu0
      %v8098 = vadd.f32 0.0, %v8097
      %v8099 = vpop.f32.mrb[0].mxu0
      %8100 = vmatprep.mubr.bf16.mxu0 0
      %8101 = vmatmul.mubr.bf16.gmra.mrb[0].mxu0 %v8052
      %v8102 = vpop.f32.mrb[0].mxu0
      %v8103 = vadd.f32 0.0, %v8102
      %v8104 = vpop.f32.mrb[0].mxu0
      %v8105 = vpop.f32.mrb[0].mxu0
      %v8106 = vadd.f32 0.0, %v8105
      %v8107 = vpop.f32.mrb[0].mxu0
      %8108 = vmatprep.mubr.bf16.mxu0 0
      %8109 = vmatmul.mubr.bf16.gmra.mrb[0].mxu0 %v8055
      %v8110 = vpop.f32.mrb[0].mxu0
      %v8111 = vadd.f32 0.0, %v8110
      %v8112 = vpop.f32.mrb[0].mxu0
      %v8113 = vpop.f32.mrb[0].mxu0
      %v8114 = vadd.f32 0.0, %v8113
      %v8115 = vpop.f32.mrb[0].mxu0
      %8116 = vmatprep.mubr.bf16.mxu0 0
      %8117 = vmatmul.mubr.bf16.gmra.mrb[0].mxu0 %v8058
      %v8118 = vpop.f32.mrb[0].mxu0
      %v8119 = vadd.f32 0.0, %v8118
      %v8120 = vpop.f32.mrb[0].mxu0
      %v8121 = vpop.f32.mrb[0].mxu0
      %v8122 = vadd.f32 0.0, %v8121
      %v8123 = vpop.f32.mrb[0].mxu0
      %8124 = vdwg.mxu0
      %v8125 = vadd.f32 %v8003, %v8095
      %v8126 = vadd.f32 %v8004, %v8098
      %v8127 = vadd.f32 %v8005, %v8103
      %v8128 = vadd.f32 %v8006, %v8106
      %v8129 = vadd.f32 %v8007, %v8111
      %v8130 = vadd.f32 %v8008, %v8114
      %v8131 = vadd.f32 %v8009, %v8119
      %v8132 = vadd.f32 %v8010, %v8122
      %v8133 = vld [vmem:[%s7465] sm:$0xf]
      %v8134 = vld [vmem:[%s7465 + $0x4] sm:$0x1]
      %v8135 = vld [vmem:[%s7465 + $0x8] sm:$0xf]
      %v8136 = vld [vmem:[%s7465 + $0xc] sm:$0x1]
      %v8137 = vld [vmem:[%s7465 + $0x10] sm:$0xf]
      %v8138 = vld [vmem:[%s7465 + $0x14] sm:$0x1]
      %v8139 = vld [vmem:[%s7465 + $0x18] sm:$0xf]
      %v8140 = vld [vmem:[%s7465 + $0x1c] sm:$0x1]
      %v8141 = vld [vmem:[%s7465 + $0x20] sm:$0xf]
      %v8142 = vld [vmem:[%s7465 + $0x24] sm:$0x1]
      %v8143 = vld [vmem:[%s7465 + $0x28] sm:$0xf]
      %v8144 = vld [vmem:[%s7465 + $0x2c] sm:$0x1]
      %v8145 = vld [vmem:[%s7465 + $0x30] sm:$0xf]
      %v8146 = vld [vmem:[%s7465 + $0x34] sm:$0x1]
      %v8147 = vld [vmem:[%s7465 + $0x38] sm:$0xf]
      %v8148 = vld [vmem:[%s7465 + $0x3c] sm:$0x1]
      %v8150 = vshrl.u32 %v8133, 16
      %v8152 = vrot.slane %v8150, 4
      %v8153 = vshll.u32 %v8133, 16
      %v8155 = vrot.slane %v8153, 5
      %v8156 = vor.u32 %v8152, %v8155
      %v8157 = vrot.slane %v8156, 4
      %v8159 = vshll.u32 %v8134, 16
      %v8161 = vrot.slane %v8159, 5
      %v8162 = vsel %vm1073, %v8157, %v8161
      %v8164 = vshrl.u32 %v8135, 16
      %v8166 = vrot.slane %v8164, 4
      %v8167 = vshll.u32 %v8135, 16
      %v8169 = vrot.slane %v8167, 5
      %v8170 = vor.u32 %v8166, %v8169
      %v8171 = vrot.slane %v8170, 4
      %v8173 = vshll.u32 %v8136, 16
      %v8175 = vrot.slane %v8173, 5
      %v8176 = vsel %vm1073, %v8171, %v8175
      %v8178 = vshrl.u32 %v8137, 16
      %v8180 = vrot.slane %v8178, 4
      %v8181 = vshll.u32 %v8137, 16
      %v8183 = vrot.slane %v8181, 5
      %v8184 = vor.u32 %v8180, %v8183
      %v8185 = vrot.slane %v8184, 4
      %v8187 = vshll.u32 %v8138, 16
      %v8189 = vrot.slane %v8187, 5
      %v8190 = vsel %vm1073, %v8185, %v8189
      %v8192 = vshrl.u32 %v8139, 16
      %v8194 = vrot.slane %v8192, 4
      %v8195 = vshll.u32 %v8139, 16
      %v8197 = vrot.slane %v8195, 5
      %v8198 = vor.u32 %v8194, %v8197
      %v8199 = vrot.slane %v8198, 4
      %v8201 = vshll.u32 %v8140, 16
      %v8203 = vrot.slane %v8201, 5
      %v8204 = vsel %vm1073, %v8199, %v8203
      %v8206 = vshrl.u32 %v8141, 16
      %v8208 = vrot.slane %v8206, 4
      %v8209 = vshll.u32 %v8141, 16
      %v8211 = vrot.slane %v8209, 5
      %v8212 = vor.u32 %v8208, %v8211
      %v8213 = vrot.slane %v8212, 4
      %v8215 = vshll.u32 %v8142, 16
      %v8217 = vrot.slane %v8215, 5
      %v8218 = vsel %vm1073, %v8213, %v8217
      %v8220 = vshrl.u32 %v8143, 16
      %v8222 = vrot.slane %v8220, 4
      %v8223 = vshll.u32 %v8143, 16
      %v8225 = vrot.slane %v8223, 5
      %v8226 = vor.u32 %v8222, %v8225
      %v8227 = vrot.slane %v8226, 4
      %v8229 = vshll.u32 %v8144, 16
      %v8231 = vrot.slane %v8229, 5
      %v8232 = vsel %vm1073, %v8227, %v8231
      %v8234 = vshrl.u32 %v8145, 16
      %v8236 = vrot.slane %v8234, 4
      %v8237 = vshll.u32 %v8145, 16
      %v8239 = vrot.slane %v8237, 5
      %v8240 = vor.u32 %v8236, %v8239
      %v8241 = vrot.slane %v8240, 4
      %v8243 = vshll.u32 %v8146, 16
      %v8245 = vrot.slane %v8243, 5
      %v8246 = vsel %vm1073, %v8241, %v8245
      %v8248 = vshrl.u32 %v8147, 16
      %v8250 = vrot.slane %v8248, 4
      %v8251 = vshll.u32 %v8147, 16
      %v8253 = vrot.slane %v8251, 5
      %v8254 = vor.u32 %v8250, %v8253
      %v8255 = vrot.slane %v8254, 4
      %v8257 = vshll.u32 %v8148, 16
      %v8259 = vrot.slane %v8257, 5
      %v8260 = vsel %vm1073, %v8255, %v8259
      %s8261 = scalar_lea.vmem %s3, 32
      %v8262 = vld [vmem:[%s8261] sm:$0xf]
      %v8263 = vld [vmem:[%s8261 + $0x4] sm:$0xf]
      %v8264 = vunpack.c.l.b16 %v8162
      %v8265 = vunpack.c.l.b16 %v8176
      %v8266 = vunpack.c.l.b16 %v8190
      %v8267 = vunpack.c.l.b16 %v8204
      %v8268 = vunpack.c.l.b16 %v8218
      %v8269 = vunpack.c.l.b16 %v8232
      %v8270 = vunpack.c.l.b16 %v8246
      %v8271 = vunpack.c.l.b16 %v8260
      %v8272 = vpack.c.b16 %v8265, %v8264
      %v8273 = vpack.c.b16 %v8267, %v8266
      %v8274 = vpack.c.b16 %v8269, %v8268
      %v8275 = vpack.c.b16 %v8271, %v8270
      %v8278 = vunpack.c.l.b16 %v8262
      %v8279 = vunpack.c.l.b16 %v8263
      %v8280 = vpack.c.b16 %v8279, %v8278
      %v8283 = vsel %vm7668, %v8272, 0
      %v8286 = vsel %vm7668, %v8273, 0
      %v8289 = vsel %vm7668, %v8274, 0
      %v8292 = vsel %vm7668, %v8275, 0
      %8294 = vmatprep.subr.bf16.mxu0 0
      %8295 = vmatpush1.bf16.msra.mxu0 %v8280
      %8296 = vmatprep.subr.bf16.mxu0 0
      %8297 = vmatpush1.bf16.msra.mxu0 0
      %8298 = vmatprep.subr.bf16.mxu0 0
      %8299 = vmatpush1.bf16.msra.mxu0 0
      %8300 = vmatprep.subr.bf16.mxu0 0
      %8301 = vmatpush1.bf16.msra.mxu0 0
      %8302 = vmatprep.subr.bf16.mxu0 0
      %8303 = vmatpush1.bf16.msra.mxu0 0
      %8304 = vmatprep.subr.bf16.mxu0 0
      %8305 = vmatpush1.bf16.msra.mxu0 0
      %8306 = vmatprep.subr.bf16.mxu0 0
      %8307 = vmatpush1.bf16.msra.mxu0 0
      %8308 = vmatprep.subr.bf16.mxu0 0
      %8309 = vmatpush1.bf16.msra.mxu0 0
      %8310 = vmatprep.subr.bf16.mxu0 0
      %8311 = vmatpush1.bf16.msra.mxu0 0
      %8312 = vmatprep.subr.bf16.mxu0 0
      %8313 = vmatpush1.bf16.msra.mxu0 0
      %8314 = vmatprep.subr.bf16.mxu0 0
      %8315 = vmatpush1.bf16.msra.mxu0 0
      %8316 = vmatprep.subr.bf16.mxu0 0
      %8317 = vmatpush1.bf16.msra.mxu0 0
      %8318 = vmatprep.subr.bf16.mxu0 0
      %8319 = vmatpush1.bf16.msra.mxu0 0
      %8320 = vmatprep.subr.bf16.mxu0 0
      %8321 = vmatpush1.bf16.msra.mxu0 0
      %8322 = vmatprep.subr.bf16.mxu0 0
      %8323 = vmatpush1.bf16.msra.mxu0 0
      %8324 = vmatprep.subr.bf16.mxu0 0
      %8325 = vmatpush1.bf16.msra.mxu0 0
      %8326 = vmatprep.mubr.bf16.mxu0 0
      %8327 = vmatmul.mubr.bf16.gmra.mrb[0].mxu0 %v8283
      %v8328 = vpop.f32.mrb[0].mxu0
      %v8329 = vadd.f32 0.0, %v8328
      %v8330 = vpop.f32.mrb[0].mxu0
      %v8331 = vpop.f32.mrb[0].mxu0
      %v8332 = vadd.f32 0.0, %v8331
      %v8333 = vpop.f32.mrb[0].mxu0
      %8334 = vmatprep.mubr.bf16.mxu0 0
      %8335 = vmatmul.mubr.bf16.gmra.mrb[0].mxu0 %v8286
      %v8336 = vpop.f32.mrb[0].mxu0
      %v8337 = vadd.f32 0.0, %v8336
      %v8338 = vpop.f32.mrb[0].mxu0
      %v8339 = vpop.f32.mrb[0].mxu0
      %v8340 = vadd.f32 0.0, %v8339
      %v8341 = vpop.f32.mrb[0].mxu0
      %8342 = vmatprep.mubr.bf16.mxu0 0
      %8343 = vmatmul.mubr.bf16.gmra.mrb[0].mxu0 %v8289
      %v8344 = vpop.f32.mrb[0].mxu0
      %v8345 = vadd.f32 0.0, %v8344
      %v8346 = vpop.f32.mrb[0].mxu0
      %v8347 = vpop.f32.mrb[0].mxu0
      %v8348 = vadd.f32 0.0, %v8347
      %v8349 = vpop.f32.mrb[0].mxu0
      %8350 = vmatprep.mubr.bf16.mxu0 0
      %8351 = vmatmul.mubr.bf16.gmra.mrb[0].mxu0 %v8292
      %v8352 = vpop.f32.mrb[0].mxu0
      %v8353 = vadd.f32 0.0, %v8352
      %v8354 = vpop.f32.mrb[0].mxu0
      %v8355 = vpop.f32.mrb[0].mxu0
      %v8356 = vadd.f32 0.0, %v8355
      %v8357 = vpop.f32.mrb[0].mxu0
      %8358 = vdwg.mxu0
      %v8359 = vadd.f32 %v8125, %v8329
      %v8360 = vadd.f32 %v8126, %v8332
      %v8361 = vadd.f32 %v8127, %v8337
      %v8362 = vadd.f32 %v8128, %v8340
      %v8363 = vadd.f32 %v8129, %v8345
      %v8364 = vadd.f32 %v8130, %v8348
      %v8365 = vadd.f32 %v8131, %v8353
      %v8366 = vadd.f32 %v8132, %v8356
      %v8367 = vld [vmem:[%s7465] sm:$0xe]
      %v8368 = vld [vmem:[%s7465 + $0x8] sm:$0xe]
      %v8369 = vld [vmem:[%s7465 + $0x10] sm:$0xe]
      %v8370 = vld [vmem:[%s7465 + $0x18] sm:$0xe]
      %v8371 = vld [vmem:[%s7465 + $0x20] sm:$0xe]
      %v8372 = vld [vmem:[%s7465 + $0x28] sm:$0xe]
      %v8373 = vld [vmem:[%s7465 + $0x30] sm:$0xe]
      %v8374 = vld [vmem:[%s7465 + $0x38] sm:$0xe]
      %v8391 = vrot.slane %v8367, 5
      %v8392 = vrot.slane %v8391, 4
      %v8393 = vrot.slane %v8134, 5
      %v8394 = vsel %vm2067, %v8392, %v8393
      %v8395 = vrot.slane %v8368, 5
      %v8396 = vrot.slane %v8395, 4
      %v8397 = vrot.slane %v8136, 5
      %v8398 = vsel %vm2067, %v8396, %v8397
      %v8399 = vrot.slane %v8369, 5
      %v8400 = vrot.slane %v8399, 4
      %v8401 = vrot.slane %v8138, 5
      %v8402 = vsel %vm2067, %v8400, %v8401
      %v8403 = vrot.slane %v8370, 5
      %v8404 = vrot.slane %v8403, 4
      %v8405 = vrot.slane %v8140, 5
      %v8406 = vsel %vm2067, %v8404, %v8405
      %v8407 = vrot.slane %v8371, 5
      %v8408 = vrot.slane %v8407, 4
      %v8409 = vrot.slane %v8142, 5
      %v8410 = vsel %vm2067, %v8408, %v8409
      %v8411 = vrot.slane %v8372, 5
      %v8412 = vrot.slane %v8411, 4
      %v8413 = vrot.slane %v8144, 5
      %v8414 = vsel %vm2067, %v8412, %v8413
      %v8415 = vrot.slane %v8373, 5
      %v8416 = vrot.slane %v8415, 4
      %v8417 = vrot.slane %v8146, 5
      %v8418 = vsel %vm2067, %v8416, %v8417
      %v8419 = vrot.slane %v8374, 5
      %v8420 = vrot.slane %v8419, 4
      %v8421 = vrot.slane %v8148, 5
      %v8422 = vsel %vm2067, %v8420, %v8421
      %s8423 = scalar_lea.vmem %s3, 40
      %v8424 = vld [vmem:[%s8423] sm:$0xf]
      %v8425 = vld [vmem:[%s8423 + $0x4] sm:$0xf]
      %v8426 = vunpack.c.l.b16 %v8394
      %v8427 = vunpack.c.l.b16 %v8398
      %v8428 = vunpack.c.l.b16 %v8402
      %v8429 = vunpack.c.l.b16 %v8406
      %v8430 = vunpack.c.l.b16 %v8410
      %v8431 = vunpack.c.l.b16 %v8414
      %v8432 = vunpack.c.l.b16 %v8418
      %v8433 = vunpack.c.l.b16 %v8422
      %v8434 = vpack.c.b16 %v8427, %v8426
      %v8435 = vpack.c.b16 %v8429, %v8428
      %v8436 = vpack.c.b16 %v8431, %v8430
      %v8437 = vpack.c.b16 %v8433, %v8432
      %v8440 = vunpack.c.l.b16 %v8424
      %v8441 = vunpack.c.l.b16 %v8425
      %v8442 = vpack.c.b16 %v8441, %v8440
      %v8445 = vsel %vm7668, %v8434, 0
      %v8448 = vsel %vm7668, %v8435, 0
      %v8451 = vsel %vm7668, %v8436, 0
      %v8454 = vsel %vm7668, %v8437, 0
      %8456 = vmatprep.subr.bf16.mxu0 0
      %8457 = vmatpush1.bf16.msra.mxu0 %v8442
      %8458 = vmatprep.subr.bf16.mxu0 0
      %8459 = vmatpush1.bf16.msra.mxu0 0
      %8460 = vmatprep.subr.bf16.mxu0 0
      %8461 = vmatpush1.bf16.msra.mxu0 0
      %8462 = vmatprep.subr.bf16.mxu0 0
      %8463 = vmatpush1.bf16.msra.mxu0 0
      %8464 = vmatprep.subr.bf16.mxu0 0
      %8465 = vmatpush1.bf16.msra.mxu0 0
      %8466 = vmatprep.subr.bf16.mxu0 0
      %8467 = vmatpush1.bf16.msra.mxu0 0
      %8468 = vmatprep.subr.bf16.mxu0 0
      %8469 = vmatpush1.bf16.msra.mxu0 0
      %8470 = vmatprep.subr.bf16.mxu0 0
      %8471 = vmatpush1.bf16.msra.mxu0 0
      %8472 = vmatprep.subr.bf16.mxu0 0
      %8473 = vmatpush1.bf16.msra.mxu0 0
      %8474 = vmatprep.subr.bf16.mxu0 0
      %8475 = vmatpush1.bf16.msra.mxu0 0
      %8476 = vmatprep.subr.bf16.mxu0 0
      %8477 = vmatpush1.bf16.msra.mxu0 0
      %8478 = vmatprep.subr.bf16.mxu0 0
      %8479 = vmatpush1.bf16.msra.mxu0 0
      %8480 = vmatprep.subr.bf16.mxu0 0
      %8481 = vmatpush1.bf16.msra.mxu0 0
      %8482 = vmatprep.subr.bf16.mxu0 0
      %8483 = vmatpush1.bf16.msra.mxu0 0
      %8484 = vmatprep.subr.bf16.mxu0 0
      %8485 = vmatpush1.bf16.msra.mxu0 0
      %8486 = vmatprep.subr.bf16.mxu0 0
      %8487 = vmatpush1.bf16.msra.mxu0 0
      %8488 = vmatprep.mubr.bf16.mxu0 0
      %8489 = vmatmul.mubr.bf16.gmra.mrb[0].mxu0 %v8445
      %v8490 = vpop.f32.mrb[0].mxu0
      %v8491 = vadd.f32 0.0, %v8490
      %v8492 = vpop.f32.mrb[0].mxu0
      %v8493 = vpop.f32.mrb[0].mxu0
      %v8494 = vadd.f32 0.0, %v8493
      %v8495 = vpop.f32.mrb[0].mxu0
      %8496 = vmatprep.mubr.bf16.mxu0 0
      %8497 = vmatmul.mubr.bf16.gmra.mrb[0].mxu0 %v8448
      %v8498 = vpop.f32.mrb[0].mxu0
      %v8499 = vadd.f32 0.0, %v8498
      %v8500 = vpop.f32.mrb[0].mxu0
      %v8501 = vpop.f32.mrb[0].mxu0
      %v8502 = vadd.f32 0.0, %v8501
      %v8503 = vpop.f32.mrb[0].mxu0
      %8504 = vmatprep.mubr.bf16.mxu0 0
      %8505 = vmatmul.mubr.bf16.gmra.mrb[0].mxu0 %v8451
      %v8506 = vpop.f32.mrb[0].mxu0
      %v8507 = vadd.f32 0.0, %v8506
      %v8508 = vpop.f32.mrb[0].mxu0
      %v8509 = vpop.f32.mrb[0].mxu0
      %v8510 = vadd.f32 0.0, %v8509
      %v8511 = vpop.f32.mrb[0].mxu0
      %8512 = vmatprep.mubr.bf16.mxu0 0
      %8513 = vmatmul.mubr.bf16.gmra.mrb[0].mxu0 %v8454
      %v8514 = vpop.f32.mrb[0].mxu0
      %v8515 = vadd.f32 0.0, %v8514
      %v8516 = vpop.f32.mrb[0].mxu0
      %v8517 = vpop.f32.mrb[0].mxu0
      %v8518 = vadd.f32 0.0, %v8517
      %v8519 = vpop.f32.mrb[0].mxu0
      %8520 = vdwg.mxu0
      %v8521 = vadd.f32 %v8359, %v8491
      %v8522 = vadd.f32 %v8360, %v8494
      %v8523 = vadd.f32 %v8361, %v8499
      %v8524 = vadd.f32 %v8362, %v8502
      %v8525 = vadd.f32 %v8363, %v8507
      %v8526 = vadd.f32 %v8364, %v8510
      %v8527 = vadd.f32 %v8365, %v8515
      %v8528 = vadd.f32 %v8366, %v8518
      %s8529 = scalar_lea.vmem [#allocation3], 16
      %v8530 = vld [vmem:[%s8529] sm:$0xf]
      %v8531 = vld [vmem:[%s8529 + $0x8] sm:$0xf]
      %v8532 = vld [vmem:[%s8529 + $0x10] sm:$0xf]
      %v8533 = vld [vmem:[%s8529 + $0x18] sm:$0xf]
      %v8534 = vld [vmem:[%s8529 + $0x20] sm:$0xf]
      %v8535 = vld [vmem:[%s8529 + $0x28] sm:$0xf]
      %v8536 = vld [vmem:[%s8529 + $0x30] sm:$0xf]
      %v8537 = vld [vmem:[%s8529 + $0x38] sm:$0xf]
      %s8538 = scalar_lea.vmem %s3, 48
      %v8539 = vld [vmem:[%s8538] sm:$0xf]
      %v8540 = vld [vmem:[%s8538 + $0x4] sm:$0xf]
      %v8549 = vunpack.c.l.b16 %v8530
      %v8550 = vunpack.c.l.b16 %v8531
      %v8551 = vunpack.c.l.b16 %v8532
      %v8552 = vunpack.c.l.b16 %v8533
      %v8553 = vunpack.c.l.b16 %v8534
      %v8554 = vunpack.c.l.b16 %v8535
      %v8555 = vunpack.c.l.b16 %v8536
      %v8556 = vunpack.c.l.b16 %v8537
      %v8557 = vpack.c.b16 %v8550, %v8549
      %v8558 = vpack.c.b16 %v8552, %v8551
      %v8559 = vpack.c.b16 %v8554, %v8553
      %v8560 = vpack.c.b16 %v8556, %v8555
      %v8563 = vunpack.c.l.b16 %v8539
      %v8564 = vunpack.c.l.b16 %v8540
      %v8565 = vpack.c.b16 %v8564, %v8563
      %v8568 = vsel %vm7668, %v8557, 0
      %v8571 = vsel %vm7668, %v8558, 0
      %v8574 = vsel %vm7668, %v8559, 0
      %v8577 = vsel %vm7668, %v8560, 0
      %8579 = vmatprep.subr.bf16.mxu0 0
      %8580 = vmatpush1.bf16.msra.mxu0 %v8565
      %8581 = vmatprep.subr.bf16.mxu0 0
      %8582 = vmatpush1.bf16.msra.mxu0 0
      %8583 = vmatprep.subr.bf16.mxu0 0
      %8584 = vmatpush1.bf16.msra.mxu0 0
      %8585 = vmatprep.subr.bf16.mxu0 0
      %8586 = vmatpush1.bf16.msra.mxu0 0
      %8587 = vmatprep.subr.bf16.mxu0 0
      %8588 = vmatpush1.bf16.msra.mxu0 0
      %8589 = vmatprep.subr.bf16.mxu0 0
      %8590 = vmatpush1.bf16.msra.mxu0 0
      %8591 = vmatprep.subr.bf16.mxu0 0
      %8592 = vmatpush1.bf16.msra.mxu0 0
      %8593 = vmatprep.subr.bf16.mxu0 0
      %8594 = vmatpush1.bf16.msra.mxu0 0
      %8595 = vmatprep.subr.bf16.mxu0 0
      %8596 = vmatpush1.bf16.msra.mxu0 0
      %8597 = vmatprep.subr.bf16.mxu0 0
      %8598 = vmatpush1.bf16.msra.mxu0 0
      %8599 = vmatprep.subr.bf16.mxu0 0
      %8600 = vmatpush1.bf16.msra.mxu0 0
      %8601 = vmatprep.subr.bf16.mxu0 0
      %8602 = vmatpush1.bf16.msra.mxu0 0
      %8603 = vmatprep.subr.bf16.mxu0 0
      %8604 = vmatpush1.bf16.msra.mxu0 0
      %8605 = vmatprep.subr.bf16.mxu0 0
      %8606 = vmatpush1.bf16.msra.mxu0 0
      %8607 = vmatprep.subr.bf16.mxu0 0
      %8608 = vmatpush1.bf16.msra.mxu0 0
      %8609 = vmatprep.subr.bf16.mxu0 0
      %8610 = vmatpush1.bf16.msra.mxu0 0
      %8611 = vmatprep.mubr.bf16.mxu0 0
      %8612 = vmatmul.mubr.bf16.gmra.mrb[0].mxu0 %v8568
      %v8613 = vpop.f32.mrb[0].mxu0
      %v8614 = vadd.f32 0.0, %v8613
      %v8615 = vpop.f32.mrb[0].mxu0
      %v8616 = vpop.f32.mrb[0].mxu0
      %v8617 = vadd.f32 0.0, %v8616
      %v8618 = vpop.f32.mrb[0].mxu0
      %8619 = vmatprep.mubr.bf16.mxu0 0
      %8620 = vmatmul.mubr.bf16.gmra.mrb[0].mxu0 %v8571
      %v8621 = vpop.f32.mrb[0].mxu0
      %v8622 = vadd.f32 0.0, %v8621
      %v8623 = vpop.f32.mrb[0].mxu0
      %v8624 = vpop.f32.mrb[0].mxu0
      %v8625 = vadd.f32 0.0, %v8624
      %v8626 = vpop.f32.mrb[0].mxu0
      %8627 = vmatprep.mubr.bf16.mxu0 0
      %8628 = vmatmul.mubr.bf16.gmra.mrb[0].mxu0 %v8574
      %v8629 = vpop.f32.mrb[0].mxu0
      %v8630 = vadd.f32 0.0, %v8629
      %v8631 = vpop.f32.mrb[0].mxu0
      %v8632 = vpop.f32.mrb[0].mxu0
      %v8633 = vadd.f32 0.0, %v8632
      %v8634 = vpop.f32.mrb[0].mxu0
      %8635 = vmatprep.mubr.bf16.mxu0 0
      %8636 = vmatmul.mubr.bf16.gmra.mrb[0].mxu0 %v8577
      %v8637 = vpop.f32.mrb[0].mxu0
      %v8638 = vadd.f32 0.0, %v8637
      %v8639 = vpop.f32.mrb[0].mxu0
      %v8640 = vpop.f32.mrb[0].mxu0
      %v8641 = vadd.f32 0.0, %v8640
      %v8642 = vpop.f32.mrb[0].mxu0
      %8643 = vdwg.mxu0
      %v8644 = vadd.f32 %v8521, %v8614
      %v8645 = vadd.f32 %v8522, %v8617
      %v8646 = vadd.f32 %v8523, %v8622
      %v8647 = vadd.f32 %v8524, %v8625
      %v8648 = vadd.f32 %v8525, %v8630
      %v8649 = vadd.f32 %v8526, %v8633
      %v8650 = vadd.f32 %v8527, %v8638
      %v8651 = vadd.f32 %v8528, %v8641
      %v8652 = vld [vmem:[%s8529] sm:$0xf]
      %v8653 = vld [vmem:[%s8529 + $0x4] sm:$0x1]
      %v8654 = vld [vmem:[%s8529 + $0x8] sm:$0xf]
      %v8655 = vld [vmem:[%s8529 + $0xc] sm:$0x1]
      %v8656 = vld [vmem:[%s8529 + $0x10] sm:$0xf]
      %v8657 = vld [vmem:[%s8529 + $0x14] sm:$0x1]
      %v8658 = vld [vmem:[%s8529 + $0x18] sm:$0xf]
      %v8659 = vld [vmem:[%s8529 + $0x1c] sm:$0x1]
      %v8660 = vld [vmem:[%s8529 + $0x20] sm:$0xf]
      %v8661 = vld [vmem:[%s8529 + $0x24] sm:$0x1]
      %v8662 = vld [vmem:[%s8529 + $0x28] sm:$0xf]
      %v8663 = vld [vmem:[%s8529 + $0x2c] sm:$0x1]
      %v8664 = vld [vmem:[%s8529 + $0x30] sm:$0xf]
      %v8665 = vld [vmem:[%s8529 + $0x34] sm:$0x1]
      %v8666 = vld [vmem:[%s8529 + $0x38] sm:$0xf]
      %v8667 = vld [vmem:[%s8529 + $0x3c] sm:$0x1]
      %v8669 = vshrl.u32 %v8652, 16
      %v8671 = vrot.slane %v8669, 4
      %v8672 = vshll.u32 %v8652, 16
      %v8674 = vrot.slane %v8672, 5
      %v8675 = vor.u32 %v8671, %v8674
      %v8676 = vrot.slane %v8675, 4
      %v8678 = vshll.u32 %v8653, 16
      %v8680 = vrot.slane %v8678, 5
      %v8681 = vsel %vm1073, %v8676, %v8680
      %v8683 = vshrl.u32 %v8654, 16
      %v8685 = vrot.slane %v8683, 4
      %v8686 = vshll.u32 %v8654, 16
      %v8688 = vrot.slane %v8686, 5
      %v8689 = vor.u32 %v8685, %v8688
      %v8690 = vrot.slane %v8689, 4
      %v8692 = vshll.u32 %v8655, 16
      %v8694 = vrot.slane %v8692, 5
      %v8695 = vsel %vm1073, %v8690, %v8694
      %v8697 = vshrl.u32 %v8656, 16
      %v8699 = vrot.slane %v8697, 4
      %v8700 = vshll.u32 %v8656, 16
      %v8702 = vrot.slane %v8700, 5
      %v8703 = vor.u32 %v8699, %v8702
      %v8704 = vrot.slane %v8703, 4
      %v8706 = vshll.u32 %v8657, 16
      %v8708 = vrot.slane %v8706, 5
      %v8709 = vsel %vm1073, %v8704, %v8708
      %v8711 = vshrl.u32 %v8658, 16
      %v8713 = vrot.slane %v8711, 4
      %v8714 = vshll.u32 %v8658, 16
      %v8716 = vrot.slane %v8714, 5
      %v8717 = vor.u32 %v8713, %v8716
      %v8718 = vrot.slane %v8717, 4
      %v8720 = vshll.u32 %v8659, 16
      %v8722 = vrot.slane %v8720, 5
      %v8723 = vsel %vm1073, %v8718, %v8722
      %v8725 = vshrl.u32 %v8660, 16
      %v8727 = vrot.slane %v8725, 4
      %v8728 = vshll.u32 %v8660, 16
      %v8730 = vrot.slane %v8728, 5
      %v8731 = vor.u32 %v8727, %v8730
      %v8732 = vrot.slane %v8731, 4
      %v8734 = vshll.u32 %v8661, 16
      %v8736 = vrot.slane %v8734, 5
      %v8737 = vsel %vm1073, %v8732, %v8736
      %v8739 = vshrl.u32 %v8662, 16
      %v8741 = vrot.slane %v8739, 4
      %v8742 = vshll.u32 %v8662, 16
      %v8744 = vrot.slane %v8742, 5
      %v8745 = vor.u32 %v8741, %v8744
      %v8746 = vrot.slane %v8745, 4
      %v8748 = vshll.u32 %v8663, 16
      %v8750 = vrot.slane %v8748, 5
      %v8751 = vsel %vm1073, %v8746, %v8750
      %v8753 = vshrl.u32 %v8664, 16
      %v8755 = vrot.slane %v8753, 4
      %v8756 = vshll.u32 %v8664, 16
      %v8758 = vrot.slane %v8756, 5
      %v8759 = vor.u32 %v8755, %v8758
      %v8760 = vrot.slane %v8759, 4
      %v8762 = vshll.u32 %v8665, 16
      %v8764 = vrot.slane %v8762, 5
      %v8765 = vsel %vm1073, %v8760, %v8764
      %v8767 = vshrl.u32 %v8666, 16
      %v8769 = vrot.slane %v8767, 4
      %v8770 = vshll.u32 %v8666, 16
      %v8772 = vrot.slane %v8770, 5
      %v8773 = vor.u32 %v8769, %v8772
      %v8774 = vrot.slane %v8773, 4
      %v8776 = vshll.u32 %v8667, 16
      %v8778 = vrot.slane %v8776, 5
      %v8779 = vsel %vm1073, %v8774, %v8778
      %s8780 = scalar_lea.vmem %s3, 56
      %v8781 = vld [vmem:[%s8780] sm:$0xf]
      %v8782 = vld [vmem:[%s8780 + $0x4] sm:$0xf]
      %v8783 = vunpack.c.l.b16 %v8681
      %v8784 = vunpack.c.l.b16 %v8695
      %v8785 = vunpack.c.l.b16 %v8709
      %v8786 = vunpack.c.l.b16 %v8723
      %v8787 = vunpack.c.l.b16 %v8737
      %v8788 = vunpack.c.l.b16 %v8751
      %v8789 = vunpack.c.l.b16 %v8765
      %v8790 = vunpack.c.l.b16 %v8779
      %v8791 = vpack.c.b16 %v8784, %v8783
      %v8792 = vpack.c.b16 %v8786, %v8785
      %v8793 = vpack.c.b16 %v8788, %v8787
      %v8794 = vpack.c.b16 %v8790, %v8789
      %v8797 = vunpack.c.l.b16 %v8781
      %v8798 = vunpack.c.l.b16 %v8782
      %v8799 = vpack.c.b16 %v8798, %v8797
      %v8802 = vsel %vm7668, %v8791, 0
      %v8805 = vsel %vm7668, %v8792, 0
      %v8808 = vsel %vm7668, %v8793, 0
      %v8811 = vsel %vm7668, %v8794, 0
      %8813 = vmatprep.subr.bf16.mxu0 0
      %8814 = vmatpush1.bf16.msra.mxu0 %v8799
      %8815 = vmatprep.subr.bf16.mxu0 0
      %8816 = vmatpush1.bf16.msra.mxu0 0
      %8817 = vmatprep.subr.bf16.mxu0 0
      %8818 = vmatpush1.bf16.msra.mxu0 0
      %8819 = vmatprep.subr.bf16.mxu0 0
      %8820 = vmatpush1.bf16.msra.mxu0 0
      %8821 = vmatprep.subr.bf16.mxu0 0
      %8822 = vmatpush1.bf16.msra.mxu0 0
      %8823 = vmatprep.subr.bf16.mxu0 0
      %8824 = vmatpush1.bf16.msra.mxu0 0
      %8825 = vmatprep.subr.bf16.mxu0 0
      %8826 = vmatpush1.bf16.msra.mxu0 0
      %8827 = vmatprep.subr.bf16.mxu0 0
      %8828 = vmatpush1.bf16.msra.mxu0 0
      %8829 = vmatprep.subr.bf16.mxu0 0
      %8830 = vmatpush1.bf16.msra.mxu0 0
      %8831 = vmatprep.subr.bf16.mxu0 0
      %8832 = vmatpush1.bf16.msra.mxu0 0
      %8833 = vmatprep.subr.bf16.mxu0 0
      %8834 = vmatpush1.bf16.msra.mxu0 0
      %8835 = vmatprep.subr.bf16.mxu0 0
      %8836 = vmatpush1.bf16.msra.mxu0 0
      %8837 = vmatprep.subr.bf16.mxu0 0
      %8838 = vmatpush1.bf16.msra.mxu0 0
      %8839 = vmatprep.subr.bf16.mxu0 0
      %8840 = vmatpush1.bf16.msra.mxu0 0
      %8841 = vmatprep.subr.bf16.mxu0 0
      %8842 = vmatpush1.bf16.msra.mxu0 0
      %8843 = vmatprep.subr.bf16.mxu0 0
      %8844 = vmatpush1.bf16.msra.mxu0 0
      %8845 = vmatprep.mubr.bf16.mxu0 0
      %8846 = vmatmul.mubr.bf16.gmra.mrb[0].mxu0 %v8802
      %v8847 = vpop.f32.mrb[0].mxu0
      %v8848 = vadd.f32 0.0, %v8847
      %v8849 = vpop.f32.mrb[0].mxu0
      %v8850 = vpop.f32.mrb[0].mxu0
      %v8851 = vadd.f32 0.0, %v8850
      %v8852 = vpop.f32.mrb[0].mxu0
      %8853 = vmatprep.mubr.bf16.mxu0 0
      %8854 = vmatmul.mubr.bf16.gmra.mrb[0].mxu0 %v8805
      %v8855 = vpop.f32.mrb[0].mxu0
      %v8856 = vadd.f32 0.0, %v8855
      %v8857 = vpop.f32.mrb[0].mxu0
      %v8858 = vpop.f32.mrb[0].mxu0
      %v8859 = vadd.f32 0.0, %v8858
      %v8860 = vpop.f32.mrb[0].mxu0
      %8861 = vmatprep.mubr.bf16.mxu0 0
      %8862 = vmatmul.mubr.bf16.gmra.mrb[0].mxu0 %v8808
      %v8863 = vpop.f32.mrb[0].mxu0
      %v8864 = vadd.f32 0.0, %v8863
      %v8865 = vpop.f32.mrb[0].mxu0
      %v8866 = vpop.f32.mrb[0].mxu0
      %v8867 = vadd.f32 0.0, %v8866
      %v8868 = vpop.f32.mrb[0].mxu0
      %8869 = vmatprep.mubr.bf16.mxu0 0
      %8870 = vmatmul.mubr.bf16.gmra.mrb[0].mxu0 %v8811
      %v8871 = vpop.f32.mrb[0].mxu0
      %v8872 = vadd.f32 0.0, %v8871
      %v8873 = vpop.f32.mrb[0].mxu0
      %v8874 = vpop.f32.mrb[0].mxu0
      %v8875 = vadd.f32 0.0, %v8874
      %v8876 = vpop.f32.mrb[0].mxu0
      %8877 = vdwg.mxu0
      %v8878 = vadd.f32 %v8644, %v8848
      %v8879 = vadd.f32 %v8645, %v8851
      %v8880 = vadd.f32 %v8646, %v8856
      %v8881 = vadd.f32 %v8647, %v8859
      %v8882 = vadd.f32 %v8648, %v8864
      %v8883 = vadd.f32 %v8649, %v8867
      %v8884 = vadd.f32 %v8650, %v8872
      %v8885 = vadd.f32 %v8651, %v8875
      %v8886 = vld [vmem:[%s8529] sm:$0xe]
      %v8887 = vld [vmem:[%s8529 + $0x8] sm:$0xe]
      %v8888 = vld [vmem:[%s8529 + $0x10] sm:$0xe]
      %v8889 = vld [vmem:[%s8529 + $0x18] sm:$0xe]
      %v8890 = vld [vmem:[%s8529 + $0x20] sm:$0xe]
      %v8891 = vld [vmem:[%s8529 + $0x28] sm:$0xe]
      %v8892 = vld [vmem:[%s8529 + $0x30] sm:$0xe]
      %v8893 = vld [vmem:[%s8529 + $0x38] sm:$0xe]
      %v8910 = vrot.slane %v8886, 5
      %v8911 = vrot.slane %v8910, 4
      %v8912 = vrot.slane %v8653, 5
      %v8913 = vsel %vm2067, %v8911, %v8912
      %v8914 = vrot.slane %v8887, 5
      %v8915 = vrot.slane %v8914, 4
      %v8916 = vrot.slane %v8655, 5
      %v8917 = vsel %vm2067, %v8915, %v8916
      %v8918 = vrot.slane %v8888, 5
      %v8919 = vrot.slane %v8918, 4
      %v8920 = vrot.slane %v8657, 5
      %v8921 = vsel %vm2067, %v8919, %v8920
      %v8922 = vrot.slane %v8889, 5
      %v8923 = vrot.slane %v8922, 4
      %v8924 = vrot.slane %v8659, 5
      %v8925 = vsel %vm2067, %v8923, %v8924
      %v8926 = vrot.slane %v8890, 5
      %v8927 = vrot.slane %v8926, 4
      %v8928 = vrot.slane %v8661, 5
      %v8929 = vsel %vm2067, %v8927, %v8928
      %v8930 = vrot.slane %v8891, 5
      %v8931 = vrot.slane %v8930, 4
      %v8932 = vrot.slane %v8663, 5
      %v8933 = vsel %vm2067, %v8931, %v8932
      %v8934 = vrot.slane %v8892, 5
      %v8935 = vrot.slane %v8934, 4
      %v8936 = vrot.slane %v8665, 5
      %v8937 = vsel %vm2067, %v8935, %v8936
      %v8938 = vrot.slane %v8893, 5
      %v8939 = vrot.slane %v8938, 4
      %v8940 = vrot.slane %v8667, 5
      %v8941 = vsel %vm2067, %v8939, %v8940
      %s8942 = scalar_lea.vmem %s3, 64
      %v8943 = vld [vmem:[%s8942] sm:$0xf]
      %v8944 = vld [vmem:[%s8942 + $0x4] sm:$0xf]
      %v8945 = vunpack.c.l.b16 %v8913
      %v8946 = vunpack.c.l.b16 %v8917
      %v8947 = vunpack.c.l.b16 %v8921
      %v8948 = vunpack.c.l.b16 %v8925
      %v8949 = vunpack.c.l.b16 %v8929
      %v8950 = vunpack.c.l.b16 %v8933
      %v8951 = vunpack.c.l.b16 %v8937
      %v8952 = vunpack.c.l.b16 %v8941
      %v8953 = vpack.c.b16 %v8946, %v8945
      %v8954 = vpack.c.b16 %v8948, %v8947
      %v8955 = vpack.c.b16 %v8950, %v8949
      %v8956 = vpack.c.b16 %v8952, %v8951
      %v8959 = vunpack.c.l.b16 %v8943
      %v8960 = vunpack.c.l.b16 %v8944
      %v8961 = vpack.c.b16 %v8960, %v8959
      %v8964 = vsel %vm7668, %v8953, 0
      %v8967 = vsel %vm7668, %v8954, 0
      %v8970 = vsel %vm7668, %v8955, 0
      %v8973 = vsel %vm7668, %v8956, 0
      %8975 = vmatprep.subr.bf16.mxu0 0
      %8976 = vmatpush1.bf16.msra.mxu0 %v8961
      %8977 = vmatprep.subr.bf16.mxu0 0
      %8978 = vmatpush1.bf16.msra.mxu0 0
      %8979 = vmatprep.subr.bf16.mxu0 0
      %8980 = vmatpush1.bf16.msra.mxu0 0
      %8981 = vmatprep.subr.bf16.mxu0 0
      %8982 = vmatpush1.bf16.msra.mxu0 0
      %8983 = vmatprep.subr.bf16.mxu0 0
      %8984 = vmatpush1.bf16.msra.mxu0 0
      %8985 = vmatprep.subr.bf16.mxu0 0
      %8986 = vmatpush1.bf16.msra.mxu0 0
      %8987 = vmatprep.subr.bf16.mxu0 0
      %8988 = vmatpush1.bf16.msra.mxu0 0
      %8989 = vmatprep.subr.bf16.mxu0 0
      %8990 = vmatpush1.bf16.msra.mxu0 0
      %8991 = vmatprep.subr.bf16.mxu0 0
      %8992 = vmatpush1.bf16.msra.mxu0 0
      %8993 = vmatprep.subr.bf16.mxu0 0
      %8994 = vmatpush1.bf16.msra.mxu0 0
      %8995 = vmatprep.subr.bf16.mxu0 0
      %8996 = vmatpush1.bf16.msra.mxu0 0
      %8997 = vmatprep.subr.bf16.mxu0 0
      %8998 = vmatpush1.bf16.msra.mxu0 0
      %8999 = vmatprep.subr.bf16.mxu0 0
      %9000 = vmatpush1.bf16.msra.mxu0 0
      %9001 = vmatprep.subr.bf16.mxu0 0
      %9002 = vmatpush1.bf16.msra.mxu0 0
      %9003 = vmatprep.subr.bf16.mxu0 0
      %9004 = vmatpush1.bf16.msra.mxu0 0
      %9005 = vmatprep.subr.bf16.mxu0 0
      %9006 = vmatpush1.bf16.msra.mxu0 0
      %9007 = vmatprep.mubr.bf16.mxu0 0
      %9008 = vmatmul.mubr.bf16.gmra.mrb[0].mxu0 %v8964
      %v9009 = vpop.f32.mrb[0].mxu0
      %v9010 = vadd.f32 0.0, %v9009
      %v9011 = vpop.f32.mrb[0].mxu0
      %v9012 = vpop.f32.mrb[0].mxu0
      %v9013 = vadd.f32 0.0, %v9012
      %v9014 = vpop.f32.mrb[0].mxu0
      %9015 = vmatprep.mubr.bf16.mxu0 0
      %9016 = vmatmul.mubr.bf16.gmra.mrb[0].mxu0 %v8967
      %v9017 = vpop.f32.mrb[0].mxu0
      %v9018 = vadd.f32 0.0, %v9017
      %v9019 = vpop.f32.mrb[0].mxu0
      %v9020 = vpop.f32.mrb[0].mxu0
      %v9021 = vadd.f32 0.0, %v9020
      %v9022 = vpop.f32.mrb[0].mxu0
      %9023 = vmatprep.mubr.bf16.mxu0 0
      %9024 = vmatmul.mubr.bf16.gmra.mrb[0].mxu0 %v8970
      %v9025 = vpop.f32.mrb[0].mxu0
      %v9026 = vadd.f32 0.0, %v9025
      %v9027 = vpop.f32.mrb[0].mxu0
      %v9028 = vpop.f32.mrb[0].mxu0
      %v9029 = vadd.f32 0.0, %v9028
      %v9030 = vpop.f32.mrb[0].mxu0
      %9031 = vmatprep.mubr.bf16.mxu0 0
      %9032 = vmatmul.mubr.bf16.gmra.mrb[0].mxu0 %v8973
      %v9033 = vpop.f32.mrb[0].mxu0
      %v9034 = vadd.f32 0.0, %v9033
      %v9035 = vpop.f32.mrb[0].mxu0
      %v9036 = vpop.f32.mrb[0].mxu0
      %v9037 = vadd.f32 0.0, %v9036
      %v9038 = vpop.f32.mrb[0].mxu0
      %9039 = vdwg.mxu0
      %v9040 = vadd.f32 %v8878, %v9010
      %v9041 = vadd.f32 %v8879, %v9013
      %v9042 = vadd.f32 %v8880, %v9018
      %v9043 = vadd.f32 %v8881, %v9021
      %v9044 = vadd.f32 %v8882, %v9026
      %v9045 = vadd.f32 %v8883, %v9029
      %v9046 = vadd.f32 %v8884, %v9034
      %v9047 = vadd.f32 %v8885, %v9037
      %v9049 = vlaneseq
      %v9050 = vshrl.u32 %v9049, 7
      %v9051 = vsub.s32 0, %v9050
      %v9052 = vrot.slane %v7516, %v9051
      %v9054 = vadd.f32 %v9040, %v9052
      %v9055 = vadd.f32 %v9041, %v9052
      %v9056 = vadd.f32 %v9042, %v9052
      %v9057 = vadd.f32 %v9043, %v9052
      %v9058 = vadd.f32 %v9044, %v9052
      %v9059 = vadd.f32 %v9045, %v9052
      %v9060 = vadd.f32 %v9046, %v9052
      %v9061 = vadd.f32 %v9047, %v9052
      %v9062 = vmax.f32 %v9054, 0.0
      %v9063 = vmax.f32 %v9055, 0.0
      %v9064 = vmax.f32 %v9056, 0.0
      %v9065 = vmax.f32 %v9057, 0.0
      %v9066 = vmax.f32 %v9058, 0.0
      %v9067 = vmax.f32 %v9059, 0.0
      %v9068 = vmax.f32 %v9060, 0.0
      %v9069 = vmax.f32 %v9061, 0.0
      %v9078 = vcombine.high %v9062, %v9062
      %v9080 = vunpack.c.l.s4 1983009808
      %v9081 = vunpack.c.0.s8 %v9080
      %v9082 = vlaneseq
      %v9083 = vshrl.u32 %v9082, 7
      %v9084 = vsub.s32 %v9081, %v9083
      %v9085 = vrot.slane %v9062, %v9084
      %v9087 = vunpack.c.l.s4 1983009808
      %v9088 = vunpack.c.0.s8 %v9087
      %v9089 = vlaneseq
      %v9090 = vshrl.u32 %v9089, 7
      %v9091 = vsub.s32 %v9088, %v9090
      %v9092 = vrot.slane %v9078, %v9091
      %v9093 = vcombine.high %v9085, %v9085
      %v9094 = vcombine.high %v9092, %v9092
      %v9095 = vcombine.high %v9063, %v9063
      %v9097 = vunpack.c.l.s4 1983009808
      %v9098 = vunpack.c.0.s8 %v9097
      %v9099 = vlaneseq
      %v9100 = vshrl.u32 %v9099, 7
      %v9101 = vsub.s32 %v9098, %v9100
      %v9102 = vrot.slane %v9063, %v9101
      %v9104 = vunpack.c.l.s4 1983009808
      %v9105 = vunpack.c.0.s8 %v9104
      %v9106 = vlaneseq
      %v9107 = vshrl.u32 %v9106, 7
      %v9108 = vsub.s32 %v9105, %v9107
      %v9109 = vrot.slane %v9095, %v9108
      %v9110 = vcombine.high %v9102, %v9102
      %v9111 = vcombine.high %v9109, %v9109
      %v9112 = vcombine.high %v9064, %v9064
      %v9114 = vunpack.c.l.s4 1983009808
      %v9115 = vunpack.c.0.s8 %v9114
      %v9116 = vlaneseq
      %v9117 = vshrl.u32 %v9116, 7
      %v9118 = vsub.s32 %v9115, %v9117
      %v9119 = vrot.slane %v9064, %v9118
      %v9121 = vunpack.c.l.s4 1983009808
      %v9122 = vunpack.c.0.s8 %v9121
      %v9123 = vlaneseq
      %v9124 = vshrl.u32 %v9123, 7
      %v9125 = vsub.s32 %v9122, %v9124
      %v9126 = vrot.slane %v9112, %v9125
      %v9127 = vcombine.high %v9119, %v9119
      %v9128 = vcombine.high %v9126, %v9126
      %v9129 = vcombine.high %v9065, %v9065
      %v9131 = vunpack.c.l.s4 1983009808
      %v9132 = vunpack.c.0.s8 %v9131
      %v9133 = vlaneseq
      %v9134 = vshrl.u32 %v9133, 7
      %v9135 = vsub.s32 %v9132, %v9134
      %v9136 = vrot.slane %v9065, %v9135
      %v9138 = vunpack.c.l.s4 1983009808
      %v9139 = vunpack.c.0.s8 %v9138
      %v9140 = vlaneseq
      %v9141 = vshrl.u32 %v9140, 7
      %v9142 = vsub.s32 %v9139, %v9141
      %v9143 = vrot.slane %v9129, %v9142
      %v9144 = vcombine.high %v9136, %v9136
      %v9145 = vcombine.high %v9143, %v9143
      %v9146 = vcombine.high %v9066, %v9066
      %v9148 = vunpack.c.l.s4 1983009808
      %v9149 = vunpack.c.0.s8 %v9148
      %v9150 = vlaneseq
      %v9151 = vshrl.u32 %v9150, 7
      %v9152 = vsub.s32 %v9149, %v9151
      %v9153 = vrot.slane %v9066, %v9152
      %v9155 = vunpack.c.l.s4 1983009808
      %v9156 = vunpack.c.0.s8 %v9155
      %v9157 = vlaneseq
      %v9158 = vshrl.u32 %v9157, 7
      %v9159 = vsub.s32 %v9156, %v9158
      %v9160 = vrot.slane %v9146, %v9159
      %v9161 = vcombine.high %v9153, %v9153
      %v9162 = vcombine.high %v9160, %v9160
      %v9163 = vcombine.high %v9067, %v9067
      %v9165 = vunpack.c.l.s4 1983009808
      %v9166 = vunpack.c.0.s8 %v9165
      %v9167 = vlaneseq
      %v9168 = vshrl.u32 %v9167, 7
      %v9169 = vsub.s32 %v9166, %v9168
      %v9170 = vrot.slane %v9067, %v9169
      %v9172 = vunpack.c.l.s4 1983009808
      %v9173 = vunpack.c.0.s8 %v9172
      %v9174 = vlaneseq
      %v9175 = vshrl.u32 %v9174, 7
      %v9176 = vsub.s32 %v9173, %v9175
      %v9177 = vrot.slane %v9163, %v9176
      %v9178 = vcombine.high %v9170, %v9170
      %v9179 = vcombine.high %v9177, %v9177
      %v9180 = vcombine.high %v9068, %v9068
      %v9182 = vunpack.c.l.s4 1983009808
      %v9183 = vunpack.c.0.s8 %v9182
      %v9184 = vlaneseq
      %v9185 = vshrl.u32 %v9184, 7
      %v9186 = vsub.s32 %v9183, %v9185
      %v9187 = vrot.slane %v9068, %v9186
      %v9189 = vunpack.c.l.s4 1983009808
      %v9190 = vunpack.c.0.s8 %v9189
      %v9191 = vlaneseq
      %v9192 = vshrl.u32 %v9191, 7
      %v9193 = vsub.s32 %v9190, %v9192
      %v9194 = vrot.slane %v9180, %v9193
      %v9195 = vcombine.high %v9187, %v9187
      %v9196 = vcombine.high %v9194, %v9194
      %v9197 = vcombine.high %v9069, %v9069
      %v9199 = vunpack.c.l.s4 1983009808
      %v9200 = vunpack.c.0.s8 %v9199
      %v9201 = vlaneseq
      %v9202 = vshrl.u32 %v9201, 7
      %v9203 = vsub.s32 %v9200, %v9202
      %v9204 = vrot.slane %v9069, %v9203
      %v9206 = vunpack.c.l.s4 1983009808
      %v9207 = vunpack.c.0.s8 %v9206
      %v9208 = vlaneseq
      %v9209 = vshrl.u32 %v9208, 7
      %v9210 = vsub.s32 %v9207, %v9209
      %v9211 = vrot.slane %v9197, %v9210
      %v9212 = vcombine.high %v9204, %v9204
      %v9213 = vcombine.high %v9211, %v9211
      %v9246 = vrot.slane %v9085, 7
      %v9247 = vrot.slane %v9246, 2
      %v9248 = vrot.slane %v9093, 7
      %v9249 = vrot.slane %v9248, 2
      %v9250 = vrot.slane %v9092, 7
      %v9251 = vrot.slane %v9250, 2
      %v9252 = vrot.slane %v9094, 7
      %v9253 = vrot.slane %v9252, 2
      %v9254 = vrot.slane %v9102, 7
      %v9255 = vrot.slane %v9254, 2
      %v9256 = vrot.slane %v9110, 7
      %v9257 = vrot.slane %v9256, 2
      %v9258 = vrot.slane %v9109, 7
      %v9259 = vrot.slane %v9258, 2
      %v9260 = vrot.slane %v9111, 7
      %v9261 = vrot.slane %v9260, 2
      %v9262 = vrot.slane %v9119, 7
      %v9263 = vrot.slane %v9262, 2
      %v9264 = vrot.slane %v9127, 7
      %v9265 = vrot.slane %v9264, 2
      %v9266 = vrot.slane %v9126, 7
      %v9267 = vrot.slane %v9266, 2
      %v9268 = vrot.slane %v9128, 7
      %v9269 = vrot.slane %v9268, 2
      %v9270 = vrot.slane %v9136, 7
      %v9271 = vrot.slane %v9270, 2
      %v9272 = vrot.slane %v9144, 7
      %v9273 = vrot.slane %v9272, 2
      %v9274 = vrot.slane %v9143, 7
      %v9275 = vrot.slane %v9274, 2
      %v9276 = vrot.slane %v9145, 7
      %v9277 = vrot.slane %v9276, 2
      %v9278 = vrot.slane %v9153, 7
      %v9279 = vrot.slane %v9278, 2
      %v9280 = vrot.slane %v9161, 7
      %v9281 = vrot.slane %v9280, 2
      %v9282 = vrot.slane %v9160, 7
      %v9283 = vrot.slane %v9282, 2
      %v9284 = vrot.slane %v9162, 7
      %v9285 = vrot.slane %v9284, 2
      %v9286 = vrot.slane %v9170, 7
      %v9287 = vrot.slane %v9286, 2
      %v9288 = vrot.slane %v9178, 7
      %v9289 = vrot.slane %v9288, 2
      %v9290 = vrot.slane %v9177, 7
      %v9291 = vrot.slane %v9290, 2
      %v9292 = vrot.slane %v9179, 7
      %v9293 = vrot.slane %v9292, 2
      %v9294 = vrot.slane %v9187, 7
      %v9295 = vrot.slane %v9294, 2
      %v9296 = vrot.slane %v9195, 7
      %v9297 = vrot.slane %v9296, 2
      %v9298 = vrot.slane %v9194, 7
      %v9299 = vrot.slane %v9298, 2
      %v9300 = vrot.slane %v9196, 7
      %v9301 = vrot.slane %v9300, 2
      %v9302 = vrot.slane %v9204, 7
      %v9303 = vrot.slane %v9302, 2
      %v9304 = vrot.slane %v9212, 7
      %v9305 = vrot.slane %v9304, 2
      %v9306 = vrot.slane %v9211, 7
      %v9307 = vrot.slane %v9306, 2
      %v9308 = vrot.slane %v9213, 7
      %v9309 = vrot.slane %v9308, 2
      %v9342 = vmax.f32 %v9085, %v9247
      %v9343 = vmax.f32 %v9093, %v9249
      %v9344 = vmax.f32 %v9092, %v9251
      %v9345 = vmax.f32 %v9094, %v9253
      %v9346 = vmax.f32 %v9102, %v9255
      %v9347 = vmax.f32 %v9110, %v9257
      %v9348 = vmax.f32 %v9109, %v9259
      %v9349 = vmax.f32 %v9111, %v9261
      %v9350 = vmax.f32 %v9119, %v9263
      %v9351 = vmax.f32 %v9127, %v9265
      %v9352 = vmax.f32 %v9126, %v9267
      %v9353 = vmax.f32 %v9128, %v9269
      %v9354 = vmax.f32 %v9136, %v9271
      %v9355 = vmax.f32 %v9144, %v9273
      %v9356 = vmax.f32 %v9143, %v9275
      %v9357 = vmax.f32 %v9145, %v9277
      %v9358 = vmax.f32 %v9153, %v9279
      %v9359 = vmax.f32 %v9161, %v9281
      %v9360 = vmax.f32 %v9160, %v9283
      %v9361 = vmax.f32 %v9162, %v9285
      %v9362 = vmax.f32 %v9170, %v9287
      %v9363 = vmax.f32 %v9178, %v9289
      %v9364 = vmax.f32 %v9177, %v9291
      %v9365 = vmax.f32 %v9179, %v9293
      %v9366 = vmax.f32 %v9187, %v9295
      %v9367 = vmax.f32 %v9195, %v9297
      %v9368 = vmax.f32 %v9194, %v9299
      %v9369 = vmax.f32 %v9196, %v9301
      %v9370 = vmax.f32 %v9204, %v9303
      %v9371 = vmax.f32 %v9212, %v9305
      %v9372 = vmax.f32 %v9211, %v9307
      %v9373 = vmax.f32 %v9213, %v9309
      %v9374 = vmax.f32 %v9342, %v9346
      %v9375 = vmax.f32 %v9343, %v9347
      %v9376 = vmax.f32 %v9344, %v9348
      %v9377 = vmax.f32 %v9345, %v9349
      %v9378 = vmax.f32 %v9350, %v9354
      %v9379 = vmax.f32 %v9351, %v9355
      %v9380 = vmax.f32 %v9352, %v9356
      %v9381 = vmax.f32 %v9353, %v9357
      %v9382 = vmax.f32 %v9358, %v9362
      %v9383 = vmax.f32 %v9359, %v9363
      %v9384 = vmax.f32 %v9360, %v9364
      %v9385 = vmax.f32 %v9361, %v9365
      %v9386 = vmax.f32 %v9366, %v9370
      %v9387 = vmax.f32 %v9367, %v9371
      %v9388 = vmax.f32 %v9368, %v9372
      %v9389 = vmax.f32 %v9369, %v9373
      %v9390 = vpack.c.bf16 %v9374, %v9374
      %v9391 = vpack.c.bf16 %v9375, %v9375
      %v9392 = vpack.c.bf16 %v9376, %v9376
      %v9393 = vpack.c.bf16 %v9377, %v9377
      %v9394 = vpack.c.bf16 %v9378, %v9378
      %v9395 = vpack.c.bf16 %v9379, %v9379
      %v9396 = vpack.c.bf16 %v9380, %v9380
      %v9397 = vpack.c.bf16 %v9381, %v9381
      %v9398 = vpack.c.bf16 %v9382, %v9382
      %v9399 = vpack.c.bf16 %v9383, %v9383
      %v9400 = vpack.c.bf16 %v9384, %v9384
      %v9401 = vpack.c.bf16 %v9385, %v9385
      %v9402 = vpack.c.bf16 %v9386, %v9386
      %v9403 = vpack.c.bf16 %v9387, %v9387
      %v9404 = vpack.c.bf16 %v9388, %v9388
      %v9405 = vpack.c.bf16 %v9389, %v9389
      %v9406 = vld [vmem:[%s5] sm:$0x3]
      %v9407 = vld [vmem:[%s6] sm:$0x1]
      %v9409 = vlaneseq
      %v9410 = vshrl.u32 %v9409, 7
      %v9411 = vsub.s32 0, %v9410
      %v9412 = vrot.slane %v9407, %v9411
      %v9430 = vunpack.c.l.b16 %v9390
      %v9431 = vunpack.c.l.b16 %v9391
      %v9432 = vunpack.c.l.b16 %v9392
      %v9433 = vunpack.c.l.b16 %v9393
      %v9434 = vunpack.c.l.b16 %v9394
      %v9435 = vunpack.c.l.b16 %v9395
      %v9436 = vunpack.c.l.b16 %v9396
      %v9437 = vunpack.c.l.b16 %v9397
      %v9438 = vunpack.c.l.b16 %v9398
      %v9439 = vunpack.c.l.b16 %v9399
      %v9440 = vunpack.c.l.b16 %v9400
      %v9441 = vunpack.c.l.b16 %v9401
      %v9442 = vunpack.c.l.b16 %v9402
      %v9443 = vunpack.c.l.b16 %v9403
      %v9444 = vunpack.c.l.b16 %v9404
      %v9445 = vunpack.c.l.b16 %v9405
      %v9446 = vrot.slane %v9431, 7
      %vm9447 = vcmask 1041409
      %v9448 = vsel %vm9447, %v9446, %v9430
      %v9449 = vrot.slane %v9432, 6
      %v9450 = vsel %vm7325, %v9449, %v9448
      %v9451 = vrot.slane %v9433, 5
      %v9452 = vsel %vm7328, %v9451, %v9450
      %v9453 = vrot.slane %v9434, 4
      %v9454 = vsel %vm7331, %v9453, %v9452
      %v9455 = vrot.slane %v9435, 3
      %v9456 = vsel %vm7334, %v9455, %v9454
      %v9457 = vrot.slane %v9436, 2
      %v9458 = vsel %vm7337, %v9457, %v9456
      %v9459 = vrot.slane %v9437, 1
      %v9460 = vsel %vm7340, %v9459, %v9458
      %v9461 = vrot.slane %v9439, 7
      %v9462 = vsel %vm9447, %v9461, %v9438
      %v9463 = vrot.slane %v9440, 6
      %v9464 = vsel %vm7325, %v9463, %v9462
      %v9465 = vrot.slane %v9441, 5
      %v9466 = vsel %vm7328, %v9465, %v9464
      %v9467 = vrot.slane %v9442, 4
      %v9468 = vsel %vm7331, %v9467, %v9466
      %v9469 = vrot.slane %v9443, 3
      %v9470 = vsel %vm7334, %v9469, %v9468
      %v9471 = vrot.slane %v9444, 2
      %v9472 = vsel %vm7337, %v9471, %v9470
      %v9473 = vrot.slane %v9445, 1
      %v9474 = vsel %vm7340, %v9473, %v9472
      %v9475 = vpack.c.b16 %v9474, %v9460
      %vm9476 = vcmask 31744
      %v9478 = vsel %vm9476, %v9475, 0
      %v9481 = vsel %vm1558, %v9406, 0
      %9483 = vmatprep.subr.bf16.mxu0 0
      %9484 = vmatpush1.bf16.msra.mxu0 %v9481
      %9485 = vmatprep.subr.bf16.mxu0 0
      %9486 = vmatpush1.bf16.msra.mxu0 0
      %9487 = vmatprep.subr.bf16.mxu0 0
      %9488 = vmatpush1.bf16.msra.mxu0 0
      %9489 = vmatprep.subr.bf16.mxu0 0
      %9490 = vmatpush1.bf16.msra.mxu0 0
      %9491 = vmatprep.subr.bf16.mxu0 0
      %9492 = vmatpush1.bf16.msra.mxu0 0
      %9493 = vmatprep.subr.bf16.mxu0 0
      %9494 = vmatpush1.bf16.msra.mxu0 0
      %9495 = vmatprep.subr.bf16.mxu0 0
      %9496 = vmatpush1.bf16.msra.mxu0 0
      %9497 = vmatprep.subr.bf16.mxu0 0
      %9498 = vmatpush1.bf16.msra.mxu0 0
      %9499 = vmatprep.subr.bf16.mxu0 0
      %9500 = vmatpush1.bf16.msra.mxu0 0
      %9501 = vmatprep.subr.bf16.mxu0 0
      %9502 = vmatpush1.bf16.msra.mxu0 0
      %9503 = vmatprep.subr.bf16.mxu0 0
      %9504 = vmatpush1.bf16.msra.mxu0 0
      %9505 = vmatprep.subr.bf16.mxu0 0
      %9506 = vmatpush1.bf16.msra.mxu0 0
      %9507 = vmatprep.subr.bf16.mxu0 0
      %9508 = vmatpush1.bf16.msra.mxu0 0
      %9509 = vmatprep.subr.bf16.mxu0 0
      %9510 = vmatpush1.bf16.msra.mxu0 0
      %9511 = vmatprep.subr.bf16.mxu0 0
      %9512 = vmatpush1.bf16.msra.mxu0 0
      %9513 = vmatprep.subr.bf16.mxu0 0
      %9514 = vmatpush1.bf16.msra.mxu0 0
      %9515 = vmatprep.mubr.bf16.mxu0 0
      %9516 = vmatmul.mubr.bf16.gmra.mrb[0].mxu0 %v9478
      %v9517 = vpop.f32.mrb[0].mxu0
      %v9518 = vadd.f32 %v9412, %v9517
      %v9519 = vpop.f32.mrb[0].mxu0
      %v9520 = vpop.f32.mrb[0].mxu0
      %v9521 = vadd.f32 %v9412, %v9520
      %v9522 = vpop.f32.mrb[0].mxu0
      %9523 = vdwg.mxu0
      %v9524 = vmax.f32 %v9518, 0.0
      %v9525 = vmax.f32 %v9521, 0.0
      %v9526 = vpack.c.bf16 %v9525, %v9524
      %v9527 = vld [vmem:[%s7] sm:$0xf]
      %v9528 = vld [vmem:[%s7 + $0x4] sm:$0xf]
      %v9529 = vld [vmem:[%s7 + $0x8] sm:$0xf]
      %v9530 = vld [vmem:[%s7 + $0xc] sm:$0xf]
      %v9531 = vld [vmem:[%s7 + $0x10] sm:$0xf]
      %v9532 = vld [vmem:[%s7 + $0x14] sm:$0xf]
      %v9533 = vld [vmem:[%s7 + $0x18] sm:$0xf]
      %v9534 = vld [vmem:[%s7 + $0x1c] sm:$0xf]
      %v9535 = vld [vmem:[%s8] sm:$0x1]
      %v9537 = vlaneseq
      %v9538 = vshrl.u32 %v9537, 7
      %v9539 = vsub.s32 0, %v9538
      %v9540 = vrot.slane %v9535, %v9539
      %v9550 = vunpack.c.l.b16 %v9527
      %v9551 = vunpack.c.l.b16 %v9528
      %v9552 = vunpack.c.l.b16 %v9529
      %v9553 = vunpack.c.l.b16 %v9530
      %v9554 = vunpack.c.l.b16 %v9531
      %v9555 = vunpack.c.l.b16 %v9532
      %v9556 = vunpack.c.l.b16 %v9533
      %v9557 = vunpack.c.l.b16 %v9534
      %v9558 = vpack.c.b16 %v9551, %v9550
      %v9559 = vpack.c.b16 %v9553, %v9552
      %v9560 = vpack.c.b16 %v9555, %v9554
      %v9561 = vpack.c.b16 %v9557, %v9556
      %vm9566 = vcmask 523264
      %v9568 = vsel %vm9566, %v9526, 0
      %9570 = vmatprep.subr.bf16.mxu0 0
      %9571 = vmatpush1.bf16.msra.mxu0 %v9558
      %9572 = vmatprep.subr.bf16.mxu0 0
      %9573 = vmatpush1.bf16.msra.mxu0 %v9559
      %9574 = vmatprep.subr.bf16.mxu0 0
      %9575 = vmatpush1.bf16.msra.mxu0 %v9560
      %9576 = vmatprep.subr.bf16.mxu0 0
      %9577 = vmatpush1.bf16.msra.mxu0 %v9561
      %9578 = vmatprep.subr.bf16.mxu0 0
      %9579 = vmatpush1.bf16.msra.mxu0 0
      %9580 = vmatprep.subr.bf16.mxu0 0
      %9581 = vmatpush1.bf16.msra.mxu0 0
      %9582 = vmatprep.subr.bf16.mxu0 0
      %9583 = vmatpush1.bf16.msra.mxu0 0
      %9584 = vmatprep.subr.bf16.mxu0 0
      %9585 = vmatpush1.bf16.msra.mxu0 0
      %9586 = vmatprep.subr.bf16.mxu0 0
      %9587 = vmatpush1.bf16.msra.mxu0 0
      %9588 = vmatprep.subr.bf16.mxu0 0
      %9589 = vmatpush1.bf16.msra.mxu0 0
      %9590 = vmatprep.subr.bf16.mxu0 0
      %9591 = vmatpush1.bf16.msra.mxu0 0
      %9592 = vmatprep.subr.bf16.mxu0 0
      %9593 = vmatpush1.bf16.msra.mxu0 0
      %9594 = vmatprep.subr.bf16.mxu0 0
      %9595 = vmatpush1.bf16.msra.mxu0 0
      %9596 = vmatprep.subr.bf16.mxu0 0
      %9597 = vmatpush1.bf16.msra.mxu0 0
      %9598 = vmatprep.subr.bf16.mxu0 0
      %9599 = vmatpush1.bf16.msra.mxu0 0
      %9600 = vmatprep.subr.bf16.mxu0 0
      %9601 = vmatpush1.bf16.msra.mxu0 0
      %9602 = vmatprep.mubr.bf16.mxu0 0
      %9603 = vmatmul.mubr.bf16.gmra.mrb[0].mxu0 %v9568
      %v9604 = vpop.f32.mrb[0].mxu0
      %v9605 = vadd.f32 %v9540, %v9604
      %v9606 = vpop.f32.mrb[0].mxu0
      %v9607 = vpop.f32.mrb[0].mxu0
      %v9608 = vadd.f32 %v9540, %v9607
      %v9609 = vpop.f32.mrb[0].mxu0
      %9610 = vdwg.mxu0
      %v9611 = vsub.f32 0.0, %v9605
      %v9612 = vsub.f32 0.0, %v9608
      %v9613 = vmul.f32 %v9611, 1.442695
      %v9614 = vpow.pop %v9613
      %v9615 = vmul.f32 %v9612, 1.442695
      %v9616 = vpow.pop %v9615
      %v9617 = vadd.f32 %v9614, 1.0
      %v9618 = vadd.f32 %v9616, 1.0
      %v9619 = vrcp.pop %v9617
      %v9620 = vmul.f32 1.0, %v9619
      %v9621 = vrcp.pop %v9618
      %v9622 = vmul.f32 1.0, %v9621
      %9623 = vst [vmem:[%s332] sm:$0xff] %v9620
      %9624 = vst [vmem:[%s332 + $0x8] sm:$0xff] %v9622
      %p9625 = scmp.lt.s32.totalorder %s20, 1
      %s9626 = scalar_select %p9625, %s20, 1
      %s9627 = smul.addr %s9626, 2
      %s9628 = smul.addr %s9627, 8
      %s9629 = scalar_lea.vmem %s9, %s9628
      // Predicated region
      $region57: #{conv_autoencoder_forward.1} parent=55 // pred_check
        %p9630 = pneg %p232
      $region58: #{conv_autoencoder_forward.1} parent=55 // pred_check_branch
        %9632 = sbr.rel (%p9630) target = $region60
      $region59: #{conv_autoencoder_forward.1} parent=55 // pred_region
        _
      $region60: #{conv_autoencoder_forward.1} parent=55 // pred_fallthru
        _
    $region56: #{conv_autoencoder_forward.1} parent=5 // pred_fallthru
      _
    %p9633 = scmp.le.s32.totalorder 2, %s15
    // Predicated region
    $region61: #{conv_autoencoder_forward.1} parent=5 // pred_check
      %p9634 = pneg %p9633
    $region62: #{conv_autoencoder_forward.1} parent=5 // pred_check_branch
      %9636 = sbr.rel (%p9634) target = $region64
    $region63: #{conv_autoencoder_forward.1} parent=5 // pred_region
      %s9637 = ssub.s32 %s15, 2
      // Predicated region
      $region65: #{conv_autoencoder_forward.1} parent=63 // pred_check
        %p9638 = pneg %p238
      $region66: #{conv_autoencoder_forward.1} parent=63 // pred_check_branch
        %9640 = sbr.rel (%p9638) target = $region68
      $region67: #{conv_autoencoder_forward.1} parent=63 // pred_region
        %p9641 = scmp.lt.s32.totalorder %s21, 1
        %s9642 = scalar_select %p9641, %s21, 1
        %s9643 = smul.addr %s9642, 2
        %s9644 = smul.addr %s9643, 8
        %s9645 = scalar_lea.vmem %s9, %s9644
      $region68: #{conv_autoencoder_forward.1} parent=63 // pred_fallthru
        _
    $region64: #{conv_autoencoder_forward.1} parent=5 // pred_fallthru
      _
  $region6: #{conv_autoencoder_forward.1} parent=0 // loop_footer
    %s19 = sadd.s32 1, %s15
  $region7: #{conv_autoencoder_forward.1} parent=0 // loop_footer_branch
    %14 = sbr.rel target = $region3
  $region8: #{conv_autoencoder_forward.1} parent=0 // loop_exit
    _

</llo_original>
